<compile_context>
chip_gen: v7x
topology: tpu7x:2x2x1
jax: 0.10.0
libtpu: 0.0.40
codegen_flags: <defaults>
</compile_context>

<pallas_src>
import jax
import jax.numpy as jnp
from jax.experimental import pallas as pl
from jax.experimental.pallas import tpu as pltpu

EPS = 1e-5


def _double_conv_kernel(x_ref, w1_ref, g1_ref, b1_ref, w2_ref, g2_ref, b2_ref,
                        out_ref, pad1_ref, pad2_ref):
    """Fused DoubleConv.

    x_ref   : [N, Cin, H*W]        f32   NCHW input (spatial dims pre-flattened)
    w1_ref  : [9*Cin,  Cmid]       bf16  stage-1 im2col weights (dy, dx, ci) major
    w2_ref  : [9*Cmid, Cout]       bf16  stage-2 im2col weights
    g*/b*   : [1, C]               f32   BN affine params
    out_ref : [N*Cout, H*W]        f32   lane-dense NCHW output slab
    pad1_ref: [N, H+2, W+2, Cin]   f32   VMEM scratch (zero-padded stage-1 input)
    pad2_ref: [N, H+2, W+2, Cmid]  f32   VMEM scratch (zero-padded stage-2 input)
    """
    N, HP, WP, Cin = pad1_ref.shape
    H, W = HP - 2, WP - 2
    Cmid = pad2_ref.shape[-1]
    Cout = g2_ref.shape[-1]
    M = N * H * W

    # ---- NCHW -> NHWC done in-kernel (2-D transposes on the XLU) ----
    x_nhwc = jnp.stack(
        [x_ref[n].T.reshape(H, W, Cin) for n in range(N)], axis=0)

    # ---- stage-1 zero padding directly in VMEM (no jnp.pad HBM copy) ----
    pad1_ref[...] = jnp.zeros_like(pad1_ref)
    pad1_ref[:, 1:H + 1, 1:W + 1, :] = x_nhwc

    def conv_bn_relu(pad_ref, w_ref, g_ref, b_ref, cin):
        xpad = pad_ref[...]
        # im2col: concatenate the 9 shifted taps along K -> one MXU matmul.
        taps = [xpad[:, dy:dy + H, dx:dx + W, :].reshape(M, cin)
                for dy in range(3) for dx in range(3)]
        patches = jnp.concatenate(taps, axis=-1).astype(jnp.bfloat16)  # [M, 9*cin]
        acc = jnp.dot(patches, w_ref[...],
                      preferred_element_type=jnp.float32)              # [M, cout] f32
        # BatchNorm2d (training-mode batch stats, biased variance), one f32 sweep.
        inv_cnt = 1.0 / jnp.float32(M)
        mean = jnp.sum(acc, axis=0, keepdims=True) * inv_cnt            # [1, cout]
        var = jnp.sum(acc * acc, axis=0, keepdims=True) * inv_cnt - mean * mean
        var = jnp.maximum(var, 0.0)
        scale = g_ref[...] * jax.lax.rsqrt(var + EPS)
        shift = b_ref[...] - mean * scale
        return jnp.maximum(acc * scale + shift, 0.0)                    # [M, cout] f32

    # ---- stage 1 ----
    y1 = conv_bn_relu(pad1_ref, w1_ref, g1_ref, b1_ref, Cin)

    # ---- stage-2 padding: intermediate stays in VMEM ----
    pad2_ref[...] = jnp.zeros_like(pad2_ref)
    pad2_ref[:, 1:H + 1, 1:W + 1, :] = y1.reshape(N, H, W, Cmid)

    # ---- stage 2 ----
    y2 = conv_bn_relu(pad2_ref, w2_ref, g2_ref, b2_ref, Cmid)

    # ---- lane-dense NCHW output: rows = (n, cout), minor dim = H*W ----
    for n in range(N):
        out_ref[n * Cout:(n + 1) * Cout, :] = y2[n * H * W:(n + 1) * H * W, :].T


def double_conv(x_nchw, params):
    """DoubleConv.forward: NCHW in, NCHW out (matches the PyTorch module)."""
    w1, g1, b1, w2, g2, b2 = params          # conv weights in HWIO layout
    N, Cin, H, W = x_nchw.shape
    Cmid = w1.shape[-1]
    Cout = w2.shape[-1]

    x2d = x_nchw.reshape(N, Cin, H * W)                       # free (contiguous)
    w1f = w1.reshape(9 * Cin, Cmid).astype(jnp.bfloat16)      # (dy, dx, ci) major
    w2f = w2.reshape(9 * Cmid, Cout).astype(jnp.bfloat16)

    out = pl.pallas_call(
        _double_conv_kernel,
        out_shape=jax.ShapeDtypeStruct((N * Cout, H * W), jnp.float32),
        grid=(1,),
        in_specs=[
            pl.BlockSpec((N, Cin, H * W), lambda i: (0, 0, 0)),
            pl.BlockSpec((9 * Cin, Cmid), lambda i: (0, 0)),
            pl.BlockSpec((1, Cmid), lambda i: (0, 0)),
            pl.BlockSpec((1, Cmid), lambda i: (0, 0)),
            pl.BlockSpec((9 * Cmid, Cout), lambda i: (0, 0)),
            pl.BlockSpec((1, Cout), lambda i: (0, 0)),
            pl.BlockSpec((1, Cout), lambda i: (0, 0)),
        ],
        out_specs=pl.BlockSpec((N * Cout, H * W), lambda i: (0, 0)),
        scratch_shapes=[
            pltpu.VMEM((N, H + 2, W + 2, Cin), jnp.float32),
            pltpu.VMEM((N, H + 2, W + 2, Cmid), jnp.float32),
        ],
        compiler_params=pltpu.CompilerParams(
            dimension_semantics=("arbitrary",),
            vmem_limit_bytes=32 * 1024 * 1024,
        ),
    )(x2d, w1f, g1.reshape(1, Cmid), b1.reshape(1, Cmid),
      w2f, g2.reshape(1, Cout), b2.reshape(1, Cout))

    return out.reshape(N, Cout, H, W)                         # free (contiguous)


def init_params(key, in_channels, out_channels):
    """Deterministic parameter init (shapes as in the PyTorch module)."""
    k1, k2 = jax.random.split(key)
    # PyTorch conv weight layout [Cout, Cin, kH, kW] -> HWIO [kH, kW, Cin, Cout]
    w1 = 0.1 * jax.random.normal(k1, (out_channels, in_channels, 3, 3), jnp.float32)
    w2 = 0.1 * jax.random.normal(k2, (out_channels, out_channels, 3, 3), jnp.float32)
    w1 = jnp.transpose(w1, (2, 3, 1, 0))
    w2 = jnp.transpose(w2, (2, 3, 1, 0))
    # BatchNorm2d default init: weight (gamma) = 1, bias (beta) = 0
    g1 = jnp.ones((out_channels,), jnp.float32)
    b1 = jnp.zeros((out_channels,), jnp.float32)
    g2 = jnp.ones((out_channels,), jnp.float32)
    b2 = jnp.zeros((out_channels,), jnp.float32)
    return (w1, g1, b1, w2, g2, b2)


def _reference(x_nchw, params):
    """Pure-JAX f32 reference (lax conv + training-mode BN + ReLU)."""
    w1, g1, b1, w2, g2, b2 = params
    x = jnp.transpose(x_nchw, (0, 2, 3, 1))

    def stage(x, w, g, b):
        y = jax.lax.conv_general_dilated(
            x, w, window_strides=(1, 1), padding="SAME",
            dimension_numbers=("NHWC", "HWIO", "NHWC"),
        )
        mean = jnp.mean(y, axis=(0, 1, 2), keepdims=True)
        var = jnp.mean((y - mean) ** 2, axis=(0, 1, 2), keepdims=True)
        y = (y - mean) * jax.lax.rsqrt(var + EPS) * g + b
        return jnp.maximum(y, 0.0)

    y = stage(x, w1, g1, b1)
    y = stage(y, w2, g2, b2)
    return jnp.transpose(y, (0, 3, 1, 2))


if __name__ == "__main__":
    N, CIN, COUT, H, W = 2, 4, 8, 16, 16

    key = jax.random.PRNGKey(0)
    kx, kp = jax.random.split(key)
    x = jax.random.normal(kx, (N, CIN, H, W), jnp.float32)
    params = init_params(kp, CIN, COUT)

    out = jax.block_until_ready(double_conv(x, params))
    ref = jax.block_until_ready(_reference(x, params))

    assert out.shape == (N, COUT, H, W), out.shape
    err = float(jnp.max(jnp.abs(out - ref)))
    # bf16 MXU inputs with f32 accumulation: tolerance loosened accordingly.
    assert err < 5e-2, f"mismatch vs JAX reference: max abs err = {err}"

    print("KERNEL_OK")
</pallas_src>

<mosaic_0001>
module attributes {stable_mosaic.version = 11 : i64} {
  func.func @_double_conv_kernel(%arg0: i32, %arg1: memref<2x4x256xf32, #tpu.memory_space<vmem>>, %arg2: memref<36x8xbf16, #tpu.memory_space<vmem>>, %arg3: memref<1x8xf32, #tpu.memory_space<vmem>>, %arg4: memref<1x8xf32, #tpu.memory_space<vmem>>, %arg5: memref<72x8xbf16, #tpu.memory_space<vmem>>, %arg6: memref<1x8xf32, #tpu.memory_space<vmem>>, %arg7: memref<1x8xf32, #tpu.memory_space<vmem>>, %arg8: memref<16x256xf32, #tpu.memory_space<vmem>>, %arg9: memref<2x18x18x4xf32, #tpu.memory_space<vmem>>, %arg10: memref<2x18x18x8xf32, #tpu.memory_space<vmem>>) attributes {dimension_semantics = [#tpu.dimension_semantics<arbitrary>], iteration_bounds = array<i64: 1>, scalar_prefetch = 0 : i64, scratch_operands = 2 : i64, tpu.core_type = #tpu.core_type<tc>, window_params = [{pipeline_mode = #tpu.pipeline_mode<synchronous>, transform_indices = @transform_0, window_bounds = array<i64: 2, 4, 256>}, {pipeline_mode = #tpu.pipeline_mode<synchronous>, transform_indices = @transform_1, window_bounds = array<i64: 36, 8>}, {pipeline_mode = #tpu.pipeline_mode<synchronous>, transform_indices = @transform_2, window_bounds = array<i64: 1, 8>}, {pipeline_mode = #tpu.pipeline_mode<synchronous>, transform_indices = @transform_3, window_bounds = array<i64: 1, 8>}, {pipeline_mode = #tpu.pipeline_mode<synchronous>, transform_indices = @transform_4, window_bounds = array<i64: 72, 8>}, {pipeline_mode = #tpu.pipeline_mode<synchronous>, transform_indices = @transform_5, window_bounds = array<i64: 1, 8>}, {pipeline_mode = #tpu.pipeline_mode<synchronous>, transform_indices = @transform_6, window_bounds = array<i64: 1, 8>}, {pipeline_mode = #tpu.pipeline_mode<synchronous>, transform_indices = @transform_7, window_bounds = array<i64: 16, 256>}]} {
    %c0 = arith.constant 0 : index
    %c0_0 = arith.constant 0 : index
    %c0_1 = arith.constant 0 : index
    %0 = vector.load %arg1[%c0, %c0_0, %c0_1] : memref<2x4x256xf32, #tpu.memory_space<vmem>>, vector<1x4x256xf32>
    %1 = vector.shape_cast %0 : vector<1x4x256xf32> to vector<4x256xf32>
    %2 = tpu.transpose %1, [1, 0] : vector<4x256xf32> -> vector<256x4xf32>
    %3 = vector.shape_cast %2 : vector<256x4xf32> to vector<16x16x4xf32>
    %c1 = arith.constant 1 : index
    %c0_2 = arith.constant 0 : index
    %c0_3 = arith.constant 0 : index
    %4 = vector.load %arg1[%c1, %c0_2, %c0_3] : memref<2x4x256xf32, #tpu.memory_space<vmem>>, vector<1x4x256xf32>
    %5 = vector.shape_cast %4 : vector<1x4x256xf32> to vector<4x256xf32>
    %6 = tpu.transpose %5, [1, 0] : vector<4x256xf32> -> vector<256x4xf32>
    %7 = vector.shape_cast %6 : vector<256x4xf32> to vector<16x16x4xf32>
    %8 = vector.shape_cast %3 : vector<16x16x4xf32> to vector<1x16x16x4xf32>
    %9 = vector.shape_cast %7 : vector<16x16x4xf32> to vector<1x16x16x4xf32>
    %10 = tpu.concatenate %8, %9 in 0 : vector<1x16x16x4xf32>, vector<1x16x16x4xf32> -> vector<2x16x16x4xf32>
    %cst = arith.constant 0.000000e+00 : f32
    %11 = vector.broadcast %cst : f32 to vector<2x18x18x4xf32>
    %c0_4 = arith.constant 0 : index
    %c0_5 = arith.constant 0 : index
    %c0_6 = arith.constant 0 : index
    %c0_7 = arith.constant 0 : index
    %12 = vector.load %arg9[%c0_4, %c0_5, %c0_6, %c0_7] : memref<2x18x18x4xf32, #tpu.memory_space<vmem>>, vector<2x18x18x4xf32>
    tpu.vector_store %arg9[%c0_4, %c0_5, %c0_6, %c0_7], %11 {strides = array<i32>} : memref<2x18x18x4xf32, #tpu.memory_space<vmem>>, vector<2x18x18x4xf32>,
    %c0_8 = arith.constant 0 : index
    %c1_9 = arith.constant 1 : index
    %c1_10 = arith.constant 1 : index
    %c0_11 = arith.constant 0 : index
    %13 = vector.load %arg9[%c0_8, %c1_9, %c1_10, %c0_11] : memref<2x18x18x4xf32, #tpu.memory_space<vmem>>, vector<2x16x16x4xf32>
    tpu.vector_store %arg9[%c0_8, %c1_9, %c1_10, %c0_11], %10 {strides = array<i32>} : memref<2x18x18x4xf32, #tpu.memory_space<vmem>>, vector<2x16x16x4xf32>,
    %c0_12 = arith.constant 0 : index
    %c0_13 = arith.constant 0 : index
    %c0_14 = arith.constant 0 : index
    %c0_15 = arith.constant 0 : index
    %14 = vector.load %arg9[%c0_12, %c0_13, %c0_14, %c0_15] : memref<2x18x18x4xf32, #tpu.memory_space<vmem>>, vector<2x18x18x4xf32>
    %15 = vector.extract_strided_slice %14 {offsets = [0, 0, 0, 0], sizes = [2, 16, 16, 4], strides = [1, 1, 1, 1]} : vector<2x18x18x4xf32> to vector<2x16x16x4xf32>
    %16 = vector.shape_cast %15 : vector<2x16x16x4xf32> to vector<512x4xf32>
    %17 = vector.extract_strided_slice %14 {offsets = [0, 0, 1, 0], sizes = [2, 16, 16, 4], strides = [1, 1, 1, 1]} : vector<2x18x18x4xf32> to vector<2x16x16x4xf32>
    %18 = vector.shape_cast %17 : vector<2x16x16x4xf32> to vector<512x4xf32>
    %19 = vector.extract_strided_slice %14 {offsets = [0, 0, 2, 0], sizes = [2, 16, 16, 4], strides = [1, 1, 1, 1]} : vector<2x18x18x4xf32> to vector<2x16x16x4xf32>
    %20 = vector.shape_cast %19 : vector<2x16x16x4xf32> to vector<512x4xf32>
    %21 = vector.extract_strided_slice %14 {offsets = [0, 1, 0, 0], sizes = [2, 16, 16, 4], strides = [1, 1, 1, 1]} : vector<2x18x18x4xf32> to vector<2x16x16x4xf32>
    %22 = vector.shape_cast %21 : vector<2x16x16x4xf32> to vector<512x4xf32>
    %23 = vector.extract_strided_slice %14 {offsets = [0, 1, 1, 0], sizes = [2, 16, 16, 4], strides = [1, 1, 1, 1]} : vector<2x18x18x4xf32> to vector<2x16x16x4xf32>
    %24 = vector.shape_cast %23 : vector<2x16x16x4xf32> to vector<512x4xf32>
    %25 = vector.extract_strided_slice %14 {offsets = [0, 1, 2, 0], sizes = [2, 16, 16, 4], strides = [1, 1, 1, 1]} : vector<2x18x18x4xf32> to vector<2x16x16x4xf32>
    %26 = vector.shape_cast %25 : vector<2x16x16x4xf32> to vector<512x4xf32>
    %27 = vector.extract_strided_slice %14 {offsets = [0, 2, 0, 0], sizes = [2, 16, 16, 4], strides = [1, 1, 1, 1]} : vector<2x18x18x4xf32> to vector<2x16x16x4xf32>
    %28 = vector.shape_cast %27 : vector<2x16x16x4xf32> to vector<512x4xf32>
    %29 = vector.extract_strided_slice %14 {offsets = [0, 2, 1, 0], sizes = [2, 16, 16, 4], strides = [1, 1, 1, 1]} : vector<2x18x18x4xf32> to vector<2x16x16x4xf32>
    %30 = vector.shape_cast %29 : vector<2x16x16x4xf32> to vector<512x4xf32>
    %31 = vector.extract_strided_slice %14 {offsets = [0, 2, 2, 0], sizes = [2, 16, 16, 4], strides = [1, 1, 1, 1]} : vector<2x18x18x4xf32> to vector<2x16x16x4xf32>
    %32 = vector.shape_cast %31 : vector<2x16x16x4xf32> to vector<512x4xf32>
    %33 = tpu.concatenate %16, %18, %20, %22, %24, %26, %28, %30, %32 in 1 : vector<512x4xf32>, vector<512x4xf32>, vector<512x4xf32>, vector<512x4xf32>, vector<512x4xf32>, vector<512x4xf32>, vector<512x4xf32>, vector<512x4xf32>, vector<512x4xf32> -> vector<512x36xf32>
    %34 = arith.truncf %33 : vector<512x36xf32> to vector<512x36xbf16>
    %c0_16 = arith.constant 0 : index
    %c0_17 = arith.constant 0 : index
    %35 = vector.load %arg2[%c0_16, %c0_17] : memref<36x8xbf16, #tpu.memory_space<vmem>>, vector<36x8xbf16>
    %cst_18 = arith.constant dense<0.000000e+00> : vector<512x8xf32>
    %36 = tpu.matmul %34, %35, %cst_18 {dimension_numbers = #tpu.dot_dimension_numbers<[1], [0], [0], [1], [0, 0, 1, 1], [], []>} : vector<512x36xbf16>, vector<36x8xbf16>, vector<512x8xf32> -> vector<512x8xf32>
    %cst_19 = arith.constant 1.000000e+00 : f32
    %cst_20 = arith.constant 5.120000e+02 : f32
    %37 = arith.divf %cst_19, %cst_20 : f32
    %cst_21 = arith.constant dense<0.000000e+00> : vector<8xf32>
    %38 = vector.multi_reduction <add>, %36, %cst_21 [0] : vector<512x8xf32> to vector<8xf32>
    %39 = vector.shape_cast %38 : vector<8xf32> to vector<1x8xf32>
    %40 = vector.broadcast %37 : f32 to vector<1x8xf32>
    %41 = arith.mulf %39, %40 : vector<1x8xf32>
    %42 = arith.mulf %36, %36 : vector<512x8xf32>
    %cst_22 = arith.constant dense<0.000000e+00> : vector<8xf32>
    %43 = vector.multi_reduction <add>, %42, %cst_22 [0] : vector<512x8xf32> to vector<8xf32>
    %44 = vector.shape_cast %43 : vector<8xf32> to vector<1x8xf32>
    %45 = vector.broadcast %37 : f32 to vector<1x8xf32>
    %46 = arith.mulf %44, %45 : vector<1x8xf32>
    %47 = arith.mulf %41, %41 : vector<1x8xf32>
    %48 = arith.subf %46, %47 : vector<1x8xf32>
    %cst_23 = arith.constant 0.000000e+00 : f32
    %49 = vector.broadcast %cst_23 : f32 to vector<1x8xf32>
    %50 = arith.maximumf %48, %49 : vector<1x8xf32>
    %c0_24 = arith.constant 0 : index
    %c0_25 = arith.constant 0 : index
    %51 = vector.load %arg3[%c0_24, %c0_25] : memref<1x8xf32, #tpu.memory_space<vmem>>, vector<1x8xf32>
    %cst_26 = arith.constant 9.99999974E-6 : f32
    %52 = vector.broadcast %cst_26 : f32 to vector<1x8xf32>
    %53 = arith.addf %50, %52 : vector<1x8xf32>
    %54 = math.rsqrt %53 : vector<1x8xf32>
    %55 = arith.mulf %51, %54 : vector<1x8xf32>
    %c0_27 = arith.constant 0 : index
    %c0_28 = arith.constant 0 : index
    %56 = vector.load %arg4[%c0_27, %c0_28] : memref<1x8xf32, #tpu.memory_space<vmem>>, vector<1x8xf32>
    %57 = arith.mulf %41, %55 : vector<1x8xf32>
    %58 = arith.subf %56, %57 : vector<1x8xf32>
    %59 = vector.broadcast %55 : vector<1x8xf32> to vector<512x8xf32>
    %60 = arith.mulf %36, %59 : vector<512x8xf32>
    %61 = vector.broadcast %58 : vector<1x8xf32> to vector<512x8xf32>
    %62 = arith.addf %60, %61 : vector<512x8xf32>
    %cst_29 = arith.constant 0.000000e+00 : f32
    %63 = vector.broadcast %cst_29 : f32 to vector<512x8xf32>
    %64 = arith.maximumf %62, %63 : vector<512x8xf32>
    %cst_30 = arith.constant 0.000000e+00 : f32
    %65 = vector.broadcast %cst_30 : f32 to vector<2x18x18x8xf32>
    %c0_31 = arith.constant 0 : index
    %c0_32 = arith.constant 0 : index
    %c0_33 = arith.constant 0 : index
    %c0_34 = arith.constant 0 : index
    %66 = vector.load %arg10[%c0_31, %c0_32, %c0_33, %c0_34] : memref<2x18x18x8xf32, #tpu.memory_space<vmem>>, vector<2x18x18x8xf32>
    tpu.vector_store %arg10[%c0_31, %c0_32, %c0_33, %c0_34], %65 {strides = array<i32>} : memref<2x18x18x8xf32, #tpu.memory_space<vmem>>, vector<2x18x18x8xf32>,
    %67 = vector.shape_cast %64 : vector<512x8xf32> to vector<2x16x16x8xf32>
    %c0_35 = arith.constant 0 : index
    %c1_36 = arith.constant 1 : index
    %c1_37 = arith.constant 1 : index
    %c0_38 = arith.constant 0 : index
    %68 = vector.load %arg10[%c0_35, %c1_36, %c1_37, %c0_38] : memref<2x18x18x8xf32, #tpu.memory_space<vmem>>, vector<2x16x16x8xf32>
    tpu.vector_store %arg10[%c0_35, %c1_36, %c1_37, %c0_38], %67 {strides = array<i32>} : memref<2x18x18x8xf32, #tpu.memory_space<vmem>>, vector<2x16x16x8xf32>,
    %c0_39 = arith.constant 0 : index
    %c0_40 = arith.constant 0 : index
    %c0_41 = arith.constant 0 : index
    %c0_42 = arith.constant 0 : index
    %69 = vector.load %arg10[%c0_39, %c0_40, %c0_41, %c0_42] : memref<2x18x18x8xf32, #tpu.memory_space<vmem>>, vector<2x18x18x8xf32>
    %70 = vector.extract_strided_slice %69 {offsets = [0, 0, 0, 0], sizes = [2, 16, 16, 8], strides = [1, 1, 1, 1]} : vector<2x18x18x8xf32> to vector<2x16x16x8xf32>
    %71 = vector.shape_cast %70 : vector<2x16x16x8xf32> to vector<512x8xf32>
    %72 = vector.extract_strided_slice %69 {offsets = [0, 0, 1, 0], sizes = [2, 16, 16, 8], strides = [1, 1, 1, 1]} : vector<2x18x18x8xf32> to vector<2x16x16x8xf32>
    %73 = vector.shape_cast %72 : vector<2x16x16x8xf32> to vector<512x8xf32>
    %74 = vector.extract_strided_slice %69 {offsets = [0, 0, 2, 0], sizes = [2, 16, 16, 8], strides = [1, 1, 1, 1]} : vector<2x18x18x8xf32> to vector<2x16x16x8xf32>
    %75 = vector.shape_cast %74 : vector<2x16x16x8xf32> to vector<512x8xf32>
    %76 = vector.extract_strided_slice %69 {offsets = [0, 1, 0, 0], sizes = [2, 16, 16, 8], strides = [1, 1, 1, 1]} : vector<2x18x18x8xf32> to vector<2x16x16x8xf32>
    %77 = vector.shape_cast %76 : vector<2x16x16x8xf32> to vector<512x8xf32>
    %78 = vector.extract_strided_slice %69 {offsets = [0, 1, 1, 0], sizes = [2, 16, 16, 8], strides = [1, 1, 1, 1]} : vector<2x18x18x8xf32> to vector<2x16x16x8xf32>
    %79 = vector.shape_cast %78 : vector<2x16x16x8xf32> to vector<512x8xf32>
    %80 = vector.extract_strided_slice %69 {offsets = [0, 1, 2, 0], sizes = [2, 16, 16, 8], strides = [1, 1, 1, 1]} : vector<2x18x18x8xf32> to vector<2x16x16x8xf32>
    %81 = vector.shape_cast %80 : vector<2x16x16x8xf32> to vector<512x8xf32>
    %82 = vector.extract_strided_slice %69 {offsets = [0, 2, 0, 0], sizes = [2, 16, 16, 8], strides = [1, 1, 1, 1]} : vector<2x18x18x8xf32> to vector<2x16x16x8xf32>
    %83 = vector.shape_cast %82 : vector<2x16x16x8xf32> to vector<512x8xf32>
    %84 = vector.extract_strided_slice %69 {offsets = [0, 2, 1, 0], sizes = [2, 16, 16, 8], strides = [1, 1, 1, 1]} : vector<2x18x18x8xf32> to vector<2x16x16x8xf32>
    %85 = vector.shape_cast %84 : vector<2x16x16x8xf32> to vector<512x8xf32>
    %86 = vector.extract_strided_slice %69 {offsets = [0, 2, 2, 0], sizes = [2, 16, 16, 8], strides = [1, 1, 1, 1]} : vector<2x18x18x8xf32> to vector<2x16x16x8xf32>
    %87 = vector.shape_cast %86 : vector<2x16x16x8xf32> to vector<512x8xf32>
    %88 = tpu.concatenate %71, %73, %75, %77, %79, %81, %83, %85, %87 in 1 : vector<512x8xf32>, vector<512x8xf32>, vector<512x8xf32>, vector<512x8xf32>, vector<512x8xf32>, vector<512x8xf32>, vector<512x8xf32>, vector<512x8xf32>, vector<512x8xf32> -> vector<512x72xf32>
    %89 = arith.truncf %88 : vector<512x72xf32> to vector<512x72xbf16>
    %c0_43 = arith.constant 0 : index
    %c0_44 = arith.constant 0 : index
    %90 = vector.load %arg5[%c0_43, %c0_44] : memref<72x8xbf16, #tpu.memory_space<vmem>>, vector<72x8xbf16>
    %cst_45 = arith.constant dense<0.000000e+00> : vector<512x8xf32>
    %91 = tpu.matmul %89, %90, %cst_45 {dimension_numbers = #tpu.dot_dimension_numbers<[1], [0], [0], [1], [0, 0, 1, 1], [], []>} : vector<512x72xbf16>, vector<72x8xbf16>, vector<512x8xf32> -> vector<512x8xf32>
    %cst_46 = arith.constant 1.000000e+00 : f32
    %cst_47 = arith.constant 5.120000e+02 : f32
    %92 = arith.divf %cst_46, %cst_47 : f32
    %cst_48 = arith.constant dense<0.000000e+00> : vector<8xf32>
    %93 = vector.multi_reduction <add>, %91, %cst_48 [0] : vector<512x8xf32> to vector<8xf32>
    %94 = vector.shape_cast %93 : vector<8xf32> to vector<1x8xf32>
    %95 = vector.broadcast %92 : f32 to vector<1x8xf32>
    %96 = arith.mulf %94, %95 : vector<1x8xf32>
    %97 = arith.mulf %91, %91 : vector<512x8xf32>
    %cst_49 = arith.constant dense<0.000000e+00> : vector<8xf32>
    %98 = vector.multi_reduction <add>, %97, %cst_49 [0] : vector<512x8xf32> to vector<8xf32>
    %99 = vector.shape_cast %98 : vector<8xf32> to vector<1x8xf32>
    %100 = vector.broadcast %92 : f32 to vector<1x8xf32>
    %101 = arith.mulf %99, %100 : vector<1x8xf32>
    %102 = arith.mulf %96, %96 : vector<1x8xf32>
    %103 = arith.subf %101, %102 : vector<1x8xf32>
    %cst_50 = arith.constant 0.000000e+00 : f32
    %104 = vector.broadcast %cst_50 : f32 to vector<1x8xf32>
    %105 = arith.maximumf %103, %104 : vector<1x8xf32>
    %c0_51 = arith.constant 0 : index
    %c0_52 = arith.constant 0 : index
    %106 = vector.load %arg6[%c0_51, %c0_52] : memref<1x8xf32, #tpu.memory_space<vmem>>, vector<1x8xf32>
    %cst_53 = arith.constant 9.99999974E-6 : f32
    %107 = vector.broadcast %cst_53 : f32 to vector<1x8xf32>
    %108 = arith.addf %105, %107 : vector<1x8xf32>
    %109 = math.rsqrt %108 : vector<1x8xf32>
    %110 = arith.mulf %106, %109 : vector<1x8xf32>
    %c0_54 = arith.constant 0 : index
    %c0_55 = arith.constant 0 : index
    %111 = vector.load %arg7[%c0_54, %c0_55] : memref<1x8xf32, #tpu.memory_space<vmem>>, vector<1x8xf32>
    %112 = arith.mulf %96, %110 : vector<1x8xf32>
    %113 = arith.subf %111, %112 : vector<1x8xf32>
    %114 = vector.broadcast %110 : vector<1x8xf32> to vector<512x8xf32>
    %115 = arith.mulf %91, %114 : vector<512x8xf32>
    %116 = vector.broadcast %113 : vector<1x8xf32> to vector<512x8xf32>
    %117 = arith.addf %115, %116 : vector<512x8xf32>
    %cst_56 = arith.constant 0.000000e+00 : f32
    %118 = vector.broadcast %cst_56 : f32 to vector<512x8xf32>
    %119 = arith.maximumf %117, %118 : vector<512x8xf32>
    %120 = vector.extract_strided_slice %119 {offsets = [0, 0], sizes = [256, 8], strides = [1, 1]} : vector<512x8xf32> to vector<256x8xf32>
    %121 = tpu.transpose %120, [1, 0] : vector<256x8xf32> -> vector<8x256xf32>
    %c0_57 = arith.constant 0 : index
    %c0_58 = arith.constant 0 : index
    %122 = vector.load %arg8[%c0_57, %c0_58] : memref<16x256xf32, #tpu.memory_space<vmem>>, vector<8x256xf32>
    tpu.vector_store %arg8[%c0_57, %c0_58], %121 {strides = array<i32>} : memref<16x256xf32, #tpu.memory_space<vmem>>, vector<8x256xf32>,
    %123 = vector.extract_strided_slice %119 {offsets = [256, 0], sizes = [256, 8], strides = [1, 1]} : vector<512x8xf32> to vector<256x8xf32>
    %124 = tpu.transpose %123, [1, 0] : vector<256x8xf32> -> vector<8x256xf32>
    %c8 = arith.constant 8 : index
    %c0_59 = arith.constant 0 : index
    %125 = vector.load %arg8[%c8, %c0_59] : memref<16x256xf32, #tpu.memory_space<vmem>>, vector<8x256xf32>
    tpu.vector_store %arg8[%c8, %c0_59], %124 {strides = array<i32>} : memref<16x256xf32, #tpu.memory_space<vmem>>, vector<8x256xf32>,
    return
  }
  func.func @transform_0(%arg0: i32) -> (i32, i32, i32) {
    %c0_i32 = arith.constant 0 : i32
    %c0_i32_0 = arith.constant 0 : i32
    %c0_i32_1 = arith.constant 0 : i32
    %c0_i32_2 = arith.constant 0 : i32
    return %c0_i32, %c0_i32_0, %c0_i32_1 : i32, i32, i32
  }
  func.func @transform_1(%arg0: i32) -> (i32, i32) {
    %c0_i32 = arith.constant 0 : i32
    %c0_i32_0 = arith.constant 0 : i32
    %c0_i32_1 = arith.constant 0 : i32
    return %c0_i32, %c0_i32_0 : i32, i32
  }
  func.func @transform_2(%arg0: i32) -> (i32, i32) {
    %c0_i32 = arith.constant 0 : i32
    %c0_i32_0 = arith.constant 0 : i32
    %c0_i32_1 = arith.constant 0 : i32
    return %c0_i32, %c0_i32_0 : i32, i32
  }
  func.func @transform_3(%arg0: i32) -> (i32, i32) {
    %c0_i32 = arith.constant 0 : i32
    %c0_i32_0 = arith.constant 0 : i32
    %c0_i32_1 = arith.constant 0 : i32
    return %c0_i32, %c0_i32_0 : i32, i32
  }
  func.func @transform_4(%arg0: i32) -> (i32, i32) {
    %c0_i32 = arith.constant 0 : i32
    %c0_i32_0 = arith.constant 0 : i32
    %c0_i32_1 = arith.constant 0 : i32
    return %c0_i32, %c0_i32_0 : i32, i32
  }
  func.func @transform_5(%arg0: i32) -> (i32, i32) {
    %c0_i32 = arith.constant 0 : i32
    %c0_i32_0 = arith.constant 0 : i32
    %c0_i32_1 = arith.constant 0 : i32
    return %c0_i32, %c0_i32_0 : i32, i32
  }
  func.func @transform_6(%arg0: i32) -> (i32, i32) {
    %c0_i32 = arith.constant 0 : i32
    %c0_i32_0 = arith.constant 0 : i32
    %c0_i32_1 = arith.constant 0 : i32
    return %c0_i32, %c0_i32_0 : i32, i32
  }
  func.func @transform_7(%arg0: i32) -> (i32, i32) {
    %c0_i32 = arith.constant 0 : i32
    %c0_i32_0 = arith.constant 0 : i32
    %c0_i32_1 = arith.constant 0 : i32
    return %c0_i32, %c0_i32_0 : i32, i32
  }
}

</mosaic_0001>

<llo_original>
// kernel: tpu_custom_call.1
$region0: #{tpu_custom_call.1}
  #allocation0 [shape = 'u32[]', space=smem, size = 0x4, offset = 0x4, fixed_abs, tag = 'smem constant byte address 0x4 - core index']
  #allocation1 [shape = 'u32[144,128]{1,0:T(1,128)}', space=vmem, size = 0x12000, scoped, tag = 'internal scratch']
  #allocation2 [shape = 'f32[2,18,18,4]{3,2,1,0:T(8,128)}', space=vmem, size = 0x6c000, scoped, tag = 'scratch operand']
  #allocation3 [shape = 'f32[2,18,18,8]{3,2,1,0:T(8,128)}', space=vmem, size = 0x6c000, scoped, tag = 'scratch operand']
  %s0 = inlined_call_operand.vmem [shape: f32[2,4,256], index: 0, kind: input, shape index: {}]
  %s1 = inlined_call_operand.vmem [shape: bf16[36,8], index: 1, kind: input, shape index: {}]
  %s2 = inlined_call_operand.vmem [shape: f32[1,8], index: 2, kind: input, shape index: {}]
  %s3 = inlined_call_operand.vmem [shape: f32[1,8], index: 3, kind: input, shape index: {}]
  %s4 = inlined_call_operand.vmem [shape: bf16[72,8], index: 4, kind: input, shape index: {}]
  %s5 = inlined_call_operand.vmem [shape: f32[1,8], index: 5, kind: input, shape index: {}]
  %s6 = inlined_call_operand.vmem [shape: f32[1,8], index: 6, kind: input, shape index: {}]
  %s7 = inlined_call_operand.hbm [shape: f32[16,256], index: 7, kind: output, shape index: {}]
  %s8 = sld [smem:[#allocation0]]
  $region38: #{tpu_custom_call.1} parent=0
    _
  %s10 = ssub.s32 1, %s8
  %s11 = scalar_select 0, %s10, %s8
  $region1: #{tpu_custom_call.1} parent=0
    #allocation4 [shape = 'u8[16384]{0}', space=vmem, size = 0x4000, scoped, tag = 'output window, operand 0, single buffered']
    #allocation5 [shape = 's32[1]{0}', space=sflag, size = 0x4, scoped, tag = 'scoped memory for tpu_custom_call.1']
    %12 = vsyncpa [#allocation5], 0
    // Predicated region
    $region2: #{tpu_custom_call.1} parent=1 // pred_check
      _
    $region3: #{tpu_custom_call.1} parent=1 // pred_check_branch
      %14 = sbr.rel (0) target = $region5
    $region4: #{tpu_custom_call.1} parent=1 // pred_region
      _
    $region5: #{tpu_custom_call.1} parent=1 // pred_fallthru
      _
    // Predicated region
    $region6: #{tpu_custom_call.1} parent=1 // pred_check
      _
    $region7: #{tpu_custom_call.1} parent=1 // pred_check_branch
      %16 = sbr.rel (0) target = $region9
    $region8: #{tpu_custom_call.1} parent=1 // pred_region
      _
    $region9: #{tpu_custom_call.1} parent=1 // pred_fallthru
      _
    // Predicated region
    $region10: #{tpu_custom_call.1} parent=1 // pred_check
      _
    $region11: #{tpu_custom_call.1} parent=1 // pred_check_branch
      %18 = sbr.rel (0) target = $region13
    $region12: #{tpu_custom_call.1} parent=1 // pred_region
      _
    $region13: #{tpu_custom_call.1} parent=1 // pred_fallthru
      _
    // Predicated region
    $region14: #{tpu_custom_call.1} parent=1 // pred_check
      _
    $region15: #{tpu_custom_call.1} parent=1 // pred_check_branch
      %20 = sbr.rel (0) target = $region17
    $region16: #{tpu_custom_call.1} parent=1 // pred_region
      _
    $region17: #{tpu_custom_call.1} parent=1 // pred_fallthru
      _
    // Predicated region
    $region18: #{tpu_custom_call.1} parent=1 // pred_check
      _
    $region19: #{tpu_custom_call.1} parent=1 // pred_check_branch
      %22 = sbr.rel (0) target = $region21
    $region20: #{tpu_custom_call.1} parent=1 // pred_region
      _
    $region21: #{tpu_custom_call.1} parent=1 // pred_fallthru
      _
    // Predicated region
    $region22: #{tpu_custom_call.1} parent=1 // pred_check
      _
    $region23: #{tpu_custom_call.1} parent=1 // pred_check_branch
      %24 = sbr.rel (0) target = $region25
    $region24: #{tpu_custom_call.1} parent=1 // pred_region
      _
    $region25: #{tpu_custom_call.1} parent=1 // pred_fallthru
      _
    // Predicated region
    $region26: #{tpu_custom_call.1} parent=1 // pred_check
      _
    $region27: #{tpu_custom_call.1} parent=1 // pred_check_branch
      %26 = sbr.rel (0) target = $region29
    $region28: #{tpu_custom_call.1} parent=1 // pred_region
      _
    $region29: #{tpu_custom_call.1} parent=1 // pred_fallthru
      _
    %v28 = vld [vmem:[%s0] sm:$0xff]
    %v30 = vcombine.high %v28, %v28
    %32 = vxpose.xlu0.b32.start [1/16] %v28, 128
    %33 = vxpose.xlu0.b32.cont [2/16] 0.0, 128
    %34 = vxpose.xlu0.b32.cont [3/16] 0.0, 128
    %35 = vxpose.xlu0.b32.cont [4/16] 0.0, 128
    %36 = vxpose.xlu0.b32.cont [5/16] 0.0, 128
    %37 = vxpose.xlu0.b32.cont [6/16] 0.0, 128
    %38 = vxpose.xlu0.b32.cont [7/16] 0.0, 128
    %39 = vxpose.xlu0.b32.cont [8/16] 0.0, 128
    %40 = vxpose.xlu0.b32.cont [9/16] 0.0, 128
    %41 = vxpose.xlu0.b32.cont [10/16] 0.0, 128
    %42 = vxpose.xlu0.b32.cont [11/16] 0.0, 128
    %43 = vxpose.xlu0.b32.cont [12/16] 0.0, 128
    %44 = vxpose.xlu0.b32.cont [13/16] 0.0, 128
    %45 = vxpose.xlu0.b32.cont [14/16] 0.0, 128
    %46 = vxpose.xlu0.b32.cont [15/16] 0.0, 128
    %47 = vxpose.xlu0.b32.end [16/16] 0.0, 128
    %v48 = vpop.trf.xlu0
    %v49 = vpop.trf.xlu0
    %v50 = vpop.trf.xlu0
    %v51 = vpop.trf.xlu0
    %v52 = vpop.trf.xlu0
    %v53 = vpop.trf.xlu0
    %v54 = vpop.trf.xlu0
    %v55 = vpop.trf.xlu0
    %v56 = vpop.trf.xlu0
    %v57 = vpop.trf.xlu0
    %v58 = vpop.trf.xlu0
    %v59 = vpop.trf.xlu0
    %v60 = vpop.trf.xlu0
    %v61 = vpop.trf.xlu0
    %v62 = vpop.trf.xlu0
    %v63 = vpop.trf.xlu0
    %64 = vxpose.xlu0.b32.start [1/16] %v30, 128
    %65 = vxpose.xlu0.b32.cont [2/16] 0.0, 128
    %66 = vxpose.xlu0.b32.cont [3/16] 0.0, 128
    %67 = vxpose.xlu0.b32.cont [4/16] 0.0, 128
    %68 = vxpose.xlu0.b32.cont [5/16] 0.0, 128
    %69 = vxpose.xlu0.b32.cont [6/16] 0.0, 128
    %70 = vxpose.xlu0.b32.cont [7/16] 0.0, 128
    %71 = vxpose.xlu0.b32.cont [8/16] 0.0, 128
    %72 = vxpose.xlu0.b32.cont [9/16] 0.0, 128
    %73 = vxpose.xlu0.b32.cont [10/16] 0.0, 128
    %74 = vxpose.xlu0.b32.cont [11/16] 0.0, 128
    %75 = vxpose.xlu0.b32.cont [12/16] 0.0, 128
    %76 = vxpose.xlu0.b32.cont [13/16] 0.0, 128
    %77 = vxpose.xlu0.b32.cont [14/16] 0.0, 128
    %78 = vxpose.xlu0.b32.cont [15/16] 0.0, 128
    %79 = vxpose.xlu0.b32.end [16/16] 0.0, 128
    %v80 = vpop.trf.xlu0
    %v81 = vpop.trf.xlu0
    %v82 = vpop.trf.xlu0
    %v83 = vpop.trf.xlu0
    %v84 = vpop.trf.xlu0
    %v85 = vpop.trf.xlu0
    %v86 = vpop.trf.xlu0
    %v87 = vpop.trf.xlu0
    %v88 = vpop.trf.xlu0
    %v89 = vpop.trf.xlu0
    %v90 = vpop.trf.xlu0
    %v91 = vpop.trf.xlu0
    %v92 = vpop.trf.xlu0
    %v93 = vpop.trf.xlu0
    %v94 = vpop.trf.xlu0
    %v95 = vpop.trf.xlu0
    %s96 = scalar_lea.vmem %s0, 8
    %v97 = vld [vmem:[%s96] sm:$0xff]
    %v99 = vcombine.high %v97, %v97
    %101 = vxpose.xlu0.b32.start [1/16] %v97, 128
    %102 = vxpose.xlu0.b32.cont [2/16] 0.0, 128
    %103 = vxpose.xlu0.b32.cont [3/16] 0.0, 128
    %104 = vxpose.xlu0.b32.cont [4/16] 0.0, 128
    %105 = vxpose.xlu0.b32.cont [5/16] 0.0, 128
    %106 = vxpose.xlu0.b32.cont [6/16] 0.0, 128
    %107 = vxpose.xlu0.b32.cont [7/16] 0.0, 128
    %108 = vxpose.xlu0.b32.cont [8/16] 0.0, 128
    %109 = vxpose.xlu0.b32.cont [9/16] 0.0, 128
    %110 = vxpose.xlu0.b32.cont [10/16] 0.0, 128
    %111 = vxpose.xlu0.b32.cont [11/16] 0.0, 128
    %112 = vxpose.xlu0.b32.cont [12/16] 0.0, 128
    %113 = vxpose.xlu0.b32.cont [13/16] 0.0, 128
    %114 = vxpose.xlu0.b32.cont [14/16] 0.0, 128
    %115 = vxpose.xlu0.b32.cont [15/16] 0.0, 128
    %116 = vxpose.xlu0.b32.end [16/16] 0.0, 128
    %v117 = vpop.trf.xlu0
    %v118 = vpop.trf.xlu0
    %v119 = vpop.trf.xlu0
    %v120 = vpop.trf.xlu0
    %v121 = vpop.trf.xlu0
    %v122 = vpop.trf.xlu0
    %v123 = vpop.trf.xlu0
    %v124 = vpop.trf.xlu0
    %v125 = vpop.trf.xlu0
    %v126 = vpop.trf.xlu0
    %v127 = vpop.trf.xlu0
    %v128 = vpop.trf.xlu0
    %v129 = vpop.trf.xlu0
    %v130 = vpop.trf.xlu0
    %v131 = vpop.trf.xlu0
    %v132 = vpop.trf.xlu0
    %133 = vxpose.xlu0.b32.start [1/16] %v99, 128
    %134 = vxpose.xlu0.b32.cont [2/16] 0.0, 128
    %135 = vxpose.xlu0.b32.cont [3/16] 0.0, 128
    %136 = vxpose.xlu0.b32.cont [4/16] 0.0, 128
    %137 = vxpose.xlu0.b32.cont [5/16] 0.0, 128
    %138 = vxpose.xlu0.b32.cont [6/16] 0.0, 128
    %139 = vxpose.xlu0.b32.cont [7/16] 0.0, 128
    %140 = vxpose.xlu0.b32.cont [8/16] 0.0, 128
    %141 = vxpose.xlu0.b32.cont [9/16] 0.0, 128
    %142 = vxpose.xlu0.b32.cont [10/16] 0.0, 128
    %143 = vxpose.xlu0.b32.cont [11/16] 0.0, 128
    %144 = vxpose.xlu0.b32.cont [12/16] 0.0, 128
    %145 = vxpose.xlu0.b32.cont [13/16] 0.0, 128
    %146 = vxpose.xlu0.b32.cont [14/16] 0.0, 128
    %147 = vxpose.xlu0.b32.cont [15/16] 0.0, 128
    %148 = vxpose.xlu0.b32.end [16/16] 0.0, 128
    %v149 = vpop.trf.xlu0
    %v150 = vpop.trf.xlu0
    %v151 = vpop.trf.xlu0
    %v152 = vpop.trf.xlu0
    %v153 = vpop.trf.xlu0
    %v154 = vpop.trf.xlu0
    %v155 = vpop.trf.xlu0
    %v156 = vpop.trf.xlu0
    %v157 = vpop.trf.xlu0
    %v158 = vpop.trf.xlu0
    %v159 = vpop.trf.xlu0
    %v160 = vpop.trf.xlu0
    %v161 = vpop.trf.xlu0
    %v162 = vpop.trf.xlu0
    %v163 = vpop.trf.xlu0
    %v164 = vpop.trf.xlu0
    %vm165 = vcmask 31744
    %166 = vst.msk [vmem:[#allocation2] sm:$0xff] %vm165, 0.0
    %167 = vst.msk [vmem:[#allocation2 + $0x8] sm:$0xff] %vm165, 0.0
    %vm168 = vcmask 25600
    %169 = vst.msk [vmem:[#allocation2 + $0x10] sm:$0x3] %vm168, 0.0
    %170 = vst.msk [vmem:[#allocation2 + $0x18] sm:$0xff] %vm165, 0.0
    %171 = vst.msk [vmem:[#allocation2 + $0x20] sm:$0xff] %vm165, 0.0
    %172 = vst.msk [vmem:[#allocation2 + $0x28] sm:$0x3] %vm168, 0.0
    %173 = vst.msk [vmem:[#allocation2 + $0x30] sm:$0xff] %vm165, 0.0
    %174 = vst.msk [vmem:[#allocation2 + $0x38] sm:$0xff] %vm165, 0.0
    %175 = vst.msk [vmem:[#allocation2 + $0x40] sm:$0x3] %vm168, 0.0
    %176 = vst.msk [vmem:[#allocation2 + $0x48] sm:$0xff] %vm165, 0.0
    %177 = vst.msk [vmem:[#allocation2 + $0x50] sm:$0xff] %vm165, 0.0
    %178 = vst.msk [vmem:[#allocation2 + $0x58] sm:$0x3] %vm168, 0.0
    %179 = vst.msk [vmem:[#allocation2 + $0x60] sm:$0xff] %vm165, 0.0
    %180 = vst.msk [vmem:[#allocation2 + $0x68] sm:$0xff] %vm165, 0.0
    %181 = vst.msk [vmem:[#allocation2 + $0x70] sm:$0x3] %vm168, 0.0
    %182 = vst.msk [vmem:[#allocation2 + $0x78] sm:$0xff] %vm165, 0.0
    %183 = vst.msk [vmem:[#allocation2 + $0x80] sm:$0xff] %vm165, 0.0
    %184 = vst.msk [vmem:[#allocation2 + $0x88] sm:$0x3] %vm168, 0.0
    %185 = vst.msk [vmem:[#allocation2 + $0x90] sm:$0xff] %vm165, 0.0
    %186 = vst.msk [vmem:[#allocation2 + $0x98] sm:$0xff] %vm165, 0.0
    %187 = vst.msk [vmem:[#allocation2 + $0xa0] sm:$0x3] %vm168, 0.0
    %188 = vst.msk [vmem:[#allocation2 + $0xa8] sm:$0xff] %vm165, 0.0
    %189 = vst.msk [vmem:[#allocation2 + $0xb0] sm:$0xff] %vm165, 0.0
    %190 = vst.msk [vmem:[#allocation2 + $0xb8] sm:$0x3] %vm168, 0.0
    %191 = vst.msk [vmem:[#allocation2 + $0xc0] sm:$0xff] %vm165, 0.0
    %192 = vst.msk [vmem:[#allocation2 + $0xc8] sm:$0xff] %vm165, 0.0
    %193 = vst.msk [vmem:[#allocation2 + $0xd0] sm:$0x3] %vm168, 0.0
    %194 = vst.msk [vmem:[#allocation2 + $0xd8] sm:$0xff] %vm165, 0.0
    %195 = vst.msk [vmem:[#allocation2 + $0xe0] sm:$0xff] %vm165, 0.0
    %196 = vst.msk [vmem:[#allocation2 + $0xe8] sm:$0x3] %vm168, 0.0
    %197 = vst.msk [vmem:[#allocation2 + $0xf0] sm:$0xff] %vm165, 0.0
    %198 = vst.msk [vmem:[#allocation2 + $0xf8] sm:$0xff] %vm165, 0.0
    %199 = vst.msk [vmem:[#allocation2 + $0x100] sm:$0x3] %vm168, 0.0
    %200 = vst.msk [vmem:[#allocation2 + $0x108] sm:$0xff] %vm165, 0.0
    %201 = vst.msk [vmem:[#allocation2 + $0x110] sm:$0xff] %vm165, 0.0
    %202 = vst.msk [vmem:[#allocation2 + $0x118] sm:$0x3] %vm168, 0.0
    %203 = vst.msk [vmem:[#allocation2 + $0x120] sm:$0xff] %vm165, 0.0
    %204 = vst.msk [vmem:[#allocation2 + $0x128] sm:$0xff] %vm165, 0.0
    %205 = vst.msk [vmem:[#allocation2 + $0x130] sm:$0x3] %vm168, 0.0
    %206 = vst.msk [vmem:[#allocation2 + $0x138] sm:$0xff] %vm165, 0.0
    %207 = vst.msk [vmem:[#allocation2 + $0x140] sm:$0xff] %vm165, 0.0
    %208 = vst.msk [vmem:[#allocation2 + $0x148] sm:$0x3] %vm168, 0.0
    %209 = vst.msk [vmem:[#allocation2 + $0x150] sm:$0xff] %vm165, 0.0
    %210 = vst.msk [vmem:[#allocation2 + $0x158] sm:$0xff] %vm165, 0.0
    %211 = vst.msk [vmem:[#allocation2 + $0x160] sm:$0x3] %vm168, 0.0
    %212 = vst.msk [vmem:[#allocation2 + $0x168] sm:$0xff] %vm165, 0.0
    %213 = vst.msk [vmem:[#allocation2 + $0x170] sm:$0xff] %vm165, 0.0
    %214 = vst.msk [vmem:[#allocation2 + $0x178] sm:$0x3] %vm168, 0.0
    %215 = vst.msk [vmem:[#allocation2 + $0x180] sm:$0xff] %vm165, 0.0
    %216 = vst.msk [vmem:[#allocation2 + $0x188] sm:$0xff] %vm165, 0.0
    %217 = vst.msk [vmem:[#allocation2 + $0x190] sm:$0x3] %vm168, 0.0
    %218 = vst.msk [vmem:[#allocation2 + $0x198] sm:$0xff] %vm165, 0.0
    %219 = vst.msk [vmem:[#allocation2 + $0x1a0] sm:$0xff] %vm165, 0.0
    %220 = vst.msk [vmem:[#allocation2 + $0x1a8] sm:$0x3] %vm168, 0.0
    %221 = vst.msk [vmem:[#allocation2 + $0x1b0] sm:$0xff] %vm165, 0.0
    %222 = vst.msk [vmem:[#allocation2 + $0x1b8] sm:$0xff] %vm165, 0.0
    %223 = vst.msk [vmem:[#allocation2 + $0x1c0] sm:$0x3] %vm168, 0.0
    %224 = vst.msk [vmem:[#allocation2 + $0x1c8] sm:$0xff] %vm165, 0.0
    %225 = vst.msk [vmem:[#allocation2 + $0x1d0] sm:$0xff] %vm165, 0.0
    %226 = vst.msk [vmem:[#allocation2 + $0x1d8] sm:$0x3] %vm168, 0.0
    %227 = vst.msk [vmem:[#allocation2 + $0x1e0] sm:$0xff] %vm165, 0.0
    %228 = vst.msk [vmem:[#allocation2 + $0x1e8] sm:$0xff] %vm165, 0.0
    %229 = vst.msk [vmem:[#allocation2 + $0x1f0] sm:$0x3] %vm168, 0.0
    %230 = vst.msk [vmem:[#allocation2 + $0x1f8] sm:$0xff] %vm165, 0.0
    %231 = vst.msk [vmem:[#allocation2 + $0x200] sm:$0xff] %vm165, 0.0
    %232 = vst.msk [vmem:[#allocation2 + $0x208] sm:$0x3] %vm168, 0.0
    %233 = vst.msk [vmem:[#allocation2 + $0x210] sm:$0xff] %vm165, 0.0
    %234 = vst.msk [vmem:[#allocation2 + $0x218] sm:$0xff] %vm165, 0.0
    %235 = vst.msk [vmem:[#allocation2 + $0x220] sm:$0x3] %vm168, 0.0
    %236 = vst.msk [vmem:[#allocation2 + $0x228] sm:$0xff] %vm165, 0.0
    %237 = vst.msk [vmem:[#allocation2 + $0x230] sm:$0xff] %vm165, 0.0
    %238 = vst.msk [vmem:[#allocation2 + $0x238] sm:$0x3] %vm168, 0.0
    %239 = vst.msk [vmem:[#allocation2 + $0x240] sm:$0xff] %vm165, 0.0
    %240 = vst.msk [vmem:[#allocation2 + $0x248] sm:$0xff] %vm165, 0.0
    %241 = vst.msk [vmem:[#allocation2 + $0x250] sm:$0x3] %vm168, 0.0
    %242 = vst.msk [vmem:[#allocation2 + $0x258] sm:$0xff] %vm165, 0.0
    %243 = vst.msk [vmem:[#allocation2 + $0x260] sm:$0xff] %vm165, 0.0
    %244 = vst.msk [vmem:[#allocation2 + $0x268] sm:$0x3] %vm168, 0.0
    %245 = vst.msk [vmem:[#allocation2 + $0x270] sm:$0xff] %vm165, 0.0
    %246 = vst.msk [vmem:[#allocation2 + $0x278] sm:$0xff] %vm165, 0.0
    %247 = vst.msk [vmem:[#allocation2 + $0x280] sm:$0x3] %vm168, 0.0
    %248 = vst.msk [vmem:[#allocation2 + $0x288] sm:$0xff] %vm165, 0.0
    %249 = vst.msk [vmem:[#allocation2 + $0x290] sm:$0xff] %vm165, 0.0
    %250 = vst.msk [vmem:[#allocation2 + $0x298] sm:$0x3] %vm168, 0.0
    %251 = vst.msk [vmem:[#allocation2 + $0x2a0] sm:$0xff] %vm165, 0.0
    %252 = vst.msk [vmem:[#allocation2 + $0x2a8] sm:$0xff] %vm165, 0.0
    %253 = vst.msk [vmem:[#allocation2 + $0x2b0] sm:$0x3] %vm168, 0.0
    %254 = vst.msk [vmem:[#allocation2 + $0x2b8] sm:$0xff] %vm165, 0.0
    %255 = vst.msk [vmem:[#allocation2 + $0x2c0] sm:$0xff] %vm165, 0.0
    %256 = vst.msk [vmem:[#allocation2 + $0x2c8] sm:$0x3] %vm168, 0.0
    %257 = vst.msk [vmem:[#allocation2 + $0x2d0] sm:$0xff] %vm165, 0.0
    %258 = vst.msk [vmem:[#allocation2 + $0x2d8] sm:$0xff] %vm165, 0.0
    %259 = vst.msk [vmem:[#allocation2 + $0x2e0] sm:$0x3] %vm168, 0.0
    %260 = vst.msk [vmem:[#allocation2 + $0x2e8] sm:$0xff] %vm165, 0.0
    %261 = vst.msk [vmem:[#allocation2 + $0x2f0] sm:$0xff] %vm165, 0.0
    %262 = vst.msk [vmem:[#allocation2 + $0x2f8] sm:$0x3] %vm168, 0.0
    %263 = vst.msk [vmem:[#allocation2 + $0x300] sm:$0xff] %vm165, 0.0
    %264 = vst.msk [vmem:[#allocation2 + $0x308] sm:$0xff] %vm165, 0.0
    %265 = vst.msk [vmem:[#allocation2 + $0x310] sm:$0x3] %vm168, 0.0
    %266 = vst.msk [vmem:[#allocation2 + $0x318] sm:$0xff] %vm165, 0.0
    %267 = vst.msk [vmem:[#allocation2 + $0x320] sm:$0xff] %vm165, 0.0
    %268 = vst.msk [vmem:[#allocation2 + $0x328] sm:$0x3] %vm168, 0.0
    %269 = vst.msk [vmem:[#allocation2 + $0x330] sm:$0xff] %vm165, 0.0
    %270 = vst.msk [vmem:[#allocation2 + $0x338] sm:$0xff] %vm165, 0.0
    %271 = vst.msk [vmem:[#allocation2 + $0x340] sm:$0x3] %vm168, 0.0
    %272 = vst.msk [vmem:[#allocation2 + $0x348] sm:$0xff] %vm165, 0.0
    %273 = vst.msk [vmem:[#allocation2 + $0x350] sm:$0xff] %vm165, 0.0
    %274 = vst.msk [vmem:[#allocation2 + $0x358] sm:$0x3] %vm168, 0.0
    %s275 = scalar_lea.vmem [#allocation2], 24
    %276 = vst.msk [vmem:[%s275 + $0x1] sm:$0xff] %vm165, %v48
    %277 = vst.msk [vmem:[%s275 + $0x9] sm:$0xff] %vm165, %v49
    %278 = vst.msk [vmem:[%s275 + $0x19] sm:$0xff] %vm165, %v50
    %279 = vst.msk [vmem:[%s275 + $0x21] sm:$0xff] %vm165, %v51
    %280 = vst.msk [vmem:[%s275 + $0x31] sm:$0xff] %vm165, %v52
    %281 = vst.msk [vmem:[%s275 + $0x39] sm:$0xff] %vm165, %v53
    %282 = vst.msk [vmem:[%s275 + $0x49] sm:$0xff] %vm165, %v54
    %283 = vst.msk [vmem:[%s275 + $0x51] sm:$0xff] %vm165, %v55
    %284 = vst.msk [vmem:[%s275 + $0x61] sm:$0xff] %vm165, %v56
    %285 = vst.msk [vmem:[%s275 + $0x69] sm:$0xff] %vm165, %v57
    %286 = vst.msk [vmem:[%s275 + $0x79] sm:$0xff] %vm165, %v58
    %287 = vst.msk [vmem:[%s275 + $0x81] sm:$0xff] %vm165, %v59
    %288 = vst.msk [vmem:[%s275 + $0x91] sm:$0xff] %vm165, %v60
    %289 = vst.msk [vmem:[%s275 + $0x99] sm:$0xff] %vm165, %v61
    %290 = vst.msk [vmem:[%s275 + $0xa9] sm:$0xff] %vm165, %v62
    %291 = vst.msk [vmem:[%s275 + $0xb1] sm:$0xff] %vm165, %v63
    %292 = vst.msk [vmem:[%s275 + $0xc1] sm:$0xff] %vm165, %v80
    %293 = vst.msk [vmem:[%s275 + $0xc9] sm:$0xff] %vm165, %v81
    %294 = vst.msk [vmem:[%s275 + $0xd9] sm:$0xff] %vm165, %v82
    %295 = vst.msk [vmem:[%s275 + $0xe1] sm:$0xff] %vm165, %v83
    %296 = vst.msk [vmem:[%s275 + $0xf1] sm:$0xff] %vm165, %v84
    %297 = vst.msk [vmem:[%s275 + $0xf9] sm:$0xff] %vm165, %v85
    %298 = vst.msk [vmem:[%s275 + $0x109] sm:$0xff] %vm165, %v86
    %299 = vst.msk [vmem:[%s275 + $0x111] sm:$0xff] %vm165, %v87
    %300 = vst.msk [vmem:[%s275 + $0x121] sm:$0xff] %vm165, %v88
    %301 = vst.msk [vmem:[%s275 + $0x129] sm:$0xff] %vm165, %v89
    %302 = vst.msk [vmem:[%s275 + $0x139] sm:$0xff] %vm165, %v90
    %303 = vst.msk [vmem:[%s275 + $0x141] sm:$0xff] %vm165, %v91
    %304 = vst.msk [vmem:[%s275 + $0x151] sm:$0xff] %vm165, %v92
    %305 = vst.msk [vmem:[%s275 + $0x159] sm:$0xff] %vm165, %v93
    %306 = vst.msk [vmem:[%s275 + $0x169] sm:$0xff] %vm165, %v94
    %307 = vst.msk [vmem:[%s275 + $0x171] sm:$0xff] %vm165, %v95
    %308 = vst.msk [vmem:[%s275 + $0x1b1] sm:$0xff] %vm165, %v117
    %309 = vst.msk [vmem:[%s275 + $0x1b9] sm:$0xff] %vm165, %v118
    %310 = vst.msk [vmem:[%s275 + $0x1c9] sm:$0xff] %vm165, %v119
    %311 = vst.msk [vmem:[%s275 + $0x1d1] sm:$0xff] %vm165, %v120
    %312 = vst.msk [vmem:[%s275 + $0x1e1] sm:$0xff] %vm165, %v121
    %313 = vst.msk [vmem:[%s275 + $0x1e9] sm:$0xff] %vm165, %v122
    %314 = vst.msk [vmem:[%s275 + $0x1f9] sm:$0xff] %vm165, %v123
    %315 = vst.msk [vmem:[%s275 + $0x201] sm:$0xff] %vm165, %v124
    %316 = vst.msk [vmem:[%s275 + $0x211] sm:$0xff] %vm165, %v125
    %317 = vst.msk [vmem:[%s275 + $0x219] sm:$0xff] %vm165, %v126
    %318 = vst.msk [vmem:[%s275 + $0x229] sm:$0xff] %vm165, %v127
    %319 = vst.msk [vmem:[%s275 + $0x231] sm:$0xff] %vm165, %v128
    %320 = vst.msk [vmem:[%s275 + $0x241] sm:$0xff] %vm165, %v129
    %321 = vst.msk [vmem:[%s275 + $0x249] sm:$0xff] %vm165, %v130
    %322 = vst.msk [vmem:[%s275 + $0x259] sm:$0xff] %vm165, %v131
    %323 = vst.msk [vmem:[%s275 + $0x261] sm:$0xff] %vm165, %v132
    %324 = vst.msk [vmem:[%s275 + $0x271] sm:$0xff] %vm165, %v149
    %325 = vst.msk [vmem:[%s275 + $0x279] sm:$0xff] %vm165, %v150
    %326 = vst.msk [vmem:[%s275 + $0x289] sm:$0xff] %vm165, %v151
    %327 = vst.msk [vmem:[%s275 + $0x291] sm:$0xff] %vm165, %v152
    %328 = vst.msk [vmem:[%s275 + $0x2a1] sm:$0xff] %vm165, %v153
    %329 = vst.msk [vmem:[%s275 + $0x2a9] sm:$0xff] %vm165, %v154
    %330 = vst.msk [vmem:[%s275 + $0x2b9] sm:$0xff] %vm165, %v155
    %331 = vst.msk [vmem:[%s275 + $0x2c1] sm:$0xff] %vm165, %v156
    %332 = vst.msk [vmem:[%s275 + $0x2d1] sm:$0xff] %vm165, %v157
    %333 = vst.msk [vmem:[%s275 + $0x2d9] sm:$0xff] %vm165, %v158
    %334 = vst.msk [vmem:[%s275 + $0x2e9] sm:$0xff] %vm165, %v159
    %335 = vst.msk [vmem:[%s275 + $0x2f1] sm:$0xff] %vm165, %v160
    %336 = vst.msk [vmem:[%s275 + $0x301] sm:$0xff] %vm165, %v161
    %337 = vst.msk [vmem:[%s275 + $0x309] sm:$0xff] %vm165, %v162
    %338 = vst.msk [vmem:[%s275 + $0x319] sm:$0xff] %vm165, %v163
    %339 = vst.msk [vmem:[%s275 + $0x321] sm:$0xff] %vm165, %v164
    %v340 = vld [vmem:[#allocation2] sm:$0xff]
    %v341 = vld [vmem:[#allocation2 + $0x8] sm:$0xff]
    %v342 = vld [vmem:[#allocation2 + $0x10] sm:$0x3]
    %v343 = vld [vmem:[#allocation2 + $0x18] sm:$0xff]
    %v344 = vld [vmem:[#allocation2 + $0x20] sm:$0xff]
    %v345 = vld [vmem:[#allocation2 + $0x28] sm:$0x3]
    %v346 = vld [vmem:[#allocation2 + $0x30] sm:$0xff]
    %v347 = vld [vmem:[#allocation2 + $0x38] sm:$0xff]
    %v348 = vld [vmem:[#allocation2 + $0x40] sm:$0x3]
    %v349 = vld [vmem:[#allocation2 + $0x48] sm:$0xff]
    %v350 = vld [vmem:[#allocation2 + $0x50] sm:$0xff]
    %v351 = vld [vmem:[#allocation2 + $0x58] sm:$0x3]
    %v352 = vld [vmem:[#allocation2 + $0x60] sm:$0xff]
    %v353 = vld [vmem:[#allocation2 + $0x68] sm:$0xff]
    %v354 = vld [vmem:[#allocation2 + $0x70] sm:$0x3]
    %v355 = vld [vmem:[#allocation2 + $0x78] sm:$0xff]
    %v356 = vld [vmem:[#allocation2 + $0x80] sm:$0xff]
    %v357 = vld [vmem:[#allocation2 + $0x88] sm:$0x3]
    %v358 = vld [vmem:[#allocation2 + $0x90] sm:$0xff]
    %v359 = vld [vmem:[#allocation2 + $0x98] sm:$0xff]
    %v360 = vld [vmem:[#allocation2 + $0xa0] sm:$0x3]
    %v361 = vld [vmem:[#allocation2 + $0xa8] sm:$0xff]
    %v362 = vld [vmem:[#allocation2 + $0xb0] sm:$0xff]
    %v363 = vld [vmem:[#allocation2 + $0xb8] sm:$0x3]
    %v364 = vld [vmem:[#allocation2 + $0xc0] sm:$0xff]
    %v365 = vld [vmem:[#allocation2 + $0xc8] sm:$0xff]
    %v366 = vld [vmem:[#allocation2 + $0xd0] sm:$0x3]
    %v367 = vld [vmem:[#allocation2 + $0xd8] sm:$0xff]
    %v368 = vld [vmem:[#allocation2 + $0xe0] sm:$0xff]
    %v369 = vld [vmem:[#allocation2 + $0xe8] sm:$0x3]
    %v370 = vld [vmem:[#allocation2 + $0xf0] sm:$0xff]
    %v371 = vld [vmem:[#allocation2 + $0xf8] sm:$0xff]
    %v372 = vld [vmem:[#allocation2 + $0x100] sm:$0x3]
    %v373 = vld [vmem:[#allocation2 + $0x108] sm:$0xff]
    %v374 = vld [vmem:[#allocation2 + $0x110] sm:$0xff]
    %v375 = vld [vmem:[#allocation2 + $0x118] sm:$0x3]
    %v376 = vld [vmem:[#allocation2 + $0x120] sm:$0xff]
    %v377 = vld [vmem:[#allocation2 + $0x128] sm:$0xff]
    %v378 = vld [vmem:[#allocation2 + $0x130] sm:$0x3]
    %v379 = vld [vmem:[#allocation2 + $0x138] sm:$0xff]
    %v380 = vld [vmem:[#allocation2 + $0x140] sm:$0xff]
    %v381 = vld [vmem:[#allocation2 + $0x148] sm:$0x3]
    %v382 = vld [vmem:[#allocation2 + $0x150] sm:$0xff]
    %v383 = vld [vmem:[#allocation2 + $0x158] sm:$0xff]
    %v384 = vld [vmem:[#allocation2 + $0x160] sm:$0x3]
    %v385 = vld [vmem:[#allocation2 + $0x168] sm:$0xff]
    %v386 = vld [vmem:[#allocation2 + $0x170] sm:$0xff]
    %v387 = vld [vmem:[#allocation2 + $0x178] sm:$0x3]
    %v388 = vld [vmem:[#allocation2 + $0x180] sm:$0xff]
    %v389 = vld [vmem:[#allocation2 + $0x188] sm:$0xff]
    %v390 = vld [vmem:[#allocation2 + $0x190] sm:$0x3]
    %v391 = vld [vmem:[#allocation2 + $0x198] sm:$0xff]
    %v392 = vld [vmem:[#allocation2 + $0x1a0] sm:$0xff]
    %v393 = vld [vmem:[#allocation2 + $0x1a8] sm:$0x3]
    %v394 = vld [vmem:[#allocation2 + $0x1b0] sm:$0xff]
    %v395 = vld [vmem:[#allocation2 + $0x1b8] sm:$0xff]
    %v396 = vld [vmem:[#allocation2 + $0x1c0] sm:$0x3]
    %v397 = vld [vmem:[#allocation2 + $0x1c8] sm:$0xff]
    %v398 = vld [vmem:[#allocation2 + $0x1d0] sm:$0xff]
    %v399 = vld [vmem:[#allocation2 + $0x1d8] sm:$0x3]
    %v400 = vld [vmem:[#allocation2 + $0x1e0] sm:$0xff]
    %v401 = vld [vmem:[#allocation2 + $0x1e8] sm:$0xff]
    %v402 = vld [vmem:[#allocation2 + $0x1f0] sm:$0x3]
    %v403 = vld [vmem:[#allocation2 + $0x1f8] sm:$0xff]
    %v404 = vld [vmem:[#allocation2 + $0x200] sm:$0xff]
    %v405 = vld [vmem:[#allocation2 + $0x208] sm:$0x3]
    %v406 = vld [vmem:[#allocation2 + $0x210] sm:$0xff]
    %v407 = vld [vmem:[#allocation2 + $0x218] sm:$0xff]
    %v408 = vld [vmem:[#allocation2 + $0x220] sm:$0x3]
    %v409 = vld [vmem:[#allocation2 + $0x228] sm:$0xff]
    %v410 = vld [vmem:[#allocation2 + $0x230] sm:$0xff]
    %v411 = vld [vmem:[#allocation2 + $0x238] sm:$0x3]
    %v412 = vld [vmem:[#allocation2 + $0x240] sm:$0xff]
    %v413 = vld [vmem:[#allocation2 + $0x248] sm:$0xff]
    %v414 = vld [vmem:[#allocation2 + $0x250] sm:$0x3]
    %v415 = vld [vmem:[#allocation2 + $0x258] sm:$0xff]
    %v416 = vld [vmem:[#allocation2 + $0x260] sm:$0xff]
    %v417 = vld [vmem:[#allocation2 + $0x268] sm:$0x3]
    %v418 = vld [vmem:[#allocation2 + $0x270] sm:$0xff]
    %v419 = vld [vmem:[#allocation2 + $0x278] sm:$0xff]
    %v420 = vld [vmem:[#allocation2 + $0x280] sm:$0x3]
    %v421 = vld [vmem:[#allocation2 + $0x288] sm:$0xff]
    %v422 = vld [vmem:[#allocation2 + $0x290] sm:$0xff]
    %v423 = vld [vmem:[#allocation2 + $0x298] sm:$0x3]
    %v424 = vld [vmem:[#allocation2 + $0x2a0] sm:$0xff]
    %v425 = vld [vmem:[#allocation2 + $0x2a8] sm:$0xff]
    %v426 = vld [vmem:[#allocation2 + $0x2b0] sm:$0x3]
    %v427 = vld [vmem:[#allocation2 + $0x2b8] sm:$0xff]
    %v428 = vld [vmem:[#allocation2 + $0x2c0] sm:$0xff]
    %v429 = vld [vmem:[#allocation2 + $0x2c8] sm:$0x3]
    %v430 = vld [vmem:[#allocation2 + $0x2d0] sm:$0xff]
    %v431 = vld [vmem:[#allocation2 + $0x2d8] sm:$0xff]
    %v432 = vld [vmem:[#allocation2 + $0x2e0] sm:$0x3]
    %v433 = vld [vmem:[#allocation2 + $0x2e8] sm:$0xff]
    %v434 = vld [vmem:[#allocation2 + $0x2f0] sm:$0xff]
    %v435 = vld [vmem:[#allocation2 + $0x2f8] sm:$0x3]
    %v436 = vld [vmem:[#allocation2 + $0x300] sm:$0xff]
    %v437 = vld [vmem:[#allocation2 + $0x308] sm:$0xff]
    %v438 = vld [vmem:[#allocation2 + $0x310] sm:$0x3]
    %v439 = vld [vmem:[#allocation2 + $0x318] sm:$0xff]
    %v440 = vld [vmem:[#allocation2 + $0x320] sm:$0xff]
    %v441 = vld [vmem:[#allocation2 + $0x328] sm:$0x3]
    %v442 = vld [vmem:[#allocation2 + $0x330] sm:$0xff]
    %v443 = vld [vmem:[#allocation2 + $0x338] sm:$0xff]
    %v444 = vld [vmem:[#allocation2 + $0x340] sm:$0x3]
    %v445 = vld [vmem:[#allocation2 + $0x348] sm:$0xff]
    %v446 = vld [vmem:[#allocation2 + $0x350] sm:$0xff]
    %v447 = vld [vmem:[#allocation2 + $0x358] sm:$0x3]
    %vm544 = vcmask 1046528
    %v545 = vrot.slane %v340, 1
    %v546 = vrot.slane %v341, 1
    %v547 = vsel %vm544, %v545, %v546
    %v548 = vrot.slane %v342, 1
    %v549 = vsel %vm544, %v546, %v548
    %v550 = vrot.slane %v343, 1
    %v551 = vrot.slane %v344, 1
    %v552 = vsel %vm544, %v550, %v551
    %v553 = vrot.slane %v345, 1
    %v554 = vsel %vm544, %v551, %v553
    %v555 = vrot.slane %v346, 1
    %v556 = vrot.slane %v347, 1
    %v557 = vsel %vm544, %v555, %v556
    %v558 = vrot.slane %v348, 1
    %v559 = vsel %vm544, %v556, %v558
    %v560 = vrot.slane %v349, 1
    %v561 = vrot.slane %v350, 1
    %v562 = vsel %vm544, %v560, %v561
    %v563 = vrot.slane %v351, 1
    %v564 = vsel %vm544, %v561, %v563
    %v565 = vrot.slane %v352, 1
    %v566 = vrot.slane %v353, 1
    %v567 = vsel %vm544, %v565, %v566
    %v568 = vrot.slane %v354, 1
    %v569 = vsel %vm544, %v566, %v568
    %v570 = vrot.slane %v355, 1
    %v571 = vrot.slane %v356, 1
    %v572 = vsel %vm544, %v570, %v571
    %v573 = vrot.slane %v357, 1
    %v574 = vsel %vm544, %v571, %v573
    %v575 = vrot.slane %v358, 1
    %v576 = vrot.slane %v359, 1
    %v577 = vsel %vm544, %v575, %v576
    %v578 = vrot.slane %v360, 1
    %v579 = vsel %vm544, %v576, %v578
    %v580 = vrot.slane %v361, 1
    %v581 = vrot.slane %v362, 1
    %v582 = vsel %vm544, %v580, %v581
    %v583 = vrot.slane %v363, 1
    %v584 = vsel %vm544, %v581, %v583
    %v585 = vrot.slane %v364, 1
    %v586 = vrot.slane %v365, 1
    %v587 = vsel %vm544, %v585, %v586
    %v588 = vrot.slane %v366, 1
    %v589 = vsel %vm544, %v586, %v588
    %v590 = vrot.slane %v367, 1
    %v591 = vrot.slane %v368, 1
    %v592 = vsel %vm544, %v590, %v591
    %v593 = vrot.slane %v369, 1
    %v594 = vsel %vm544, %v591, %v593
    %v595 = vrot.slane %v370, 1
    %v596 = vrot.slane %v371, 1
    %v597 = vsel %vm544, %v595, %v596
    %v598 = vrot.slane %v372, 1
    %v599 = vsel %vm544, %v596, %v598
    %v600 = vrot.slane %v373, 1
    %v601 = vrot.slane %v374, 1
    %v602 = vsel %vm544, %v600, %v601
    %v603 = vrot.slane %v375, 1
    %v604 = vsel %vm544, %v601, %v603
    %v605 = vrot.slane %v376, 1
    %v606 = vrot.slane %v377, 1
    %v607 = vsel %vm544, %v605, %v606
    %v608 = vrot.slane %v378, 1
    %v609 = vsel %vm544, %v606, %v608
    %v610 = vrot.slane %v379, 1
    %v611 = vrot.slane %v380, 1
    %v612 = vsel %vm544, %v610, %v611
    %v613 = vrot.slane %v381, 1
    %v614 = vsel %vm544, %v611, %v613
    %v615 = vrot.slane %v382, 1
    %v616 = vrot.slane %v383, 1
    %v617 = vsel %vm544, %v615, %v616
    %v618 = vrot.slane %v384, 1
    %v619 = vsel %vm544, %v616, %v618
    %v620 = vrot.slane %v385, 1
    %v621 = vrot.slane %v386, 1
    %v622 = vsel %vm544, %v620, %v621
    %v623 = vrot.slane %v387, 1
    %v624 = vsel %vm544, %v621, %v623
    %v625 = vrot.slane %v394, 1
    %v626 = vrot.slane %v395, 1
    %v627 = vsel %vm544, %v625, %v626
    %v628 = vrot.slane %v396, 1
    %v629 = vsel %vm544, %v626, %v628
    %v630 = vrot.slane %v397, 1
    %v631 = vrot.slane %v398, 1
    %v632 = vsel %vm544, %v630, %v631
    %v633 = vrot.slane %v399, 1
    %v634 = vsel %vm544, %v631, %v633
    %v635 = vrot.slane %v400, 1
    %v636 = vrot.slane %v401, 1
    %v637 = vsel %vm544, %v635, %v636
    %v638 = vrot.slane %v402, 1
    %v639 = vsel %vm544, %v636, %v638
    %v640 = vrot.slane %v403, 1
    %v641 = vrot.slane %v404, 1
    %v642 = vsel %vm544, %v640, %v641
    %v643 = vrot.slane %v405, 1
    %v644 = vsel %vm544, %v641, %v643
    %v645 = vrot.slane %v406, 1
    %v646 = vrot.slane %v407, 1
    %v647 = vsel %vm544, %v645, %v646
    %v648 = vrot.slane %v408, 1
    %v649 = vsel %vm544, %v646, %v648
    %v650 = vrot.slane %v409, 1
    %v651 = vrot.slane %v410, 1
    %v652 = vsel %vm544, %v650, %v651
    %v653 = vrot.slane %v411, 1
    %v654 = vsel %vm544, %v651, %v653
    %v655 = vrot.slane %v412, 1
    %v656 = vrot.slane %v413, 1
    %v657 = vsel %vm544, %v655, %v656
    %v658 = vrot.slane %v414, 1
    %v659 = vsel %vm544, %v656, %v658
    %v660 = vrot.slane %v415, 1
    %v661 = vrot.slane %v416, 1
    %v662 = vsel %vm544, %v660, %v661
    %v663 = vrot.slane %v417, 1
    %v664 = vsel %vm544, %v661, %v663
    %v665 = vrot.slane %v418, 1
    %v666 = vrot.slane %v419, 1
    %v667 = vsel %vm544, %v665, %v666
    %v668 = vrot.slane %v420, 1
    %v669 = vsel %vm544, %v666, %v668
    %v670 = vrot.slane %v421, 1
    %v671 = vrot.slane %v422, 1
    %v672 = vsel %vm544, %v670, %v671
    %v673 = vrot.slane %v423, 1
    %v674 = vsel %vm544, %v671, %v673
    %v675 = vrot.slane %v424, 1
    %v676 = vrot.slane %v425, 1
    %v677 = vsel %vm544, %v675, %v676
    %v678 = vrot.slane %v426, 1
    %v679 = vsel %vm544, %v676, %v678
    %v680 = vrot.slane %v427, 1
    %v681 = vrot.slane %v428, 1
    %v682 = vsel %vm544, %v680, %v681
    %v683 = vrot.slane %v429, 1
    %v684 = vsel %vm544, %v681, %v683
    %v685 = vrot.slane %v430, 1
    %v686 = vrot.slane %v431, 1
    %v687 = vsel %vm544, %v685, %v686
    %v688 = vrot.slane %v432, 1
    %v689 = vsel %vm544, %v686, %v688
    %v690 = vrot.slane %v433, 1
    %v691 = vrot.slane %v434, 1
    %v692 = vsel %vm544, %v690, %v691
    %v693 = vrot.slane %v435, 1
    %v694 = vsel %vm544, %v691, %v693
    %v695 = vrot.slane %v436, 1
    %v696 = vrot.slane %v437, 1
    %v697 = vsel %vm544, %v695, %v696
    %v698 = vrot.slane %v438, 1
    %v699 = vsel %vm544, %v696, %v698
    %v700 = vrot.slane %v439, 1
    %v701 = vrot.slane %v440, 1
    %v702 = vsel %vm544, %v700, %v701
    %v703 = vrot.slane %v441, 1
    %v704 = vsel %vm544, %v701, %v703
    %vm705 = vcmask 1045504
    %v706 = vrot.slane %v340, 2
    %v707 = vrot.slane %v341, 2
    %v708 = vsel %vm705, %v706, %v707
    %v709 = vrot.slane %v342, 2
    %v710 = vsel %vm705, %v707, %v709
    %v711 = vrot.slane %v343, 2
    %v712 = vrot.slane %v344, 2
    %v713 = vsel %vm705, %v711, %v712
    %v714 = vrot.slane %v345, 2
    %v715 = vsel %vm705, %v712, %v714
    %v716 = vrot.slane %v346, 2
    %v717 = vrot.slane %v347, 2
    %v718 = vsel %vm705, %v716, %v717
    %v719 = vrot.slane %v348, 2
    %v720 = vsel %vm705, %v717, %v719
    %v721 = vrot.slane %v349, 2
    %v722 = vrot.slane %v350, 2
    %v723 = vsel %vm705, %v721, %v722
    %v724 = vrot.slane %v351, 2
    %v725 = vsel %vm705, %v722, %v724
    %v726 = vrot.slane %v352, 2
    %v727 = vrot.slane %v353, 2
    %v728 = vsel %vm705, %v726, %v727
    %v729 = vrot.slane %v354, 2
    %v730 = vsel %vm705, %v727, %v729
    %v731 = vrot.slane %v355, 2
    %v732 = vrot.slane %v356, 2
    %v733 = vsel %vm705, %v731, %v732
    %v734 = vrot.slane %v357, 2
    %v735 = vsel %vm705, %v732, %v734
    %v736 = vrot.slane %v358, 2
    %v737 = vrot.slane %v359, 2
    %v738 = vsel %vm705, %v736, %v737
    %v739 = vrot.slane %v360, 2
    %v740 = vsel %vm705, %v737, %v739
    %v741 = vrot.slane %v361, 2
    %v742 = vrot.slane %v362, 2
    %v743 = vsel %vm705, %v741, %v742
    %v744 = vrot.slane %v363, 2
    %v745 = vsel %vm705, %v742, %v744
    %v746 = vrot.slane %v364, 2
    %v747 = vrot.slane %v365, 2
    %v748 = vsel %vm705, %v746, %v747
    %v749 = vrot.slane %v366, 2
    %v750 = vsel %vm705, %v747, %v749
    %v751 = vrot.slane %v367, 2
    %v752 = vrot.slane %v368, 2
    %v753 = vsel %vm705, %v751, %v752
    %v754 = vrot.slane %v369, 2
    %v755 = vsel %vm705, %v752, %v754
    %v756 = vrot.slane %v370, 2
    %v757 = vrot.slane %v371, 2
    %v758 = vsel %vm705, %v756, %v757
    %v759 = vrot.slane %v372, 2
    %v760 = vsel %vm705, %v757, %v759
    %v761 = vrot.slane %v373, 2
    %v762 = vrot.slane %v374, 2
    %v763 = vsel %vm705, %v761, %v762
    %v764 = vrot.slane %v375, 2
    %v765 = vsel %vm705, %v762, %v764
    %v766 = vrot.slane %v376, 2
    %v767 = vrot.slane %v377, 2
    %v768 = vsel %vm705, %v766, %v767
    %v769 = vrot.slane %v378, 2
    %v770 = vsel %vm705, %v767, %v769
    %v771 = vrot.slane %v379, 2
    %v772 = vrot.slane %v380, 2
    %v773 = vsel %vm705, %v771, %v772
    %v774 = vrot.slane %v381, 2
    %v775 = vsel %vm705, %v772, %v774
    %v776 = vrot.slane %v382, 2
    %v777 = vrot.slane %v383, 2
    %v778 = vsel %vm705, %v776, %v777
    %v779 = vrot.slane %v384, 2
    %v780 = vsel %vm705, %v777, %v779
    %v781 = vrot.slane %v385, 2
    %v782 = vrot.slane %v386, 2
    %v783 = vsel %vm705, %v781, %v782
    %v784 = vrot.slane %v387, 2
    %v785 = vsel %vm705, %v782, %v784
    %v786 = vrot.slane %v394, 2
    %v787 = vrot.slane %v395, 2
    %v788 = vsel %vm705, %v786, %v787
    %v789 = vrot.slane %v396, 2
    %v790 = vsel %vm705, %v787, %v789
    %v791 = vrot.slane %v397, 2
    %v792 = vrot.slane %v398, 2
    %v793 = vsel %vm705, %v791, %v792
    %v794 = vrot.slane %v399, 2
    %v795 = vsel %vm705, %v792, %v794
    %v796 = vrot.slane %v400, 2
    %v797 = vrot.slane %v401, 2
    %v798 = vsel %vm705, %v796, %v797
    %v799 = vrot.slane %v402, 2
    %v800 = vsel %vm705, %v797, %v799
    %v801 = vrot.slane %v403, 2
    %v802 = vrot.slane %v404, 2
    %v803 = vsel %vm705, %v801, %v802
    %v804 = vrot.slane %v405, 2
    %v805 = vsel %vm705, %v802, %v804
    %v806 = vrot.slane %v406, 2
    %v807 = vrot.slane %v407, 2
    %v808 = vsel %vm705, %v806, %v807
    %v809 = vrot.slane %v408, 2
    %v810 = vsel %vm705, %v807, %v809
    %v811 = vrot.slane %v409, 2
    %v812 = vrot.slane %v410, 2
    %v813 = vsel %vm705, %v811, %v812
    %v814 = vrot.slane %v411, 2
    %v815 = vsel %vm705, %v812, %v814
    %v816 = vrot.slane %v412, 2
    %v817 = vrot.slane %v413, 2
    %v818 = vsel %vm705, %v816, %v817
    %v819 = vrot.slane %v414, 2
    %v820 = vsel %vm705, %v817, %v819
    %v821 = vrot.slane %v415, 2
    %v822 = vrot.slane %v416, 2
    %v823 = vsel %vm705, %v821, %v822
    %v824 = vrot.slane %v417, 2
    %v825 = vsel %vm705, %v822, %v824
    %v826 = vrot.slane %v418, 2
    %v827 = vrot.slane %v419, 2
    %v828 = vsel %vm705, %v826, %v827
    %v829 = vrot.slane %v420, 2
    %v830 = vsel %vm705, %v827, %v829
    %v831 = vrot.slane %v421, 2
    %v832 = vrot.slane %v422, 2
    %v833 = vsel %vm705, %v831, %v832
    %v834 = vrot.slane %v423, 2
    %v835 = vsel %vm705, %v832, %v834
    %v836 = vrot.slane %v424, 2
    %v837 = vrot.slane %v425, 2
    %v838 = vsel %vm705, %v836, %v837
    %v839 = vrot.slane %v426, 2
    %v840 = vsel %vm705, %v837, %v839
    %v841 = vrot.slane %v427, 2
    %v842 = vrot.slane %v428, 2
    %v843 = vsel %vm705, %v841, %v842
    %v844 = vrot.slane %v429, 2
    %v845 = vsel %vm705, %v842, %v844
    %v846 = vrot.slane %v430, 2
    %v847 = vrot.slane %v431, 2
    %v848 = vsel %vm705, %v846, %v847
    %v849 = vrot.slane %v432, 2
    %v850 = vsel %vm705, %v847, %v849
    %v851 = vrot.slane %v433, 2
    %v852 = vrot.slane %v434, 2
    %v853 = vsel %vm705, %v851, %v852
    %v854 = vrot.slane %v435, 2
    %v855 = vsel %vm705, %v852, %v854
    %v856 = vrot.slane %v436, 2
    %v857 = vrot.slane %v437, 2
    %v858 = vsel %vm705, %v856, %v857
    %v859 = vrot.slane %v438, 2
    %v860 = vsel %vm705, %v857, %v859
    %v861 = vrot.slane %v439, 2
    %v862 = vrot.slane %v440, 2
    %v863 = vsel %vm705, %v861, %v862
    %v864 = vrot.slane %v441, 2
    %v865 = vsel %vm705, %v862, %v864
    %v872 = vrot.slane %v388, 1
    %v873 = vrot.slane %v389, 1
    %v874 = vsel %vm544, %v872, %v873
    %v875 = vrot.slane %v390, 1
    %v876 = vsel %vm544, %v873, %v875
    %v877 = vrot.slane %v442, 1
    %v878 = vrot.slane %v443, 1
    %v879 = vsel %vm544, %v877, %v878
    %v880 = vrot.slane %v444, 1
    %v881 = vsel %vm544, %v878, %v880
    %v882 = vrot.slane %v388, 2
    %v883 = vrot.slane %v389, 2
    %v884 = vsel %vm705, %v882, %v883
    %v885 = vrot.slane %v390, 2
    %v886 = vsel %vm705, %v883, %v885
    %v887 = vrot.slane %v442, 2
    %v888 = vrot.slane %v443, 2
    %v889 = vsel %vm705, %v887, %v888
    %v890 = vrot.slane %v444, 2
    %v891 = vsel %vm705, %v888, %v890
    %v898 = vrot.slane %v391, 1
    %v899 = vrot.slane %v392, 1
    %v900 = vsel %vm544, %v898, %v899
    %v901 = vrot.slane %v393, 1
    %v902 = vsel %vm544, %v899, %v901
    %v903 = vrot.slane %v445, 1
    %v904 = vrot.slane %v446, 1
    %v905 = vsel %vm544, %v903, %v904
    %v906 = vrot.slane %v447, 1
    %v907 = vsel %vm544, %v904, %v906
    %v908 = vrot.slane %v391, 2
    %v909 = vrot.slane %v392, 2
    %v910 = vsel %vm705, %v908, %v909
    %v911 = vrot.slane %v393, 2
    %v912 = vsel %vm705, %v909, %v911
    %v913 = vrot.slane %v445, 2
    %v914 = vrot.slane %v446, 2
    %v915 = vsel %vm705, %v913, %v914
    %v916 = vrot.slane %v447, 2
    %v917 = vsel %vm705, %v914, %v916
    %918 = vrot.lane.b32.xlu0 %v547, 4
    %v919 = vpop.permute.xlu0 %918
    %920 = vrot.lane.b32.xlu0 %v549, 4
    %v921 = vpop.permute.xlu0 %920
    %922 = vrot.lane.b32.xlu0 %v552, 4
    %v923 = vpop.permute.xlu0 %922
    %924 = vrot.lane.b32.xlu0 %v554, 4
    %v925 = vpop.permute.xlu0 %924
    %926 = vrot.lane.b32.xlu0 %v557, 4
    %v927 = vpop.permute.xlu0 %926
    %928 = vrot.lane.b32.xlu0 %v559, 4
    %v929 = vpop.permute.xlu0 %928
    %930 = vrot.lane.b32.xlu0 %v562, 4
    %v931 = vpop.permute.xlu0 %930
    %932 = vrot.lane.b32.xlu0 %v564, 4
    %v933 = vpop.permute.xlu0 %932
    %934 = vrot.lane.b32.xlu0 %v567, 4
    %v935 = vpop.permute.xlu0 %934
    %936 = vrot.lane.b32.xlu0 %v569, 4
    %v937 = vpop.permute.xlu0 %936
    %938 = vrot.lane.b32.xlu0 %v572, 4
    %v939 = vpop.permute.xlu0 %938
    %940 = vrot.lane.b32.xlu0 %v574, 4
    %v941 = vpop.permute.xlu0 %940
    %942 = vrot.lane.b32.xlu0 %v577, 4
    %v943 = vpop.permute.xlu0 %942
    %944 = vrot.lane.b32.xlu0 %v579, 4
    %v945 = vpop.permute.xlu0 %944
    %946 = vrot.lane.b32.xlu0 %v582, 4
    %v947 = vpop.permute.xlu0 %946
    %948 = vrot.lane.b32.xlu0 %v584, 4
    %v949 = vpop.permute.xlu0 %948
    %950 = vrot.lane.b32.xlu0 %v587, 4
    %v951 = vpop.permute.xlu0 %950
    %952 = vrot.lane.b32.xlu0 %v589, 4
    %v953 = vpop.permute.xlu0 %952
    %954 = vrot.lane.b32.xlu0 %v592, 4
    %v955 = vpop.permute.xlu0 %954
    %956 = vrot.lane.b32.xlu0 %v594, 4
    %v957 = vpop.permute.xlu0 %956
    %958 = vrot.lane.b32.xlu0 %v597, 4
    %v959 = vpop.permute.xlu0 %958
    %960 = vrot.lane.b32.xlu0 %v599, 4
    %v961 = vpop.permute.xlu0 %960
    %962 = vrot.lane.b32.xlu0 %v602, 4
    %v963 = vpop.permute.xlu0 %962
    %964 = vrot.lane.b32.xlu0 %v604, 4
    %v965 = vpop.permute.xlu0 %964
    %966 = vrot.lane.b32.xlu0 %v607, 4
    %v967 = vpop.permute.xlu0 %966
    %968 = vrot.lane.b32.xlu0 %v609, 4
    %v969 = vpop.permute.xlu0 %968
    %970 = vrot.lane.b32.xlu0 %v612, 4
    %v971 = vpop.permute.xlu0 %970
    %972 = vrot.lane.b32.xlu0 %v614, 4
    %v973 = vpop.permute.xlu0 %972
    %974 = vrot.lane.b32.xlu0 %v617, 4
    %v975 = vpop.permute.xlu0 %974
    %976 = vrot.lane.b32.xlu0 %v619, 4
    %v977 = vpop.permute.xlu0 %976
    %978 = vrot.lane.b32.xlu0 %v622, 4
    %v979 = vpop.permute.xlu0 %978
    %980 = vrot.lane.b32.xlu0 %v624, 4
    %v981 = vpop.permute.xlu0 %980
    %982 = vrot.lane.b32.xlu0 %v627, 4
    %v983 = vpop.permute.xlu0 %982
    %984 = vrot.lane.b32.xlu0 %v629, 4
    %v985 = vpop.permute.xlu0 %984
    %986 = vrot.lane.b32.xlu0 %v632, 4
    %v987 = vpop.permute.xlu0 %986
    %988 = vrot.lane.b32.xlu0 %v634, 4
    %v989 = vpop.permute.xlu0 %988
    %990 = vrot.lane.b32.xlu0 %v637, 4
    %v991 = vpop.permute.xlu0 %990
    %992 = vrot.lane.b32.xlu0 %v639, 4
    %v993 = vpop.permute.xlu0 %992
    %994 = vrot.lane.b32.xlu0 %v642, 4
    %v995 = vpop.permute.xlu0 %994
    %996 = vrot.lane.b32.xlu0 %v644, 4
    %v997 = vpop.permute.xlu0 %996
    %998 = vrot.lane.b32.xlu0 %v647, 4
    %v999 = vpop.permute.xlu0 %998
    %1000 = vrot.lane.b32.xlu0 %v649, 4
    %v1001 = vpop.permute.xlu0 %1000
    %1002 = vrot.lane.b32.xlu0 %v652, 4
    %v1003 = vpop.permute.xlu0 %1002
    %1004 = vrot.lane.b32.xlu0 %v654, 4
    %v1005 = vpop.permute.xlu0 %1004
    %1006 = vrot.lane.b32.xlu0 %v657, 4
    %v1007 = vpop.permute.xlu0 %1006
    %1008 = vrot.lane.b32.xlu0 %v659, 4
    %v1009 = vpop.permute.xlu0 %1008
    %1010 = vrot.lane.b32.xlu0 %v662, 4
    %v1011 = vpop.permute.xlu0 %1010
    %1012 = vrot.lane.b32.xlu0 %v664, 4
    %v1013 = vpop.permute.xlu0 %1012
    %1014 = vrot.lane.b32.xlu0 %v667, 4
    %v1015 = vpop.permute.xlu0 %1014
    %1016 = vrot.lane.b32.xlu0 %v669, 4
    %v1017 = vpop.permute.xlu0 %1016
    %1018 = vrot.lane.b32.xlu0 %v672, 4
    %v1019 = vpop.permute.xlu0 %1018
    %1020 = vrot.lane.b32.xlu0 %v674, 4
    %v1021 = vpop.permute.xlu0 %1020
    %1022 = vrot.lane.b32.xlu0 %v677, 4
    %v1023 = vpop.permute.xlu0 %1022
    %1024 = vrot.lane.b32.xlu0 %v679, 4
    %v1025 = vpop.permute.xlu0 %1024
    %1026 = vrot.lane.b32.xlu0 %v682, 4
    %v1027 = vpop.permute.xlu0 %1026
    %1028 = vrot.lane.b32.xlu0 %v684, 4
    %v1029 = vpop.permute.xlu0 %1028
    %1030 = vrot.lane.b32.xlu0 %v687, 4
    %v1031 = vpop.permute.xlu0 %1030
    %1032 = vrot.lane.b32.xlu0 %v689, 4
    %v1033 = vpop.permute.xlu0 %1032
    %1034 = vrot.lane.b32.xlu0 %v692, 4
    %v1035 = vpop.permute.xlu0 %1034
    %1036 = vrot.lane.b32.xlu0 %v694, 4
    %v1037 = vpop.permute.xlu0 %1036
    %1038 = vrot.lane.b32.xlu0 %v697, 4
    %v1039 = vpop.permute.xlu0 %1038
    %1040 = vrot.lane.b32.xlu0 %v699, 4
    %v1041 = vpop.permute.xlu0 %1040
    %1042 = vrot.lane.b32.xlu0 %v702, 4
    %v1043 = vpop.permute.xlu0 %1042
    %1044 = vrot.lane.b32.xlu0 %v704, 4
    %v1045 = vpop.permute.xlu0 %1044
    %1110 = vrot.lane.b32.xlu0 %v708, 8
    %v1111 = vpop.permute.xlu0 %1110
    %1112 = vrot.lane.b32.xlu0 %v710, 8
    %v1113 = vpop.permute.xlu0 %1112
    %1114 = vrot.lane.b32.xlu0 %v713, 8
    %v1115 = vpop.permute.xlu0 %1114
    %1116 = vrot.lane.b32.xlu0 %v715, 8
    %v1117 = vpop.permute.xlu0 %1116
    %1118 = vrot.lane.b32.xlu0 %v718, 8
    %v1119 = vpop.permute.xlu0 %1118
    %1120 = vrot.lane.b32.xlu0 %v720, 8
    %v1121 = vpop.permute.xlu0 %1120
    %1122 = vrot.lane.b32.xlu0 %v723, 8
    %v1123 = vpop.permute.xlu0 %1122
    %1124 = vrot.lane.b32.xlu0 %v725, 8
    %v1125 = vpop.permute.xlu0 %1124
    %1126 = vrot.lane.b32.xlu0 %v728, 8
    %v1127 = vpop.permute.xlu0 %1126
    %1128 = vrot.lane.b32.xlu0 %v730, 8
    %v1129 = vpop.permute.xlu0 %1128
    %1130 = vrot.lane.b32.xlu0 %v733, 8
    %v1131 = vpop.permute.xlu0 %1130
    %1132 = vrot.lane.b32.xlu0 %v735, 8
    %v1133 = vpop.permute.xlu0 %1132
    %1134 = vrot.lane.b32.xlu0 %v738, 8
    %v1135 = vpop.permute.xlu0 %1134
    %1136 = vrot.lane.b32.xlu0 %v740, 8
    %v1137 = vpop.permute.xlu0 %1136
    %1138 = vrot.lane.b32.xlu0 %v743, 8
    %v1139 = vpop.permute.xlu0 %1138
    %1140 = vrot.lane.b32.xlu0 %v745, 8
    %v1141 = vpop.permute.xlu0 %1140
    %1142 = vrot.lane.b32.xlu0 %v748, 8
    %v1143 = vpop.permute.xlu0 %1142
    %1144 = vrot.lane.b32.xlu0 %v750, 8
    %v1145 = vpop.permute.xlu0 %1144
    %1146 = vrot.lane.b32.xlu0 %v753, 8
    %v1147 = vpop.permute.xlu0 %1146
    %1148 = vrot.lane.b32.xlu0 %v755, 8
    %v1149 = vpop.permute.xlu0 %1148
    %1150 = vrot.lane.b32.xlu0 %v758, 8
    %v1151 = vpop.permute.xlu0 %1150
    %1152 = vrot.lane.b32.xlu0 %v760, 8
    %v1153 = vpop.permute.xlu0 %1152
    %1154 = vrot.lane.b32.xlu0 %v763, 8
    %v1155 = vpop.permute.xlu0 %1154
    %1156 = vrot.lane.b32.xlu0 %v765, 8
    %v1157 = vpop.permute.xlu0 %1156
    %1158 = vrot.lane.b32.xlu0 %v768, 8
    %v1159 = vpop.permute.xlu0 %1158
    %1160 = vrot.lane.b32.xlu0 %v770, 8
    %v1161 = vpop.permute.xlu0 %1160
    %1162 = vrot.lane.b32.xlu0 %v773, 8
    %v1163 = vpop.permute.xlu0 %1162
    %1164 = vrot.lane.b32.xlu0 %v775, 8
    %v1165 = vpop.permute.xlu0 %1164
    %1166 = vrot.lane.b32.xlu0 %v778, 8
    %v1167 = vpop.permute.xlu0 %1166
    %1168 = vrot.lane.b32.xlu0 %v780, 8
    %v1169 = vpop.permute.xlu0 %1168
    %1170 = vrot.lane.b32.xlu0 %v783, 8
    %v1171 = vpop.permute.xlu0 %1170
    %1172 = vrot.lane.b32.xlu0 %v785, 8
    %v1173 = vpop.permute.xlu0 %1172
    %1174 = vrot.lane.b32.xlu0 %v788, 8
    %v1175 = vpop.permute.xlu0 %1174
    %1176 = vrot.lane.b32.xlu0 %v790, 8
    %v1177 = vpop.permute.xlu0 %1176
    %1178 = vrot.lane.b32.xlu0 %v793, 8
    %v1179 = vpop.permute.xlu0 %1178
    %1180 = vrot.lane.b32.xlu0 %v795, 8
    %v1181 = vpop.permute.xlu0 %1180
    %1182 = vrot.lane.b32.xlu0 %v798, 8
    %v1183 = vpop.permute.xlu0 %1182
    %1184 = vrot.lane.b32.xlu0 %v800, 8
    %v1185 = vpop.permute.xlu0 %1184
    %1186 = vrot.lane.b32.xlu0 %v803, 8
    %v1187 = vpop.permute.xlu0 %1186
    %1188 = vrot.lane.b32.xlu0 %v805, 8
    %v1189 = vpop.permute.xlu0 %1188
    %1190 = vrot.lane.b32.xlu0 %v808, 8
    %v1191 = vpop.permute.xlu0 %1190
    %1192 = vrot.lane.b32.xlu0 %v810, 8
    %v1193 = vpop.permute.xlu0 %1192
    %1194 = vrot.lane.b32.xlu0 %v813, 8
    %v1195 = vpop.permute.xlu0 %1194
    %1196 = vrot.lane.b32.xlu0 %v815, 8
    %v1197 = vpop.permute.xlu0 %1196
    %1198 = vrot.lane.b32.xlu0 %v818, 8
    %v1199 = vpop.permute.xlu0 %1198
    %1200 = vrot.lane.b32.xlu0 %v820, 8
    %v1201 = vpop.permute.xlu0 %1200
    %1202 = vrot.lane.b32.xlu0 %v823, 8
    %v1203 = vpop.permute.xlu0 %1202
    %1204 = vrot.lane.b32.xlu0 %v825, 8
    %v1205 = vpop.permute.xlu0 %1204
    %1206 = vrot.lane.b32.xlu0 %v828, 8
    %v1207 = vpop.permute.xlu0 %1206
    %1208 = vrot.lane.b32.xlu0 %v830, 8
    %v1209 = vpop.permute.xlu0 %1208
    %1210 = vrot.lane.b32.xlu0 %v833, 8
    %v1211 = vpop.permute.xlu0 %1210
    %1212 = vrot.lane.b32.xlu0 %v835, 8
    %v1213 = vpop.permute.xlu0 %1212
    %1214 = vrot.lane.b32.xlu0 %v838, 8
    %v1215 = vpop.permute.xlu0 %1214
    %1216 = vrot.lane.b32.xlu0 %v840, 8
    %v1217 = vpop.permute.xlu0 %1216
    %1218 = vrot.lane.b32.xlu0 %v843, 8
    %v1219 = vpop.permute.xlu0 %1218
    %1220 = vrot.lane.b32.xlu0 %v845, 8
    %v1221 = vpop.permute.xlu0 %1220
    %1222 = vrot.lane.b32.xlu0 %v848, 8
    %v1223 = vpop.permute.xlu0 %1222
    %1224 = vrot.lane.b32.xlu0 %v850, 8
    %v1225 = vpop.permute.xlu0 %1224
    %1226 = vrot.lane.b32.xlu0 %v853, 8
    %v1227 = vpop.permute.xlu0 %1226
    %1228 = vrot.lane.b32.xlu0 %v855, 8
    %v1229 = vpop.permute.xlu0 %1228
    %1230 = vrot.lane.b32.xlu0 %v858, 8
    %v1231 = vpop.permute.xlu0 %1230
    %1232 = vrot.lane.b32.xlu0 %v860, 8
    %v1233 = vpop.permute.xlu0 %1232
    %1234 = vrot.lane.b32.xlu0 %v863, 8
    %v1235 = vpop.permute.xlu0 %1234
    %1236 = vrot.lane.b32.xlu0 %v865, 8
    %v1237 = vpop.permute.xlu0 %1236
    %1302 = vrot.lane.b32.xlu0 %v343, 12
    %v1303 = vpop.permute.xlu0 %1302
    %1304 = vrot.lane.b32.xlu0 %v344, 12
    %v1305 = vpop.permute.xlu0 %1304
    %1306 = vrot.lane.b32.xlu0 %v346, 12
    %v1307 = vpop.permute.xlu0 %1306
    %1308 = vrot.lane.b32.xlu0 %v347, 12
    %v1309 = vpop.permute.xlu0 %1308
    %1310 = vrot.lane.b32.xlu0 %v349, 12
    %v1311 = vpop.permute.xlu0 %1310
    %1312 = vrot.lane.b32.xlu0 %v350, 12
    %v1313 = vpop.permute.xlu0 %1312
    %1314 = vrot.lane.b32.xlu0 %v352, 12
    %v1315 = vpop.permute.xlu0 %1314
    %1316 = vrot.lane.b32.xlu0 %v353, 12
    %v1317 = vpop.permute.xlu0 %1316
    %1318 = vrot.lane.b32.xlu0 %v355, 12
    %v1319 = vpop.permute.xlu0 %1318
    %1320 = vrot.lane.b32.xlu0 %v356, 12
    %v1321 = vpop.permute.xlu0 %1320
    %1322 = vrot.lane.b32.xlu0 %v358, 12
    %v1323 = vpop.permute.xlu0 %1322
    %1324 = vrot.lane.b32.xlu0 %v359, 12
    %v1325 = vpop.permute.xlu0 %1324
    %1326 = vrot.lane.b32.xlu0 %v361, 12
    %v1327 = vpop.permute.xlu0 %1326
    %1328 = vrot.lane.b32.xlu0 %v362, 12
    %v1329 = vpop.permute.xlu0 %1328
    %1330 = vrot.lane.b32.xlu0 %v364, 12
    %v1331 = vpop.permute.xlu0 %1330
    %1332 = vrot.lane.b32.xlu0 %v365, 12
    %v1333 = vpop.permute.xlu0 %1332
    %1334 = vrot.lane.b32.xlu0 %v367, 12
    %v1335 = vpop.permute.xlu0 %1334
    %1336 = vrot.lane.b32.xlu0 %v368, 12
    %v1337 = vpop.permute.xlu0 %1336
    %1338 = vrot.lane.b32.xlu0 %v370, 12
    %v1339 = vpop.permute.xlu0 %1338
    %1340 = vrot.lane.b32.xlu0 %v371, 12
    %v1341 = vpop.permute.xlu0 %1340
    %1342 = vrot.lane.b32.xlu0 %v373, 12
    %v1343 = vpop.permute.xlu0 %1342
    %1344 = vrot.lane.b32.xlu0 %v374, 12
    %v1345 = vpop.permute.xlu0 %1344
    %1346 = vrot.lane.b32.xlu0 %v376, 12
    %v1347 = vpop.permute.xlu0 %1346
    %1348 = vrot.lane.b32.xlu0 %v377, 12
    %v1349 = vpop.permute.xlu0 %1348
    %1350 = vrot.lane.b32.xlu0 %v379, 12
    %v1351 = vpop.permute.xlu0 %1350
    %1352 = vrot.lane.b32.xlu0 %v380, 12
    %v1353 = vpop.permute.xlu0 %1352
    %1354 = vrot.lane.b32.xlu0 %v382, 12
    %v1355 = vpop.permute.xlu0 %1354
    %1356 = vrot.lane.b32.xlu0 %v383, 12
    %v1357 = vpop.permute.xlu0 %1356
    %1358 = vrot.lane.b32.xlu0 %v385, 12
    %v1359 = vpop.permute.xlu0 %1358
    %1360 = vrot.lane.b32.xlu0 %v386, 12
    %v1361 = vpop.permute.xlu0 %1360
    %1362 = vrot.lane.b32.xlu0 %v388, 12
    %v1363 = vpop.permute.xlu0 %1362
    %1364 = vrot.lane.b32.xlu0 %v389, 12
    %v1365 = vpop.permute.xlu0 %1364
    %1366 = vrot.lane.b32.xlu0 %v397, 12
    %v1367 = vpop.permute.xlu0 %1366
    %1368 = vrot.lane.b32.xlu0 %v398, 12
    %v1369 = vpop.permute.xlu0 %1368
    %1370 = vrot.lane.b32.xlu0 %v400, 12
    %v1371 = vpop.permute.xlu0 %1370
    %1372 = vrot.lane.b32.xlu0 %v401, 12
    %v1373 = vpop.permute.xlu0 %1372
    %1374 = vrot.lane.b32.xlu0 %v403, 12
    %v1375 = vpop.permute.xlu0 %1374
    %1376 = vrot.lane.b32.xlu0 %v404, 12
    %v1377 = vpop.permute.xlu0 %1376
    %1378 = vrot.lane.b32.xlu0 %v406, 12
    %v1379 = vpop.permute.xlu0 %1378
    %1380 = vrot.lane.b32.xlu0 %v407, 12
    %v1381 = vpop.permute.xlu0 %1380
    %1382 = vrot.lane.b32.xlu0 %v409, 12
    %v1383 = vpop.permute.xlu0 %1382
    %1384 = vrot.lane.b32.xlu0 %v410, 12
    %v1385 = vpop.permute.xlu0 %1384
    %1386 = vrot.lane.b32.xlu0 %v412, 12
    %v1387 = vpop.permute.xlu0 %1386
    %1388 = vrot.lane.b32.xlu0 %v413, 12
    %v1389 = vpop.permute.xlu0 %1388
    %1390 = vrot.lane.b32.xlu0 %v415, 12
    %v1391 = vpop.permute.xlu0 %1390
    %1392 = vrot.lane.b32.xlu0 %v416, 12
    %v1393 = vpop.permute.xlu0 %1392
    %1394 = vrot.lane.b32.xlu0 %v418, 12
    %v1395 = vpop.permute.xlu0 %1394
    %1396 = vrot.lane.b32.xlu0 %v419, 12
    %v1397 = vpop.permute.xlu0 %1396
    %1398 = vrot.lane.b32.xlu0 %v421, 12
    %v1399 = vpop.permute.xlu0 %1398
    %1400 = vrot.lane.b32.xlu0 %v422, 12
    %v1401 = vpop.permute.xlu0 %1400
    %1402 = vrot.lane.b32.xlu0 %v424, 12
    %v1403 = vpop.permute.xlu0 %1402
    %1404 = vrot.lane.b32.xlu0 %v425, 12
    %v1405 = vpop.permute.xlu0 %1404
    %1406 = vrot.lane.b32.xlu0 %v427, 12
    %v1407 = vpop.permute.xlu0 %1406
    %1408 = vrot.lane.b32.xlu0 %v428, 12
    %v1409 = vpop.permute.xlu0 %1408
    %1410 = vrot.lane.b32.xlu0 %v430, 12
    %v1411 = vpop.permute.xlu0 %1410
    %1412 = vrot.lane.b32.xlu0 %v431, 12
    %v1413 = vpop.permute.xlu0 %1412
    %1414 = vrot.lane.b32.xlu0 %v433, 12
    %v1415 = vpop.permute.xlu0 %1414
    %1416 = vrot.lane.b32.xlu0 %v434, 12
    %v1417 = vpop.permute.xlu0 %1416
    %1418 = vrot.lane.b32.xlu0 %v436, 12
    %v1419 = vpop.permute.xlu0 %1418
    %1420 = vrot.lane.b32.xlu0 %v437, 12
    %v1421 = vpop.permute.xlu0 %1420
    %1422 = vrot.lane.b32.xlu0 %v439, 12
    %v1423 = vpop.permute.xlu0 %1422
    %1424 = vrot.lane.b32.xlu0 %v440, 12
    %v1425 = vpop.permute.xlu0 %1424
    %1426 = vrot.lane.b32.xlu0 %v442, 12
    %v1427 = vpop.permute.xlu0 %1426
    %1428 = vrot.lane.b32.xlu0 %v443, 12
    %v1429 = vpop.permute.xlu0 %1428
    %1494 = vrot.lane.b32.xlu0 %v552, 16
    %v1495 = vpop.permute.xlu0 %1494
    %1496 = vrot.lane.b32.xlu0 %v554, 16
    %v1497 = vpop.permute.xlu0 %1496
    %1498 = vrot.lane.b32.xlu0 %v557, 16
    %v1499 = vpop.permute.xlu0 %1498
    %1500 = vrot.lane.b32.xlu0 %v559, 16
    %v1501 = vpop.permute.xlu0 %1500
    %1502 = vrot.lane.b32.xlu0 %v562, 16
    %v1503 = vpop.permute.xlu0 %1502
    %1504 = vrot.lane.b32.xlu0 %v564, 16
    %v1505 = vpop.permute.xlu0 %1504
    %1506 = vrot.lane.b32.xlu0 %v567, 16
    %v1507 = vpop.permute.xlu0 %1506
    %1508 = vrot.lane.b32.xlu0 %v569, 16
    %v1509 = vpop.permute.xlu0 %1508
    %1510 = vrot.lane.b32.xlu0 %v572, 16
    %v1511 = vpop.permute.xlu0 %1510
    %1512 = vrot.lane.b32.xlu0 %v574, 16
    %v1513 = vpop.permute.xlu0 %1512
    %1514 = vrot.lane.b32.xlu0 %v577, 16
    %v1515 = vpop.permute.xlu0 %1514
    %1516 = vrot.lane.b32.xlu0 %v579, 16
    %v1517 = vpop.permute.xlu0 %1516
    %1518 = vrot.lane.b32.xlu0 %v582, 16
    %v1519 = vpop.permute.xlu0 %1518
    %1520 = vrot.lane.b32.xlu0 %v584, 16
    %v1521 = vpop.permute.xlu0 %1520
    %1522 = vrot.lane.b32.xlu0 %v587, 16
    %v1523 = vpop.permute.xlu0 %1522
    %1524 = vrot.lane.b32.xlu0 %v589, 16
    %v1525 = vpop.permute.xlu0 %1524
    %1526 = vrot.lane.b32.xlu0 %v592, 16
    %v1527 = vpop.permute.xlu0 %1526
    %1528 = vrot.lane.b32.xlu0 %v594, 16
    %v1529 = vpop.permute.xlu0 %1528
    %1530 = vrot.lane.b32.xlu0 %v597, 16
    %v1531 = vpop.permute.xlu0 %1530
    %1532 = vrot.lane.b32.xlu0 %v599, 16
    %v1533 = vpop.permute.xlu0 %1532
    %1534 = vrot.lane.b32.xlu0 %v602, 16
    %v1535 = vpop.permute.xlu0 %1534
    %1536 = vrot.lane.b32.xlu0 %v604, 16
    %v1537 = vpop.permute.xlu0 %1536
    %1538 = vrot.lane.b32.xlu0 %v607, 16
    %v1539 = vpop.permute.xlu0 %1538
    %1540 = vrot.lane.b32.xlu0 %v609, 16
    %v1541 = vpop.permute.xlu0 %1540
    %1542 = vrot.lane.b32.xlu0 %v612, 16
    %v1543 = vpop.permute.xlu0 %1542
    %1544 = vrot.lane.b32.xlu0 %v614, 16
    %v1545 = vpop.permute.xlu0 %1544
    %1546 = vrot.lane.b32.xlu0 %v617, 16
    %v1547 = vpop.permute.xlu0 %1546
    %1548 = vrot.lane.b32.xlu0 %v619, 16
    %v1549 = vpop.permute.xlu0 %1548
    %1550 = vrot.lane.b32.xlu0 %v622, 16
    %v1551 = vpop.permute.xlu0 %1550
    %1552 = vrot.lane.b32.xlu0 %v624, 16
    %v1553 = vpop.permute.xlu0 %1552
    %1554 = vrot.lane.b32.xlu0 %v874, 16
    %v1555 = vpop.permute.xlu0 %1554
    %1556 = vrot.lane.b32.xlu0 %v876, 16
    %v1557 = vpop.permute.xlu0 %1556
    %1558 = vrot.lane.b32.xlu0 %v632, 16
    %v1559 = vpop.permute.xlu0 %1558
    %1560 = vrot.lane.b32.xlu0 %v634, 16
    %v1561 = vpop.permute.xlu0 %1560
    %1562 = vrot.lane.b32.xlu0 %v637, 16
    %v1563 = vpop.permute.xlu0 %1562
    %1564 = vrot.lane.b32.xlu0 %v639, 16
    %v1565 = vpop.permute.xlu0 %1564
    %1566 = vrot.lane.b32.xlu0 %v642, 16
    %v1567 = vpop.permute.xlu0 %1566
    %1568 = vrot.lane.b32.xlu0 %v644, 16
    %v1569 = vpop.permute.xlu0 %1568
    %1570 = vrot.lane.b32.xlu0 %v647, 16
    %v1571 = vpop.permute.xlu0 %1570
    %1572 = vrot.lane.b32.xlu0 %v649, 16
    %v1573 = vpop.permute.xlu0 %1572
    %1574 = vrot.lane.b32.xlu0 %v652, 16
    %v1575 = vpop.permute.xlu0 %1574
    %1576 = vrot.lane.b32.xlu0 %v654, 16
    %v1577 = vpop.permute.xlu0 %1576
    %1578 = vrot.lane.b32.xlu0 %v657, 16
    %v1579 = vpop.permute.xlu0 %1578
    %1580 = vrot.lane.b32.xlu0 %v659, 16
    %v1581 = vpop.permute.xlu0 %1580
    %1582 = vrot.lane.b32.xlu0 %v662, 16
    %v1583 = vpop.permute.xlu0 %1582
    %1584 = vrot.lane.b32.xlu0 %v664, 16
    %v1585 = vpop.permute.xlu0 %1584
    %1586 = vrot.lane.b32.xlu0 %v667, 16
    %v1587 = vpop.permute.xlu0 %1586
    %1588 = vrot.lane.b32.xlu0 %v669, 16
    %v1589 = vpop.permute.xlu0 %1588
    %1590 = vrot.lane.b32.xlu0 %v672, 16
    %v1591 = vpop.permute.xlu0 %1590
    %1592 = vrot.lane.b32.xlu0 %v674, 16
    %v1593 = vpop.permute.xlu0 %1592
    %1594 = vrot.lane.b32.xlu0 %v677, 16
    %v1595 = vpop.permute.xlu0 %1594
    %1596 = vrot.lane.b32.xlu0 %v679, 16
    %v1597 = vpop.permute.xlu0 %1596
    %1598 = vrot.lane.b32.xlu0 %v682, 16
    %v1599 = vpop.permute.xlu0 %1598
    %1600 = vrot.lane.b32.xlu0 %v684, 16
    %v1601 = vpop.permute.xlu0 %1600
    %1602 = vrot.lane.b32.xlu0 %v687, 16
    %v1603 = vpop.permute.xlu0 %1602
    %1604 = vrot.lane.b32.xlu0 %v689, 16
    %v1605 = vpop.permute.xlu0 %1604
    %1606 = vrot.lane.b32.xlu0 %v692, 16
    %v1607 = vpop.permute.xlu0 %1606
    %1608 = vrot.lane.b32.xlu0 %v694, 16
    %v1609 = vpop.permute.xlu0 %1608
    %1610 = vrot.lane.b32.xlu0 %v697, 16
    %v1611 = vpop.permute.xlu0 %1610
    %1612 = vrot.lane.b32.xlu0 %v699, 16
    %v1613 = vpop.permute.xlu0 %1612
    %1614 = vrot.lane.b32.xlu0 %v702, 16
    %v1615 = vpop.permute.xlu0 %1614
    %1616 = vrot.lane.b32.xlu0 %v704, 16
    %v1617 = vpop.permute.xlu0 %1616
    %1618 = vrot.lane.b32.xlu0 %v879, 16
    %v1619 = vpop.permute.xlu0 %1618
    %1620 = vrot.lane.b32.xlu0 %v881, 16
    %v1621 = vpop.permute.xlu0 %1620
    %1686 = vrot.lane.b32.xlu0 %v713, 20
    %v1687 = vpop.permute.xlu0 %1686
    %1688 = vrot.lane.b32.xlu0 %v715, 20
    %v1689 = vpop.permute.xlu0 %1688
    %1690 = vrot.lane.b32.xlu0 %v718, 20
    %v1691 = vpop.permute.xlu0 %1690
    %1692 = vrot.lane.b32.xlu0 %v720, 20
    %v1693 = vpop.permute.xlu0 %1692
    %1694 = vrot.lane.b32.xlu0 %v723, 20
    %v1695 = vpop.permute.xlu0 %1694
    %1696 = vrot.lane.b32.xlu0 %v725, 20
    %v1697 = vpop.permute.xlu0 %1696
    %1698 = vrot.lane.b32.xlu0 %v728, 20
    %v1699 = vpop.permute.xlu0 %1698
    %1700 = vrot.lane.b32.xlu0 %v730, 20
    %v1701 = vpop.permute.xlu0 %1700
    %1702 = vrot.lane.b32.xlu0 %v733, 20
    %v1703 = vpop.permute.xlu0 %1702
    %1704 = vrot.lane.b32.xlu0 %v735, 20
    %v1705 = vpop.permute.xlu0 %1704
    %1706 = vrot.lane.b32.xlu0 %v738, 20
    %v1707 = vpop.permute.xlu0 %1706
    %1708 = vrot.lane.b32.xlu0 %v740, 20
    %v1709 = vpop.permute.xlu0 %1708
    %1710 = vrot.lane.b32.xlu0 %v743, 20
    %v1711 = vpop.permute.xlu0 %1710
    %1712 = vrot.lane.b32.xlu0 %v745, 20
    %v1713 = vpop.permute.xlu0 %1712
    %1714 = vrot.lane.b32.xlu0 %v748, 20
    %v1715 = vpop.permute.xlu0 %1714
    %1716 = vrot.lane.b32.xlu0 %v750, 20
    %v1717 = vpop.permute.xlu0 %1716
    %1718 = vrot.lane.b32.xlu0 %v753, 20
    %v1719 = vpop.permute.xlu0 %1718
    %1720 = vrot.lane.b32.xlu0 %v755, 20
    %v1721 = vpop.permute.xlu0 %1720
    %1722 = vrot.lane.b32.xlu0 %v758, 20
    %v1723 = vpop.permute.xlu0 %1722
    %1724 = vrot.lane.b32.xlu0 %v760, 20
    %v1725 = vpop.permute.xlu0 %1724
    %1726 = vrot.lane.b32.xlu0 %v763, 20
    %v1727 = vpop.permute.xlu0 %1726
    %1728 = vrot.lane.b32.xlu0 %v765, 20
    %v1729 = vpop.permute.xlu0 %1728
    %1730 = vrot.lane.b32.xlu0 %v768, 20
    %v1731 = vpop.permute.xlu0 %1730
    %1732 = vrot.lane.b32.xlu0 %v770, 20
    %v1733 = vpop.permute.xlu0 %1732
    %1734 = vrot.lane.b32.xlu0 %v773, 20
    %v1735 = vpop.permute.xlu0 %1734
    %1736 = vrot.lane.b32.xlu0 %v775, 20
    %v1737 = vpop.permute.xlu0 %1736
    %1738 = vrot.lane.b32.xlu0 %v778, 20
    %v1739 = vpop.permute.xlu0 %1738
    %1740 = vrot.lane.b32.xlu0 %v780, 20
    %v1741 = vpop.permute.xlu0 %1740
    %1742 = vrot.lane.b32.xlu0 %v783, 20
    %v1743 = vpop.permute.xlu0 %1742
    %1744 = vrot.lane.b32.xlu0 %v785, 20
    %v1745 = vpop.permute.xlu0 %1744
    %1746 = vrot.lane.b32.xlu0 %v884, 20
    %v1747 = vpop.permute.xlu0 %1746
    %1748 = vrot.lane.b32.xlu0 %v886, 20
    %v1749 = vpop.permute.xlu0 %1748
    %1750 = vrot.lane.b32.xlu0 %v793, 20
    %v1751 = vpop.permute.xlu0 %1750
    %1752 = vrot.lane.b32.xlu0 %v795, 20
    %v1753 = vpop.permute.xlu0 %1752
    %1754 = vrot.lane.b32.xlu0 %v798, 20
    %v1755 = vpop.permute.xlu0 %1754
    %1756 = vrot.lane.b32.xlu0 %v800, 20
    %v1757 = vpop.permute.xlu0 %1756
    %1758 = vrot.lane.b32.xlu0 %v803, 20
    %v1759 = vpop.permute.xlu0 %1758
    %1760 = vrot.lane.b32.xlu0 %v805, 20
    %v1761 = vpop.permute.xlu0 %1760
    %1762 = vrot.lane.b32.xlu0 %v808, 20
    %v1763 = vpop.permute.xlu0 %1762
    %1764 = vrot.lane.b32.xlu0 %v810, 20
    %v1765 = vpop.permute.xlu0 %1764
    %1766 = vrot.lane.b32.xlu0 %v813, 20
    %v1767 = vpop.permute.xlu0 %1766
    %1768 = vrot.lane.b32.xlu0 %v815, 20
    %v1769 = vpop.permute.xlu0 %1768
    %1770 = vrot.lane.b32.xlu0 %v818, 20
    %v1771 = vpop.permute.xlu0 %1770
    %1772 = vrot.lane.b32.xlu0 %v820, 20
    %v1773 = vpop.permute.xlu0 %1772
    %1774 = vrot.lane.b32.xlu0 %v823, 20
    %v1775 = vpop.permute.xlu0 %1774
    %1776 = vrot.lane.b32.xlu0 %v825, 20
    %v1777 = vpop.permute.xlu0 %1776
    %1778 = vrot.lane.b32.xlu0 %v828, 20
    %v1779 = vpop.permute.xlu0 %1778
    %1780 = vrot.lane.b32.xlu0 %v830, 20
    %v1781 = vpop.permute.xlu0 %1780
    %1782 = vrot.lane.b32.xlu0 %v833, 20
    %v1783 = vpop.permute.xlu0 %1782
    %1784 = vrot.lane.b32.xlu0 %v835, 20
    %v1785 = vpop.permute.xlu0 %1784
    %1786 = vrot.lane.b32.xlu0 %v838, 20
    %v1787 = vpop.permute.xlu0 %1786
    %1788 = vrot.lane.b32.xlu0 %v840, 20
    %v1789 = vpop.permute.xlu0 %1788
    %1790 = vrot.lane.b32.xlu0 %v843, 20
    %v1791 = vpop.permute.xlu0 %1790
    %1792 = vrot.lane.b32.xlu0 %v845, 20
    %v1793 = vpop.permute.xlu0 %1792
    %1794 = vrot.lane.b32.xlu0 %v848, 20
    %v1795 = vpop.permute.xlu0 %1794
    %1796 = vrot.lane.b32.xlu0 %v850, 20
    %v1797 = vpop.permute.xlu0 %1796
    %1798 = vrot.lane.b32.xlu0 %v853, 20
    %v1799 = vpop.permute.xlu0 %1798
    %1800 = vrot.lane.b32.xlu0 %v855, 20
    %v1801 = vpop.permute.xlu0 %1800
    %1802 = vrot.lane.b32.xlu0 %v858, 20
    %v1803 = vpop.permute.xlu0 %1802
    %1804 = vrot.lane.b32.xlu0 %v860, 20
    %v1805 = vpop.permute.xlu0 %1804
    %1806 = vrot.lane.b32.xlu0 %v863, 20
    %v1807 = vpop.permute.xlu0 %1806
    %1808 = vrot.lane.b32.xlu0 %v865, 20
    %v1809 = vpop.permute.xlu0 %1808
    %1810 = vrot.lane.b32.xlu0 %v889, 20
    %v1811 = vpop.permute.xlu0 %1810
    %1812 = vrot.lane.b32.xlu0 %v891, 20
    %v1813 = vpop.permute.xlu0 %1812
    %1878 = vrot.lane.b32.xlu0 %v346, 24
    %v1879 = vpop.permute.xlu0 %1878
    %1880 = vrot.lane.b32.xlu0 %v347, 24
    %v1881 = vpop.permute.xlu0 %1880
    %1882 = vrot.lane.b32.xlu0 %v349, 24
    %v1883 = vpop.permute.xlu0 %1882
    %1884 = vrot.lane.b32.xlu0 %v350, 24
    %v1885 = vpop.permute.xlu0 %1884
    %1886 = vrot.lane.b32.xlu0 %v352, 24
    %v1887 = vpop.permute.xlu0 %1886
    %1888 = vrot.lane.b32.xlu0 %v353, 24
    %v1889 = vpop.permute.xlu0 %1888
    %1890 = vrot.lane.b32.xlu0 %v355, 24
    %v1891 = vpop.permute.xlu0 %1890
    %1892 = vrot.lane.b32.xlu0 %v356, 24
    %v1893 = vpop.permute.xlu0 %1892
    %1894 = vrot.lane.b32.xlu0 %v358, 24
    %v1895 = vpop.permute.xlu0 %1894
    %1896 = vrot.lane.b32.xlu0 %v359, 24
    %v1897 = vpop.permute.xlu0 %1896
    %1898 = vrot.lane.b32.xlu0 %v361, 24
    %v1899 = vpop.permute.xlu0 %1898
    %1900 = vrot.lane.b32.xlu0 %v362, 24
    %v1901 = vpop.permute.xlu0 %1900
    %1902 = vrot.lane.b32.xlu0 %v364, 24
    %v1903 = vpop.permute.xlu0 %1902
    %1904 = vrot.lane.b32.xlu0 %v365, 24
    %v1905 = vpop.permute.xlu0 %1904
    %1906 = vrot.lane.b32.xlu0 %v367, 24
    %v1907 = vpop.permute.xlu0 %1906
    %1908 = vrot.lane.b32.xlu0 %v368, 24
    %v1909 = vpop.permute.xlu0 %1908
    %1910 = vrot.lane.b32.xlu0 %v370, 24
    %v1911 = vpop.permute.xlu0 %1910
    %1912 = vrot.lane.b32.xlu0 %v371, 24
    %v1913 = vpop.permute.xlu0 %1912
    %1914 = vrot.lane.b32.xlu0 %v373, 24
    %v1915 = vpop.permute.xlu0 %1914
    %1916 = vrot.lane.b32.xlu0 %v374, 24
    %v1917 = vpop.permute.xlu0 %1916
    %1918 = vrot.lane.b32.xlu0 %v376, 24
    %v1919 = vpop.permute.xlu0 %1918
    %1920 = vrot.lane.b32.xlu0 %v377, 24
    %v1921 = vpop.permute.xlu0 %1920
    %1922 = vrot.lane.b32.xlu0 %v379, 24
    %v1923 = vpop.permute.xlu0 %1922
    %1924 = vrot.lane.b32.xlu0 %v380, 24
    %v1925 = vpop.permute.xlu0 %1924
    %1926 = vrot.lane.b32.xlu0 %v382, 24
    %v1927 = vpop.permute.xlu0 %1926
    %1928 = vrot.lane.b32.xlu0 %v383, 24
    %v1929 = vpop.permute.xlu0 %1928
    %1930 = vrot.lane.b32.xlu0 %v385, 24
    %v1931 = vpop.permute.xlu0 %1930
    %1932 = vrot.lane.b32.xlu0 %v386, 24
    %v1933 = vpop.permute.xlu0 %1932
    %1934 = vrot.lane.b32.xlu0 %v388, 24
    %v1935 = vpop.permute.xlu0 %1934
    %1936 = vrot.lane.b32.xlu0 %v389, 24
    %v1937 = vpop.permute.xlu0 %1936
    %1938 = vrot.lane.b32.xlu0 %v391, 24
    %v1939 = vpop.permute.xlu0 %1938
    %1940 = vrot.lane.b32.xlu0 %v392, 24
    %v1941 = vpop.permute.xlu0 %1940
    %1942 = vrot.lane.b32.xlu0 %v400, 24
    %v1943 = vpop.permute.xlu0 %1942
    %1944 = vrot.lane.b32.xlu0 %v401, 24
    %v1945 = vpop.permute.xlu0 %1944
    %1946 = vrot.lane.b32.xlu0 %v403, 24
    %v1947 = vpop.permute.xlu0 %1946
    %1948 = vrot.lane.b32.xlu0 %v404, 24
    %v1949 = vpop.permute.xlu0 %1948
    %1950 = vrot.lane.b32.xlu0 %v406, 24
    %v1951 = vpop.permute.xlu0 %1950
    %1952 = vrot.lane.b32.xlu0 %v407, 24
    %v1953 = vpop.permute.xlu0 %1952
    %1954 = vrot.lane.b32.xlu0 %v409, 24
    %v1955 = vpop.permute.xlu0 %1954
    %1956 = vrot.lane.b32.xlu0 %v410, 24
    %v1957 = vpop.permute.xlu0 %1956
    %1958 = vrot.lane.b32.xlu0 %v412, 24
    %v1959 = vpop.permute.xlu0 %1958
    %1960 = vrot.lane.b32.xlu0 %v413, 24
    %v1961 = vpop.permute.xlu0 %1960
    %1962 = vrot.lane.b32.xlu0 %v415, 24
    %v1963 = vpop.permute.xlu0 %1962
    %1964 = vrot.lane.b32.xlu0 %v416, 24
    %v1965 = vpop.permute.xlu0 %1964
    %1966 = vrot.lane.b32.xlu0 %v418, 24
    %v1967 = vpop.permute.xlu0 %1966
    %1968 = vrot.lane.b32.xlu0 %v419, 24
    %v1969 = vpop.permute.xlu0 %1968
    %1970 = vrot.lane.b32.xlu0 %v421, 24
    %v1971 = vpop.permute.xlu0 %1970
    %1972 = vrot.lane.b32.xlu0 %v422, 24
    %v1973 = vpop.permute.xlu0 %1972
    %1974 = vrot.lane.b32.xlu0 %v424, 24
    %v1975 = vpop.permute.xlu0 %1974
    %1976 = vrot.lane.b32.xlu0 %v425, 24
    %v1977 = vpop.permute.xlu0 %1976
    %1978 = vrot.lane.b32.xlu0 %v427, 24
    %v1979 = vpop.permute.xlu0 %1978
    %1980 = vrot.lane.b32.xlu0 %v428, 24
    %v1981 = vpop.permute.xlu0 %1980
    %1982 = vrot.lane.b32.xlu0 %v430, 24
    %v1983 = vpop.permute.xlu0 %1982
    %1984 = vrot.lane.b32.xlu0 %v431, 24
    %v1985 = vpop.permute.xlu0 %1984
    %1986 = vrot.lane.b32.xlu0 %v433, 24
    %v1987 = vpop.permute.xlu0 %1986
    %1988 = vrot.lane.b32.xlu0 %v434, 24
    %v1989 = vpop.permute.xlu0 %1988
    %1990 = vrot.lane.b32.xlu0 %v436, 24
    %v1991 = vpop.permute.xlu0 %1990
    %1992 = vrot.lane.b32.xlu0 %v437, 24
    %v1993 = vpop.permute.xlu0 %1992
    %1994 = vrot.lane.b32.xlu0 %v439, 24
    %v1995 = vpop.permute.xlu0 %1994
    %1996 = vrot.lane.b32.xlu0 %v440, 24
    %v1997 = vpop.permute.xlu0 %1996
    %1998 = vrot.lane.b32.xlu0 %v442, 24
    %v1999 = vpop.permute.xlu0 %1998
    %2000 = vrot.lane.b32.xlu0 %v443, 24
    %v2001 = vpop.permute.xlu0 %2000
    %2002 = vrot.lane.b32.xlu0 %v445, 24
    %v2003 = vpop.permute.xlu0 %2002
    %2004 = vrot.lane.b32.xlu0 %v446, 24
    %v2005 = vpop.permute.xlu0 %2004
    %2070 = vrot.lane.b32.xlu0 %v557, 28
    %v2071 = vpop.permute.xlu0 %2070
    %2072 = vrot.lane.b32.xlu0 %v559, 28
    %v2073 = vpop.permute.xlu0 %2072
    %2074 = vrot.lane.b32.xlu0 %v562, 28
    %v2075 = vpop.permute.xlu0 %2074
    %2076 = vrot.lane.b32.xlu0 %v564, 28
    %v2077 = vpop.permute.xlu0 %2076
    %2078 = vrot.lane.b32.xlu0 %v567, 28
    %v2079 = vpop.permute.xlu0 %2078
    %2080 = vrot.lane.b32.xlu0 %v569, 28
    %v2081 = vpop.permute.xlu0 %2080
    %2082 = vrot.lane.b32.xlu0 %v572, 28
    %v2083 = vpop.permute.xlu0 %2082
    %2084 = vrot.lane.b32.xlu0 %v574, 28
    %v2085 = vpop.permute.xlu0 %2084
    %2086 = vrot.lane.b32.xlu0 %v577, 28
    %v2087 = vpop.permute.xlu0 %2086
    %2088 = vrot.lane.b32.xlu0 %v579, 28
    %v2089 = vpop.permute.xlu0 %2088
    %2090 = vrot.lane.b32.xlu0 %v582, 28
    %v2091 = vpop.permute.xlu0 %2090
    %2092 = vrot.lane.b32.xlu0 %v584, 28
    %v2093 = vpop.permute.xlu0 %2092
    %2094 = vrot.lane.b32.xlu0 %v587, 28
    %v2095 = vpop.permute.xlu0 %2094
    %2096 = vrot.lane.b32.xlu0 %v589, 28
    %v2097 = vpop.permute.xlu0 %2096
    %2098 = vrot.lane.b32.xlu0 %v592, 28
    %v2099 = vpop.permute.xlu0 %2098
    %2100 = vrot.lane.b32.xlu0 %v594, 28
    %v2101 = vpop.permute.xlu0 %2100
    %2102 = vrot.lane.b32.xlu0 %v597, 28
    %v2103 = vpop.permute.xlu0 %2102
    %2104 = vrot.lane.b32.xlu0 %v599, 28
    %v2105 = vpop.permute.xlu0 %2104
    %2106 = vrot.lane.b32.xlu0 %v602, 28
    %v2107 = vpop.permute.xlu0 %2106
    %2108 = vrot.lane.b32.xlu0 %v604, 28
    %v2109 = vpop.permute.xlu0 %2108
    %2110 = vrot.lane.b32.xlu0 %v607, 28
    %v2111 = vpop.permute.xlu0 %2110
    %2112 = vrot.lane.b32.xlu0 %v609, 28
    %v2113 = vpop.permute.xlu0 %2112
    %2114 = vrot.lane.b32.xlu0 %v612, 28
    %v2115 = vpop.permute.xlu0 %2114
    %2116 = vrot.lane.b32.xlu0 %v614, 28
    %v2117 = vpop.permute.xlu0 %2116
    %2118 = vrot.lane.b32.xlu0 %v617, 28
    %v2119 = vpop.permute.xlu0 %2118
    %2120 = vrot.lane.b32.xlu0 %v619, 28
    %v2121 = vpop.permute.xlu0 %2120
    %2122 = vrot.lane.b32.xlu0 %v622, 28
    %v2123 = vpop.permute.xlu0 %2122
    %2124 = vrot.lane.b32.xlu0 %v624, 28
    %v2125 = vpop.permute.xlu0 %2124
    %2126 = vrot.lane.b32.xlu0 %v874, 28
    %v2127 = vpop.permute.xlu0 %2126
    %2128 = vrot.lane.b32.xlu0 %v876, 28
    %v2129 = vpop.permute.xlu0 %2128
    %2130 = vrot.lane.b32.xlu0 %v900, 28
    %v2131 = vpop.permute.xlu0 %2130
    %2132 = vrot.lane.b32.xlu0 %v902, 28
    %v2133 = vpop.permute.xlu0 %2132
    %2134 = vrot.lane.b32.xlu0 %v637, 28
    %v2135 = vpop.permute.xlu0 %2134
    %2136 = vrot.lane.b32.xlu0 %v639, 28
    %v2137 = vpop.permute.xlu0 %2136
    %2138 = vrot.lane.b32.xlu0 %v642, 28
    %v2139 = vpop.permute.xlu0 %2138
    %2140 = vrot.lane.b32.xlu0 %v644, 28
    %v2141 = vpop.permute.xlu0 %2140
    %2142 = vrot.lane.b32.xlu0 %v647, 28
    %v2143 = vpop.permute.xlu0 %2142
    %2144 = vrot.lane.b32.xlu0 %v649, 28
    %v2145 = vpop.permute.xlu0 %2144
    %2146 = vrot.lane.b32.xlu0 %v652, 28
    %v2147 = vpop.permute.xlu0 %2146
    %2148 = vrot.lane.b32.xlu0 %v654, 28
    %v2149 = vpop.permute.xlu0 %2148
    %2150 = vrot.lane.b32.xlu0 %v657, 28
    %v2151 = vpop.permute.xlu0 %2150
    %2152 = vrot.lane.b32.xlu0 %v659, 28
    %v2153 = vpop.permute.xlu0 %2152
    %2154 = vrot.lane.b32.xlu0 %v662, 28
    %v2155 = vpop.permute.xlu0 %2154
    %2156 = vrot.lane.b32.xlu0 %v664, 28
    %v2157 = vpop.permute.xlu0 %2156
    %2158 = vrot.lane.b32.xlu0 %v667, 28
    %v2159 = vpop.permute.xlu0 %2158
    %2160 = vrot.lane.b32.xlu0 %v669, 28
    %v2161 = vpop.permute.xlu0 %2160
    %2162 = vrot.lane.b32.xlu0 %v672, 28
    %v2163 = vpop.permute.xlu0 %2162
    %2164 = vrot.lane.b32.xlu0 %v674, 28
    %v2165 = vpop.permute.xlu0 %2164
    %2166 = vrot.lane.b32.xlu0 %v677, 28
    %v2167 = vpop.permute.xlu0 %2166
    %2168 = vrot.lane.b32.xlu0 %v679, 28
    %v2169 = vpop.permute.xlu0 %2168
    %2170 = vrot.lane.b32.xlu0 %v682, 28
    %v2171 = vpop.permute.xlu0 %2170
    %2172 = vrot.lane.b32.xlu0 %v684, 28
    %v2173 = vpop.permute.xlu0 %2172
    %2174 = vrot.lane.b32.xlu0 %v687, 28
    %v2175 = vpop.permute.xlu0 %2174
    %2176 = vrot.lane.b32.xlu0 %v689, 28
    %v2177 = vpop.permute.xlu0 %2176
    %2178 = vrot.lane.b32.xlu0 %v692, 28
    %v2179 = vpop.permute.xlu0 %2178
    %2180 = vrot.lane.b32.xlu0 %v694, 28
    %v2181 = vpop.permute.xlu0 %2180
    %2182 = vrot.lane.b32.xlu0 %v697, 28
    %v2183 = vpop.permute.xlu0 %2182
    %2184 = vrot.lane.b32.xlu0 %v699, 28
    %v2185 = vpop.permute.xlu0 %2184
    %2186 = vrot.lane.b32.xlu0 %v702, 28
    %v2187 = vpop.permute.xlu0 %2186
    %2188 = vrot.lane.b32.xlu0 %v704, 28
    %v2189 = vpop.permute.xlu0 %2188
    %2190 = vrot.lane.b32.xlu0 %v879, 28
    %v2191 = vpop.permute.xlu0 %2190
    %2192 = vrot.lane.b32.xlu0 %v881, 28
    %v2193 = vpop.permute.xlu0 %2192
    %2194 = vrot.lane.b32.xlu0 %v905, 28
    %v2195 = vpop.permute.xlu0 %2194
    %2196 = vrot.lane.b32.xlu0 %v907, 28
    %v2197 = vpop.permute.xlu0 %2196
    %2262 = vrot.lane.b32.xlu0 %v718, 32
    %v2263 = vpop.permute.xlu0 %2262
    %2264 = vrot.lane.b32.xlu0 %v720, 32
    %v2265 = vpop.permute.xlu0 %2264
    %2266 = vrot.lane.b32.xlu0 %v723, 32
    %v2267 = vpop.permute.xlu0 %2266
    %2268 = vrot.lane.b32.xlu0 %v725, 32
    %v2269 = vpop.permute.xlu0 %2268
    %2270 = vrot.lane.b32.xlu0 %v728, 32
    %v2271 = vpop.permute.xlu0 %2270
    %2272 = vrot.lane.b32.xlu0 %v730, 32
    %v2273 = vpop.permute.xlu0 %2272
    %2274 = vrot.lane.b32.xlu0 %v733, 32
    %v2275 = vpop.permute.xlu0 %2274
    %2276 = vrot.lane.b32.xlu0 %v735, 32
    %v2277 = vpop.permute.xlu0 %2276
    %2278 = vrot.lane.b32.xlu0 %v738, 32
    %v2279 = vpop.permute.xlu0 %2278
    %2280 = vrot.lane.b32.xlu0 %v740, 32
    %v2281 = vpop.permute.xlu0 %2280
    %2282 = vrot.lane.b32.xlu0 %v743, 32
    %v2283 = vpop.permute.xlu0 %2282
    %2284 = vrot.lane.b32.xlu0 %v745, 32
    %v2285 = vpop.permute.xlu0 %2284
    %2286 = vrot.lane.b32.xlu0 %v748, 32
    %v2287 = vpop.permute.xlu0 %2286
    %2288 = vrot.lane.b32.xlu0 %v750, 32
    %v2289 = vpop.permute.xlu0 %2288
    %2290 = vrot.lane.b32.xlu0 %v753, 32
    %v2291 = vpop.permute.xlu0 %2290
    %2292 = vrot.lane.b32.xlu0 %v755, 32
    %v2293 = vpop.permute.xlu0 %2292
    %2294 = vrot.lane.b32.xlu0 %v758, 32
    %v2295 = vpop.permute.xlu0 %2294
    %2296 = vrot.lane.b32.xlu0 %v760, 32
    %v2297 = vpop.permute.xlu0 %2296
    %2298 = vrot.lane.b32.xlu0 %v763, 32
    %v2299 = vpop.permute.xlu0 %2298
    %2300 = vrot.lane.b32.xlu0 %v765, 32
    %v2301 = vpop.permute.xlu0 %2300
    %2302 = vrot.lane.b32.xlu0 %v768, 32
    %v2303 = vpop.permute.xlu0 %2302
    %2304 = vrot.lane.b32.xlu0 %v770, 32
    %v2305 = vpop.permute.xlu0 %2304
    %2306 = vrot.lane.b32.xlu0 %v773, 32
    %v2307 = vpop.permute.xlu0 %2306
    %2308 = vrot.lane.b32.xlu0 %v775, 32
    %v2309 = vpop.permute.xlu0 %2308
    %2310 = vrot.lane.b32.xlu0 %v778, 32
    %v2311 = vpop.permute.xlu0 %2310
    %2312 = vrot.lane.b32.xlu0 %v780, 32
    %v2313 = vpop.permute.xlu0 %2312
    %2314 = vrot.lane.b32.xlu0 %v783, 32
    %v2315 = vpop.permute.xlu0 %2314
    %2316 = vrot.lane.b32.xlu0 %v785, 32
    %v2317 = vpop.permute.xlu0 %2316
    %2318 = vrot.lane.b32.xlu0 %v884, 32
    %v2319 = vpop.permute.xlu0 %2318
    %2320 = vrot.lane.b32.xlu0 %v886, 32
    %v2321 = vpop.permute.xlu0 %2320
    %2322 = vrot.lane.b32.xlu0 %v910, 32
    %v2323 = vpop.permute.xlu0 %2322
    %2324 = vrot.lane.b32.xlu0 %v912, 32
    %v2325 = vpop.permute.xlu0 %2324
    %2326 = vrot.lane.b32.xlu0 %v798, 32
    %v2327 = vpop.permute.xlu0 %2326
    %2328 = vrot.lane.b32.xlu0 %v800, 32
    %v2329 = vpop.permute.xlu0 %2328
    %2330 = vrot.lane.b32.xlu0 %v803, 32
    %v2331 = vpop.permute.xlu0 %2330
    %2332 = vrot.lane.b32.xlu0 %v805, 32
    %v2333 = vpop.permute.xlu0 %2332
    %2334 = vrot.lane.b32.xlu0 %v808, 32
    %v2335 = vpop.permute.xlu0 %2334
    %2336 = vrot.lane.b32.xlu0 %v810, 32
    %v2337 = vpop.permute.xlu0 %2336
    %2338 = vrot.lane.b32.xlu0 %v813, 32
    %v2339 = vpop.permute.xlu0 %2338
    %2340 = vrot.lane.b32.xlu0 %v815, 32
    %v2341 = vpop.permute.xlu0 %2340
    %2342 = vrot.lane.b32.xlu0 %v818, 32
    %v2343 = vpop.permute.xlu0 %2342
    %2344 = vrot.lane.b32.xlu0 %v820, 32
    %v2345 = vpop.permute.xlu0 %2344
    %2346 = vrot.lane.b32.xlu0 %v823, 32
    %v2347 = vpop.permute.xlu0 %2346
    %2348 = vrot.lane.b32.xlu0 %v825, 32
    %v2349 = vpop.permute.xlu0 %2348
    %2350 = vrot.lane.b32.xlu0 %v828, 32
    %v2351 = vpop.permute.xlu0 %2350
    %2352 = vrot.lane.b32.xlu0 %v830, 32
    %v2353 = vpop.permute.xlu0 %2352
    %2354 = vrot.lane.b32.xlu0 %v833, 32
    %v2355 = vpop.permute.xlu0 %2354
    %2356 = vrot.lane.b32.xlu0 %v835, 32
    %v2357 = vpop.permute.xlu0 %2356
    %2358 = vrot.lane.b32.xlu0 %v838, 32
    %v2359 = vpop.permute.xlu0 %2358
    %2360 = vrot.lane.b32.xlu0 %v840, 32
    %v2361 = vpop.permute.xlu0 %2360
    %2362 = vrot.lane.b32.xlu0 %v843, 32
    %v2363 = vpop.permute.xlu0 %2362
    %2364 = vrot.lane.b32.xlu0 %v845, 32
    %v2365 = vpop.permute.xlu0 %2364
    %2366 = vrot.lane.b32.xlu0 %v848, 32
    %v2367 = vpop.permute.xlu0 %2366
    %2368 = vrot.lane.b32.xlu0 %v850, 32
    %v2369 = vpop.permute.xlu0 %2368
    %2370 = vrot.lane.b32.xlu0 %v853, 32
    %v2371 = vpop.permute.xlu0 %2370
    %2372 = vrot.lane.b32.xlu0 %v855, 32
    %v2373 = vpop.permute.xlu0 %2372
    %2374 = vrot.lane.b32.xlu0 %v858, 32
    %v2375 = vpop.permute.xlu0 %2374
    %2376 = vrot.lane.b32.xlu0 %v860, 32
    %v2377 = vpop.permute.xlu0 %2376
    %2378 = vrot.lane.b32.xlu0 %v863, 32
    %v2379 = vpop.permute.xlu0 %2378
    %2380 = vrot.lane.b32.xlu0 %v865, 32
    %v2381 = vpop.permute.xlu0 %2380
    %2382 = vrot.lane.b32.xlu0 %v889, 32
    %v2383 = vpop.permute.xlu0 %2382
    %2384 = vrot.lane.b32.xlu0 %v891, 32
    %v2385 = vpop.permute.xlu0 %2384
    %2386 = vrot.lane.b32.xlu0 %v915, 32
    %v2387 = vpop.permute.xlu0 %2386
    %2388 = vrot.lane.b32.xlu0 %v917, 32
    %v2389 = vpop.permute.xlu0 %2388
    %v2454 = vsel %vm165, %v340, %v919
    %v2455 = vsel %vm165, %v341, %v921
    %v2456 = vsel %vm165, %v343, %v923
    %v2457 = vsel %vm165, %v344, %v925
    %v2458 = vsel %vm165, %v346, %v927
    %v2459 = vsel %vm165, %v347, %v929
    %v2460 = vsel %vm165, %v349, %v931
    %v2461 = vsel %vm165, %v350, %v933
    %v2462 = vsel %vm165, %v352, %v935
    %v2463 = vsel %vm165, %v353, %v937
    %v2464 = vsel %vm165, %v355, %v939
    %v2465 = vsel %vm165, %v356, %v941
    %v2466 = vsel %vm165, %v358, %v943
    %v2467 = vsel %vm165, %v359, %v945
    %v2468 = vsel %vm165, %v361, %v947
    %v2469 = vsel %vm165, %v362, %v949
    %v2470 = vsel %vm165, %v364, %v951
    %v2471 = vsel %vm165, %v365, %v953
    %v2472 = vsel %vm165, %v367, %v955
    %v2473 = vsel %vm165, %v368, %v957
    %v2474 = vsel %vm165, %v370, %v959
    %v2475 = vsel %vm165, %v371, %v961
    %v2476 = vsel %vm165, %v373, %v963
    %v2477 = vsel %vm165, %v374, %v965
    %v2478 = vsel %vm165, %v376, %v967
    %v2479 = vsel %vm165, %v377, %v969
    %v2480 = vsel %vm165, %v379, %v971
    %v2481 = vsel %vm165, %v380, %v973
    %v2482 = vsel %vm165, %v382, %v975
    %v2483 = vsel %vm165, %v383, %v977
    %v2484 = vsel %vm165, %v385, %v979
    %v2485 = vsel %vm165, %v386, %v981
    %v2486 = vsel %vm165, %v394, %v983
    %v2487 = vsel %vm165, %v395, %v985
    %v2488 = vsel %vm165, %v397, %v987
    %v2489 = vsel %vm165, %v398, %v989
    %v2490 = vsel %vm165, %v400, %v991
    %v2491 = vsel %vm165, %v401, %v993
    %v2492 = vsel %vm165, %v403, %v995
    %v2493 = vsel %vm165, %v404, %v997
    %v2494 = vsel %vm165, %v406, %v999
    %v2495 = vsel %vm165, %v407, %v1001
    %v2496 = vsel %vm165, %v409, %v1003
    %v2497 = vsel %vm165, %v410, %v1005
    %v2498 = vsel %vm165, %v412, %v1007
    %v2499 = vsel %vm165, %v413, %v1009
    %v2500 = vsel %vm165, %v415, %v1011
    %v2501 = vsel %vm165, %v416, %v1013
    %v2502 = vsel %vm165, %v418, %v1015
    %v2503 = vsel %vm165, %v419, %v1017
    %v2504 = vsel %vm165, %v421, %v1019
    %v2505 = vsel %vm165, %v422, %v1021
    %v2506 = vsel %vm165, %v424, %v1023
    %v2507 = vsel %vm165, %v425, %v1025
    %v2508 = vsel %vm165, %v427, %v1027
    %v2509 = vsel %vm165, %v428, %v1029
    %v2510 = vsel %vm165, %v430, %v1031
    %v2511 = vsel %vm165, %v431, %v1033
    %v2512 = vsel %vm165, %v433, %v1035
    %v2513 = vsel %vm165, %v434, %v1037
    %v2514 = vsel %vm165, %v436, %v1039
    %v2515 = vsel %vm165, %v437, %v1041
    %v2516 = vsel %vm165, %v439, %v1043
    %v2517 = vsel %vm165, %v440, %v1045
    %vm2518 = vcmask 64512
    %v2519 = vsel %vm2518, %v2454, %v1111
    %v2520 = vsel %vm2518, %v2455, %v1113
    %v2521 = vsel %vm2518, %v2456, %v1115
    %v2522 = vsel %vm2518, %v2457, %v1117
    %v2523 = vsel %vm2518, %v2458, %v1119
    %v2524 = vsel %vm2518, %v2459, %v1121
    %v2525 = vsel %vm2518, %v2460, %v1123
    %v2526 = vsel %vm2518, %v2461, %v1125
    %v2527 = vsel %vm2518, %v2462, %v1127
    %v2528 = vsel %vm2518, %v2463, %v1129
    %v2529 = vsel %vm2518, %v2464, %v1131
    %v2530 = vsel %vm2518, %v2465, %v1133
    %v2531 = vsel %vm2518, %v2466, %v1135
    %v2532 = vsel %vm2518, %v2467, %v1137
    %v2533 = vsel %vm2518, %v2468, %v1139
    %v2534 = vsel %vm2518, %v2469, %v1141
    %v2535 = vsel %vm2518, %v2470, %v1143
    %v2536 = vsel %vm2518, %v2471, %v1145
    %v2537 = vsel %vm2518, %v2472, %v1147
    %v2538 = vsel %vm2518, %v2473, %v1149
    %v2539 = vsel %vm2518, %v2474, %v1151
    %v2540 = vsel %vm2518, %v2475, %v1153
    %v2541 = vsel %vm2518, %v2476, %v1155
    %v2542 = vsel %vm2518, %v2477, %v1157
    %v2543 = vsel %vm2518, %v2478, %v1159
    %v2544 = vsel %vm2518, %v2479, %v1161
    %v2545 = vsel %vm2518, %v2480, %v1163
    %v2546 = vsel %vm2518, %v2481, %v1165
    %v2547 = vsel %vm2518, %v2482, %v1167
    %v2548 = vsel %vm2518, %v2483, %v1169
    %v2549 = vsel %vm2518, %v2484, %v1171
    %v2550 = vsel %vm2518, %v2485, %v1173
    %v2551 = vsel %vm2518, %v2486, %v1175
    %v2552 = vsel %vm2518, %v2487, %v1177
    %v2553 = vsel %vm2518, %v2488, %v1179
    %v2554 = vsel %vm2518, %v2489, %v1181
    %v2555 = vsel %vm2518, %v2490, %v1183
    %v2556 = vsel %vm2518, %v2491, %v1185
    %v2557 = vsel %vm2518, %v2492, %v1187
    %v2558 = vsel %vm2518, %v2493, %v1189
    %v2559 = vsel %vm2518, %v2494, %v1191
    %v2560 = vsel %vm2518, %v2495, %v1193
    %v2561 = vsel %vm2518, %v2496, %v1195
    %v2562 = vsel %vm2518, %v2497, %v1197
    %v2563 = vsel %vm2518, %v2498, %v1199
    %v2564 = vsel %vm2518, %v2499, %v1201
    %v2565 = vsel %vm2518, %v2500, %v1203
    %v2566 = vsel %vm2518, %v2501, %v1205
    %v2567 = vsel %vm2518, %v2502, %v1207
    %v2568 = vsel %vm2518, %v2503, %v1209
    %v2569 = vsel %vm2518, %v2504, %v1211
    %v2570 = vsel %vm2518, %v2505, %v1213
    %v2571 = vsel %vm2518, %v2506, %v1215
    %v2572 = vsel %vm2518, %v2507, %v1217
    %v2573 = vsel %vm2518, %v2508, %v1219
    %v2574 = vsel %vm2518, %v2509, %v1221
    %v2575 = vsel %vm2518, %v2510, %v1223
    %v2576 = vsel %vm2518, %v2511, %v1225
    %v2577 = vsel %vm2518, %v2512, %v1227
    %v2578 = vsel %vm2518, %v2513, %v1229
    %v2579 = vsel %vm2518, %v2514, %v1231
    %v2580 = vsel %vm2518, %v2515, %v1233
    %v2581 = vsel %vm2518, %v2516, %v1235
    %v2582 = vsel %vm2518, %v2517, %v1237
    %vm2583 = vcmask 97280
    %v2584 = vsel %vm2583, %v2519, %v1303
    %v2585 = vsel %vm2583, %v2520, %v1305
    %v2586 = vsel %vm2583, %v2521, %v1307
    %v2587 = vsel %vm2583, %v2522, %v1309
    %v2588 = vsel %vm2583, %v2523, %v1311
    %v2589 = vsel %vm2583, %v2524, %v1313
    %v2590 = vsel %vm2583, %v2525, %v1315
    %v2591 = vsel %vm2583, %v2526, %v1317
    %v2592 = vsel %vm2583, %v2527, %v1319
    %v2593 = vsel %vm2583, %v2528, %v1321
    %v2594 = vsel %vm2583, %v2529, %v1323
    %v2595 = vsel %vm2583, %v2530, %v1325
    %v2596 = vsel %vm2583, %v2531, %v1327
    %v2597 = vsel %vm2583, %v2532, %v1329
    %v2598 = vsel %vm2583, %v2533, %v1331
    %v2599 = vsel %vm2583, %v2534, %v1333
    %v2600 = vsel %vm2583, %v2535, %v1335
    %v2601 = vsel %vm2583, %v2536, %v1337
    %v2602 = vsel %vm2583, %v2537, %v1339
    %v2603 = vsel %vm2583, %v2538, %v1341
    %v2604 = vsel %vm2583, %v2539, %v1343
    %v2605 = vsel %vm2583, %v2540, %v1345
    %v2606 = vsel %vm2583, %v2541, %v1347
    %v2607 = vsel %vm2583, %v2542, %v1349
    %v2608 = vsel %vm2583, %v2543, %v1351
    %v2609 = vsel %vm2583, %v2544, %v1353
    %v2610 = vsel %vm2583, %v2545, %v1355
    %v2611 = vsel %vm2583, %v2546, %v1357
    %v2612 = vsel %vm2583, %v2547, %v1359
    %v2613 = vsel %vm2583, %v2548, %v1361
    %v2614 = vsel %vm2583, %v2549, %v1363
    %v2615 = vsel %vm2583, %v2550, %v1365
    %v2616 = vsel %vm2583, %v2551, %v1367
    %v2617 = vsel %vm2583, %v2552, %v1369
    %v2618 = vsel %vm2583, %v2553, %v1371
    %v2619 = vsel %vm2583, %v2554, %v1373
    %v2620 = vsel %vm2583, %v2555, %v1375
    %v2621 = vsel %vm2583, %v2556, %v1377
    %v2622 = vsel %vm2583, %v2557, %v1379
    %v2623 = vsel %vm2583, %v2558, %v1381
    %v2624 = vsel %vm2583, %v2559, %v1383
    %v2625 = vsel %vm2583, %v2560, %v1385
    %v2626 = vsel %vm2583, %v2561, %v1387
    %v2627 = vsel %vm2583, %v2562, %v1389
    %v2628 = vsel %vm2583, %v2563, %v1391
    %v2629 = vsel %vm2583, %v2564, %v1393
    %v2630 = vsel %vm2583, %v2565, %v1395
    %v2631 = vsel %vm2583, %v2566, %v1397
    %v2632 = vsel %vm2583, %v2567, %v1399
    %v2633 = vsel %vm2583, %v2568, %v1401
    %v2634 = vsel %vm2583, %v2569, %v1403
    %v2635 = vsel %vm2583, %v2570, %v1405
    %v2636 = vsel %vm2583, %v2571, %v1407
    %v2637 = vsel %vm2583, %v2572, %v1409
    %v2638 = vsel %vm2583, %v2573, %v1411
    %v2639 = vsel %vm2583, %v2574, %v1413
    %v2640 = vsel %vm2583, %v2575, %v1415
    %v2641 = vsel %vm2583, %v2576, %v1417
    %v2642 = vsel %vm2583, %v2577, %v1419
    %v2643 = vsel %vm2583, %v2578, %v1421
    %v2644 = vsel %vm2583, %v2579, %v1423
    %v2645 = vsel %vm2583, %v2580, %v1425
    %v2646 = vsel %vm2583, %v2581, %v1427
    %v2647 = vsel %vm2583, %v2582, %v1429
    %vm2648 = vcmask 130048
    %v2649 = vsel %vm2648, %v2584, %v1495
    %v2650 = vsel %vm2648, %v2585, %v1497
    %v2651 = vsel %vm2648, %v2586, %v1499
    %v2652 = vsel %vm2648, %v2587, %v1501
    %v2653 = vsel %vm2648, %v2588, %v1503
    %v2654 = vsel %vm2648, %v2589, %v1505
    %v2655 = vsel %vm2648, %v2590, %v1507
    %v2656 = vsel %vm2648, %v2591, %v1509
    %v2657 = vsel %vm2648, %v2592, %v1511
    %v2658 = vsel %vm2648, %v2593, %v1513
    %v2659 = vsel %vm2648, %v2594, %v1515
    %v2660 = vsel %vm2648, %v2595, %v1517
    %v2661 = vsel %vm2648, %v2596, %v1519
    %v2662 = vsel %vm2648, %v2597, %v1521
    %v2663 = vsel %vm2648, %v2598, %v1523
    %v2664 = vsel %vm2648, %v2599, %v1525
    %v2665 = vsel %vm2648, %v2600, %v1527
    %v2666 = vsel %vm2648, %v2601, %v1529
    %v2667 = vsel %vm2648, %v2602, %v1531
    %v2668 = vsel %vm2648, %v2603, %v1533
    %v2669 = vsel %vm2648, %v2604, %v1535
    %v2670 = vsel %vm2648, %v2605, %v1537
    %v2671 = vsel %vm2648, %v2606, %v1539
    %v2672 = vsel %vm2648, %v2607, %v1541
    %v2673 = vsel %vm2648, %v2608, %v1543
    %v2674 = vsel %vm2648, %v2609, %v1545
    %v2675 = vsel %vm2648, %v2610, %v1547
    %v2676 = vsel %vm2648, %v2611, %v1549
    %v2677 = vsel %vm2648, %v2612, %v1551
    %v2678 = vsel %vm2648, %v2613, %v1553
    %v2679 = vsel %vm2648, %v2614, %v1555
    %v2680 = vsel %vm2648, %v2615, %v1557
    %v2681 = vsel %vm2648, %v2616, %v1559
    %v2682 = vsel %vm2648, %v2617, %v1561
    %v2683 = vsel %vm2648, %v2618, %v1563
    %v2684 = vsel %vm2648, %v2619, %v1565
    %v2685 = vsel %vm2648, %v2620, %v1567
    %v2686 = vsel %vm2648, %v2621, %v1569
    %v2687 = vsel %vm2648, %v2622, %v1571
    %v2688 = vsel %vm2648, %v2623, %v1573
    %v2689 = vsel %vm2648, %v2624, %v1575
    %v2690 = vsel %vm2648, %v2625, %v1577
    %v2691 = vsel %vm2648, %v2626, %v1579
    %v2692 = vsel %vm2648, %v2627, %v1581
    %v2693 = vsel %vm2648, %v2628, %v1583
    %v2694 = vsel %vm2648, %v2629, %v1585
    %v2695 = vsel %vm2648, %v2630, %v1587
    %v2696 = vsel %vm2648, %v2631, %v1589
    %v2697 = vsel %vm2648, %v2632, %v1591
    %v2698 = vsel %vm2648, %v2633, %v1593
    %v2699 = vsel %vm2648, %v2634, %v1595
    %v2700 = vsel %vm2648, %v2635, %v1597
    %v2701 = vsel %vm2648, %v2636, %v1599
    %v2702 = vsel %vm2648, %v2637, %v1601
    %v2703 = vsel %vm2648, %v2638, %v1603
    %v2704 = vsel %vm2648, %v2639, %v1605
    %v2705 = vsel %vm2648, %v2640, %v1607
    %v2706 = vsel %vm2648, %v2641, %v1609
    %v2707 = vsel %vm2648, %v2642, %v1611
    %v2708 = vsel %vm2648, %v2643, %v1613
    %v2709 = vsel %vm2648, %v2644, %v1615
    %v2710 = vsel %vm2648, %v2645, %v1617
    %v2711 = vsel %vm2648, %v2646, %v1619
    %v2712 = vsel %vm2648, %v2647, %v1621
    %vm2713 = vcmask 162816
    %v2714 = vsel %vm2713, %v2649, %v1687
    %v2715 = vsel %vm2713, %v2650, %v1689
    %v2716 = vsel %vm2713, %v2651, %v1691
    %v2717 = vsel %vm2713, %v2652, %v1693
    %v2718 = vsel %vm2713, %v2653, %v1695
    %v2719 = vsel %vm2713, %v2654, %v1697
    %v2720 = vsel %vm2713, %v2655, %v1699
    %v2721 = vsel %vm2713, %v2656, %v1701
    %v2722 = vsel %vm2713, %v2657, %v1703
    %v2723 = vsel %vm2713, %v2658, %v1705
    %v2724 = vsel %vm2713, %v2659, %v1707
    %v2725 = vsel %vm2713, %v2660, %v1709
    %v2726 = vsel %vm2713, %v2661, %v1711
    %v2727 = vsel %vm2713, %v2662, %v1713
    %v2728 = vsel %vm2713, %v2663, %v1715
    %v2729 = vsel %vm2713, %v2664, %v1717
    %v2730 = vsel %vm2713, %v2665, %v1719
    %v2731 = vsel %vm2713, %v2666, %v1721
    %v2732 = vsel %vm2713, %v2667, %v1723
    %v2733 = vsel %vm2713, %v2668, %v1725
    %v2734 = vsel %vm2713, %v2669, %v1727
    %v2735 = vsel %vm2713, %v2670, %v1729
    %v2736 = vsel %vm2713, %v2671, %v1731
    %v2737 = vsel %vm2713, %v2672, %v1733
    %v2738 = vsel %vm2713, %v2673, %v1735
    %v2739 = vsel %vm2713, %v2674, %v1737
    %v2740 = vsel %vm2713, %v2675, %v1739
    %v2741 = vsel %vm2713, %v2676, %v1741
    %v2742 = vsel %vm2713, %v2677, %v1743
    %v2743 = vsel %vm2713, %v2678, %v1745
    %v2744 = vsel %vm2713, %v2679, %v1747
    %v2745 = vsel %vm2713, %v2680, %v1749
    %v2746 = vsel %vm2713, %v2681, %v1751
    %v2747 = vsel %vm2713, %v2682, %v1753
    %v2748 = vsel %vm2713, %v2683, %v1755
    %v2749 = vsel %vm2713, %v2684, %v1757
    %v2750 = vsel %vm2713, %v2685, %v1759
    %v2751 = vsel %vm2713, %v2686, %v1761
    %v2752 = vsel %vm2713, %v2687, %v1763
    %v2753 = vsel %vm2713, %v2688, %v1765
    %v2754 = vsel %vm2713, %v2689, %v1767
    %v2755 = vsel %vm2713, %v2690, %v1769
    %v2756 = vsel %vm2713, %v2691, %v1771
    %v2757 = vsel %vm2713, %v2692, %v1773
    %v2758 = vsel %vm2713, %v2693, %v1775
    %v2759 = vsel %vm2713, %v2694, %v1777
    %v2760 = vsel %vm2713, %v2695, %v1779
    %v2761 = vsel %vm2713, %v2696, %v1781
    %v2762 = vsel %vm2713, %v2697, %v1783
    %v2763 = vsel %vm2713, %v2698, %v1785
    %v2764 = vsel %vm2713, %v2699, %v1787
    %v2765 = vsel %vm2713, %v2700, %v1789
    %v2766 = vsel %vm2713, %v2701, %v1791
    %v2767 = vsel %vm2713, %v2702, %v1793
    %v2768 = vsel %vm2713, %v2703, %v1795
    %v2769 = vsel %vm2713, %v2704, %v1797
    %v2770 = vsel %vm2713, %v2705, %v1799
    %v2771 = vsel %vm2713, %v2706, %v1801
    %v2772 = vsel %vm2713, %v2707, %v1803
    %v2773 = vsel %vm2713, %v2708, %v1805
    %v2774 = vsel %vm2713, %v2709, %v1807
    %v2775 = vsel %vm2713, %v2710, %v1809
    %v2776 = vsel %vm2713, %v2711, %v1811
    %v2777 = vsel %vm2713, %v2712, %v1813
    %vm2778 = vcmask 195584
    %v2779 = vsel %vm2778, %v2714, %v1879
    %v2780 = vsel %vm2778, %v2715, %v1881
    %v2781 = vsel %vm2778, %v2716, %v1883
    %v2782 = vsel %vm2778, %v2717, %v1885
    %v2783 = vsel %vm2778, %v2718, %v1887
    %v2784 = vsel %vm2778, %v2719, %v1889
    %v2785 = vsel %vm2778, %v2720, %v1891
    %v2786 = vsel %vm2778, %v2721, %v1893
    %v2787 = vsel %vm2778, %v2722, %v1895
    %v2788 = vsel %vm2778, %v2723, %v1897
    %v2789 = vsel %vm2778, %v2724, %v1899
    %v2790 = vsel %vm2778, %v2725, %v1901
    %v2791 = vsel %vm2778, %v2726, %v1903
    %v2792 = vsel %vm2778, %v2727, %v1905
    %v2793 = vsel %vm2778, %v2728, %v1907
    %v2794 = vsel %vm2778, %v2729, %v1909
    %v2795 = vsel %vm2778, %v2730, %v1911
    %v2796 = vsel %vm2778, %v2731, %v1913
    %v2797 = vsel %vm2778, %v2732, %v1915
    %v2798 = vsel %vm2778, %v2733, %v1917
    %v2799 = vsel %vm2778, %v2734, %v1919
    %v2800 = vsel %vm2778, %v2735, %v1921
    %v2801 = vsel %vm2778, %v2736, %v1923
    %v2802 = vsel %vm2778, %v2737, %v1925
    %v2803 = vsel %vm2778, %v2738, %v1927
    %v2804 = vsel %vm2778, %v2739, %v1929
    %v2805 = vsel %vm2778, %v2740, %v1931
    %v2806 = vsel %vm2778, %v2741, %v1933
    %v2807 = vsel %vm2778, %v2742, %v1935
    %v2808 = vsel %vm2778, %v2743, %v1937
    %v2809 = vsel %vm2778, %v2744, %v1939
    %v2810 = vsel %vm2778, %v2745, %v1941
    %v2811 = vsel %vm2778, %v2746, %v1943
    %v2812 = vsel %vm2778, %v2747, %v1945
    %v2813 = vsel %vm2778, %v2748, %v1947
    %v2814 = vsel %vm2778, %v2749, %v1949
    %v2815 = vsel %vm2778, %v2750, %v1951
    %v2816 = vsel %vm2778, %v2751, %v1953
    %v2817 = vsel %vm2778, %v2752, %v1955
    %v2818 = vsel %vm2778, %v2753, %v1957
    %v2819 = vsel %vm2778, %v2754, %v1959
    %v2820 = vsel %vm2778, %v2755, %v1961
    %v2821 = vsel %vm2778, %v2756, %v1963
    %v2822 = vsel %vm2778, %v2757, %v1965
    %v2823 = vsel %vm2778, %v2758, %v1967
    %v2824 = vsel %vm2778, %v2759, %v1969
    %v2825 = vsel %vm2778, %v2760, %v1971
    %v2826 = vsel %vm2778, %v2761, %v1973
    %v2827 = vsel %vm2778, %v2762, %v1975
    %v2828 = vsel %vm2778, %v2763, %v1977
    %v2829 = vsel %vm2778, %v2764, %v1979
    %v2830 = vsel %vm2778, %v2765, %v1981
    %v2831 = vsel %vm2778, %v2766, %v1983
    %v2832 = vsel %vm2778, %v2767, %v1985
    %v2833 = vsel %vm2778, %v2768, %v1987
    %v2834 = vsel %vm2778, %v2769, %v1989
    %v2835 = vsel %vm2778, %v2770, %v1991
    %v2836 = vsel %vm2778, %v2771, %v1993
    %v2837 = vsel %vm2778, %v2772, %v1995
    %v2838 = vsel %vm2778, %v2773, %v1997
    %v2839 = vsel %vm2778, %v2774, %v1999
    %v2840 = vsel %vm2778, %v2775, %v2001
    %v2841 = vsel %vm2778, %v2776, %v2003
    %v2842 = vsel %vm2778, %v2777, %v2005
    %vm2843 = vcmask 228352
    %v2844 = vsel %vm2843, %v2779, %v2071
    %v2845 = vsel %vm2843, %v2780, %v2073
    %v2846 = vsel %vm2843, %v2781, %v2075
    %v2847 = vsel %vm2843, %v2782, %v2077
    %v2848 = vsel %vm2843, %v2783, %v2079
    %v2849 = vsel %vm2843, %v2784, %v2081
    %v2850 = vsel %vm2843, %v2785, %v2083
    %v2851 = vsel %vm2843, %v2786, %v2085
    %v2852 = vsel %vm2843, %v2787, %v2087
    %v2853 = vsel %vm2843, %v2788, %v2089
    %v2854 = vsel %vm2843, %v2789, %v2091
    %v2855 = vsel %vm2843, %v2790, %v2093
    %v2856 = vsel %vm2843, %v2791, %v2095
    %v2857 = vsel %vm2843, %v2792, %v2097
    %v2858 = vsel %vm2843, %v2793, %v2099
    %v2859 = vsel %vm2843, %v2794, %v2101
    %v2860 = vsel %vm2843, %v2795, %v2103
    %v2861 = vsel %vm2843, %v2796, %v2105
    %v2862 = vsel %vm2843, %v2797, %v2107
    %v2863 = vsel %vm2843, %v2798, %v2109
    %v2864 = vsel %vm2843, %v2799, %v2111
    %v2865 = vsel %vm2843, %v2800, %v2113
    %v2866 = vsel %vm2843, %v2801, %v2115
    %v2867 = vsel %vm2843, %v2802, %v2117
    %v2868 = vsel %vm2843, %v2803, %v2119
    %v2869 = vsel %vm2843, %v2804, %v2121
    %v2870 = vsel %vm2843, %v2805, %v2123
    %v2871 = vsel %vm2843, %v2806, %v2125
    %v2872 = vsel %vm2843, %v2807, %v2127
    %v2873 = vsel %vm2843, %v2808, %v2129
    %v2874 = vsel %vm2843, %v2809, %v2131
    %v2875 = vsel %vm2843, %v2810, %v2133
    %v2876 = vsel %vm2843, %v2811, %v2135
    %v2877 = vsel %vm2843, %v2812, %v2137
    %v2878 = vsel %vm2843, %v2813, %v2139
    %v2879 = vsel %vm2843, %v2814, %v2141
    %v2880 = vsel %vm2843, %v2815, %v2143
    %v2881 = vsel %vm2843, %v2816, %v2145
    %v2882 = vsel %vm2843, %v2817, %v2147
    %v2883 = vsel %vm2843, %v2818, %v2149
    %v2884 = vsel %vm2843, %v2819, %v2151
    %v2885 = vsel %vm2843, %v2820, %v2153
    %v2886 = vsel %vm2843, %v2821, %v2155
    %v2887 = vsel %vm2843, %v2822, %v2157
    %v2888 = vsel %vm2843, %v2823, %v2159
    %v2889 = vsel %vm2843, %v2824, %v2161
    %v2890 = vsel %vm2843, %v2825, %v2163
    %v2891 = vsel %vm2843, %v2826, %v2165
    %v2892 = vsel %vm2843, %v2827, %v2167
    %v2893 = vsel %vm2843, %v2828, %v2169
    %v2894 = vsel %vm2843, %v2829, %v2171
    %v2895 = vsel %vm2843, %v2830, %v2173
    %v2896 = vsel %vm2843, %v2831, %v2175
    %v2897 = vsel %vm2843, %v2832, %v2177
    %v2898 = vsel %vm2843, %v2833, %v2179
    %v2899 = vsel %vm2843, %v2834, %v2181
    %v2900 = vsel %vm2843, %v2835, %v2183
    %v2901 = vsel %vm2843, %v2836, %v2185
    %v2902 = vsel %vm2843, %v2837, %v2187
    %v2903 = vsel %vm2843, %v2838, %v2189
    %v2904 = vsel %vm2843, %v2839, %v2191
    %v2905 = vsel %vm2843, %v2840, %v2193
    %v2906 = vsel %vm2843, %v2841, %v2195
    %v2907 = vsel %vm2843, %v2842, %v2197
    %vm2908 = vcmask 261120
    %v2909 = vsel %vm2908, %v2844, %v2263
    %v2910 = vsel %vm2908, %v2845, %v2265
    %v2911 = vsel %vm2908, %v2846, %v2267
    %v2912 = vsel %vm2908, %v2847, %v2269
    %v2913 = vsel %vm2908, %v2848, %v2271
    %v2914 = vsel %vm2908, %v2849, %v2273
    %v2915 = vsel %vm2908, %v2850, %v2275
    %v2916 = vsel %vm2908, %v2851, %v2277
    %v2917 = vsel %vm2908, %v2852, %v2279
    %v2918 = vsel %vm2908, %v2853, %v2281
    %v2919 = vsel %vm2908, %v2854, %v2283
    %v2920 = vsel %vm2908, %v2855, %v2285
    %v2921 = vsel %vm2908, %v2856, %v2287
    %v2922 = vsel %vm2908, %v2857, %v2289
    %v2923 = vsel %vm2908, %v2858, %v2291
    %v2924 = vsel %vm2908, %v2859, %v2293
    %v2925 = vsel %vm2908, %v2860, %v2295
    %v2926 = vsel %vm2908, %v2861, %v2297
    %v2927 = vsel %vm2908, %v2862, %v2299
    %v2928 = vsel %vm2908, %v2863, %v2301
    %v2929 = vsel %vm2908, %v2864, %v2303
    %v2930 = vsel %vm2908, %v2865, %v2305
    %v2931 = vsel %vm2908, %v2866, %v2307
    %v2932 = vsel %vm2908, %v2867, %v2309
    %v2933 = vsel %vm2908, %v2868, %v2311
    %v2934 = vsel %vm2908, %v2869, %v2313
    %v2935 = vsel %vm2908, %v2870, %v2315
    %v2936 = vsel %vm2908, %v2871, %v2317
    %v2937 = vsel %vm2908, %v2872, %v2319
    %v2938 = vsel %vm2908, %v2873, %v2321
    %v2939 = vsel %vm2908, %v2874, %v2323
    %v2940 = vsel %vm2908, %v2875, %v2325
    %v2941 = vsel %vm2908, %v2876, %v2327
    %v2942 = vsel %vm2908, %v2877, %v2329
    %v2943 = vsel %vm2908, %v2878, %v2331
    %v2944 = vsel %vm2908, %v2879, %v2333
    %v2945 = vsel %vm2908, %v2880, %v2335
    %v2946 = vsel %vm2908, %v2881, %v2337
    %v2947 = vsel %vm2908, %v2882, %v2339
    %v2948 = vsel %vm2908, %v2883, %v2341
    %v2949 = vsel %vm2908, %v2884, %v2343
    %v2950 = vsel %vm2908, %v2885, %v2345
    %v2951 = vsel %vm2908, %v2886, %v2347
    %v2952 = vsel %vm2908, %v2887, %v2349
    %v2953 = vsel %vm2908, %v2888, %v2351
    %v2954 = vsel %vm2908, %v2889, %v2353
    %v2955 = vsel %vm2908, %v2890, %v2355
    %v2956 = vsel %vm2908, %v2891, %v2357
    %v2957 = vsel %vm2908, %v2892, %v2359
    %v2958 = vsel %vm2908, %v2893, %v2361
    %v2959 = vsel %vm2908, %v2894, %v2363
    %v2960 = vsel %vm2908, %v2895, %v2365
    %v2961 = vsel %vm2908, %v2896, %v2367
    %v2962 = vsel %vm2908, %v2897, %v2369
    %v2963 = vsel %vm2908, %v2898, %v2371
    %v2964 = vsel %vm2908, %v2899, %v2373
    %v2965 = vsel %vm2908, %v2900, %v2375
    %v2966 = vsel %vm2908, %v2901, %v2377
    %v2967 = vsel %vm2908, %v2902, %v2379
    %v2968 = vsel %vm2908, %v2903, %v2381
    %v2969 = vsel %vm2908, %v2904, %v2383
    %v2970 = vsel %vm2908, %v2905, %v2385
    %v2971 = vsel %vm2908, %v2906, %v2387
    %v2972 = vsel %vm2908, %v2907, %v2389
    %v2973 = vpack.c.bf16 %v2910, %v2909
    %v2974 = vpack.c.bf16 %v2912, %v2911
    %v2975 = vpack.c.bf16 %v2914, %v2913
    %v2976 = vpack.c.bf16 %v2916, %v2915
    %v2977 = vpack.c.bf16 %v2918, %v2917
    %v2978 = vpack.c.bf16 %v2920, %v2919
    %v2979 = vpack.c.bf16 %v2922, %v2921
    %v2980 = vpack.c.bf16 %v2924, %v2923
    %v2981 = vpack.c.bf16 %v2926, %v2925
    %v2982 = vpack.c.bf16 %v2928, %v2927
    %v2983 = vpack.c.bf16 %v2930, %v2929
    %v2984 = vpack.c.bf16 %v2932, %v2931
    %v2985 = vpack.c.bf16 %v2934, %v2933
    %v2986 = vpack.c.bf16 %v2936, %v2935
    %v2987 = vpack.c.bf16 %v2938, %v2937
    %v2988 = vpack.c.bf16 %v2940, %v2939
    %v2989 = vpack.c.bf16 %v2942, %v2941
    %v2990 = vpack.c.bf16 %v2944, %v2943
    %v2991 = vpack.c.bf16 %v2946, %v2945
    %v2992 = vpack.c.bf16 %v2948, %v2947
    %v2993 = vpack.c.bf16 %v2950, %v2949
    %v2994 = vpack.c.bf16 %v2952, %v2951
    %v2995 = vpack.c.bf16 %v2954, %v2953
    %v2996 = vpack.c.bf16 %v2956, %v2955
    %v2997 = vpack.c.bf16 %v2958, %v2957
    %v2998 = vpack.c.bf16 %v2960, %v2959
    %v2999 = vpack.c.bf16 %v2962, %v2961
    %v3000 = vpack.c.bf16 %v2964, %v2963
    %v3001 = vpack.c.bf16 %v2966, %v2965
    %v3002 = vpack.c.bf16 %v2968, %v2967
    %v3003 = vpack.c.bf16 %v2970, %v2969
    %v3004 = vpack.c.bf16 %v2972, %v2971
    %v3005 = vld [vmem:[%s1] sm:$0xf]
    %v3006 = vld [vmem:[%s1 + $0x4] sm:$0xf]
    %v3007 = vld [vmem:[%s1 + $0x8] sm:$0xf]
    %v3008 = vld [vmem:[%s1 + $0xc] sm:$0xf]
    %v3009 = vld [vmem:[%s1 + $0x10] sm:$0x3]
    %v3015 = vunpack.c.l.b16 %v3005
    %v3016 = vunpack.c.l.b16 %v3006
    %v3017 = vunpack.c.l.b16 %v3007
    %v3018 = vunpack.c.l.b16 %v3008
    %v3019 = vunpack.c.l.b16 %v3009
    %v3020 = vpack.c.b16 %v3016, %v3015
    %v3021 = vpack.c.b16 %v3018, %v3017
    %v3022 = vpack.c.b16 %v3019, %v3019
    %vm3025 = vcmask 293888
    %v3027 = vsel %vm3025, %v2973, 0
    %v3030 = vsel %vm3025, %v2974, 0
    %v3033 = vsel %vm3025, %v2975, 0
    %v3036 = vsel %vm3025, %v2976, 0
    %v3039 = vsel %vm3025, %v2977, 0
    %v3042 = vsel %vm3025, %v2978, 0
    %v3045 = vsel %vm3025, %v2979, 0
    %v3048 = vsel %vm3025, %v2980, 0
    %v3051 = vsel %vm3025, %v2981, 0
    %v3054 = vsel %vm3025, %v2982, 0
    %v3057 = vsel %vm3025, %v2983, 0
    %v3060 = vsel %vm3025, %v2984, 0
    %v3063 = vsel %vm3025, %v2985, 0
    %v3066 = vsel %vm3025, %v2986, 0
    %v3069 = vsel %vm3025, %v2987, 0
    %v3072 = vsel %vm3025, %v2988, 0
    %v3075 = vsel %vm3025, %v2989, 0
    %v3078 = vsel %vm3025, %v2990, 0
    %v3081 = vsel %vm3025, %v2991, 0
    %v3084 = vsel %vm3025, %v2992, 0
    %v3087 = vsel %vm3025, %v2993, 0
    %v3090 = vsel %vm3025, %v2994, 0
    %v3093 = vsel %vm3025, %v2995, 0
    %v3096 = vsel %vm3025, %v2996, 0
    %v3099 = vsel %vm3025, %v2997, 0
    %v3102 = vsel %vm3025, %v2998, 0
    %v3105 = vsel %vm3025, %v2999, 0
    %v3108 = vsel %vm3025, %v3000, 0
    %v3111 = vsel %vm3025, %v3001, 0
    %v3114 = vsel %vm3025, %v3002, 0
    %v3117 = vsel %vm3025, %v3003, 0
    %v3120 = vsel %vm3025, %v3004, 0
    %vm3122 = vcmask 1041408
    %v3124 = vsel %vm3122, %v3022, 0
    %3126 = vmatprep.subr.bf16.mxu0 0
    %3127 = vmatpush1.bf16.msra.mxu0 %v3020
    %3128 = vmatprep.subr.bf16.mxu0 0
    %3129 = vmatpush1.bf16.msra.mxu0 %v3021
    %3130 = vmatprep.subr.bf16.mxu0 0
    %3131 = vmatpush1.bf16.msra.mxu0 %v3124
    %3132 = vmatprep.subr.bf16.mxu0 0
    %3133 = vmatpush1.bf16.msra.mxu0 0
    %3134 = vmatprep.subr.bf16.mxu0 0
    %3135 = vmatpush1.bf16.msra.mxu0 0
    %3136 = vmatprep.subr.bf16.mxu0 0
    %3137 = vmatpush1.bf16.msra.mxu0 0
    %3138 = vmatprep.subr.bf16.mxu0 0
    %3139 = vmatpush1.bf16.msra.mxu0 0
    %3140 = vmatprep.subr.bf16.mxu0 0
    %3141 = vmatpush1.bf16.msra.mxu0 0
    %3142 = vmatprep.subr.bf16.mxu0 0
    %3143 = vmatpush1.bf16.msra.mxu0 0
    %3144 = vmatprep.subr.bf16.mxu0 0
    %3145 = vmatpush1.bf16.msra.mxu0 0
    %3146 = vmatprep.subr.bf16.mxu0 0
    %3147 = vmatpush1.bf16.msra.mxu0 0
    %3148 = vmatprep.subr.bf16.mxu0 0
    %3149 = vmatpush1.bf16.msra.mxu0 0
    %3150 = vmatprep.subr.bf16.mxu0 0
    %3151 = vmatpush1.bf16.msra.mxu0 0
    %3152 = vmatprep.subr.bf16.mxu0 0
    %3153 = vmatpush1.bf16.msra.mxu0 0
    %3154 = vmatprep.subr.bf16.mxu0 0
    %3155 = vmatpush1.bf16.msra.mxu0 0
    %3156 = vmatprep.subr.bf16.mxu0 0
    %3157 = vmatpush1.bf16.msra.mxu0 0
    %3158 = vmatprep.mubr.bf16.mxu0 0
    %3159 = vmatmul.mubr.bf16.gmra.mrb[0].mxu0 %v3027
    %v3160 = vpop.f32.mrb[0].mxu0
    %v3161 = vadd.f32 0.0, %v3160
    %v3162 = vpop.f32.mrb[0].mxu0
    %v3163 = vpop.f32.mrb[0].mxu0
    %v3164 = vadd.f32 0.0, %v3163
    %v3165 = vpop.f32.mrb[0].mxu0
    %3166 = vmatprep.mubr.bf16.mxu0 0
    %3167 = vmatmul.mubr.bf16.gmra.mrb[0].mxu0 %v3030
    %v3168 = vpop.f32.mrb[0].mxu0
    %v3169 = vadd.f32 0.0, %v3168
    %v3170 = vpop.f32.mrb[0].mxu0
    %v3171 = vpop.f32.mrb[0].mxu0
    %v3172 = vadd.f32 0.0, %v3171
    %v3173 = vpop.f32.mrb[0].mxu0
    %3174 = vmatprep.mubr.bf16.mxu0 0
    %3175 = vmatmul.mubr.bf16.gmra.mrb[0].mxu0 %v3033
    %v3176 = vpop.f32.mrb[0].mxu0
    %v3177 = vadd.f32 0.0, %v3176
    %v3178 = vpop.f32.mrb[0].mxu0
    %v3179 = vpop.f32.mrb[0].mxu0
    %v3180 = vadd.f32 0.0, %v3179
    %v3181 = vpop.f32.mrb[0].mxu0
    %3182 = vmatprep.mubr.bf16.mxu0 0
    %3183 = vmatmul.mubr.bf16.gmra.mrb[0].mxu0 %v3036
    %v3184 = vpop.f32.mrb[0].mxu0
    %v3185 = vadd.f32 0.0, %v3184
    %v3186 = vpop.f32.mrb[0].mxu0
    %v3187 = vpop.f32.mrb[0].mxu0
    %v3188 = vadd.f32 0.0, %v3187
    %v3189 = vpop.f32.mrb[0].mxu0
    %3190 = vmatprep.mubr.bf16.mxu0 0
    %3191 = vmatmul.mubr.bf16.gmra.mrb[0].mxu0 %v3039
    %v3192 = vpop.f32.mrb[0].mxu0
    %v3193 = vadd.f32 0.0, %v3192
    %v3194 = vpop.f32.mrb[0].mxu0
    %v3195 = vpop.f32.mrb[0].mxu0
    %v3196 = vadd.f32 0.0, %v3195
    %v3197 = vpop.f32.mrb[0].mxu0
    %3198 = vmatprep.mubr.bf16.mxu0 0
    %3199 = vmatmul.mubr.bf16.gmra.mrb[0].mxu0 %v3042
    %v3200 = vpop.f32.mrb[0].mxu0
    %v3201 = vadd.f32 0.0, %v3200
    %v3202 = vpop.f32.mrb[0].mxu0
    %v3203 = vpop.f32.mrb[0].mxu0
    %v3204 = vadd.f32 0.0, %v3203
    %v3205 = vpop.f32.mrb[0].mxu0
    %3206 = vmatprep.mubr.bf16.mxu0 0
    %3207 = vmatmul.mubr.bf16.gmra.mrb[0].mxu0 %v3045
    %v3208 = vpop.f32.mrb[0].mxu0
    %v3209 = vadd.f32 0.0, %v3208
    %v3210 = vpop.f32.mrb[0].mxu0
    %v3211 = vpop.f32.mrb[0].mxu0
    %v3212 = vadd.f32 0.0, %v3211
    %v3213 = vpop.f32.mrb[0].mxu0
    %3214 = vmatprep.mubr.bf16.mxu0 0
    %3215 = vmatmul.mubr.bf16.gmra.mrb[0].mxu0 %v3048
    %v3216 = vpop.f32.mrb[0].mxu0
    %v3217 = vadd.f32 0.0, %v3216
    %v3218 = vpop.f32.mrb[0].mxu0
    %v3219 = vpop.f32.mrb[0].mxu0
    %v3220 = vadd.f32 0.0, %v3219
    %v3221 = vpop.f32.mrb[0].mxu0
    %3222 = vmatprep.mubr.bf16.mxu0 0
    %3223 = vmatmul.mubr.bf16.gmra.mrb[0].mxu0 %v3051
    %v3224 = vpop.f32.mrb[0].mxu0
    %v3225 = vadd.f32 0.0, %v3224
    %v3226 = vpop.f32.mrb[0].mxu0
    %v3227 = vpop.f32.mrb[0].mxu0
    %v3228 = vadd.f32 0.0, %v3227
    %v3229 = vpop.f32.mrb[0].mxu0
    %3230 = vmatprep.mubr.bf16.mxu0 0
    %3231 = vmatmul.mubr.bf16.gmra.mrb[0].mxu0 %v3054
    %v3232 = vpop.f32.mrb[0].mxu0
    %v3233 = vadd.f32 0.0, %v3232
    %v3234 = vpop.f32.mrb[0].mxu0
    %v3235 = vpop.f32.mrb[0].mxu0
    %v3236 = vadd.f32 0.0, %v3235
    %v3237 = vpop.f32.mrb[0].mxu0
    %3238 = vmatprep.mubr.bf16.mxu0 0
    %3239 = vmatmul.mubr.bf16.gmra.mrb[0].mxu0 %v3057
    %v3240 = vpop.f32.mrb[0].mxu0
    %v3241 = vadd.f32 0.0, %v3240
    %v3242 = vpop.f32.mrb[0].mxu0
    %v3243 = vpop.f32.mrb[0].mxu0
    %v3244 = vadd.f32 0.0, %v3243
    %v3245 = vpop.f32.mrb[0].mxu0
    %3246 = vmatprep.mubr.bf16.mxu0 0
    %3247 = vmatmul.mubr.bf16.gmra.mrb[0].mxu0 %v3060
    %v3248 = vpop.f32.mrb[0].mxu0
    %v3249 = vadd.f32 0.0, %v3248
    %v3250 = vpop.f32.mrb[0].mxu0
    %v3251 = vpop.f32.mrb[0].mxu0
    %v3252 = vadd.f32 0.0, %v3251
    %v3253 = vpop.f32.mrb[0].mxu0
    %3254 = vmatprep.mubr.bf16.mxu0 0
    %3255 = vmatmul.mubr.bf16.gmra.mrb[0].mxu0 %v3063
    %v3256 = vpop.f32.mrb[0].mxu0
    %v3257 = vadd.f32 0.0, %v3256
    %v3258 = vpop.f32.mrb[0].mxu0
    %v3259 = vpop.f32.mrb[0].mxu0
    %v3260 = vadd.f32 0.0, %v3259
    %v3261 = vpop.f32.mrb[0].mxu0
    %3262 = vmatprep.mubr.bf16.mxu0 0
    %3263 = vmatmul.mubr.bf16.gmra.mrb[0].mxu0 %v3066
    %v3264 = vpop.f32.mrb[0].mxu0
    %v3265 = vadd.f32 0.0, %v3264
    %v3266 = vpop.f32.mrb[0].mxu0
    %v3267 = vpop.f32.mrb[0].mxu0
    %v3268 = vadd.f32 0.0, %v3267
    %v3269 = vpop.f32.mrb[0].mxu0
    %3270 = vmatprep.mubr.bf16.mxu0 0
    %3271 = vmatmul.mubr.bf16.gmra.mrb[0].mxu0 %v3069
    %v3272 = vpop.f32.mrb[0].mxu0
    %v3273 = vadd.f32 0.0, %v3272
    %v3274 = vpop.f32.mrb[0].mxu0
    %v3275 = vpop.f32.mrb[0].mxu0
    %v3276 = vadd.f32 0.0, %v3275
    %v3277 = vpop.f32.mrb[0].mxu0
    %3278 = vmatprep.mubr.bf16.mxu0 0
    %3279 = vmatmul.mubr.bf16.gmra.mrb[0].mxu0 %v3072
    %v3280 = vpop.f32.mrb[0].mxu0
    %v3281 = vadd.f32 0.0, %v3280
    %v3282 = vpop.f32.mrb[0].mxu0
    %v3283 = vpop.f32.mrb[0].mxu0
    %v3284 = vadd.f32 0.0, %v3283
    %v3285 = vpop.f32.mrb[0].mxu0
    %3286 = vmatprep.mubr.bf16.mxu0 0
    %3287 = vmatmul.mubr.bf16.gmra.mrb[0].mxu0 %v3075
    %v3288 = vpop.f32.mrb[0].mxu0
    %v3289 = vadd.f32 0.0, %v3288
    %v3290 = vpop.f32.mrb[0].mxu0
    %v3291 = vpop.f32.mrb[0].mxu0
    %v3292 = vadd.f32 0.0, %v3291
    %v3293 = vpop.f32.mrb[0].mxu0
    %3294 = vmatprep.mubr.bf16.mxu0 0
    %3295 = vmatmul.mubr.bf16.gmra.mrb[0].mxu0 %v3078
    %v3296 = vpop.f32.mrb[0].mxu0
    %v3297 = vadd.f32 0.0, %v3296
    %v3298 = vpop.f32.mrb[0].mxu0
    %v3299 = vpop.f32.mrb[0].mxu0
    %v3300 = vadd.f32 0.0, %v3299
    %v3301 = vpop.f32.mrb[0].mxu0
    %3302 = vmatprep.mubr.bf16.mxu0 0
    %3303 = vmatmul.mubr.bf16.gmra.mrb[0].mxu0 %v3081
    %v3304 = vpop.f32.mrb[0].mxu0
    %v3305 = vadd.f32 0.0, %v3304
    %v3306 = vpop.f32.mrb[0].mxu0
    %v3307 = vpop.f32.mrb[0].mxu0
    %v3308 = vadd.f32 0.0, %v3307
    %v3309 = vpop.f32.mrb[0].mxu0
    %3310 = vmatprep.mubr.bf16.mxu0 0
    %3311 = vmatmul.mubr.bf16.gmra.mrb[0].mxu0 %v3084
    %v3312 = vpop.f32.mrb[0].mxu0
    %v3313 = vadd.f32 0.0, %v3312
    %v3314 = vpop.f32.mrb[0].mxu0
    %v3315 = vpop.f32.mrb[0].mxu0
    %v3316 = vadd.f32 0.0, %v3315
    %v3317 = vpop.f32.mrb[0].mxu0
    %3318 = vmatprep.mubr.bf16.mxu0 0
    %3319 = vmatmul.mubr.bf16.gmra.mrb[0].mxu0 %v3087
    %v3320 = vpop.f32.mrb[0].mxu0
    %v3321 = vadd.f32 0.0, %v3320
    %v3322 = vpop.f32.mrb[0].mxu0
    %v3323 = vpop.f32.mrb[0].mxu0
    %v3324 = vadd.f32 0.0, %v3323
    %v3325 = vpop.f32.mrb[0].mxu0
    %3326 = vmatprep.mubr.bf16.mxu0 0
    %3327 = vmatmul.mubr.bf16.gmra.mrb[0].mxu0 %v3090
    %v3328 = vpop.f32.mrb[0].mxu0
    %v3329 = vadd.f32 0.0, %v3328
    %v3330 = vpop.f32.mrb[0].mxu0
    %v3331 = vpop.f32.mrb[0].mxu0
    %v3332 = vadd.f32 0.0, %v3331
    %v3333 = vpop.f32.mrb[0].mxu0
    %3334 = vmatprep.mubr.bf16.mxu0 0
    %3335 = vmatmul.mubr.bf16.gmra.mrb[0].mxu0 %v3093
    %v3336 = vpop.f32.mrb[0].mxu0
    %v3337 = vadd.f32 0.0, %v3336
    %v3338 = vpop.f32.mrb[0].mxu0
    %v3339 = vpop.f32.mrb[0].mxu0
    %v3340 = vadd.f32 0.0, %v3339
    %v3341 = vpop.f32.mrb[0].mxu0
    %3342 = vmatprep.mubr.bf16.mxu0 0
    %3343 = vmatmul.mubr.bf16.gmra.mrb[0].mxu0 %v3096
    %v3344 = vpop.f32.mrb[0].mxu0
    %v3345 = vadd.f32 0.0, %v3344
    %v3346 = vpop.f32.mrb[0].mxu0
    %v3347 = vpop.f32.mrb[0].mxu0
    %v3348 = vadd.f32 0.0, %v3347
    %v3349 = vpop.f32.mrb[0].mxu0
    %3350 = vmatprep.mubr.bf16.mxu0 0
    %3351 = vmatmul.mubr.bf16.gmra.mrb[0].mxu0 %v3099
    %v3352 = vpop.f32.mrb[0].mxu0
    %v3353 = vadd.f32 0.0, %v3352
    %v3354 = vpop.f32.mrb[0].mxu0
    %v3355 = vpop.f32.mrb[0].mxu0
    %v3356 = vadd.f32 0.0, %v3355
    %v3357 = vpop.f32.mrb[0].mxu0
    %3358 = vmatprep.mubr.bf16.mxu0 0
    %3359 = vmatmul.mubr.bf16.gmra.mrb[0].mxu0 %v3102
    %v3360 = vpop.f32.mrb[0].mxu0
    %v3361 = vadd.f32 0.0, %v3360
    %v3362 = vpop.f32.mrb[0].mxu0
    %v3363 = vpop.f32.mrb[0].mxu0
    %v3364 = vadd.f32 0.0, %v3363
    %v3365 = vpop.f32.mrb[0].mxu0
    %3366 = vmatprep.mubr.bf16.mxu0 0
    %3367 = vmatmul.mubr.bf16.gmra.mrb[0].mxu0 %v3105
    %v3368 = vpop.f32.mrb[0].mxu0
    %v3369 = vadd.f32 0.0, %v3368
    %v3370 = vpop.f32.mrb[0].mxu0
    %v3371 = vpop.f32.mrb[0].mxu0
    %v3372 = vadd.f32 0.0, %v3371
    %v3373 = vpop.f32.mrb[0].mxu0
    %3374 = vmatprep.mubr.bf16.mxu0 0
    %3375 = vmatmul.mubr.bf16.gmra.mrb[0].mxu0 %v3108
    %v3376 = vpop.f32.mrb[0].mxu0
    %v3377 = vadd.f32 0.0, %v3376
    %v3378 = vpop.f32.mrb[0].mxu0
    %v3379 = vpop.f32.mrb[0].mxu0
    %v3380 = vadd.f32 0.0, %v3379
    %v3381 = vpop.f32.mrb[0].mxu0
    %3382 = vmatprep.mubr.bf16.mxu0 0
    %3383 = vmatmul.mubr.bf16.gmra.mrb[0].mxu0 %v3111
    %v3384 = vpop.f32.mrb[0].mxu0
    %v3385 = vadd.f32 0.0, %v3384
    %v3386 = vpop.f32.mrb[0].mxu0
    %v3387 = vpop.f32.mrb[0].mxu0
    %v3388 = vadd.f32 0.0, %v3387
    %v3389 = vpop.f32.mrb[0].mxu0
    %3390 = vmatprep.mubr.bf16.mxu0 0
    %3391 = vmatmul.mubr.bf16.gmra.mrb[0].mxu0 %v3114
    %v3392 = vpop.f32.mrb[0].mxu0
    %v3393 = vadd.f32 0.0, %v3392
    %v3394 = vpop.f32.mrb[0].mxu0
    %v3395 = vpop.f32.mrb[0].mxu0
    %v3396 = vadd.f32 0.0, %v3395
    %v3397 = vpop.f32.mrb[0].mxu0
    %3398 = vmatprep.mubr.bf16.mxu0 0
    %3399 = vmatmul.mubr.bf16.gmra.mrb[0].mxu0 %v3117
    %v3400 = vpop.f32.mrb[0].mxu0
    %v3401 = vadd.f32 0.0, %v3400
    %v3402 = vpop.f32.mrb[0].mxu0
    %v3403 = vpop.f32.mrb[0].mxu0
    %v3404 = vadd.f32 0.0, %v3403
    %v3405 = vpop.f32.mrb[0].mxu0
    %3406 = vmatprep.mubr.bf16.mxu0 0
    %3407 = vmatmul.mubr.bf16.gmra.mrb[0].mxu0 %v3120
    %v3408 = vpop.f32.mrb[0].mxu0
    %v3409 = vadd.f32 0.0, %v3408
    %v3410 = vpop.f32.mrb[0].mxu0
    %v3411 = vpop.f32.mrb[0].mxu0
    %v3412 = vadd.f32 0.0, %v3411
    %v3413 = vpop.f32.mrb[0].mxu0
    %3414 = vdwg.mxu0
    %v3415 = vsel %vm2518, %v3161, 0.0
    %v3416 = vsel %vm2518, %v3164, 0.0
    %v3417 = vadd.f32 %v3415, %v3416
    %v3418 = vsel %vm2518, %v3169, 0.0
    %v3419 = vadd.f32 %v3417, %v3418
    %v3420 = vsel %vm2518, %v3172, 0.0
    %v3421 = vadd.f32 %v3419, %v3420
    %v3422 = vsel %vm2518, %v3177, 0.0
    %v3423 = vadd.f32 %v3421, %v3422
    %v3424 = vsel %vm2518, %v3180, 0.0
    %v3425 = vadd.f32 %v3423, %v3424
    %v3426 = vsel %vm2518, %v3185, 0.0
    %v3427 = vadd.f32 %v3425, %v3426
    %v3428 = vsel %vm2518, %v3188, 0.0
    %v3429 = vadd.f32 %v3427, %v3428
    %v3430 = vsel %vm2518, %v3193, 0.0
    %v3431 = vadd.f32 %v3429, %v3430
    %v3432 = vsel %vm2518, %v3196, 0.0
    %v3433 = vadd.f32 %v3431, %v3432
    %v3434 = vsel %vm2518, %v3201, 0.0
    %v3435 = vadd.f32 %v3433, %v3434
    %v3436 = vsel %vm2518, %v3204, 0.0
    %v3437 = vadd.f32 %v3435, %v3436
    %v3438 = vsel %vm2518, %v3209, 0.0
    %v3439 = vadd.f32 %v3437, %v3438
    %v3440 = vsel %vm2518, %v3212, 0.0
    %v3441 = vadd.f32 %v3439, %v3440
    %v3442 = vsel %vm2518, %v3217, 0.0
    %v3443 = vadd.f32 %v3441, %v3442
    %v3444 = vsel %vm2518, %v3220, 0.0
    %v3445 = vadd.f32 %v3443, %v3444
    %v3446 = vsel %vm2518, %v3225, 0.0
    %v3447 = vadd.f32 %v3445, %v3446
    %v3448 = vsel %vm2518, %v3228, 0.0
    %v3449 = vadd.f32 %v3447, %v3448
    %v3450 = vsel %vm2518, %v3233, 0.0
    %v3451 = vadd.f32 %v3449, %v3450
    %v3452 = vsel %vm2518, %v3236, 0.0
    %v3453 = vadd.f32 %v3451, %v3452
    %v3454 = vsel %vm2518, %v3241, 0.0
    %v3455 = vadd.f32 %v3453, %v3454
    %v3456 = vsel %vm2518, %v3244, 0.0
    %v3457 = vadd.f32 %v3455, %v3456
    %v3458 = vsel %vm2518, %v3249, 0.0
    %v3459 = vadd.f32 %v3457, %v3458
    %v3460 = vsel %vm2518, %v3252, 0.0
    %v3461 = vadd.f32 %v3459, %v3460
    %v3462 = vsel %vm2518, %v3257, 0.0
    %v3463 = vadd.f32 %v3461, %v3462
    %v3464 = vsel %vm2518, %v3260, 0.0
    %v3465 = vadd.f32 %v3463, %v3464
    %v3466 = vsel %vm2518, %v3265, 0.0
    %v3467 = vadd.f32 %v3465, %v3466
    %v3468 = vsel %vm2518, %v3268, 0.0
    %v3469 = vadd.f32 %v3467, %v3468
    %v3470 = vsel %vm2518, %v3273, 0.0
    %v3471 = vadd.f32 %v3469, %v3470
    %v3472 = vsel %vm2518, %v3276, 0.0
    %v3473 = vadd.f32 %v3471, %v3472
    %v3474 = vsel %vm2518, %v3281, 0.0
    %v3475 = vadd.f32 %v3473, %v3474
    %v3476 = vsel %vm2518, %v3284, 0.0
    %v3477 = vadd.f32 %v3475, %v3476
    %v3478 = vsel %vm2518, %v3289, 0.0
    %v3479 = vadd.f32 %v3477, %v3478
    %v3480 = vsel %vm2518, %v3292, 0.0
    %v3481 = vadd.f32 %v3479, %v3480
    %v3482 = vsel %vm2518, %v3297, 0.0
    %v3483 = vadd.f32 %v3481, %v3482
    %v3484 = vsel %vm2518, %v3300, 0.0
    %v3485 = vadd.f32 %v3483, %v3484
    %v3486 = vsel %vm2518, %v3305, 0.0
    %v3487 = vadd.f32 %v3485, %v3486
    %v3488 = vsel %vm2518, %v3308, 0.0
    %v3489 = vadd.f32 %v3487, %v3488
    %v3490 = vsel %vm2518, %v3313, 0.0
    %v3491 = vadd.f32 %v3489, %v3490
    %v3492 = vsel %vm2518, %v3316, 0.0
    %v3493 = vadd.f32 %v3491, %v3492
    %v3494 = vsel %vm2518, %v3321, 0.0
    %v3495 = vadd.f32 %v3493, %v3494
    %v3496 = vsel %vm2518, %v3324, 0.0
    %v3497 = vadd.f32 %v3495, %v3496
    %v3498 = vsel %vm2518, %v3329, 0.0
    %v3499 = vadd.f32 %v3497, %v3498
    %v3500 = vsel %vm2518, %v3332, 0.0
    %v3501 = vadd.f32 %v3499, %v3500
    %v3502 = vsel %vm2518, %v3337, 0.0
    %v3503 = vadd.f32 %v3501, %v3502
    %v3504 = vsel %vm2518, %v3340, 0.0
    %v3505 = vadd.f32 %v3503, %v3504
    %v3506 = vsel %vm2518, %v3345, 0.0
    %v3507 = vadd.f32 %v3505, %v3506
    %v3508 = vsel %vm2518, %v3348, 0.0
    %v3509 = vadd.f32 %v3507, %v3508
    %v3510 = vsel %vm2518, %v3353, 0.0
    %v3511 = vadd.f32 %v3509, %v3510
    %v3512 = vsel %vm2518, %v3356, 0.0
    %v3513 = vadd.f32 %v3511, %v3512
    %v3514 = vsel %vm2518, %v3361, 0.0
    %v3515 = vadd.f32 %v3513, %v3514
    %v3516 = vsel %vm2518, %v3364, 0.0
    %v3517 = vadd.f32 %v3515, %v3516
    %v3518 = vsel %vm2518, %v3369, 0.0
    %v3519 = vadd.f32 %v3517, %v3518
    %v3520 = vsel %vm2518, %v3372, 0.0
    %v3521 = vadd.f32 %v3519, %v3520
    %v3522 = vsel %vm2518, %v3377, 0.0
    %v3523 = vadd.f32 %v3521, %v3522
    %v3524 = vsel %vm2518, %v3380, 0.0
    %v3525 = vadd.f32 %v3523, %v3524
    %v3526 = vsel %vm2518, %v3385, 0.0
    %v3527 = vadd.f32 %v3525, %v3526
    %v3528 = vsel %vm2518, %v3388, 0.0
    %v3529 = vadd.f32 %v3527, %v3528
    %v3530 = vsel %vm2518, %v3393, 0.0
    %v3531 = vadd.f32 %v3529, %v3530
    %v3532 = vsel %vm2518, %v3396, 0.0
    %v3533 = vadd.f32 %v3531, %v3532
    %v3534 = vsel %vm2518, %v3401, 0.0
    %v3535 = vadd.f32 %v3533, %v3534
    %v3536 = vsel %vm2518, %v3404, 0.0
    %v3537 = vadd.f32 %v3535, %v3536
    %v3538 = vsel %vm2518, %v3409, 0.0
    %v3539 = vadd.f32 %v3537, %v3538
    %v3540 = vsel %vm2518, %v3412, 0.0
    %v3541 = vadd.f32 %v3539, %v3540
    %v3542 = vrot.slane %v3541, 4
    %v3543 = vadd.f32 %v3541, %v3542
    %v3544 = vrot.slane %v3543, 2
    %v3545 = vadd.f32 %v3543, %v3544
    %v3546 = vrot.slane %v3545, 1
    %v3547 = vadd.f32 %v3545, %v3546
    %v3548 = vmul.f32 %v3547, 0.001953125
    %v3549 = vmul.f32 %v3161, %v3161
    %v3550 = vmul.f32 %v3164, %v3164
    %v3551 = vmul.f32 %v3169, %v3169
    %v3552 = vmul.f32 %v3172, %v3172
    %v3553 = vmul.f32 %v3177, %v3177
    %v3554 = vmul.f32 %v3180, %v3180
    %v3555 = vmul.f32 %v3185, %v3185
    %v3556 = vmul.f32 %v3188, %v3188
    %v3557 = vmul.f32 %v3193, %v3193
    %v3558 = vmul.f32 %v3196, %v3196
    %v3559 = vmul.f32 %v3201, %v3201
    %v3560 = vmul.f32 %v3204, %v3204
    %v3561 = vmul.f32 %v3209, %v3209
    %v3562 = vmul.f32 %v3212, %v3212
    %v3563 = vmul.f32 %v3217, %v3217
    %v3564 = vmul.f32 %v3220, %v3220
    %v3565 = vmul.f32 %v3225, %v3225
    %v3566 = vmul.f32 %v3228, %v3228
    %v3567 = vmul.f32 %v3233, %v3233
    %v3568 = vmul.f32 %v3236, %v3236
    %v3569 = vmul.f32 %v3241, %v3241
    %v3570 = vmul.f32 %v3244, %v3244
    %v3571 = vmul.f32 %v3249, %v3249
    %v3572 = vmul.f32 %v3252, %v3252
    %v3573 = vmul.f32 %v3257, %v3257
    %v3574 = vmul.f32 %v3260, %v3260
    %v3575 = vmul.f32 %v3265, %v3265
    %v3576 = vmul.f32 %v3268, %v3268
    %v3577 = vmul.f32 %v3273, %v3273
    %v3578 = vmul.f32 %v3276, %v3276
    %v3579 = vmul.f32 %v3281, %v3281
    %v3580 = vmul.f32 %v3284, %v3284
    %v3581 = vmul.f32 %v3289, %v3289
    %v3582 = vmul.f32 %v3292, %v3292
    %v3583 = vmul.f32 %v3297, %v3297
    %v3584 = vmul.f32 %v3300, %v3300
    %v3585 = vmul.f32 %v3305, %v3305
    %v3586 = vmul.f32 %v3308, %v3308
    %v3587 = vmul.f32 %v3313, %v3313
    %v3588 = vmul.f32 %v3316, %v3316
    %v3589 = vmul.f32 %v3321, %v3321
    %v3590 = vmul.f32 %v3324, %v3324
    %v3591 = vmul.f32 %v3329, %v3329
    %v3592 = vmul.f32 %v3332, %v3332
    %v3593 = vmul.f32 %v3337, %v3337
    %v3594 = vmul.f32 %v3340, %v3340
    %v3595 = vmul.f32 %v3345, %v3345
    %v3596 = vmul.f32 %v3348, %v3348
    %v3597 = vmul.f32 %v3353, %v3353
    %v3598 = vmul.f32 %v3356, %v3356
    %v3599 = vmul.f32 %v3361, %v3361
    %v3600 = vmul.f32 %v3364, %v3364
    %v3601 = vmul.f32 %v3369, %v3369
    %v3602 = vmul.f32 %v3372, %v3372
    %v3603 = vmul.f32 %v3377, %v3377
    %v3604 = vmul.f32 %v3380, %v3380
    %v3605 = vmul.f32 %v3385, %v3385
    %v3606 = vmul.f32 %v3388, %v3388
    %v3607 = vmul.f32 %v3393, %v3393
    %v3608 = vmul.f32 %v3396, %v3396
    %v3609 = vmul.f32 %v3401, %v3401
    %v3610 = vmul.f32 %v3404, %v3404
    %v3611 = vmul.f32 %v3409, %v3409
    %v3612 = vmul.f32 %v3412, %v3412
    %v3613 = vsel %vm2518, %v3549, 0.0
    %v3614 = vsel %vm2518, %v3550, 0.0
    %v3615 = vadd.f32 %v3613, %v3614
    %v3616 = vsel %vm2518, %v3551, 0.0
    %v3617 = vadd.f32 %v3615, %v3616
    %v3618 = vsel %vm2518, %v3552, 0.0
    %v3619 = vadd.f32 %v3617, %v3618
    %v3620 = vsel %vm2518, %v3553, 0.0
    %v3621 = vadd.f32 %v3619, %v3620
    %v3622 = vsel %vm2518, %v3554, 0.0
    %v3623 = vadd.f32 %v3621, %v3622
    %v3624 = vsel %vm2518, %v3555, 0.0
    %v3625 = vadd.f32 %v3623, %v3624
    %v3626 = vsel %vm2518, %v3556, 0.0
    %v3627 = vadd.f32 %v3625, %v3626
    %v3628 = vsel %vm2518, %v3557, 0.0
    %v3629 = vadd.f32 %v3627, %v3628
    %v3630 = vsel %vm2518, %v3558, 0.0
    %v3631 = vadd.f32 %v3629, %v3630
    %v3632 = vsel %vm2518, %v3559, 0.0
    %v3633 = vadd.f32 %v3631, %v3632
    %v3634 = vsel %vm2518, %v3560, 0.0
    %v3635 = vadd.f32 %v3633, %v3634
    %v3636 = vsel %vm2518, %v3561, 0.0
    %v3637 = vadd.f32 %v3635, %v3636
    %v3638 = vsel %vm2518, %v3562, 0.0
    %v3639 = vadd.f32 %v3637, %v3638
    %v3640 = vsel %vm2518, %v3563, 0.0
    %v3641 = vadd.f32 %v3639, %v3640
    %v3642 = vsel %vm2518, %v3564, 0.0
    %v3643 = vadd.f32 %v3641, %v3642
    %v3644 = vsel %vm2518, %v3565, 0.0
    %v3645 = vadd.f32 %v3643, %v3644
    %v3646 = vsel %vm2518, %v3566, 0.0
    %v3647 = vadd.f32 %v3645, %v3646
    %v3648 = vsel %vm2518, %v3567, 0.0
    %v3649 = vadd.f32 %v3647, %v3648
    %v3650 = vsel %vm2518, %v3568, 0.0
    %v3651 = vadd.f32 %v3649, %v3650
    %v3652 = vsel %vm2518, %v3569, 0.0
    %v3653 = vadd.f32 %v3651, %v3652
    %v3654 = vsel %vm2518, %v3570, 0.0
    %v3655 = vadd.f32 %v3653, %v3654
    %v3656 = vsel %vm2518, %v3571, 0.0
    %v3657 = vadd.f32 %v3655, %v3656
    %v3658 = vsel %vm2518, %v3572, 0.0
    %v3659 = vadd.f32 %v3657, %v3658
    %v3660 = vsel %vm2518, %v3573, 0.0
    %v3661 = vadd.f32 %v3659, %v3660
    %v3662 = vsel %vm2518, %v3574, 0.0
    %v3663 = vadd.f32 %v3661, %v3662
    %v3664 = vsel %vm2518, %v3575, 0.0
    %v3665 = vadd.f32 %v3663, %v3664
    %v3666 = vsel %vm2518, %v3576, 0.0
    %v3667 = vadd.f32 %v3665, %v3666
    %v3668 = vsel %vm2518, %v3577, 0.0
    %v3669 = vadd.f32 %v3667, %v3668
    %v3670 = vsel %vm2518, %v3578, 0.0
    %v3671 = vadd.f32 %v3669, %v3670
    %v3672 = vsel %vm2518, %v3579, 0.0
    %v3673 = vadd.f32 %v3671, %v3672
    %v3674 = vsel %vm2518, %v3580, 0.0
    %v3675 = vadd.f32 %v3673, %v3674
    %v3676 = vsel %vm2518, %v3581, 0.0
    %v3677 = vadd.f32 %v3675, %v3676
    %v3678 = vsel %vm2518, %v3582, 0.0
    %v3679 = vadd.f32 %v3677, %v3678
    %v3680 = vsel %vm2518, %v3583, 0.0
    %v3681 = vadd.f32 %v3679, %v3680
    %v3682 = vsel %vm2518, %v3584, 0.0
    %v3683 = vadd.f32 %v3681, %v3682
    %v3684 = vsel %vm2518, %v3585, 0.0
    %v3685 = vadd.f32 %v3683, %v3684
    %v3686 = vsel %vm2518, %v3586, 0.0
    %v3687 = vadd.f32 %v3685, %v3686
    %v3688 = vsel %vm2518, %v3587, 0.0
    %v3689 = vadd.f32 %v3687, %v3688
    %v3690 = vsel %vm2518, %v3588, 0.0
    %v3691 = vadd.f32 %v3689, %v3690
    %v3692 = vsel %vm2518, %v3589, 0.0
    %v3693 = vadd.f32 %v3691, %v3692
    %v3694 = vsel %vm2518, %v3590, 0.0
    %v3695 = vadd.f32 %v3693, %v3694
    %v3696 = vsel %vm2518, %v3591, 0.0
    %v3697 = vadd.f32 %v3695, %v3696
    %v3698 = vsel %vm2518, %v3592, 0.0
    %v3699 = vadd.f32 %v3697, %v3698
    %v3700 = vsel %vm2518, %v3593, 0.0
    %v3701 = vadd.f32 %v3699, %v3700
    %v3702 = vsel %vm2518, %v3594, 0.0
    %v3703 = vadd.f32 %v3701, %v3702
    %v3704 = vsel %vm2518, %v3595, 0.0
    %v3705 = vadd.f32 %v3703, %v3704
    %v3706 = vsel %vm2518, %v3596, 0.0
    %v3707 = vadd.f32 %v3705, %v3706
    %v3708 = vsel %vm2518, %v3597, 0.0
    %v3709 = vadd.f32 %v3707, %v3708
    %v3710 = vsel %vm2518, %v3598, 0.0
    %v3711 = vadd.f32 %v3709, %v3710
    %v3712 = vsel %vm2518, %v3599, 0.0
    %v3713 = vadd.f32 %v3711, %v3712
    %v3714 = vsel %vm2518, %v3600, 0.0
    %v3715 = vadd.f32 %v3713, %v3714
    %v3716 = vsel %vm2518, %v3601, 0.0
    %v3717 = vadd.f32 %v3715, %v3716
    %v3718 = vsel %vm2518, %v3602, 0.0
    %v3719 = vadd.f32 %v3717, %v3718
    %v3720 = vsel %vm2518, %v3603, 0.0
    %v3721 = vadd.f32 %v3719, %v3720
    %v3722 = vsel %vm2518, %v3604, 0.0
    %v3723 = vadd.f32 %v3721, %v3722
    %v3724 = vsel %vm2518, %v3605, 0.0
    %v3725 = vadd.f32 %v3723, %v3724
    %v3726 = vsel %vm2518, %v3606, 0.0
    %v3727 = vadd.f32 %v3725, %v3726
    %v3728 = vsel %vm2518, %v3607, 0.0
    %v3729 = vadd.f32 %v3727, %v3728
    %v3730 = vsel %vm2518, %v3608, 0.0
    %v3731 = vadd.f32 %v3729, %v3730
    %v3732 = vsel %vm2518, %v3609, 0.0
    %v3733 = vadd.f32 %v3731, %v3732
    %v3734 = vsel %vm2518, %v3610, 0.0
    %v3735 = vadd.f32 %v3733, %v3734
    %v3736 = vsel %vm2518, %v3611, 0.0
    %v3737 = vadd.f32 %v3735, %v3736
    %v3738 = vsel %vm2518, %v3612, 0.0
    %v3739 = vadd.f32 %v3737, %v3738
    %v3740 = vrot.slane %v3739, 4
    %v3741 = vadd.f32 %v3739, %v3740
    %v3742 = vrot.slane %v3741, 2
    %v3743 = vadd.f32 %v3741, %v3742
    %v3744 = vrot.slane %v3743, 1
    %v3745 = vadd.f32 %v3743, %v3744
    %v3746 = vmul.f32 %v3745, 0.001953125
    %v3747 = vmul.f32 %v3548, %v3548
    %v3748 = vsub.f32 %v3746, %v3747
    %v3749 = vmax.f32 %v3748, 0.0
    %v3750 = vld [vmem:[%s2] sm:$0x1]
    %v3751 = vadd.f32 %v3749, 1e-05
    %v3752 = vrsqrt.pop %v3751
    %v3753 = vmul.f32 %v3750, %v3752
    %v3754 = vld [vmem:[%s3] sm:$0x1]
    %v3755 = vmul.f32 %v3548, %v3753
    %v3756 = vsub.f32 %v3754, %v3755
    %v3758 = vlaneseq
    %v3759 = vshrl.u32 %v3758, 7
    %v3760 = vsub.s32 0, %v3759
    %v3761 = vrot.slane %v3753, %v3760
    %v3763 = vmul.f32 %v3161, %v3761
    %v3764 = vmul.f32 %v3164, %v3761
    %v3765 = vmul.f32 %v3169, %v3761
    %v3766 = vmul.f32 %v3172, %v3761
    %v3767 = vmul.f32 %v3177, %v3761
    %v3768 = vmul.f32 %v3180, %v3761
    %v3769 = vmul.f32 %v3185, %v3761
    %v3770 = vmul.f32 %v3188, %v3761
    %v3771 = vmul.f32 %v3193, %v3761
    %v3772 = vmul.f32 %v3196, %v3761
    %v3773 = vmul.f32 %v3201, %v3761
    %v3774 = vmul.f32 %v3204, %v3761
    %v3775 = vmul.f32 %v3209, %v3761
    %v3776 = vmul.f32 %v3212, %v3761
    %v3777 = vmul.f32 %v3217, %v3761
    %v3778 = vmul.f32 %v3220, %v3761
    %v3779 = vmul.f32 %v3225, %v3761
    %v3780 = vmul.f32 %v3228, %v3761
    %v3781 = vmul.f32 %v3233, %v3761
    %v3782 = vmul.f32 %v3236, %v3761
    %v3783 = vmul.f32 %v3241, %v3761
    %v3784 = vmul.f32 %v3244, %v3761
    %v3785 = vmul.f32 %v3249, %v3761
    %v3786 = vmul.f32 %v3252, %v3761
    %v3787 = vmul.f32 %v3257, %v3761
    %v3788 = vmul.f32 %v3260, %v3761
    %v3789 = vmul.f32 %v3265, %v3761
    %v3790 = vmul.f32 %v3268, %v3761
    %v3791 = vmul.f32 %v3273, %v3761
    %v3792 = vmul.f32 %v3276, %v3761
    %v3793 = vmul.f32 %v3281, %v3761
    %v3794 = vmul.f32 %v3284, %v3761
    %v3795 = vmul.f32 %v3289, %v3761
    %v3796 = vmul.f32 %v3292, %v3761
    %v3797 = vmul.f32 %v3297, %v3761
    %v3798 = vmul.f32 %v3300, %v3761
    %v3799 = vmul.f32 %v3305, %v3761
    %v3800 = vmul.f32 %v3308, %v3761
    %v3801 = vmul.f32 %v3313, %v3761
    %v3802 = vmul.f32 %v3316, %v3761
    %v3803 = vmul.f32 %v3321, %v3761
    %v3804 = vmul.f32 %v3324, %v3761
    %v3805 = vmul.f32 %v3329, %v3761
    %v3806 = vmul.f32 %v3332, %v3761
    %v3807 = vmul.f32 %v3337, %v3761
    %v3808 = vmul.f32 %v3340, %v3761
    %v3809 = vmul.f32 %v3345, %v3761
    %v3810 = vmul.f32 %v3348, %v3761
    %v3811 = vmul.f32 %v3353, %v3761
    %v3812 = vmul.f32 %v3356, %v3761
    %v3813 = vmul.f32 %v3361, %v3761
    %v3814 = vmul.f32 %v3364, %v3761
    %v3815 = vmul.f32 %v3369, %v3761
    %v3816 = vmul.f32 %v3372, %v3761
    %v3817 = vmul.f32 %v3377, %v3761
    %v3818 = vmul.f32 %v3380, %v3761
    %v3819 = vmul.f32 %v3385, %v3761
    %v3820 = vmul.f32 %v3388, %v3761
    %v3821 = vmul.f32 %v3393, %v3761
    %v3822 = vmul.f32 %v3396, %v3761
    %v3823 = vmul.f32 %v3401, %v3761
    %v3824 = vmul.f32 %v3404, %v3761
    %v3825 = vmul.f32 %v3409, %v3761
    %v3826 = vmul.f32 %v3412, %v3761
    %v3828 = vlaneseq
    %v3829 = vshrl.u32 %v3828, 7
    %v3830 = vsub.s32 0, %v3829
    %v3831 = vrot.slane %v3756, %v3830
    %v3833 = vadd.f32 %v3763, %v3831
    %v3834 = vadd.f32 %v3764, %v3831
    %v3835 = vadd.f32 %v3765, %v3831
    %v3836 = vadd.f32 %v3766, %v3831
    %v3837 = vadd.f32 %v3767, %v3831
    %v3838 = vadd.f32 %v3768, %v3831
    %v3839 = vadd.f32 %v3769, %v3831
    %v3840 = vadd.f32 %v3770, %v3831
    %v3841 = vadd.f32 %v3771, %v3831
    %v3842 = vadd.f32 %v3772, %v3831
    %v3843 = vadd.f32 %v3773, %v3831
    %v3844 = vadd.f32 %v3774, %v3831
    %v3845 = vadd.f32 %v3775, %v3831
    %v3846 = vadd.f32 %v3776, %v3831
    %v3847 = vadd.f32 %v3777, %v3831
    %v3848 = vadd.f32 %v3778, %v3831
    %v3849 = vadd.f32 %v3779, %v3831
    %v3850 = vadd.f32 %v3780, %v3831
    %v3851 = vadd.f32 %v3781, %v3831
    %v3852 = vadd.f32 %v3782, %v3831
    %v3853 = vadd.f32 %v3783, %v3831
    %v3854 = vadd.f32 %v3784, %v3831
    %v3855 = vadd.f32 %v3785, %v3831
    %v3856 = vadd.f32 %v3786, %v3831
    %v3857 = vadd.f32 %v3787, %v3831
    %v3858 = vadd.f32 %v3788, %v3831
    %v3859 = vadd.f32 %v3789, %v3831
    %v3860 = vadd.f32 %v3790, %v3831
    %v3861 = vadd.f32 %v3791, %v3831
    %v3862 = vadd.f32 %v3792, %v3831
    %v3863 = vadd.f32 %v3793, %v3831
    %v3864 = vadd.f32 %v3794, %v3831
    %v3865 = vadd.f32 %v3795, %v3831
    %v3866 = vadd.f32 %v3796, %v3831
    %v3867 = vadd.f32 %v3797, %v3831
    %v3868 = vadd.f32 %v3798, %v3831
    %v3869 = vadd.f32 %v3799, %v3831
    %v3870 = vadd.f32 %v3800, %v3831
    %v3871 = vadd.f32 %v3801, %v3831
    %v3872 = vadd.f32 %v3802, %v3831
    %v3873 = vadd.f32 %v3803, %v3831
    %v3874 = vadd.f32 %v3804, %v3831
    %v3875 = vadd.f32 %v3805, %v3831
    %v3876 = vadd.f32 %v3806, %v3831
    %v3877 = vadd.f32 %v3807, %v3831
    %v3878 = vadd.f32 %v3808, %v3831
    %v3879 = vadd.f32 %v3809, %v3831
    %v3880 = vadd.f32 %v3810, %v3831
    %v3881 = vadd.f32 %v3811, %v3831
    %v3882 = vadd.f32 %v3812, %v3831
    %v3883 = vadd.f32 %v3813, %v3831
    %v3884 = vadd.f32 %v3814, %v3831
    %v3885 = vadd.f32 %v3815, %v3831
    %v3886 = vadd.f32 %v3816, %v3831
    %v3887 = vadd.f32 %v3817, %v3831
    %v3888 = vadd.f32 %v3818, %v3831
    %v3889 = vadd.f32 %v3819, %v3831
    %v3890 = vadd.f32 %v3820, %v3831
    %v3891 = vadd.f32 %v3821, %v3831
    %v3892 = vadd.f32 %v3822, %v3831
    %v3893 = vadd.f32 %v3823, %v3831
    %v3894 = vadd.f32 %v3824, %v3831
    %v3895 = vadd.f32 %v3825, %v3831
    %v3896 = vadd.f32 %v3826, %v3831
    %v3897 = vmax.f32 %v3833, 0.0
    %v3898 = vmax.f32 %v3834, 0.0
    %v3899 = vmax.f32 %v3835, 0.0
    %v3900 = vmax.f32 %v3836, 0.0
    %v3901 = vmax.f32 %v3837, 0.0
    %v3902 = vmax.f32 %v3838, 0.0
    %v3903 = vmax.f32 %v3839, 0.0
    %v3904 = vmax.f32 %v3840, 0.0
    %v3905 = vmax.f32 %v3841, 0.0
    %v3906 = vmax.f32 %v3842, 0.0
    %v3907 = vmax.f32 %v3843, 0.0
    %v3908 = vmax.f32 %v3844, 0.0
    %v3909 = vmax.f32 %v3845, 0.0
    %v3910 = vmax.f32 %v3846, 0.0
    %v3911 = vmax.f32 %v3847, 0.0
    %v3912 = vmax.f32 %v3848, 0.0
    %v3913 = vmax.f32 %v3849, 0.0
    %v3914 = vmax.f32 %v3850, 0.0
    %v3915 = vmax.f32 %v3851, 0.0
    %v3916 = vmax.f32 %v3852, 0.0
    %v3917 = vmax.f32 %v3853, 0.0
    %v3918 = vmax.f32 %v3854, 0.0
    %v3919 = vmax.f32 %v3855, 0.0
    %v3920 = vmax.f32 %v3856, 0.0
    %v3921 = vmax.f32 %v3857, 0.0
    %v3922 = vmax.f32 %v3858, 0.0
    %v3923 = vmax.f32 %v3859, 0.0
    %v3924 = vmax.f32 %v3860, 0.0
    %v3925 = vmax.f32 %v3861, 0.0
    %v3926 = vmax.f32 %v3862, 0.0
    %v3927 = vmax.f32 %v3863, 0.0
    %v3928 = vmax.f32 %v3864, 0.0
    %v3929 = vmax.f32 %v3865, 0.0
    %v3930 = vmax.f32 %v3866, 0.0
    %v3931 = vmax.f32 %v3867, 0.0
    %v3932 = vmax.f32 %v3868, 0.0
    %v3933 = vmax.f32 %v3869, 0.0
    %v3934 = vmax.f32 %v3870, 0.0
    %v3935 = vmax.f32 %v3871, 0.0
    %v3936 = vmax.f32 %v3872, 0.0
    %v3937 = vmax.f32 %v3873, 0.0
    %v3938 = vmax.f32 %v3874, 0.0
    %v3939 = vmax.f32 %v3875, 0.0
    %v3940 = vmax.f32 %v3876, 0.0
    %v3941 = vmax.f32 %v3877, 0.0
    %v3942 = vmax.f32 %v3878, 0.0
    %v3943 = vmax.f32 %v3879, 0.0
    %v3944 = vmax.f32 %v3880, 0.0
    %v3945 = vmax.f32 %v3881, 0.0
    %v3946 = vmax.f32 %v3882, 0.0
    %v3947 = vmax.f32 %v3883, 0.0
    %v3948 = vmax.f32 %v3884, 0.0
    %v3949 = vmax.f32 %v3885, 0.0
    %v3950 = vmax.f32 %v3886, 0.0
    %v3951 = vmax.f32 %v3887, 0.0
    %v3952 = vmax.f32 %v3888, 0.0
    %v3953 = vmax.f32 %v3889, 0.0
    %v3954 = vmax.f32 %v3890, 0.0
    %v3955 = vmax.f32 %v3891, 0.0
    %v3956 = vmax.f32 %v3892, 0.0
    %v3957 = vmax.f32 %v3893, 0.0
    %v3958 = vmax.f32 %v3894, 0.0
    %v3959 = vmax.f32 %v3895, 0.0
    %v3960 = vmax.f32 %v3896, 0.0
    %3961 = vst.msk [vmem:[#allocation3] sm:$0xff] %vm2518, 0.0
    %3962 = vst.msk [vmem:[#allocation3 + $0x8] sm:$0xff] %vm2518, 0.0
    %vm3963 = vcmask 58368
    %3964 = vst.msk [vmem:[#allocation3 + $0x10] sm:$0x3] %vm3963, 0.0
    %3965 = vst.msk [vmem:[#allocation3 + $0x18] sm:$0xff] %vm2518, 0.0
    %3966 = vst.msk [vmem:[#allocation3 + $0x20] sm:$0xff] %vm2518, 0.0
    %3967 = vst.msk [vmem:[#allocation3 + $0x28] sm:$0x3] %vm3963, 0.0
    %3968 = vst.msk [vmem:[#allocation3 + $0x30] sm:$0xff] %vm2518, 0.0
    %3969 = vst.msk [vmem:[#allocation3 + $0x38] sm:$0xff] %vm2518, 0.0
    %3970 = vst.msk [vmem:[#allocation3 + $0x40] sm:$0x3] %vm3963, 0.0
    %3971 = vst.msk [vmem:[#allocation3 + $0x48] sm:$0xff] %vm2518, 0.0
    %3972 = vst.msk [vmem:[#allocation3 + $0x50] sm:$0xff] %vm2518, 0.0
    %3973 = vst.msk [vmem:[#allocation3 + $0x58] sm:$0x3] %vm3963, 0.0
    %3974 = vst.msk [vmem:[#allocation3 + $0x60] sm:$0xff] %vm2518, 0.0
    %3975 = vst.msk [vmem:[#allocation3 + $0x68] sm:$0xff] %vm2518, 0.0
    %3976 = vst.msk [vmem:[#allocation3 + $0x70] sm:$0x3] %vm3963, 0.0
    %3977 = vst.msk [vmem:[#allocation3 + $0x78] sm:$0xff] %vm2518, 0.0
    %3978 = vst.msk [vmem:[#allocation3 + $0x80] sm:$0xff] %vm2518, 0.0
    %3979 = vst.msk [vmem:[#allocation3 + $0x88] sm:$0x3] %vm3963, 0.0
    %3980 = vst.msk [vmem:[#allocation3 + $0x90] sm:$0xff] %vm2518, 0.0
    %3981 = vst.msk [vmem:[#allocation3 + $0x98] sm:$0xff] %vm2518, 0.0
    %3982 = vst.msk [vmem:[#allocation3 + $0xa0] sm:$0x3] %vm3963, 0.0
    %3983 = vst.msk [vmem:[#allocation3 + $0xa8] sm:$0xff] %vm2518, 0.0
    %3984 = vst.msk [vmem:[#allocation3 + $0xb0] sm:$0xff] %vm2518, 0.0
    %3985 = vst.msk [vmem:[#allocation3 + $0xb8] sm:$0x3] %vm3963, 0.0
    %3986 = vst.msk [vmem:[#allocation3 + $0xc0] sm:$0xff] %vm2518, 0.0
    %3987 = vst.msk [vmem:[#allocation3 + $0xc8] sm:$0xff] %vm2518, 0.0
    %3988 = vst.msk [vmem:[#allocation3 + $0xd0] sm:$0x3] %vm3963, 0.0
    %3989 = vst.msk [vmem:[#allocation3 + $0xd8] sm:$0xff] %vm2518, 0.0
    %3990 = vst.msk [vmem:[#allocation3 + $0xe0] sm:$0xff] %vm2518, 0.0
    %3991 = vst.msk [vmem:[#allocation3 + $0xe8] sm:$0x3] %vm3963, 0.0
    %3992 = vst.msk [vmem:[#allocation3 + $0xf0] sm:$0xff] %vm2518, 0.0
    %3993 = vst.msk [vmem:[#allocation3 + $0xf8] sm:$0xff] %vm2518, 0.0
    %3994 = vst.msk [vmem:[#allocation3 + $0x100] sm:$0x3] %vm3963, 0.0
    %3995 = vst.msk [vmem:[#allocation3 + $0x108] sm:$0xff] %vm2518, 0.0
    %3996 = vst.msk [vmem:[#allocation3 + $0x110] sm:$0xff] %vm2518, 0.0
    %3997 = vst.msk [vmem:[#allocation3 + $0x118] sm:$0x3] %vm3963, 0.0
    %3998 = vst.msk [vmem:[#allocation3 + $0x120] sm:$0xff] %vm2518, 0.0
    %3999 = vst.msk [vmem:[#allocation3 + $0x128] sm:$0xff] %vm2518, 0.0
    %4000 = vst.msk [vmem:[#allocation3 + $0x130] sm:$0x3] %vm3963, 0.0
    %4001 = vst.msk [vmem:[#allocation3 + $0x138] sm:$0xff] %vm2518, 0.0
    %4002 = vst.msk [vmem:[#allocation3 + $0x140] sm:$0xff] %vm2518, 0.0
    %4003 = vst.msk [vmem:[#allocation3 + $0x148] sm:$0x3] %vm3963, 0.0
    %4004 = vst.msk [vmem:[#allocation3 + $0x150] sm:$0xff] %vm2518, 0.0
    %4005 = vst.msk [vmem:[#allocation3 + $0x158] sm:$0xff] %vm2518, 0.0
    %4006 = vst.msk [vmem:[#allocation3 + $0x160] sm:$0x3] %vm3963, 0.0
    %4007 = vst.msk [vmem:[#allocation3 + $0x168] sm:$0xff] %vm2518, 0.0
    %4008 = vst.msk [vmem:[#allocation3 + $0x170] sm:$0xff] %vm2518, 0.0
    %4009 = vst.msk [vmem:[#allocation3 + $0x178] sm:$0x3] %vm3963, 0.0
    %4010 = vst.msk [vmem:[#allocation3 + $0x180] sm:$0xff] %vm2518, 0.0
    %4011 = vst.msk [vmem:[#allocation3 + $0x188] sm:$0xff] %vm2518, 0.0
    %4012 = vst.msk [vmem:[#allocation3 + $0x190] sm:$0x3] %vm3963, 0.0
    %4013 = vst.msk [vmem:[#allocation3 + $0x198] sm:$0xff] %vm2518, 0.0
    %4014 = vst.msk [vmem:[#allocation3 + $0x1a0] sm:$0xff] %vm2518, 0.0
    %4015 = vst.msk [vmem:[#allocation3 + $0x1a8] sm:$0x3] %vm3963, 0.0
    %4016 = vst.msk [vmem:[#allocation3 + $0x1b0] sm:$0xff] %vm2518, 0.0
    %4017 = vst.msk [vmem:[#allocation3 + $0x1b8] sm:$0xff] %vm2518, 0.0
    %4018 = vst.msk [vmem:[#allocation3 + $0x1c0] sm:$0x3] %vm3963, 0.0
    %4019 = vst.msk [vmem:[#allocation3 + $0x1c8] sm:$0xff] %vm2518, 0.0
    %4020 = vst.msk [vmem:[#allocation3 + $0x1d0] sm:$0xff] %vm2518, 0.0
    %4021 = vst.msk [vmem:[#allocation3 + $0x1d8] sm:$0x3] %vm3963, 0.0
    %4022 = vst.msk [vmem:[#allocation3 + $0x1e0] sm:$0xff] %vm2518, 0.0
    %4023 = vst.msk [vmem:[#allocation3 + $0x1e8] sm:$0xff] %vm2518, 0.0
    %4024 = vst.msk [vmem:[#allocation3 + $0x1f0] sm:$0x3] %vm3963, 0.0
    %4025 = vst.msk [vmem:[#allocation3 + $0x1f8] sm:$0xff] %vm2518, 0.0
    %4026 = vst.msk [vmem:[#allocation3 + $0x200] sm:$0xff] %vm2518, 0.0
    %4027 = vst.msk [vmem:[#allocation3 + $0x208] sm:$0x3] %vm3963, 0.0
    %4028 = vst.msk [vmem:[#allocation3 + $0x210] sm:$0xff] %vm2518, 0.0
    %4029 = vst.msk [vmem:[#allocation3 + $0x218] sm:$0xff] %vm2518, 0.0
    %4030 = vst.msk [vmem:[#allocation3 + $0x220] sm:$0x3] %vm3963, 0.0
    %4031 = vst.msk [vmem:[#allocation3 + $0x228] sm:$0xff] %vm2518, 0.0
    %4032 = vst.msk [vmem:[#allocation3 + $0x230] sm:$0xff] %vm2518, 0.0
    %4033 = vst.msk [vmem:[#allocation3 + $0x238] sm:$0x3] %vm3963, 0.0
    %4034 = vst.msk [vmem:[#allocation3 + $0x240] sm:$0xff] %vm2518, 0.0
    %4035 = vst.msk [vmem:[#allocation3 + $0x248] sm:$0xff] %vm2518, 0.0
    %4036 = vst.msk [vmem:[#allocation3 + $0x250] sm:$0x3] %vm3963, 0.0
    %4037 = vst.msk [vmem:[#allocation3 + $0x258] sm:$0xff] %vm2518, 0.0
    %4038 = vst.msk [vmem:[#allocation3 + $0x260] sm:$0xff] %vm2518, 0.0
    %4039 = vst.msk [vmem:[#allocation3 + $0x268] sm:$0x3] %vm3963, 0.0
    %4040 = vst.msk [vmem:[#allocation3 + $0x270] sm:$0xff] %vm2518, 0.0
    %4041 = vst.msk [vmem:[#allocation3 + $0x278] sm:$0xff] %vm2518, 0.0
    %4042 = vst.msk [vmem:[#allocation3 + $0x280] sm:$0x3] %vm3963, 0.0
    %4043 = vst.msk [vmem:[#allocation3 + $0x288] sm:$0xff] %vm2518, 0.0
    %4044 = vst.msk [vmem:[#allocation3 + $0x290] sm:$0xff] %vm2518, 0.0
    %4045 = vst.msk [vmem:[#allocation3 + $0x298] sm:$0x3] %vm3963, 0.0
    %4046 = vst.msk [vmem:[#allocation3 + $0x2a0] sm:$0xff] %vm2518, 0.0
    %4047 = vst.msk [vmem:[#allocation3 + $0x2a8] sm:$0xff] %vm2518, 0.0
    %4048 = vst.msk [vmem:[#allocation3 + $0x2b0] sm:$0x3] %vm3963, 0.0
    %4049 = vst.msk [vmem:[#allocation3 + $0x2b8] sm:$0xff] %vm2518, 0.0
    %4050 = vst.msk [vmem:[#allocation3 + $0x2c0] sm:$0xff] %vm2518, 0.0
    %4051 = vst.msk [vmem:[#allocation3 + $0x2c8] sm:$0x3] %vm3963, 0.0
    %4052 = vst.msk [vmem:[#allocation3 + $0x2d0] sm:$0xff] %vm2518, 0.0
    %4053 = vst.msk [vmem:[#allocation3 + $0x2d8] sm:$0xff] %vm2518, 0.0
    %4054 = vst.msk [vmem:[#allocation3 + $0x2e0] sm:$0x3] %vm3963, 0.0
    %4055 = vst.msk [vmem:[#allocation3 + $0x2e8] sm:$0xff] %vm2518, 0.0
    %4056 = vst.msk [vmem:[#allocation3 + $0x2f0] sm:$0xff] %vm2518, 0.0
    %4057 = vst.msk [vmem:[#allocation3 + $0x2f8] sm:$0x3] %vm3963, 0.0
    %4058 = vst.msk [vmem:[#allocation3 + $0x300] sm:$0xff] %vm2518, 0.0
    %4059 = vst.msk [vmem:[#allocation3 + $0x308] sm:$0xff] %vm2518, 0.0
    %4060 = vst.msk [vmem:[#allocation3 + $0x310] sm:$0x3] %vm3963, 0.0
    %4061 = vst.msk [vmem:[#allocation3 + $0x318] sm:$0xff] %vm2518, 0.0
    %4062 = vst.msk [vmem:[#allocation3 + $0x320] sm:$0xff] %vm2518, 0.0
    %4063 = vst.msk [vmem:[#allocation3 + $0x328] sm:$0x3] %vm3963, 0.0
    %4064 = vst.msk [vmem:[#allocation3 + $0x330] sm:$0xff] %vm2518, 0.0
    %4065 = vst.msk [vmem:[#allocation3 + $0x338] sm:$0xff] %vm2518, 0.0
    %4066 = vst.msk [vmem:[#allocation3 + $0x340] sm:$0x3] %vm3963, 0.0
    %4067 = vst.msk [vmem:[#allocation3 + $0x348] sm:$0xff] %vm2518, 0.0
    %4068 = vst.msk [vmem:[#allocation3 + $0x350] sm:$0xff] %vm2518, 0.0
    %4069 = vst.msk [vmem:[#allocation3 + $0x358] sm:$0x3] %vm3963, 0.0
    %s4070 = scalar_lea.vmem [#allocation3], 24
    %4071 = vst.msk [vmem:[%s4070 + $0x1] sm:$0xff] %vm2518, %v3897
    %4072 = vst.msk [vmem:[%s4070 + $0x9] sm:$0xff] %vm2518, %v3898
    %4073 = vst.msk [vmem:[%s4070 + $0x19] sm:$0xff] %vm2518, %v3899
    %4074 = vst.msk [vmem:[%s4070 + $0x21] sm:$0xff] %vm2518, %v3900
    %4075 = vst.msk [vmem:[%s4070 + $0x31] sm:$0xff] %vm2518, %v3901
    %4076 = vst.msk [vmem:[%s4070 + $0x39] sm:$0xff] %vm2518, %v3902
    %4077 = vst.msk [vmem:[%s4070 + $0x49] sm:$0xff] %vm2518, %v3903
    %4078 = vst.msk [vmem:[%s4070 + $0x51] sm:$0xff] %vm2518, %v3904
    %4079 = vst.msk [vmem:[%s4070 + $0x61] sm:$0xff] %vm2518, %v3905
    %4080 = vst.msk [vmem:[%s4070 + $0x69] sm:$0xff] %vm2518, %v3906
    %4081 = vst.msk [vmem:[%s4070 + $0x79] sm:$0xff] %vm2518, %v3907
    %4082 = vst.msk [vmem:[%s4070 + $0x81] sm:$0xff] %vm2518, %v3908
    %4083 = vst.msk [vmem:[%s4070 + $0x91] sm:$0xff] %vm2518, %v3909
    %4084 = vst.msk [vmem:[%s4070 + $0x99] sm:$0xff] %vm2518, %v3910
    %4085 = vst.msk [vmem:[%s4070 + $0xa9] sm:$0xff] %vm2518, %v3911
    %4086 = vst.msk [vmem:[%s4070 + $0xb1] sm:$0xff] %vm2518, %v3912
    %4087 = vst.msk [vmem:[%s4070 + $0xc1] sm:$0xff] %vm2518, %v3913
    %4088 = vst.msk [vmem:[%s4070 + $0xc9] sm:$0xff] %vm2518, %v3914
    %4089 = vst.msk [vmem:[%s4070 + $0xd9] sm:$0xff] %vm2518, %v3915
    %4090 = vst.msk [vmem:[%s4070 + $0xe1] sm:$0xff] %vm2518, %v3916
    %4091 = vst.msk [vmem:[%s4070 + $0xf1] sm:$0xff] %vm2518, %v3917
    %4092 = vst.msk [vmem:[%s4070 + $0xf9] sm:$0xff] %vm2518, %v3918
    %4093 = vst.msk [vmem:[%s4070 + $0x109] sm:$0xff] %vm2518, %v3919
    %4094 = vst.msk [vmem:[%s4070 + $0x111] sm:$0xff] %vm2518, %v3920
    %4095 = vst.msk [vmem:[%s4070 + $0x121] sm:$0xff] %vm2518, %v3921
    %4096 = vst.msk [vmem:[%s4070 + $0x129] sm:$0xff] %vm2518, %v3922
    %4097 = vst.msk [vmem:[%s4070 + $0x139] sm:$0xff] %vm2518, %v3923
    %4098 = vst.msk [vmem:[%s4070 + $0x141] sm:$0xff] %vm2518, %v3924
    %4099 = vst.msk [vmem:[%s4070 + $0x151] sm:$0xff] %vm2518, %v3925
    %4100 = vst.msk [vmem:[%s4070 + $0x159] sm:$0xff] %vm2518, %v3926
    %4101 = vst.msk [vmem:[%s4070 + $0x169] sm:$0xff] %vm2518, %v3927
    %4102 = vst.msk [vmem:[%s4070 + $0x171] sm:$0xff] %vm2518, %v3928
    %4103 = vst.msk [vmem:[%s4070 + $0x1b1] sm:$0xff] %vm2518, %v3929
    %4104 = vst.msk [vmem:[%s4070 + $0x1b9] sm:$0xff] %vm2518, %v3930
    %4105 = vst.msk [vmem:[%s4070 + $0x1c9] sm:$0xff] %vm2518, %v3931
    %4106 = vst.msk [vmem:[%s4070 + $0x1d1] sm:$0xff] %vm2518, %v3932
    %4107 = vst.msk [vmem:[%s4070 + $0x1e1] sm:$0xff] %vm2518, %v3933
    %4108 = vst.msk [vmem:[%s4070 + $0x1e9] sm:$0xff] %vm2518, %v3934
    %4109 = vst.msk [vmem:[%s4070 + $0x1f9] sm:$0xff] %vm2518, %v3935
    %4110 = vst.msk [vmem:[%s4070 + $0x201] sm:$0xff] %vm2518, %v3936
    %4111 = vst.msk [vmem:[%s4070 + $0x211] sm:$0xff] %vm2518, %v3937
    %4112 = vst.msk [vmem:[%s4070 + $0x219] sm:$0xff] %vm2518, %v3938
    %4113 = vst.msk [vmem:[%s4070 + $0x229] sm:$0xff] %vm2518, %v3939
    %4114 = vst.msk [vmem:[%s4070 + $0x231] sm:$0xff] %vm2518, %v3940
    %4115 = vst.msk [vmem:[%s4070 + $0x241] sm:$0xff] %vm2518, %v3941
    %4116 = vst.msk [vmem:[%s4070 + $0x249] sm:$0xff] %vm2518, %v3942
    %4117 = vst.msk [vmem:[%s4070 + $0x259] sm:$0xff] %vm2518, %v3943
    %4118 = vst.msk [vmem:[%s4070 + $0x261] sm:$0xff] %vm2518, %v3944
    %4119 = vst.msk [vmem:[%s4070 + $0x271] sm:$0xff] %vm2518, %v3945
    %4120 = vst.msk [vmem:[%s4070 + $0x279] sm:$0xff] %vm2518, %v3946
    %4121 = vst.msk [vmem:[%s4070 + $0x289] sm:$0xff] %vm2518, %v3947
    %4122 = vst.msk [vmem:[%s4070 + $0x291] sm:$0xff] %vm2518, %v3948
    %4123 = vst.msk [vmem:[%s4070 + $0x2a1] sm:$0xff] %vm2518, %v3949
    %4124 = vst.msk [vmem:[%s4070 + $0x2a9] sm:$0xff] %vm2518, %v3950
    %4125 = vst.msk [vmem:[%s4070 + $0x2b9] sm:$0xff] %vm2518, %v3951
    %4126 = vst.msk [vmem:[%s4070 + $0x2c1] sm:$0xff] %vm2518, %v3952
    %4127 = vst.msk [vmem:[%s4070 + $0x2d1] sm:$0xff] %vm2518, %v3953
    %4128 = vst.msk [vmem:[%s4070 + $0x2d9] sm:$0xff] %vm2518, %v3954
    %4129 = vst.msk [vmem:[%s4070 + $0x2e9] sm:$0xff] %vm2518, %v3955
    %4130 = vst.msk [vmem:[%s4070 + $0x2f1] sm:$0xff] %vm2518, %v3956
    %4131 = vst.msk [vmem:[%s4070 + $0x301] sm:$0xff] %vm2518, %v3957
    %4132 = vst.msk [vmem:[%s4070 + $0x309] sm:$0xff] %vm2518, %v3958
    %4133 = vst.msk [vmem:[%s4070 + $0x319] sm:$0xff] %vm2518, %v3959
    %4134 = vst.msk [vmem:[%s4070 + $0x321] sm:$0xff] %vm2518, %v3960
    %v4135 = vld [vmem:[#allocation3] sm:$0xff]
    %v4136 = vld [vmem:[#allocation3 + $0x8] sm:$0xff]
    %v4137 = vld [vmem:[#allocation3 + $0x10] sm:$0x3]
    %v4138 = vld [vmem:[#allocation3 + $0x18] sm:$0xff]
    %v4139 = vld [vmem:[#allocation3 + $0x20] sm:$0xff]
    %v4140 = vld [vmem:[#allocation3 + $0x28] sm:$0x3]
    %v4141 = vld [vmem:[#allocation3 + $0x30] sm:$0xff]
    %v4142 = vld [vmem:[#allocation3 + $0x38] sm:$0xff]
    %v4143 = vld [vmem:[#allocation3 + $0x40] sm:$0x3]
    %v4144 = vld [vmem:[#allocation3 + $0x48] sm:$0xff]
    %v4145 = vld [vmem:[#allocation3 + $0x50] sm:$0xff]
    %v4146 = vld [vmem:[#allocation3 + $0x58] sm:$0x3]
    %v4147 = vld [vmem:[#allocation3 + $0x60] sm:$0xff]
    %v4148 = vld [vmem:[#allocation3 + $0x68] sm:$0xff]
    %v4149 = vld [vmem:[#allocation3 + $0x70] sm:$0x3]
    %v4150 = vld [vmem:[#allocation3 + $0x78] sm:$0xff]
    %v4151 = vld [vmem:[#allocation3 + $0x80] sm:$0xff]
    %v4152 = vld [vmem:[#allocation3 + $0x88] sm:$0x3]
    %v4153 = vld [vmem:[#allocation3 + $0x90] sm:$0xff]
    %v4154 = vld [vmem:[#allocation3 + $0x98] sm:$0xff]
    %v4155 = vld [vmem:[#allocation3 + $0xa0] sm:$0x3]
    %v4156 = vld [vmem:[#allocation3 + $0xa8] sm:$0xff]
    %v4157 = vld [vmem:[#allocation3 + $0xb0] sm:$0xff]
    %v4158 = vld [vmem:[#allocation3 + $0xb8] sm:$0x3]
    %v4159 = vld [vmem:[#allocation3 + $0xc0] sm:$0xff]
    %v4160 = vld [vmem:[#allocation3 + $0xc8] sm:$0xff]
    %v4161 = vld [vmem:[#allocation3 + $0xd0] sm:$0x3]
    %v4162 = vld [vmem:[#allocation3 + $0xd8] sm:$0xff]
    %v4163 = vld [vmem:[#allocation3 + $0xe0] sm:$0xff]
    %v4164 = vld [vmem:[#allocation3 + $0xe8] sm:$0x3]
    %v4165 = vld [vmem:[#allocation3 + $0xf0] sm:$0xff]
    %v4166 = vld [vmem:[#allocation3 + $0xf8] sm:$0xff]
    %v4167 = vld [vmem:[#allocation3 + $0x100] sm:$0x3]
    %v4168 = vld [vmem:[#allocation3 + $0x108] sm:$0xff]
    %v4169 = vld [vmem:[#allocation3 + $0x110] sm:$0xff]
    %v4170 = vld [vmem:[#allocation3 + $0x118] sm:$0x3]
    %v4171 = vld [vmem:[#allocation3 + $0x120] sm:$0xff]
    %v4172 = vld [vmem:[#allocation3 + $0x128] sm:$0xff]
    %v4173 = vld [vmem:[#allocation3 + $0x130] sm:$0x3]
    %v4174 = vld [vmem:[#allocation3 + $0x138] sm:$0xff]
    %v4175 = vld [vmem:[#allocation3 + $0x140] sm:$0xff]
    %v4176 = vld [vmem:[#allocation3 + $0x148] sm:$0x3]
    %v4177 = vld [vmem:[#allocation3 + $0x150] sm:$0xff]
    %v4178 = vld [vmem:[#allocation3 + $0x158] sm:$0xff]
    %v4179 = vld [vmem:[#allocation3 + $0x160] sm:$0x3]
    %v4180 = vld [vmem:[#allocation3 + $0x168] sm:$0xff]
    %v4181 = vld [vmem:[#allocation3 + $0x170] sm:$0xff]
    %v4182 = vld [vmem:[#allocation3 + $0x178] sm:$0x3]
    %v4183 = vld [vmem:[#allocation3 + $0x180] sm:$0xff]
    %v4184 = vld [vmem:[#allocation3 + $0x188] sm:$0xff]
    %v4185 = vld [vmem:[#allocation3 + $0x190] sm:$0x3]
    %v4186 = vld [vmem:[#allocation3 + $0x198] sm:$0xff]
    %v4187 = vld [vmem:[#allocation3 + $0x1a0] sm:$0xff]
    %v4188 = vld [vmem:[#allocation3 + $0x1a8] sm:$0x3]
    %v4189 = vld [vmem:[#allocation3 + $0x1b0] sm:$0xff]
    %v4190 = vld [vmem:[#allocation3 + $0x1b8] sm:$0xff]
    %v4191 = vld [vmem:[#allocation3 + $0x1c0] sm:$0x3]
    %v4192 = vld [vmem:[#allocation3 + $0x1c8] sm:$0xff]
    %v4193 = vld [vmem:[#allocation3 + $0x1d0] sm:$0xff]
    %v4194 = vld [vmem:[#allocation3 + $0x1d8] sm:$0x3]
    %v4195 = vld [vmem:[#allocation3 + $0x1e0] sm:$0xff]
    %v4196 = vld [vmem:[#allocation3 + $0x1e8] sm:$0xff]
    %v4197 = vld [vmem:[#allocation3 + $0x1f0] sm:$0x3]
    %v4198 = vld [vmem:[#allocation3 + $0x1f8] sm:$0xff]
    %v4199 = vld [vmem:[#allocation3 + $0x200] sm:$0xff]
    %v4200 = vld [vmem:[#allocation3 + $0x208] sm:$0x3]
    %v4201 = vld [vmem:[#allocation3 + $0x210] sm:$0xff]
    %v4202 = vld [vmem:[#allocation3 + $0x218] sm:$0xff]
    %v4203 = vld [vmem:[#allocation3 + $0x220] sm:$0x3]
    %v4204 = vld [vmem:[#allocation3 + $0x228] sm:$0xff]
    %v4205 = vld [vmem:[#allocation3 + $0x230] sm:$0xff]
    %v4206 = vld [vmem:[#allocation3 + $0x238] sm:$0x3]
    %v4207 = vld [vmem:[#allocation3 + $0x240] sm:$0xff]
    %v4208 = vld [vmem:[#allocation3 + $0x248] sm:$0xff]
    %v4209 = vld [vmem:[#allocation3 + $0x250] sm:$0x3]
    %v4210 = vld [vmem:[#allocation3 + $0x258] sm:$0xff]
    %v4211 = vld [vmem:[#allocation3 + $0x260] sm:$0xff]
    %v4212 = vld [vmem:[#allocation3 + $0x268] sm:$0x3]
    %v4213 = vld [vmem:[#allocation3 + $0x270] sm:$0xff]
    %v4214 = vld [vmem:[#allocation3 + $0x278] sm:$0xff]
    %v4215 = vld [vmem:[#allocation3 + $0x280] sm:$0x3]
    %v4216 = vld [vmem:[#allocation3 + $0x288] sm:$0xff]
    %v4217 = vld [vmem:[#allocation3 + $0x290] sm:$0xff]
    %v4218 = vld [vmem:[#allocation3 + $0x298] sm:$0x3]
    %v4219 = vld [vmem:[#allocation3 + $0x2a0] sm:$0xff]
    %v4220 = vld [vmem:[#allocation3 + $0x2a8] sm:$0xff]
    %v4221 = vld [vmem:[#allocation3 + $0x2b0] sm:$0x3]
    %v4222 = vld [vmem:[#allocation3 + $0x2b8] sm:$0xff]
    %v4223 = vld [vmem:[#allocation3 + $0x2c0] sm:$0xff]
    %v4224 = vld [vmem:[#allocation3 + $0x2c8] sm:$0x3]
    %v4225 = vld [vmem:[#allocation3 + $0x2d0] sm:$0xff]
    %v4226 = vld [vmem:[#allocation3 + $0x2d8] sm:$0xff]
    %v4227 = vld [vmem:[#allocation3 + $0x2e0] sm:$0x3]
    %v4228 = vld [vmem:[#allocation3 + $0x2e8] sm:$0xff]
    %v4229 = vld [vmem:[#allocation3 + $0x2f0] sm:$0xff]
    %v4230 = vld [vmem:[#allocation3 + $0x2f8] sm:$0x3]
    %v4231 = vld [vmem:[#allocation3 + $0x300] sm:$0xff]
    %v4232 = vld [vmem:[#allocation3 + $0x308] sm:$0xff]
    %v4233 = vld [vmem:[#allocation3 + $0x310] sm:$0x3]
    %v4234 = vld [vmem:[#allocation3 + $0x318] sm:$0xff]
    %v4235 = vld [vmem:[#allocation3 + $0x320] sm:$0xff]
    %v4236 = vld [vmem:[#allocation3 + $0x328] sm:$0x3]
    %v4237 = vld [vmem:[#allocation3 + $0x330] sm:$0xff]
    %v4238 = vld [vmem:[#allocation3 + $0x338] sm:$0xff]
    %v4239 = vld [vmem:[#allocation3 + $0x340] sm:$0x3]
    %v4240 = vld [vmem:[#allocation3 + $0x348] sm:$0xff]
    %v4241 = vld [vmem:[#allocation3 + $0x350] sm:$0xff]
    %v4242 = vld [vmem:[#allocation3 + $0x358] sm:$0x3]
    %v4339 = vrot.slane %v4135, 1
    %v4340 = vrot.slane %v4136, 1
    %v4341 = vsel %vm544, %v4339, %v4340
    %v4342 = vrot.slane %v4137, 1
    %v4343 = vsel %vm544, %v4340, %v4342
    %v4344 = vrot.slane %v4138, 1
    %v4345 = vrot.slane %v4139, 1
    %v4346 = vsel %vm544, %v4344, %v4345
    %v4347 = vrot.slane %v4140, 1
    %v4348 = vsel %vm544, %v4345, %v4347
    %v4349 = vrot.slane %v4141, 1
    %v4350 = vrot.slane %v4142, 1
    %v4351 = vsel %vm544, %v4349, %v4350
    %v4352 = vrot.slane %v4143, 1
    %v4353 = vsel %vm544, %v4350, %v4352
    %v4354 = vrot.slane %v4144, 1
    %v4355 = vrot.slane %v4145, 1
    %v4356 = vsel %vm544, %v4354, %v4355
    %v4357 = vrot.slane %v4146, 1
    %v4358 = vsel %vm544, %v4355, %v4357
    %v4359 = vrot.slane %v4147, 1
    %v4360 = vrot.slane %v4148, 1
    %v4361 = vsel %vm544, %v4359, %v4360
    %v4362 = vrot.slane %v4149, 1
    %v4363 = vsel %vm544, %v4360, %v4362
    %v4364 = vrot.slane %v4150, 1
    %v4365 = vrot.slane %v4151, 1
    %v4366 = vsel %vm544, %v4364, %v4365
    %v4367 = vrot.slane %v4152, 1
    %v4368 = vsel %vm544, %v4365, %v4367
    %v4369 = vrot.slane %v4153, 1
    %v4370 = vrot.slane %v4154, 1
    %v4371 = vsel %vm544, %v4369, %v4370
    %v4372 = vrot.slane %v4155, 1
    %v4373 = vsel %vm544, %v4370, %v4372
    %v4374 = vrot.slane %v4156, 1
    %v4375 = vrot.slane %v4157, 1
    %v4376 = vsel %vm544, %v4374, %v4375
    %v4377 = vrot.slane %v4158, 1
    %v4378 = vsel %vm544, %v4375, %v4377
    %v4379 = vrot.slane %v4159, 1
    %v4380 = vrot.slane %v4160, 1
    %v4381 = vsel %vm544, %v4379, %v4380
    %v4382 = vrot.slane %v4161, 1
    %v4383 = vsel %vm544, %v4380, %v4382
    %v4384 = vrot.slane %v4162, 1
    %v4385 = vrot.slane %v4163, 1
    %v4386 = vsel %vm544, %v4384, %v4385
    %v4387 = vrot.slane %v4164, 1
    %v4388 = vsel %vm544, %v4385, %v4387
    %v4389 = vrot.slane %v4165, 1
    %v4390 = vrot.slane %v4166, 1
    %v4391 = vsel %vm544, %v4389, %v4390
    %v4392 = vrot.slane %v4167, 1
    %v4393 = vsel %vm544, %v4390, %v4392
    %v4394 = vrot.slane %v4168, 1
    %v4395 = vrot.slane %v4169, 1
    %v4396 = vsel %vm544, %v4394, %v4395
    %v4397 = vrot.slane %v4170, 1
    %v4398 = vsel %vm544, %v4395, %v4397
    %v4399 = vrot.slane %v4171, 1
    %v4400 = vrot.slane %v4172, 1
    %v4401 = vsel %vm544, %v4399, %v4400
    %v4402 = vrot.slane %v4173, 1
    %v4403 = vsel %vm544, %v4400, %v4402
    %v4404 = vrot.slane %v4174, 1
    %v4405 = vrot.slane %v4175, 1
    %v4406 = vsel %vm544, %v4404, %v4405
    %v4407 = vrot.slane %v4176, 1
    %v4408 = vsel %vm544, %v4405, %v4407
    %v4409 = vrot.slane %v4177, 1
    %v4410 = vrot.slane %v4178, 1
    %v4411 = vsel %vm544, %v4409, %v4410
    %v4412 = vrot.slane %v4179, 1
    %v4413 = vsel %vm544, %v4410, %v4412
    %v4414 = vrot.slane %v4180, 1
    %v4415 = vrot.slane %v4181, 1
    %v4416 = vsel %vm544, %v4414, %v4415
    %v4417 = vrot.slane %v4182, 1
    %v4418 = vsel %vm544, %v4415, %v4417
    %v4419 = vrot.slane %v4189, 1
    %v4420 = vrot.slane %v4190, 1
    %v4421 = vsel %vm544, %v4419, %v4420
    %v4422 = vrot.slane %v4191, 1
    %v4423 = vsel %vm544, %v4420, %v4422
    %v4424 = vrot.slane %v4192, 1
    %v4425 = vrot.slane %v4193, 1
    %v4426 = vsel %vm544, %v4424, %v4425
    %v4427 = vrot.slane %v4194, 1
    %v4428 = vsel %vm544, %v4425, %v4427
    %v4429 = vrot.slane %v4195, 1
    %v4430 = vrot.slane %v4196, 1
    %v4431 = vsel %vm544, %v4429, %v4430
    %v4432 = vrot.slane %v4197, 1
    %v4433 = vsel %vm544, %v4430, %v4432
    %v4434 = vrot.slane %v4198, 1
    %v4435 = vrot.slane %v4199, 1
    %v4436 = vsel %vm544, %v4434, %v4435
    %v4437 = vrot.slane %v4200, 1
    %v4438 = vsel %vm544, %v4435, %v4437
    %v4439 = vrot.slane %v4201, 1
    %v4440 = vrot.slane %v4202, 1
    %v4441 = vsel %vm544, %v4439, %v4440
    %v4442 = vrot.slane %v4203, 1
    %v4443 = vsel %vm544, %v4440, %v4442
    %v4444 = vrot.slane %v4204, 1
    %v4445 = vrot.slane %v4205, 1
    %v4446 = vsel %vm544, %v4444, %v4445
    %v4447 = vrot.slane %v4206, 1
    %v4448 = vsel %vm544, %v4445, %v4447
    %v4449 = vrot.slane %v4207, 1
    %v4450 = vrot.slane %v4208, 1
    %v4451 = vsel %vm544, %v4449, %v4450
    %v4452 = vrot.slane %v4209, 1
    %v4453 = vsel %vm544, %v4450, %v4452
    %v4454 = vrot.slane %v4210, 1
    %v4455 = vrot.slane %v4211, 1
    %v4456 = vsel %vm544, %v4454, %v4455
    %v4457 = vrot.slane %v4212, 1
    %v4458 = vsel %vm544, %v4455, %v4457
    %v4459 = vrot.slane %v4213, 1
    %v4460 = vrot.slane %v4214, 1
    %v4461 = vsel %vm544, %v4459, %v4460
    %v4462 = vrot.slane %v4215, 1
    %v4463 = vsel %vm544, %v4460, %v4462
    %v4464 = vrot.slane %v4216, 1
    %v4465 = vrot.slane %v4217, 1
    %v4466 = vsel %vm544, %v4464, %v4465
    %v4467 = vrot.slane %v4218, 1
    %v4468 = vsel %vm544, %v4465, %v4467
    %v4469 = vrot.slane %v4219, 1
    %v4470 = vrot.slane %v4220, 1
    %v4471 = vsel %vm544, %v4469, %v4470
    %v4472 = vrot.slane %v4221, 1
    %v4473 = vsel %vm544, %v4470, %v4472
    %v4474 = vrot.slane %v4222, 1
    %v4475 = vrot.slane %v4223, 1
    %v4476 = vsel %vm544, %v4474, %v4475
    %v4477 = vrot.slane %v4224, 1
    %v4478 = vsel %vm544, %v4475, %v4477
    %v4479 = vrot.slane %v4225, 1
    %v4480 = vrot.slane %v4226, 1
    %v4481 = vsel %vm544, %v4479, %v4480
    %v4482 = vrot.slane %v4227, 1
    %v4483 = vsel %vm544, %v4480, %v4482
    %v4484 = vrot.slane %v4228, 1
    %v4485 = vrot.slane %v4229, 1
    %v4486 = vsel %vm544, %v4484, %v4485
    %v4487 = vrot.slane %v4230, 1
    %v4488 = vsel %vm544, %v4485, %v4487
    %v4489 = vrot.slane %v4231, 1
    %v4490 = vrot.slane %v4232, 1
    %v4491 = vsel %vm544, %v4489, %v4490
    %v4492 = vrot.slane %v4233, 1
    %v4493 = vsel %vm544, %v4490, %v4492
    %v4494 = vrot.slane %v4234, 1
    %v4495 = vrot.slane %v4235, 1
    %v4496 = vsel %vm544, %v4494, %v4495
    %v4497 = vrot.slane %v4236, 1
    %v4498 = vsel %vm544, %v4495, %v4497
    %v4499 = vrot.slane %v4135, 2
    %v4500 = vrot.slane %v4136, 2
    %v4501 = vsel %vm705, %v4499, %v4500
    %v4502 = vrot.slane %v4137, 2
    %v4503 = vsel %vm705, %v4500, %v4502
    %v4504 = vrot.slane %v4138, 2
    %v4505 = vrot.slane %v4139, 2
    %v4506 = vsel %vm705, %v4504, %v4505
    %v4507 = vrot.slane %v4140, 2
    %v4508 = vsel %vm705, %v4505, %v4507
    %v4509 = vrot.slane %v4141, 2
    %v4510 = vrot.slane %v4142, 2
    %v4511 = vsel %vm705, %v4509, %v4510
    %v4512 = vrot.slane %v4143, 2
    %v4513 = vsel %vm705, %v4510, %v4512
    %v4514 = vrot.slane %v4144, 2
    %v4515 = vrot.slane %v4145, 2
    %v4516 = vsel %vm705, %v4514, %v4515
    %v4517 = vrot.slane %v4146, 2
    %v4518 = vsel %vm705, %v4515, %v4517
    %v4519 = vrot.slane %v4147, 2
    %v4520 = vrot.slane %v4148, 2
    %v4521 = vsel %vm705, %v4519, %v4520
    %v4522 = vrot.slane %v4149, 2
    %v4523 = vsel %vm705, %v4520, %v4522
    %v4524 = vrot.slane %v4150, 2
    %v4525 = vrot.slane %v4151, 2
    %v4526 = vsel %vm705, %v4524, %v4525
    %v4527 = vrot.slane %v4152, 2
    %v4528 = vsel %vm705, %v4525, %v4527
    %v4529 = vrot.slane %v4153, 2
    %v4530 = vrot.slane %v4154, 2
    %v4531 = vsel %vm705, %v4529, %v4530
    %v4532 = vrot.slane %v4155, 2
    %v4533 = vsel %vm705, %v4530, %v4532
    %v4534 = vrot.slane %v4156, 2
    %v4535 = vrot.slane %v4157, 2
    %v4536 = vsel %vm705, %v4534, %v4535
    %v4537 = vrot.slane %v4158, 2
    %v4538 = vsel %vm705, %v4535, %v4537
    %v4539 = vrot.slane %v4159, 2
    %v4540 = vrot.slane %v4160, 2
    %v4541 = vsel %vm705, %v4539, %v4540
    %v4542 = vrot.slane %v4161, 2
    %v4543 = vsel %vm705, %v4540, %v4542
    %v4544 = vrot.slane %v4162, 2
    %v4545 = vrot.slane %v4163, 2
    %v4546 = vsel %vm705, %v4544, %v4545
    %v4547 = vrot.slane %v4164, 2
    %v4548 = vsel %vm705, %v4545, %v4547
    %v4549 = vrot.slane %v4165, 2
    %v4550 = vrot.slane %v4166, 2
    %v4551 = vsel %vm705, %v4549, %v4550
    %v4552 = vrot.slane %v4167, 2
    %v4553 = vsel %vm705, %v4550, %v4552
    %v4554 = vrot.slane %v4168, 2
    %v4555 = vrot.slane %v4169, 2
    %v4556 = vsel %vm705, %v4554, %v4555
    %v4557 = vrot.slane %v4170, 2
    %v4558 = vsel %vm705, %v4555, %v4557
    %v4559 = vrot.slane %v4171, 2
    %v4560 = vrot.slane %v4172, 2
    %v4561 = vsel %vm705, %v4559, %v4560
    %v4562 = vrot.slane %v4173, 2
    %v4563 = vsel %vm705, %v4560, %v4562
    %v4564 = vrot.slane %v4174, 2
    %v4565 = vrot.slane %v4175, 2
    %v4566 = vsel %vm705, %v4564, %v4565
    %v4567 = vrot.slane %v4176, 2
    %v4568 = vsel %vm705, %v4565, %v4567
    %v4569 = vrot.slane %v4177, 2
    %v4570 = vrot.slane %v4178, 2
    %v4571 = vsel %vm705, %v4569, %v4570
    %v4572 = vrot.slane %v4179, 2
    %v4573 = vsel %vm705, %v4570, %v4572
    %v4574 = vrot.slane %v4180, 2
    %v4575 = vrot.slane %v4181, 2
    %v4576 = vsel %vm705, %v4574, %v4575
    %v4577 = vrot.slane %v4182, 2
    %v4578 = vsel %vm705, %v4575, %v4577
    %v4579 = vrot.slane %v4189, 2
    %v4580 = vrot.slane %v4190, 2
    %v4581 = vsel %vm705, %v4579, %v4580
    %v4582 = vrot.slane %v4191, 2
    %v4583 = vsel %vm705, %v4580, %v4582
    %v4584 = vrot.slane %v4192, 2
    %v4585 = vrot.slane %v4193, 2
    %v4586 = vsel %vm705, %v4584, %v4585
    %v4587 = vrot.slane %v4194, 2
    %v4588 = vsel %vm705, %v4585, %v4587
    %v4589 = vrot.slane %v4195, 2
    %v4590 = vrot.slane %v4196, 2
    %v4591 = vsel %vm705, %v4589, %v4590
    %v4592 = vrot.slane %v4197, 2
    %v4593 = vsel %vm705, %v4590, %v4592
    %v4594 = vrot.slane %v4198, 2
    %v4595 = vrot.slane %v4199, 2
    %v4596 = vsel %vm705, %v4594, %v4595
    %v4597 = vrot.slane %v4200, 2
    %v4598 = vsel %vm705, %v4595, %v4597
    %v4599 = vrot.slane %v4201, 2
    %v4600 = vrot.slane %v4202, 2
    %v4601 = vsel %vm705, %v4599, %v4600
    %v4602 = vrot.slane %v4203, 2
    %v4603 = vsel %vm705, %v4600, %v4602
    %v4604 = vrot.slane %v4204, 2
    %v4605 = vrot.slane %v4205, 2
    %v4606 = vsel %vm705, %v4604, %v4605
    %v4607 = vrot.slane %v4206, 2
    %v4608 = vsel %vm705, %v4605, %v4607
    %v4609 = vrot.slane %v4207, 2
    %v4610 = vrot.slane %v4208, 2
    %v4611 = vsel %vm705, %v4609, %v4610
    %v4612 = vrot.slane %v4209, 2
    %v4613 = vsel %vm705, %v4610, %v4612
    %v4614 = vrot.slane %v4210, 2
    %v4615 = vrot.slane %v4211, 2
    %v4616 = vsel %vm705, %v4614, %v4615
    %v4617 = vrot.slane %v4212, 2
    %v4618 = vsel %vm705, %v4615, %v4617
    %v4619 = vrot.slane %v4213, 2
    %v4620 = vrot.slane %v4214, 2
    %v4621 = vsel %vm705, %v4619, %v4620
    %v4622 = vrot.slane %v4215, 2
    %v4623 = vsel %vm705, %v4620, %v4622
    %v4624 = vrot.slane %v4216, 2
    %v4625 = vrot.slane %v4217, 2
    %v4626 = vsel %vm705, %v4624, %v4625
    %v4627 = vrot.slane %v4218, 2
    %v4628 = vsel %vm705, %v4625, %v4627
    %v4629 = vrot.slane %v4219, 2
    %v4630 = vrot.slane %v4220, 2
    %v4631 = vsel %vm705, %v4629, %v4630
    %v4632 = vrot.slane %v4221, 2
    %v4633 = vsel %vm705, %v4630, %v4632
    %v4634 = vrot.slane %v4222, 2
    %v4635 = vrot.slane %v4223, 2
    %v4636 = vsel %vm705, %v4634, %v4635
    %v4637 = vrot.slane %v4224, 2
    %v4638 = vsel %vm705, %v4635, %v4637
    %v4639 = vrot.slane %v4225, 2
    %v4640 = vrot.slane %v4226, 2
    %v4641 = vsel %vm705, %v4639, %v4640
    %v4642 = vrot.slane %v4227, 2
    %v4643 = vsel %vm705, %v4640, %v4642
    %v4644 = vrot.slane %v4228, 2
    %v4645 = vrot.slane %v4229, 2
    %v4646 = vsel %vm705, %v4644, %v4645
    %v4647 = vrot.slane %v4230, 2
    %v4648 = vsel %vm705, %v4645, %v4647
    %v4649 = vrot.slane %v4231, 2
    %v4650 = vrot.slane %v4232, 2
    %v4651 = vsel %vm705, %v4649, %v4650
    %v4652 = vrot.slane %v4233, 2
    %v4653 = vsel %vm705, %v4650, %v4652
    %v4654 = vrot.slane %v4234, 2
    %v4655 = vrot.slane %v4235, 2
    %v4656 = vsel %vm705, %v4654, %v4655
    %v4657 = vrot.slane %v4236, 2
    %v4658 = vsel %vm705, %v4655, %v4657
    %v4665 = vrot.slane %v4183, 1
    %v4666 = vrot.slane %v4184, 1
    %v4667 = vsel %vm544, %v4665, %v4666
    %v4668 = vrot.slane %v4185, 1
    %v4669 = vsel %vm544, %v4666, %v4668
    %v4670 = vrot.slane %v4237, 1
    %v4671 = vrot.slane %v4238, 1
    %v4672 = vsel %vm544, %v4670, %v4671
    %v4673 = vrot.slane %v4239, 1
    %v4674 = vsel %vm544, %v4671, %v4673
    %v4675 = vrot.slane %v4183, 2
    %v4676 = vrot.slane %v4184, 2
    %v4677 = vsel %vm705, %v4675, %v4676
    %v4678 = vrot.slane %v4185, 2
    %v4679 = vsel %vm705, %v4676, %v4678
    %v4680 = vrot.slane %v4237, 2
    %v4681 = vrot.slane %v4238, 2
    %v4682 = vsel %vm705, %v4680, %v4681
    %v4683 = vrot.slane %v4239, 2
    %v4684 = vsel %vm705, %v4681, %v4683
    %v4691 = vrot.slane %v4186, 1
    %v4692 = vrot.slane %v4187, 1
    %v4693 = vsel %vm544, %v4691, %v4692
    %v4694 = vrot.slane %v4188, 1
    %v4695 = vsel %vm544, %v4692, %v4694
    %v4696 = vrot.slane %v4240, 1
    %v4697 = vrot.slane %v4241, 1
    %v4698 = vsel %vm544, %v4696, %v4697
    %v4699 = vrot.slane %v4242, 1
    %v4700 = vsel %vm544, %v4697, %v4699
    %v4701 = vrot.slane %v4186, 2
    %v4702 = vrot.slane %v4187, 2
    %v4703 = vsel %vm705, %v4701, %v4702
    %v4704 = vrot.slane %v4188, 2
    %v4705 = vsel %vm705, %v4702, %v4704
    %v4706 = vrot.slane %v4240, 2
    %v4707 = vrot.slane %v4241, 2
    %v4708 = vsel %vm705, %v4706, %v4707
    %v4709 = vrot.slane %v4242, 2
    %v4710 = vsel %vm705, %v4707, %v4709
    %4711 = vrot.lane.b32.xlu0 %v4341, 8
    %v4712 = vpop.permute.xlu0 %4711
    %4713 = vrot.lane.b32.xlu0 %v4343, 8
    %v4714 = vpop.permute.xlu0 %4713
    %4715 = vrot.lane.b32.xlu0 %v4346, 8
    %v4716 = vpop.permute.xlu0 %4715
    %4717 = vrot.lane.b32.xlu0 %v4348, 8
    %v4718 = vpop.permute.xlu0 %4717
    %4719 = vrot.lane.b32.xlu0 %v4351, 8
    %v4720 = vpop.permute.xlu0 %4719
    %4721 = vrot.lane.b32.xlu0 %v4353, 8
    %v4722 = vpop.permute.xlu0 %4721
    %4723 = vrot.lane.b32.xlu0 %v4356, 8
    %v4724 = vpop.permute.xlu0 %4723
    %4725 = vrot.lane.b32.xlu0 %v4358, 8
    %v4726 = vpop.permute.xlu0 %4725
    %4727 = vrot.lane.b32.xlu0 %v4361, 8
    %v4728 = vpop.permute.xlu0 %4727
    %4729 = vrot.lane.b32.xlu0 %v4363, 8
    %v4730 = vpop.permute.xlu0 %4729
    %4731 = vrot.lane.b32.xlu0 %v4366, 8
    %v4732 = vpop.permute.xlu0 %4731
    %4733 = vrot.lane.b32.xlu0 %v4368, 8
    %v4734 = vpop.permute.xlu0 %4733
    %4735 = vrot.lane.b32.xlu0 %v4371, 8
    %v4736 = vpop.permute.xlu0 %4735
    %4737 = vrot.lane.b32.xlu0 %v4373, 8
    %v4738 = vpop.permute.xlu0 %4737
    %4739 = vrot.lane.b32.xlu0 %v4376, 8
    %v4740 = vpop.permute.xlu0 %4739
    %4741 = vrot.lane.b32.xlu0 %v4378, 8
    %v4742 = vpop.permute.xlu0 %4741
    %4743 = vrot.lane.b32.xlu0 %v4381, 8
    %v4744 = vpop.permute.xlu0 %4743
    %4745 = vrot.lane.b32.xlu0 %v4383, 8
    %v4746 = vpop.permute.xlu0 %4745
    %4747 = vrot.lane.b32.xlu0 %v4386, 8
    %v4748 = vpop.permute.xlu0 %4747
    %4749 = vrot.lane.b32.xlu0 %v4388, 8
    %v4750 = vpop.permute.xlu0 %4749
    %4751 = vrot.lane.b32.xlu0 %v4391, 8
    %v4752 = vpop.permute.xlu0 %4751
    %4753 = vrot.lane.b32.xlu0 %v4393, 8
    %v4754 = vpop.permute.xlu0 %4753
    %4755 = vrot.lane.b32.xlu0 %v4396, 8
    %v4756 = vpop.permute.xlu0 %4755
    %4757 = vrot.lane.b32.xlu0 %v4398, 8
    %v4758 = vpop.permute.xlu0 %4757
    %4759 = vrot.lane.b32.xlu0 %v4401, 8
    %v4760 = vpop.permute.xlu0 %4759
    %4761 = vrot.lane.b32.xlu0 %v4403, 8
    %v4762 = vpop.permute.xlu0 %4761
    %4763 = vrot.lane.b32.xlu0 %v4406, 8
    %v4764 = vpop.permute.xlu0 %4763
    %4765 = vrot.lane.b32.xlu0 %v4408, 8
    %v4766 = vpop.permute.xlu0 %4765
    %4767 = vrot.lane.b32.xlu0 %v4411, 8
    %v4768 = vpop.permute.xlu0 %4767
    %4769 = vrot.lane.b32.xlu0 %v4413, 8
    %v4770 = vpop.permute.xlu0 %4769
    %4771 = vrot.lane.b32.xlu0 %v4416, 8
    %v4772 = vpop.permute.xlu0 %4771
    %4773 = vrot.lane.b32.xlu0 %v4418, 8
    %v4774 = vpop.permute.xlu0 %4773
    %4775 = vrot.lane.b32.xlu0 %v4421, 8
    %v4776 = vpop.permute.xlu0 %4775
    %4777 = vrot.lane.b32.xlu0 %v4423, 8
    %v4778 = vpop.permute.xlu0 %4777
    %4779 = vrot.lane.b32.xlu0 %v4426, 8
    %v4780 = vpop.permute.xlu0 %4779
    %4781 = vrot.lane.b32.xlu0 %v4428, 8
    %v4782 = vpop.permute.xlu0 %4781
    %4783 = vrot.lane.b32.xlu0 %v4431, 8
    %v4784 = vpop.permute.xlu0 %4783
    %4785 = vrot.lane.b32.xlu0 %v4433, 8
    %v4786 = vpop.permute.xlu0 %4785
    %4787 = vrot.lane.b32.xlu0 %v4436, 8
    %v4788 = vpop.permute.xlu0 %4787
    %4789 = vrot.lane.b32.xlu0 %v4438, 8
    %v4790 = vpop.permute.xlu0 %4789
    %4791 = vrot.lane.b32.xlu0 %v4441, 8
    %v4792 = vpop.permute.xlu0 %4791
    %4793 = vrot.lane.b32.xlu0 %v4443, 8
    %v4794 = vpop.permute.xlu0 %4793
    %4795 = vrot.lane.b32.xlu0 %v4446, 8
    %v4796 = vpop.permute.xlu0 %4795
    %4797 = vrot.lane.b32.xlu0 %v4448, 8
    %v4798 = vpop.permute.xlu0 %4797
    %4799 = vrot.lane.b32.xlu0 %v4451, 8
    %v4800 = vpop.permute.xlu0 %4799
    %4801 = vrot.lane.b32.xlu0 %v4453, 8
    %v4802 = vpop.permute.xlu0 %4801
    %4803 = vrot.lane.b32.xlu0 %v4456, 8
    %v4804 = vpop.permute.xlu0 %4803
    %4805 = vrot.lane.b32.xlu0 %v4458, 8
    %v4806 = vpop.permute.xlu0 %4805
    %4807 = vrot.lane.b32.xlu0 %v4461, 8
    %v4808 = vpop.permute.xlu0 %4807
    %4809 = vrot.lane.b32.xlu0 %v4463, 8
    %v4810 = vpop.permute.xlu0 %4809
    %4811 = vrot.lane.b32.xlu0 %v4466, 8
    %v4812 = vpop.permute.xlu0 %4811
    %4813 = vrot.lane.b32.xlu0 %v4468, 8
    %v4814 = vpop.permute.xlu0 %4813
    %4815 = vrot.lane.b32.xlu0 %v4471, 8
    %v4816 = vpop.permute.xlu0 %4815
    %4817 = vrot.lane.b32.xlu0 %v4473, 8
    %v4818 = vpop.permute.xlu0 %4817
    %4819 = vrot.lane.b32.xlu0 %v4476, 8
    %v4820 = vpop.permute.xlu0 %4819
    %4821 = vrot.lane.b32.xlu0 %v4478, 8
    %v4822 = vpop.permute.xlu0 %4821
    %4823 = vrot.lane.b32.xlu0 %v4481, 8
    %v4824 = vpop.permute.xlu0 %4823
    %4825 = vrot.lane.b32.xlu0 %v4483, 8
    %v4826 = vpop.permute.xlu0 %4825
    %4827 = vrot.lane.b32.xlu0 %v4486, 8
    %v4828 = vpop.permute.xlu0 %4827
    %4829 = vrot.lane.b32.xlu0 %v4488, 8
    %v4830 = vpop.permute.xlu0 %4829
    %4831 = vrot.lane.b32.xlu0 %v4491, 8
    %v4832 = vpop.permute.xlu0 %4831
    %4833 = vrot.lane.b32.xlu0 %v4493, 8
    %v4834 = vpop.permute.xlu0 %4833
    %4835 = vrot.lane.b32.xlu0 %v4496, 8
    %v4836 = vpop.permute.xlu0 %4835
    %4837 = vrot.lane.b32.xlu0 %v4498, 8
    %v4838 = vpop.permute.xlu0 %4837
    %4903 = vrot.lane.b32.xlu0 %v4501, 16
    %v4904 = vpop.permute.xlu0 %4903
    %4905 = vrot.lane.b32.xlu0 %v4503, 16
    %v4906 = vpop.permute.xlu0 %4905
    %4907 = vrot.lane.b32.xlu0 %v4506, 16
    %v4908 = vpop.permute.xlu0 %4907
    %4909 = vrot.lane.b32.xlu0 %v4508, 16
    %v4910 = vpop.permute.xlu0 %4909
    %4911 = vrot.lane.b32.xlu0 %v4511, 16
    %v4912 = vpop.permute.xlu0 %4911
    %4913 = vrot.lane.b32.xlu0 %v4513, 16
    %v4914 = vpop.permute.xlu0 %4913
    %4915 = vrot.lane.b32.xlu0 %v4516, 16
    %v4916 = vpop.permute.xlu0 %4915
    %4917 = vrot.lane.b32.xlu0 %v4518, 16
    %v4918 = vpop.permute.xlu0 %4917
    %4919 = vrot.lane.b32.xlu0 %v4521, 16
    %v4920 = vpop.permute.xlu0 %4919
    %4921 = vrot.lane.b32.xlu0 %v4523, 16
    %v4922 = vpop.permute.xlu0 %4921
    %4923 = vrot.lane.b32.xlu0 %v4526, 16
    %v4924 = vpop.permute.xlu0 %4923
    %4925 = vrot.lane.b32.xlu0 %v4528, 16
    %v4926 = vpop.permute.xlu0 %4925
    %4927 = vrot.lane.b32.xlu0 %v4531, 16
    %v4928 = vpop.permute.xlu0 %4927
    %4929 = vrot.lane.b32.xlu0 %v4533, 16
    %v4930 = vpop.permute.xlu0 %4929
    %4931 = vrot.lane.b32.xlu0 %v4536, 16
    %v4932 = vpop.permute.xlu0 %4931
    %4933 = vrot.lane.b32.xlu0 %v4538, 16
    %v4934 = vpop.permute.xlu0 %4933
    %4935 = vrot.lane.b32.xlu0 %v4541, 16
    %v4936 = vpop.permute.xlu0 %4935
    %4937 = vrot.lane.b32.xlu0 %v4543, 16
    %v4938 = vpop.permute.xlu0 %4937
    %4939 = vrot.lane.b32.xlu0 %v4546, 16
    %v4940 = vpop.permute.xlu0 %4939
    %4941 = vrot.lane.b32.xlu0 %v4548, 16
    %v4942 = vpop.permute.xlu0 %4941
    %4943 = vrot.lane.b32.xlu0 %v4551, 16
    %v4944 = vpop.permute.xlu0 %4943
    %4945 = vrot.lane.b32.xlu0 %v4553, 16
    %v4946 = vpop.permute.xlu0 %4945
    %4947 = vrot.lane.b32.xlu0 %v4556, 16
    %v4948 = vpop.permute.xlu0 %4947
    %4949 = vrot.lane.b32.xlu0 %v4558, 16
    %v4950 = vpop.permute.xlu0 %4949
    %4951 = vrot.lane.b32.xlu0 %v4561, 16
    %v4952 = vpop.permute.xlu0 %4951
    %4953 = vrot.lane.b32.xlu0 %v4563, 16
    %v4954 = vpop.permute.xlu0 %4953
    %4955 = vrot.lane.b32.xlu0 %v4566, 16
    %v4956 = vpop.permute.xlu0 %4955
    %4957 = vrot.lane.b32.xlu0 %v4568, 16
    %v4958 = vpop.permute.xlu0 %4957
    %4959 = vrot.lane.b32.xlu0 %v4571, 16
    %v4960 = vpop.permute.xlu0 %4959
    %4961 = vrot.lane.b32.xlu0 %v4573, 16
    %v4962 = vpop.permute.xlu0 %4961
    %4963 = vrot.lane.b32.xlu0 %v4576, 16
    %v4964 = vpop.permute.xlu0 %4963
    %4965 = vrot.lane.b32.xlu0 %v4578, 16
    %v4966 = vpop.permute.xlu0 %4965
    %4967 = vrot.lane.b32.xlu0 %v4581, 16
    %v4968 = vpop.permute.xlu0 %4967
    %4969 = vrot.lane.b32.xlu0 %v4583, 16
    %v4970 = vpop.permute.xlu0 %4969
    %4971 = vrot.lane.b32.xlu0 %v4586, 16
    %v4972 = vpop.permute.xlu0 %4971
    %4973 = vrot.lane.b32.xlu0 %v4588, 16
    %v4974 = vpop.permute.xlu0 %4973
    %4975 = vrot.lane.b32.xlu0 %v4591, 16
    %v4976 = vpop.permute.xlu0 %4975
    %4977 = vrot.lane.b32.xlu0 %v4593, 16
    %v4978 = vpop.permute.xlu0 %4977
    %4979 = vrot.lane.b32.xlu0 %v4596, 16
    %v4980 = vpop.permute.xlu0 %4979
    %4981 = vrot.lane.b32.xlu0 %v4598, 16
    %v4982 = vpop.permute.xlu0 %4981
    %4983 = vrot.lane.b32.xlu0 %v4601, 16
    %v4984 = vpop.permute.xlu0 %4983
    %4985 = vrot.lane.b32.xlu0 %v4603, 16
    %v4986 = vpop.permute.xlu0 %4985
    %4987 = vrot.lane.b32.xlu0 %v4606, 16
    %v4988 = vpop.permute.xlu0 %4987
    %4989 = vrot.lane.b32.xlu0 %v4608, 16
    %v4990 = vpop.permute.xlu0 %4989
    %4991 = vrot.lane.b32.xlu0 %v4611, 16
    %v4992 = vpop.permute.xlu0 %4991
    %4993 = vrot.lane.b32.xlu0 %v4613, 16
    %v4994 = vpop.permute.xlu0 %4993
    %4995 = vrot.lane.b32.xlu0 %v4616, 16
    %v4996 = vpop.permute.xlu0 %4995
    %4997 = vrot.lane.b32.xlu0 %v4618, 16
    %v4998 = vpop.permute.xlu0 %4997
    %4999 = vrot.lane.b32.xlu0 %v4621, 16
    %v5000 = vpop.permute.xlu0 %4999
    %5001 = vrot.lane.b32.xlu0 %v4623, 16
    %v5002 = vpop.permute.xlu0 %5001
    %5003 = vrot.lane.b32.xlu0 %v4626, 16
    %v5004 = vpop.permute.xlu0 %5003
    %5005 = vrot.lane.b32.xlu0 %v4628, 16
    %v5006 = vpop.permute.xlu0 %5005
    %5007 = vrot.lane.b32.xlu0 %v4631, 16
    %v5008 = vpop.permute.xlu0 %5007
    %5009 = vrot.lane.b32.xlu0 %v4633, 16
    %v5010 = vpop.permute.xlu0 %5009
    %5011 = vrot.lane.b32.xlu0 %v4636, 16
    %v5012 = vpop.permute.xlu0 %5011
    %5013 = vrot.lane.b32.xlu0 %v4638, 16
    %v5014 = vpop.permute.xlu0 %5013
    %5015 = vrot.lane.b32.xlu0 %v4641, 16
    %v5016 = vpop.permute.xlu0 %5015
    %5017 = vrot.lane.b32.xlu0 %v4643, 16
    %v5018 = vpop.permute.xlu0 %5017
    %5019 = vrot.lane.b32.xlu0 %v4646, 16
    %v5020 = vpop.permute.xlu0 %5019
    %5021 = vrot.lane.b32.xlu0 %v4648, 16
    %v5022 = vpop.permute.xlu0 %5021
    %5023 = vrot.lane.b32.xlu0 %v4651, 16
    %v5024 = vpop.permute.xlu0 %5023
    %5025 = vrot.lane.b32.xlu0 %v4653, 16
    %v5026 = vpop.permute.xlu0 %5025
    %5027 = vrot.lane.b32.xlu0 %v4656, 16
    %v5028 = vpop.permute.xlu0 %5027
    %5029 = vrot.lane.b32.xlu0 %v4658, 16
    %v5030 = vpop.permute.xlu0 %5029
    %5095 = vrot.lane.b32.xlu0 %v4138, 24
    %v5096 = vpop.permute.xlu0 %5095
    %5097 = vrot.lane.b32.xlu0 %v4139, 24
    %v5098 = vpop.permute.xlu0 %5097
    %5099 = vrot.lane.b32.xlu0 %v4141, 24
    %v5100 = vpop.permute.xlu0 %5099
    %5101 = vrot.lane.b32.xlu0 %v4142, 24
    %v5102 = vpop.permute.xlu0 %5101
    %5103 = vrot.lane.b32.xlu0 %v4144, 24
    %v5104 = vpop.permute.xlu0 %5103
    %5105 = vrot.lane.b32.xlu0 %v4145, 24
    %v5106 = vpop.permute.xlu0 %5105
    %5107 = vrot.lane.b32.xlu0 %v4147, 24
    %v5108 = vpop.permute.xlu0 %5107
    %5109 = vrot.lane.b32.xlu0 %v4148, 24
    %v5110 = vpop.permute.xlu0 %5109
    %5111 = vrot.lane.b32.xlu0 %v4150, 24
    %v5112 = vpop.permute.xlu0 %5111
    %5113 = vrot.lane.b32.xlu0 %v4151, 24
    %v5114 = vpop.permute.xlu0 %5113
    %5115 = vrot.lane.b32.xlu0 %v4153, 24
    %v5116 = vpop.permute.xlu0 %5115
    %5117 = vrot.lane.b32.xlu0 %v4154, 24
    %v5118 = vpop.permute.xlu0 %5117
    %5119 = vrot.lane.b32.xlu0 %v4156, 24
    %v5120 = vpop.permute.xlu0 %5119
    %5121 = vrot.lane.b32.xlu0 %v4157, 24
    %v5122 = vpop.permute.xlu0 %5121
    %5123 = vrot.lane.b32.xlu0 %v4159, 24
    %v5124 = vpop.permute.xlu0 %5123
    %5125 = vrot.lane.b32.xlu0 %v4160, 24
    %v5126 = vpop.permute.xlu0 %5125
    %5127 = vrot.lane.b32.xlu0 %v4162, 24
    %v5128 = vpop.permute.xlu0 %5127
    %5129 = vrot.lane.b32.xlu0 %v4163, 24
    %v5130 = vpop.permute.xlu0 %5129
    %5131 = vrot.lane.b32.xlu0 %v4165, 24
    %v5132 = vpop.permute.xlu0 %5131
    %5133 = vrot.lane.b32.xlu0 %v4166, 24
    %v5134 = vpop.permute.xlu0 %5133
    %5135 = vrot.lane.b32.xlu0 %v4168, 24
    %v5136 = vpop.permute.xlu0 %5135
    %5137 = vrot.lane.b32.xlu0 %v4169, 24
    %v5138 = vpop.permute.xlu0 %5137
    %5139 = vrot.lane.b32.xlu0 %v4171, 24
    %v5140 = vpop.permute.xlu0 %5139
    %5141 = vrot.lane.b32.xlu0 %v4172, 24
    %v5142 = vpop.permute.xlu0 %5141
    %5143 = vrot.lane.b32.xlu0 %v4174, 24
    %v5144 = vpop.permute.xlu0 %5143
    %5145 = vrot.lane.b32.xlu0 %v4175, 24
    %v5146 = vpop.permute.xlu0 %5145
    %5147 = vrot.lane.b32.xlu0 %v4177, 24
    %v5148 = vpop.permute.xlu0 %5147
    %5149 = vrot.lane.b32.xlu0 %v4178, 24
    %v5150 = vpop.permute.xlu0 %5149
    %5151 = vrot.lane.b32.xlu0 %v4180, 24
    %v5152 = vpop.permute.xlu0 %5151
    %5153 = vrot.lane.b32.xlu0 %v4181, 24
    %v5154 = vpop.permute.xlu0 %5153
    %5155 = vrot.lane.b32.xlu0 %v4183, 24
    %v5156 = vpop.permute.xlu0 %5155
    %5157 = vrot.lane.b32.xlu0 %v4184, 24
    %v5158 = vpop.permute.xlu0 %5157
    %5159 = vrot.lane.b32.xlu0 %v4192, 24
    %v5160 = vpop.permute.xlu0 %5159
    %5161 = vrot.lane.b32.xlu0 %v4193, 24
    %v5162 = vpop.permute.xlu0 %5161
    %5163 = vrot.lane.b32.xlu0 %v4195, 24
    %v5164 = vpop.permute.xlu0 %5163
    %5165 = vrot.lane.b32.xlu0 %v4196, 24
    %v5166 = vpop.permute.xlu0 %5165
    %5167 = vrot.lane.b32.xlu0 %v4198, 24
    %v5168 = vpop.permute.xlu0 %5167
    %5169 = vrot.lane.b32.xlu0 %v4199, 24
    %v5170 = vpop.permute.xlu0 %5169
    %5171 = vrot.lane.b32.xlu0 %v4201, 24
    %v5172 = vpop.permute.xlu0 %5171
    %5173 = vrot.lane.b32.xlu0 %v4202, 24
    %v5174 = vpop.permute.xlu0 %5173
    %5175 = vrot.lane.b32.xlu0 %v4204, 24
    %v5176 = vpop.permute.xlu0 %5175
    %5177 = vrot.lane.b32.xlu0 %v4205, 24
    %v5178 = vpop.permute.xlu0 %5177
    %5179 = vrot.lane.b32.xlu0 %v4207, 24
    %v5180 = vpop.permute.xlu0 %5179
    %5181 = vrot.lane.b32.xlu0 %v4208, 24
    %v5182 = vpop.permute.xlu0 %5181
    %5183 = vrot.lane.b32.xlu0 %v4210, 24
    %v5184 = vpop.permute.xlu0 %5183
    %5185 = vrot.lane.b32.xlu0 %v4211, 24
    %v5186 = vpop.permute.xlu0 %5185
    %5187 = vrot.lane.b32.xlu0 %v4213, 24
    %v5188 = vpop.permute.xlu0 %5187
    %5189 = vrot.lane.b32.xlu0 %v4214, 24
    %v5190 = vpop.permute.xlu0 %5189
    %5191 = vrot.lane.b32.xlu0 %v4216, 24
    %v5192 = vpop.permute.xlu0 %5191
    %5193 = vrot.lane.b32.xlu0 %v4217, 24
    %v5194 = vpop.permute.xlu0 %5193
    %5195 = vrot.lane.b32.xlu0 %v4219, 24
    %v5196 = vpop.permute.xlu0 %5195
    %5197 = vrot.lane.b32.xlu0 %v4220, 24
    %v5198 = vpop.permute.xlu0 %5197
    %5199 = vrot.lane.b32.xlu0 %v4222, 24
    %v5200 = vpop.permute.xlu0 %5199
    %5201 = vrot.lane.b32.xlu0 %v4223, 24
    %v5202 = vpop.permute.xlu0 %5201
    %5203 = vrot.lane.b32.xlu0 %v4225, 24
    %v5204 = vpop.permute.xlu0 %5203
    %5205 = vrot.lane.b32.xlu0 %v4226, 24
    %v5206 = vpop.permute.xlu0 %5205
    %5207 = vrot.lane.b32.xlu0 %v4228, 24
    %v5208 = vpop.permute.xlu0 %5207
    %5209 = vrot.lane.b32.xlu0 %v4229, 24
    %v5210 = vpop.permute.xlu0 %5209
    %5211 = vrot.lane.b32.xlu0 %v4231, 24
    %v5212 = vpop.permute.xlu0 %5211
    %5213 = vrot.lane.b32.xlu0 %v4232, 24
    %v5214 = vpop.permute.xlu0 %5213
    %5215 = vrot.lane.b32.xlu0 %v4234, 24
    %v5216 = vpop.permute.xlu0 %5215
    %5217 = vrot.lane.b32.xlu0 %v4235, 24
    %v5218 = vpop.permute.xlu0 %5217
    %5219 = vrot.lane.b32.xlu0 %v4237, 24
    %v5220 = vpop.permute.xlu0 %5219
    %5221 = vrot.lane.b32.xlu0 %v4238, 24
    %v5222 = vpop.permute.xlu0 %5221
    %5287 = vrot.lane.b32.xlu0 %v4346, 32
    %v5288 = vpop.permute.xlu0 %5287
    %5289 = vrot.lane.b32.xlu0 %v4348, 32
    %v5290 = vpop.permute.xlu0 %5289
    %5291 = vrot.lane.b32.xlu0 %v4351, 32
    %v5292 = vpop.permute.xlu0 %5291
    %5293 = vrot.lane.b32.xlu0 %v4353, 32
    %v5294 = vpop.permute.xlu0 %5293
    %5295 = vrot.lane.b32.xlu0 %v4356, 32
    %v5296 = vpop.permute.xlu0 %5295
    %5297 = vrot.lane.b32.xlu0 %v4358, 32
    %v5298 = vpop.permute.xlu0 %5297
    %5299 = vrot.lane.b32.xlu0 %v4361, 32
    %v5300 = vpop.permute.xlu0 %5299
    %5301 = vrot.lane.b32.xlu0 %v4363, 32
    %v5302 = vpop.permute.xlu0 %5301
    %5303 = vrot.lane.b32.xlu0 %v4366, 32
    %v5304 = vpop.permute.xlu0 %5303
    %5305 = vrot.lane.b32.xlu0 %v4368, 32
    %v5306 = vpop.permute.xlu0 %5305
    %5307 = vrot.lane.b32.xlu0 %v4371, 32
    %v5308 = vpop.permute.xlu0 %5307
    %5309 = vrot.lane.b32.xlu0 %v4373, 32
    %v5310 = vpop.permute.xlu0 %5309
    %5311 = vrot.lane.b32.xlu0 %v4376, 32
    %v5312 = vpop.permute.xlu0 %5311
    %5313 = vrot.lane.b32.xlu0 %v4378, 32
    %v5314 = vpop.permute.xlu0 %5313
    %5315 = vrot.lane.b32.xlu0 %v4381, 32
    %v5316 = vpop.permute.xlu0 %5315
    %5317 = vrot.lane.b32.xlu0 %v4383, 32
    %v5318 = vpop.permute.xlu0 %5317
    %5319 = vrot.lane.b32.xlu0 %v4386, 32
    %v5320 = vpop.permute.xlu0 %5319
    %5321 = vrot.lane.b32.xlu0 %v4388, 32
    %v5322 = vpop.permute.xlu0 %5321
    %5323 = vrot.lane.b32.xlu0 %v4391, 32
    %v5324 = vpop.permute.xlu0 %5323
    %5325 = vrot.lane.b32.xlu0 %v4393, 32
    %v5326 = vpop.permute.xlu0 %5325
    %5327 = vrot.lane.b32.xlu0 %v4396, 32
    %v5328 = vpop.permute.xlu0 %5327
    %5329 = vrot.lane.b32.xlu0 %v4398, 32
    %v5330 = vpop.permute.xlu0 %5329
    %5331 = vrot.lane.b32.xlu0 %v4401, 32
    %v5332 = vpop.permute.xlu0 %5331
    %5333 = vrot.lane.b32.xlu0 %v4403, 32
    %v5334 = vpop.permute.xlu0 %5333
    %5335 = vrot.lane.b32.xlu0 %v4406, 32
    %v5336 = vpop.permute.xlu0 %5335
    %5337 = vrot.lane.b32.xlu0 %v4408, 32
    %v5338 = vpop.permute.xlu0 %5337
    %5339 = vrot.lane.b32.xlu0 %v4411, 32
    %v5340 = vpop.permute.xlu0 %5339
    %5341 = vrot.lane.b32.xlu0 %v4413, 32
    %v5342 = vpop.permute.xlu0 %5341
    %5343 = vrot.lane.b32.xlu0 %v4416, 32
    %v5344 = vpop.permute.xlu0 %5343
    %5345 = vrot.lane.b32.xlu0 %v4418, 32
    %v5346 = vpop.permute.xlu0 %5345
    %5347 = vrot.lane.b32.xlu0 %v4667, 32
    %v5348 = vpop.permute.xlu0 %5347
    %5349 = vrot.lane.b32.xlu0 %v4669, 32
    %v5350 = vpop.permute.xlu0 %5349
    %5351 = vrot.lane.b32.xlu0 %v4426, 32
    %v5352 = vpop.permute.xlu0 %5351
    %5353 = vrot.lane.b32.xlu0 %v4428, 32
    %v5354 = vpop.permute.xlu0 %5353
    %5355 = vrot.lane.b32.xlu0 %v4431, 32
    %v5356 = vpop.permute.xlu0 %5355
    %5357 = vrot.lane.b32.xlu0 %v4433, 32
    %v5358 = vpop.permute.xlu0 %5357
    %5359 = vrot.lane.b32.xlu0 %v4436, 32
    %v5360 = vpop.permute.xlu0 %5359
    %5361 = vrot.lane.b32.xlu0 %v4438, 32
    %v5362 = vpop.permute.xlu0 %5361
    %5363 = vrot.lane.b32.xlu0 %v4441, 32
    %v5364 = vpop.permute.xlu0 %5363
    %5365 = vrot.lane.b32.xlu0 %v4443, 32
    %v5366 = vpop.permute.xlu0 %5365
    %5367 = vrot.lane.b32.xlu0 %v4446, 32
    %v5368 = vpop.permute.xlu0 %5367
    %5369 = vrot.lane.b32.xlu0 %v4448, 32
    %v5370 = vpop.permute.xlu0 %5369
    %5371 = vrot.lane.b32.xlu0 %v4451, 32
    %v5372 = vpop.permute.xlu0 %5371
    %5373 = vrot.lane.b32.xlu0 %v4453, 32
    %v5374 = vpop.permute.xlu0 %5373
    %5375 = vrot.lane.b32.xlu0 %v4456, 32
    %v5376 = vpop.permute.xlu0 %5375
    %5377 = vrot.lane.b32.xlu0 %v4458, 32
    %v5378 = vpop.permute.xlu0 %5377
    %5379 = vrot.lane.b32.xlu0 %v4461, 32
    %v5380 = vpop.permute.xlu0 %5379
    %5381 = vrot.lane.b32.xlu0 %v4463, 32
    %v5382 = vpop.permute.xlu0 %5381
    %5383 = vrot.lane.b32.xlu0 %v4466, 32
    %v5384 = vpop.permute.xlu0 %5383
    %5385 = vrot.lane.b32.xlu0 %v4468, 32
    %v5386 = vpop.permute.xlu0 %5385
    %5387 = vrot.lane.b32.xlu0 %v4471, 32
    %v5388 = vpop.permute.xlu0 %5387
    %5389 = vrot.lane.b32.xlu0 %v4473, 32
    %v5390 = vpop.permute.xlu0 %5389
    %5391 = vrot.lane.b32.xlu0 %v4476, 32
    %v5392 = vpop.permute.xlu0 %5391
    %5393 = vrot.lane.b32.xlu0 %v4478, 32
    %v5394 = vpop.permute.xlu0 %5393
    %5395 = vrot.lane.b32.xlu0 %v4481, 32
    %v5396 = vpop.permute.xlu0 %5395
    %5397 = vrot.lane.b32.xlu0 %v4483, 32
    %v5398 = vpop.permute.xlu0 %5397
    %5399 = vrot.lane.b32.xlu0 %v4486, 32
    %v5400 = vpop.permute.xlu0 %5399
    %5401 = vrot.lane.b32.xlu0 %v4488, 32
    %v5402 = vpop.permute.xlu0 %5401
    %5403 = vrot.lane.b32.xlu0 %v4491, 32
    %v5404 = vpop.permute.xlu0 %5403
    %5405 = vrot.lane.b32.xlu0 %v4493, 32
    %v5406 = vpop.permute.xlu0 %5405
    %5407 = vrot.lane.b32.xlu0 %v4496, 32
    %v5408 = vpop.permute.xlu0 %5407
    %5409 = vrot.lane.b32.xlu0 %v4498, 32
    %v5410 = vpop.permute.xlu0 %5409
    %5411 = vrot.lane.b32.xlu0 %v4672, 32
    %v5412 = vpop.permute.xlu0 %5411
    %5413 = vrot.lane.b32.xlu0 %v4674, 32
    %v5414 = vpop.permute.xlu0 %5413
    %5479 = vrot.lane.b32.xlu0 %v4506, 40
    %v5480 = vpop.permute.xlu0 %5479
    %5481 = vrot.lane.b32.xlu0 %v4508, 40
    %v5482 = vpop.permute.xlu0 %5481
    %5483 = vrot.lane.b32.xlu0 %v4511, 40
    %v5484 = vpop.permute.xlu0 %5483
    %5485 = vrot.lane.b32.xlu0 %v4513, 40
    %v5486 = vpop.permute.xlu0 %5485
    %5487 = vrot.lane.b32.xlu0 %v4516, 40
    %v5488 = vpop.permute.xlu0 %5487
    %5489 = vrot.lane.b32.xlu0 %v4518, 40
    %v5490 = vpop.permute.xlu0 %5489
    %5491 = vrot.lane.b32.xlu0 %v4521, 40
    %v5492 = vpop.permute.xlu0 %5491
    %5493 = vrot.lane.b32.xlu0 %v4523, 40
    %v5494 = vpop.permute.xlu0 %5493
    %5495 = vrot.lane.b32.xlu0 %v4526, 40
    %v5496 = vpop.permute.xlu0 %5495
    %5497 = vrot.lane.b32.xlu0 %v4528, 40
    %v5498 = vpop.permute.xlu0 %5497
    %5499 = vrot.lane.b32.xlu0 %v4531, 40
    %v5500 = vpop.permute.xlu0 %5499
    %5501 = vrot.lane.b32.xlu0 %v4533, 40
    %v5502 = vpop.permute.xlu0 %5501
    %5503 = vrot.lane.b32.xlu0 %v4536, 40
    %v5504 = vpop.permute.xlu0 %5503
    %5505 = vrot.lane.b32.xlu0 %v4538, 40
    %v5506 = vpop.permute.xlu0 %5505
    %5507 = vrot.lane.b32.xlu0 %v4541, 40
    %v5508 = vpop.permute.xlu0 %5507
    %5509 = vrot.lane.b32.xlu0 %v4543, 40
    %v5510 = vpop.permute.xlu0 %5509
    %5511 = vrot.lane.b32.xlu0 %v4546, 40
    %v5512 = vpop.permute.xlu0 %5511
    %5513 = vrot.lane.b32.xlu0 %v4548, 40
    %v5514 = vpop.permute.xlu0 %5513
    %5515 = vrot.lane.b32.xlu0 %v4551, 40
    %v5516 = vpop.permute.xlu0 %5515
    %5517 = vrot.lane.b32.xlu0 %v4553, 40
    %v5518 = vpop.permute.xlu0 %5517
    %5519 = vrot.lane.b32.xlu0 %v4556, 40
    %v5520 = vpop.permute.xlu0 %5519
    %5521 = vrot.lane.b32.xlu0 %v4558, 40
    %v5522 = vpop.permute.xlu0 %5521
    %5523 = vrot.lane.b32.xlu0 %v4561, 40
    %v5524 = vpop.permute.xlu0 %5523
    %5525 = vrot.lane.b32.xlu0 %v4563, 40
    %v5526 = vpop.permute.xlu0 %5525
    %5527 = vrot.lane.b32.xlu0 %v4566, 40
    %v5528 = vpop.permute.xlu0 %5527
    %5529 = vrot.lane.b32.xlu0 %v4568, 40
    %v5530 = vpop.permute.xlu0 %5529
    %5531 = vrot.lane.b32.xlu0 %v4571, 40
    %v5532 = vpop.permute.xlu0 %5531
    %5533 = vrot.lane.b32.xlu0 %v4573, 40
    %v5534 = vpop.permute.xlu0 %5533
    %5535 = vrot.lane.b32.xlu0 %v4576, 40
    %v5536 = vpop.permute.xlu0 %5535
    %5537 = vrot.lane.b32.xlu0 %v4578, 40
    %v5538 = vpop.permute.xlu0 %5537
    %5539 = vrot.lane.b32.xlu0 %v4677, 40
    %v5540 = vpop.permute.xlu0 %5539
    %5541 = vrot.lane.b32.xlu0 %v4679, 40
    %v5542 = vpop.permute.xlu0 %5541
    %5543 = vrot.lane.b32.xlu0 %v4586, 40
    %v5544 = vpop.permute.xlu0 %5543
    %5545 = vrot.lane.b32.xlu0 %v4588, 40
    %v5546 = vpop.permute.xlu0 %5545
    %5547 = vrot.lane.b32.xlu0 %v4591, 40
    %v5548 = vpop.permute.xlu0 %5547
    %5549 = vrot.lane.b32.xlu0 %v4593, 40
    %v5550 = vpop.permute.xlu0 %5549
    %5551 = vrot.lane.b32.xlu0 %v4596, 40
    %v5552 = vpop.permute.xlu0 %5551
    %5553 = vrot.lane.b32.xlu0 %v4598, 40
    %v5554 = vpop.permute.xlu0 %5553
    %5555 = vrot.lane.b32.xlu0 %v4601, 40
    %v5556 = vpop.permute.xlu0 %5555
    %5557 = vrot.lane.b32.xlu0 %v4603, 40
    %v5558 = vpop.permute.xlu0 %5557
    %5559 = vrot.lane.b32.xlu0 %v4606, 40
    %v5560 = vpop.permute.xlu0 %5559
    %5561 = vrot.lane.b32.xlu0 %v4608, 40
    %v5562 = vpop.permute.xlu0 %5561
    %5563 = vrot.lane.b32.xlu0 %v4611, 40
    %v5564 = vpop.permute.xlu0 %5563
    %5565 = vrot.lane.b32.xlu0 %v4613, 40
    %v5566 = vpop.permute.xlu0 %5565
    %5567 = vrot.lane.b32.xlu0 %v4616, 40
    %v5568 = vpop.permute.xlu0 %5567
    %5569 = vrot.lane.b32.xlu0 %v4618, 40
    %v5570 = vpop.permute.xlu0 %5569
    %5571 = vrot.lane.b32.xlu0 %v4621, 40
    %v5572 = vpop.permute.xlu0 %5571
    %5573 = vrot.lane.b32.xlu0 %v4623, 40
    %v5574 = vpop.permute.xlu0 %5573
    %5575 = vrot.lane.b32.xlu0 %v4626, 40
    %v5576 = vpop.permute.xlu0 %5575
    %5577 = vrot.lane.b32.xlu0 %v4628, 40
    %v5578 = vpop.permute.xlu0 %5577
    %5579 = vrot.lane.b32.xlu0 %v4631, 40
    %v5580 = vpop.permute.xlu0 %5579
    %5581 = vrot.lane.b32.xlu0 %v4633, 40
    %v5582 = vpop.permute.xlu0 %5581
    %5583 = vrot.lane.b32.xlu0 %v4636, 40
    %v5584 = vpop.permute.xlu0 %5583
    %5585 = vrot.lane.b32.xlu0 %v4638, 40
    %v5586 = vpop.permute.xlu0 %5585
    %5587 = vrot.lane.b32.xlu0 %v4641, 40
    %v5588 = vpop.permute.xlu0 %5587
    %5589 = vrot.lane.b32.xlu0 %v4643, 40
    %v5590 = vpop.permute.xlu0 %5589
    %5591 = vrot.lane.b32.xlu0 %v4646, 40
    %v5592 = vpop.permute.xlu0 %5591
    %5593 = vrot.lane.b32.xlu0 %v4648, 40
    %v5594 = vpop.permute.xlu0 %5593
    %5595 = vrot.lane.b32.xlu0 %v4651, 40
    %v5596 = vpop.permute.xlu0 %5595
    %5597 = vrot.lane.b32.xlu0 %v4653, 40
    %v5598 = vpop.permute.xlu0 %5597
    %5599 = vrot.lane.b32.xlu0 %v4656, 40
    %v5600 = vpop.permute.xlu0 %5599
    %5601 = vrot.lane.b32.xlu0 %v4658, 40
    %v5602 = vpop.permute.xlu0 %5601
    %5603 = vrot.lane.b32.xlu0 %v4682, 40
    %v5604 = vpop.permute.xlu0 %5603
    %5605 = vrot.lane.b32.xlu0 %v4684, 40
    %v5606 = vpop.permute.xlu0 %5605
    %5671 = vrot.lane.b32.xlu0 %v4141, 48
    %v5672 = vpop.permute.xlu0 %5671
    %5673 = vrot.lane.b32.xlu0 %v4142, 48
    %v5674 = vpop.permute.xlu0 %5673
    %5675 = vrot.lane.b32.xlu0 %v4144, 48
    %v5676 = vpop.permute.xlu0 %5675
    %5677 = vrot.lane.b32.xlu0 %v4145, 48
    %v5678 = vpop.permute.xlu0 %5677
    %5679 = vrot.lane.b32.xlu0 %v4147, 48
    %v5680 = vpop.permute.xlu0 %5679
    %5681 = vrot.lane.b32.xlu0 %v4148, 48
    %v5682 = vpop.permute.xlu0 %5681
    %5683 = vrot.lane.b32.xlu0 %v4150, 48
    %v5684 = vpop.permute.xlu0 %5683
    %5685 = vrot.lane.b32.xlu0 %v4151, 48
    %v5686 = vpop.permute.xlu0 %5685
    %5687 = vrot.lane.b32.xlu0 %v4153, 48
    %v5688 = vpop.permute.xlu0 %5687
    %5689 = vrot.lane.b32.xlu0 %v4154, 48
    %v5690 = vpop.permute.xlu0 %5689
    %5691 = vrot.lane.b32.xlu0 %v4156, 48
    %v5692 = vpop.permute.xlu0 %5691
    %5693 = vrot.lane.b32.xlu0 %v4157, 48
    %v5694 = vpop.permute.xlu0 %5693
    %5695 = vrot.lane.b32.xlu0 %v4159, 48
    %v5696 = vpop.permute.xlu0 %5695
    %5697 = vrot.lane.b32.xlu0 %v4160, 48
    %v5698 = vpop.permute.xlu0 %5697
    %5699 = vrot.lane.b32.xlu0 %v4162, 48
    %v5700 = vpop.permute.xlu0 %5699
    %5701 = vrot.lane.b32.xlu0 %v4163, 48
    %v5702 = vpop.permute.xlu0 %5701
    %5703 = vrot.lane.b32.xlu0 %v4165, 48
    %v5704 = vpop.permute.xlu0 %5703
    %5705 = vrot.lane.b32.xlu0 %v4166, 48
    %v5706 = vpop.permute.xlu0 %5705
    %5707 = vrot.lane.b32.xlu0 %v4168, 48
    %v5708 = vpop.permute.xlu0 %5707
    %5709 = vrot.lane.b32.xlu0 %v4169, 48
    %v5710 = vpop.permute.xlu0 %5709
    %5711 = vrot.lane.b32.xlu0 %v4171, 48
    %v5712 = vpop.permute.xlu0 %5711
    %5713 = vrot.lane.b32.xlu0 %v4172, 48
    %v5714 = vpop.permute.xlu0 %5713
    %5715 = vrot.lane.b32.xlu0 %v4174, 48
    %v5716 = vpop.permute.xlu0 %5715
    %5717 = vrot.lane.b32.xlu0 %v4175, 48
    %v5718 = vpop.permute.xlu0 %5717
    %5719 = vrot.lane.b32.xlu0 %v4177, 48
    %v5720 = vpop.permute.xlu0 %5719
    %5721 = vrot.lane.b32.xlu0 %v4178, 48
    %v5722 = vpop.permute.xlu0 %5721
    %5723 = vrot.lane.b32.xlu0 %v4180, 48
    %v5724 = vpop.permute.xlu0 %5723
    %5725 = vrot.lane.b32.xlu0 %v4181, 48
    %v5726 = vpop.permute.xlu0 %5725
    %5727 = vrot.lane.b32.xlu0 %v4183, 48
    %v5728 = vpop.permute.xlu0 %5727
    %5729 = vrot.lane.b32.xlu0 %v4184, 48
    %v5730 = vpop.permute.xlu0 %5729
    %5731 = vrot.lane.b32.xlu0 %v4186, 48
    %v5732 = vpop.permute.xlu0 %5731
    %5733 = vrot.lane.b32.xlu0 %v4187, 48
    %v5734 = vpop.permute.xlu0 %5733
    %5735 = vrot.lane.b32.xlu0 %v4195, 48
    %v5736 = vpop.permute.xlu0 %5735
    %5737 = vrot.lane.b32.xlu0 %v4196, 48
    %v5738 = vpop.permute.xlu0 %5737
    %5739 = vrot.lane.b32.xlu0 %v4198, 48
    %v5740 = vpop.permute.xlu0 %5739
    %5741 = vrot.lane.b32.xlu0 %v4199, 48
    %v5742 = vpop.permute.xlu0 %5741
    %5743 = vrot.lane.b32.xlu0 %v4201, 48
    %v5744 = vpop.permute.xlu0 %5743
    %5745 = vrot.lane.b32.xlu0 %v4202, 48
    %v5746 = vpop.permute.xlu0 %5745
    %5747 = vrot.lane.b32.xlu0 %v4204, 48
    %v5748 = vpop.permute.xlu0 %5747
    %5749 = vrot.lane.b32.xlu0 %v4205, 48
    %v5750 = vpop.permute.xlu0 %5749
    %5751 = vrot.lane.b32.xlu0 %v4207, 48
    %v5752 = vpop.permute.xlu0 %5751
    %5753 = vrot.lane.b32.xlu0 %v4208, 48
    %v5754 = vpop.permute.xlu0 %5753
    %5755 = vrot.lane.b32.xlu0 %v4210, 48
    %v5756 = vpop.permute.xlu0 %5755
    %5757 = vrot.lane.b32.xlu0 %v4211, 48
    %v5758 = vpop.permute.xlu0 %5757
    %5759 = vrot.lane.b32.xlu0 %v4213, 48
    %v5760 = vpop.permute.xlu0 %5759
    %5761 = vrot.lane.b32.xlu0 %v4214, 48
    %v5762 = vpop.permute.xlu0 %5761
    %5763 = vrot.lane.b32.xlu0 %v4216, 48
    %v5764 = vpop.permute.xlu0 %5763
    %5765 = vrot.lane.b32.xlu0 %v4217, 48
    %v5766 = vpop.permute.xlu0 %5765
    %5767 = vrot.lane.b32.xlu0 %v4219, 48
    %v5768 = vpop.permute.xlu0 %5767
    %5769 = vrot.lane.b32.xlu0 %v4220, 48
    %v5770 = vpop.permute.xlu0 %5769
    %5771 = vrot.lane.b32.xlu0 %v4222, 48
    %v5772 = vpop.permute.xlu0 %5771
    %5773 = vrot.lane.b32.xlu0 %v4223, 48
    %v5774 = vpop.permute.xlu0 %5773
    %5775 = vrot.lane.b32.xlu0 %v4225, 48
    %v5776 = vpop.permute.xlu0 %5775
    %5777 = vrot.lane.b32.xlu0 %v4226, 48
    %v5778 = vpop.permute.xlu0 %5777
    %5779 = vrot.lane.b32.xlu0 %v4228, 48
    %v5780 = vpop.permute.xlu0 %5779
    %5781 = vrot.lane.b32.xlu0 %v4229, 48
    %v5782 = vpop.permute.xlu0 %5781
    %5783 = vrot.lane.b32.xlu0 %v4231, 48
    %v5784 = vpop.permute.xlu0 %5783
    %5785 = vrot.lane.b32.xlu0 %v4232, 48
    %v5786 = vpop.permute.xlu0 %5785
    %5787 = vrot.lane.b32.xlu0 %v4234, 48
    %v5788 = vpop.permute.xlu0 %5787
    %5789 = vrot.lane.b32.xlu0 %v4235, 48
    %v5790 = vpop.permute.xlu0 %5789
    %5791 = vrot.lane.b32.xlu0 %v4237, 48
    %v5792 = vpop.permute.xlu0 %5791
    %5793 = vrot.lane.b32.xlu0 %v4238, 48
    %v5794 = vpop.permute.xlu0 %5793
    %5795 = vrot.lane.b32.xlu0 %v4240, 48
    %v5796 = vpop.permute.xlu0 %5795
    %5797 = vrot.lane.b32.xlu0 %v4241, 48
    %v5798 = vpop.permute.xlu0 %5797
    %5863 = vrot.lane.b32.xlu0 %v4351, 56
    %v5864 = vpop.permute.xlu0 %5863
    %5865 = vrot.lane.b32.xlu0 %v4353, 56
    %v5866 = vpop.permute.xlu0 %5865
    %5867 = vrot.lane.b32.xlu0 %v4356, 56
    %v5868 = vpop.permute.xlu0 %5867
    %5869 = vrot.lane.b32.xlu0 %v4358, 56
    %v5870 = vpop.permute.xlu0 %5869
    %5871 = vrot.lane.b32.xlu0 %v4361, 56
    %v5872 = vpop.permute.xlu0 %5871
    %5873 = vrot.lane.b32.xlu0 %v4363, 56
    %v5874 = vpop.permute.xlu0 %5873
    %5875 = vrot.lane.b32.xlu0 %v4366, 56
    %v5876 = vpop.permute.xlu0 %5875
    %5877 = vrot.lane.b32.xlu0 %v4368, 56
    %v5878 = vpop.permute.xlu0 %5877
    %5879 = vrot.lane.b32.xlu0 %v4371, 56
    %v5880 = vpop.permute.xlu0 %5879
    %5881 = vrot.lane.b32.xlu0 %v4373, 56
    %v5882 = vpop.permute.xlu0 %5881
    %5883 = vrot.lane.b32.xlu0 %v4376, 56
    %v5884 = vpop.permute.xlu0 %5883
    %5885 = vrot.lane.b32.xlu0 %v4378, 56
    %v5886 = vpop.permute.xlu0 %5885
    %5887 = vrot.lane.b32.xlu0 %v4381, 56
    %v5888 = vpop.permute.xlu0 %5887
    %5889 = vrot.lane.b32.xlu0 %v4383, 56
    %v5890 = vpop.permute.xlu0 %5889
    %5891 = vrot.lane.b32.xlu0 %v4386, 56
    %v5892 = vpop.permute.xlu0 %5891
    %5893 = vrot.lane.b32.xlu0 %v4388, 56
    %v5894 = vpop.permute.xlu0 %5893
    %5895 = vrot.lane.b32.xlu0 %v4391, 56
    %v5896 = vpop.permute.xlu0 %5895
    %5897 = vrot.lane.b32.xlu0 %v4393, 56
    %v5898 = vpop.permute.xlu0 %5897
    %5899 = vrot.lane.b32.xlu0 %v4396, 56
    %v5900 = vpop.permute.xlu0 %5899
    %5901 = vrot.lane.b32.xlu0 %v4398, 56
    %v5902 = vpop.permute.xlu0 %5901
    %5903 = vrot.lane.b32.xlu0 %v4401, 56
    %v5904 = vpop.permute.xlu0 %5903
    %5905 = vrot.lane.b32.xlu0 %v4403, 56
    %v5906 = vpop.permute.xlu0 %5905
    %5907 = vrot.lane.b32.xlu0 %v4406, 56
    %v5908 = vpop.permute.xlu0 %5907
    %5909 = vrot.lane.b32.xlu0 %v4408, 56
    %v5910 = vpop.permute.xlu0 %5909
    %5911 = vrot.lane.b32.xlu0 %v4411, 56
    %v5912 = vpop.permute.xlu0 %5911
    %5913 = vrot.lane.b32.xlu0 %v4413, 56
    %v5914 = vpop.permute.xlu0 %5913
    %5915 = vrot.lane.b32.xlu0 %v4416, 56
    %v5916 = vpop.permute.xlu0 %5915
    %5917 = vrot.lane.b32.xlu0 %v4418, 56
    %v5918 = vpop.permute.xlu0 %5917
    %5919 = vrot.lane.b32.xlu0 %v4667, 56
    %v5920 = vpop.permute.xlu0 %5919
    %5921 = vrot.lane.b32.xlu0 %v4669, 56
    %v5922 = vpop.permute.xlu0 %5921
    %5923 = vrot.lane.b32.xlu0 %v4693, 56
    %v5924 = vpop.permute.xlu0 %5923
    %5925 = vrot.lane.b32.xlu0 %v4695, 56
    %v5926 = vpop.permute.xlu0 %5925
    %5927 = vrot.lane.b32.xlu0 %v4431, 56
    %v5928 = vpop.permute.xlu0 %5927
    %5929 = vrot.lane.b32.xlu0 %v4433, 56
    %v5930 = vpop.permute.xlu0 %5929
    %5931 = vrot.lane.b32.xlu0 %v4436, 56
    %v5932 = vpop.permute.xlu0 %5931
    %5933 = vrot.lane.b32.xlu0 %v4438, 56
    %v5934 = vpop.permute.xlu0 %5933
    %5935 = vrot.lane.b32.xlu0 %v4441, 56
    %v5936 = vpop.permute.xlu0 %5935
    %5937 = vrot.lane.b32.xlu0 %v4443, 56
    %v5938 = vpop.permute.xlu0 %5937
    %5939 = vrot.lane.b32.xlu0 %v4446, 56
    %v5940 = vpop.permute.xlu0 %5939
    %5941 = vrot.lane.b32.xlu0 %v4448, 56
    %v5942 = vpop.permute.xlu0 %5941
    %5943 = vrot.lane.b32.xlu0 %v4451, 56
    %v5944 = vpop.permute.xlu0 %5943
    %5945 = vrot.lane.b32.xlu0 %v4453, 56
    %v5946 = vpop.permute.xlu0 %5945
    %5947 = vrot.lane.b32.xlu0 %v4456, 56
    %v5948 = vpop.permute.xlu0 %5947
    %5949 = vrot.lane.b32.xlu0 %v4458, 56
    %v5950 = vpop.permute.xlu0 %5949
    %5951 = vrot.lane.b32.xlu0 %v4461, 56
    %v5952 = vpop.permute.xlu0 %5951
    %5953 = vrot.lane.b32.xlu0 %v4463, 56
    %v5954 = vpop.permute.xlu0 %5953
    %5955 = vrot.lane.b32.xlu0 %v4466, 56
    %v5956 = vpop.permute.xlu0 %5955
    %5957 = vrot.lane.b32.xlu0 %v4468, 56
    %v5958 = vpop.permute.xlu0 %5957
    %5959 = vrot.lane.b32.xlu0 %v4471, 56
    %v5960 = vpop.permute.xlu0 %5959
    %5961 = vrot.lane.b32.xlu0 %v4473, 56
    %v5962 = vpop.permute.xlu0 %5961
    %5963 = vrot.lane.b32.xlu0 %v4476, 56
    %v5964 = vpop.permute.xlu0 %5963
    %5965 = vrot.lane.b32.xlu0 %v4478, 56
    %v5966 = vpop.permute.xlu0 %5965
    %5967 = vrot.lane.b32.xlu0 %v4481, 56
    %v5968 = vpop.permute.xlu0 %5967
    %5969 = vrot.lane.b32.xlu0 %v4483, 56
    %v5970 = vpop.permute.xlu0 %5969
    %5971 = vrot.lane.b32.xlu0 %v4486, 56
    %v5972 = vpop.permute.xlu0 %5971
    %5973 = vrot.lane.b32.xlu0 %v4488, 56
    %v5974 = vpop.permute.xlu0 %5973
    %5975 = vrot.lane.b32.xlu0 %v4491, 56
    %v5976 = vpop.permute.xlu0 %5975
    %5977 = vrot.lane.b32.xlu0 %v4493, 56
    %v5978 = vpop.permute.xlu0 %5977
    %5979 = vrot.lane.b32.xlu0 %v4496, 56
    %v5980 = vpop.permute.xlu0 %5979
    %5981 = vrot.lane.b32.xlu0 %v4498, 56
    %v5982 = vpop.permute.xlu0 %5981
    %5983 = vrot.lane.b32.xlu0 %v4672, 56
    %v5984 = vpop.permute.xlu0 %5983
    %5985 = vrot.lane.b32.xlu0 %v4674, 56
    %v5986 = vpop.permute.xlu0 %5985
    %5987 = vrot.lane.b32.xlu0 %v4698, 56
    %v5988 = vpop.permute.xlu0 %5987
    %5989 = vrot.lane.b32.xlu0 %v4700, 56
    %v5990 = vpop.permute.xlu0 %5989
    %6055 = vrot.lane.b32.xlu0 %v4511, 64
    %v6056 = vpop.permute.xlu0 %6055
    %6057 = vrot.lane.b32.xlu0 %v4513, 64
    %v6058 = vpop.permute.xlu0 %6057
    %6059 = vrot.lane.b32.xlu0 %v4516, 64
    %v6060 = vpop.permute.xlu0 %6059
    %6061 = vrot.lane.b32.xlu0 %v4518, 64
    %v6062 = vpop.permute.xlu0 %6061
    %6063 = vrot.lane.b32.xlu0 %v4521, 64
    %v6064 = vpop.permute.xlu0 %6063
    %6065 = vrot.lane.b32.xlu0 %v4523, 64
    %v6066 = vpop.permute.xlu0 %6065
    %6067 = vrot.lane.b32.xlu0 %v4526, 64
    %v6068 = vpop.permute.xlu0 %6067
    %6069 = vrot.lane.b32.xlu0 %v4528, 64
    %v6070 = vpop.permute.xlu0 %6069
    %6071 = vrot.lane.b32.xlu0 %v4531, 64
    %v6072 = vpop.permute.xlu0 %6071
    %6073 = vrot.lane.b32.xlu0 %v4533, 64
    %v6074 = vpop.permute.xlu0 %6073
    %6075 = vrot.lane.b32.xlu0 %v4536, 64
    %v6076 = vpop.permute.xlu0 %6075
    %6077 = vrot.lane.b32.xlu0 %v4538, 64
    %v6078 = vpop.permute.xlu0 %6077
    %6079 = vrot.lane.b32.xlu0 %v4541, 64
    %v6080 = vpop.permute.xlu0 %6079
    %6081 = vrot.lane.b32.xlu0 %v4543, 64
    %v6082 = vpop.permute.xlu0 %6081
    %6083 = vrot.lane.b32.xlu0 %v4546, 64
    %v6084 = vpop.permute.xlu0 %6083
    %6085 = vrot.lane.b32.xlu0 %v4548, 64
    %v6086 = vpop.permute.xlu0 %6085
    %6087 = vrot.lane.b32.xlu0 %v4551, 64
    %v6088 = vpop.permute.xlu0 %6087
    %6089 = vrot.lane.b32.xlu0 %v4553, 64
    %v6090 = vpop.permute.xlu0 %6089
    %6091 = vrot.lane.b32.xlu0 %v4556, 64
    %v6092 = vpop.permute.xlu0 %6091
    %6093 = vrot.lane.b32.xlu0 %v4558, 64
    %v6094 = vpop.permute.xlu0 %6093
    %6095 = vrot.lane.b32.xlu0 %v4561, 64
    %v6096 = vpop.permute.xlu0 %6095
    %6097 = vrot.lane.b32.xlu0 %v4563, 64
    %v6098 = vpop.permute.xlu0 %6097
    %6099 = vrot.lane.b32.xlu0 %v4566, 64
    %v6100 = vpop.permute.xlu0 %6099
    %6101 = vrot.lane.b32.xlu0 %v4568, 64
    %v6102 = vpop.permute.xlu0 %6101
    %6103 = vrot.lane.b32.xlu0 %v4571, 64
    %v6104 = vpop.permute.xlu0 %6103
    %6105 = vrot.lane.b32.xlu0 %v4573, 64
    %v6106 = vpop.permute.xlu0 %6105
    %6107 = vrot.lane.b32.xlu0 %v4576, 64
    %v6108 = vpop.permute.xlu0 %6107
    %6109 = vrot.lane.b32.xlu0 %v4578, 64
    %v6110 = vpop.permute.xlu0 %6109
    %6111 = vrot.lane.b32.xlu0 %v4677, 64
    %v6112 = vpop.permute.xlu0 %6111
    %6113 = vrot.lane.b32.xlu0 %v4679, 64
    %v6114 = vpop.permute.xlu0 %6113
    %6115 = vrot.lane.b32.xlu0 %v4703, 64
    %v6116 = vpop.permute.xlu0 %6115
    %6117 = vrot.lane.b32.xlu0 %v4705, 64
    %v6118 = vpop.permute.xlu0 %6117
    %6119 = vrot.lane.b32.xlu0 %v4591, 64
    %v6120 = vpop.permute.xlu0 %6119
    %6121 = vrot.lane.b32.xlu0 %v4593, 64
    %v6122 = vpop.permute.xlu0 %6121
    %6123 = vrot.lane.b32.xlu0 %v4596, 64
    %v6124 = vpop.permute.xlu0 %6123
    %6125 = vrot.lane.b32.xlu0 %v4598, 64
    %v6126 = vpop.permute.xlu0 %6125
    %6127 = vrot.lane.b32.xlu0 %v4601, 64
    %v6128 = vpop.permute.xlu0 %6127
    %6129 = vrot.lane.b32.xlu0 %v4603, 64
    %v6130 = vpop.permute.xlu0 %6129
    %6131 = vrot.lane.b32.xlu0 %v4606, 64
    %v6132 = vpop.permute.xlu0 %6131
    %6133 = vrot.lane.b32.xlu0 %v4608, 64
    %v6134 = vpop.permute.xlu0 %6133
    %6135 = vrot.lane.b32.xlu0 %v4611, 64
    %v6136 = vpop.permute.xlu0 %6135
    %6137 = vrot.lane.b32.xlu0 %v4613, 64
    %v6138 = vpop.permute.xlu0 %6137
    %6139 = vrot.lane.b32.xlu0 %v4616, 64
    %v6140 = vpop.permute.xlu0 %6139
    %6141 = vrot.lane.b32.xlu0 %v4618, 64
    %v6142 = vpop.permute.xlu0 %6141
    %6143 = vrot.lane.b32.xlu0 %v4621, 64
    %v6144 = vpop.permute.xlu0 %6143
    %6145 = vrot.lane.b32.xlu0 %v4623, 64
    %v6146 = vpop.permute.xlu0 %6145
    %6147 = vrot.lane.b32.xlu0 %v4626, 64
    %v6148 = vpop.permute.xlu0 %6147
    %6149 = vrot.lane.b32.xlu0 %v4628, 64
    %v6150 = vpop.permute.xlu0 %6149
    %6151 = vrot.lane.b32.xlu0 %v4631, 64
    %v6152 = vpop.permute.xlu0 %6151
    %6153 = vrot.lane.b32.xlu0 %v4633, 64
    %v6154 = vpop.permute.xlu0 %6153
    %6155 = vrot.lane.b32.xlu0 %v4636, 64
    %v6156 = vpop.permute.xlu0 %6155
    %6157 = vrot.lane.b32.xlu0 %v4638, 64
    %v6158 = vpop.permute.xlu0 %6157
    %6159 = vrot.lane.b32.xlu0 %v4641, 64
    %v6160 = vpop.permute.xlu0 %6159
    %6161 = vrot.lane.b32.xlu0 %v4643, 64
    %v6162 = vpop.permute.xlu0 %6161
    %6163 = vrot.lane.b32.xlu0 %v4646, 64
    %v6164 = vpop.permute.xlu0 %6163
    %6165 = vrot.lane.b32.xlu0 %v4648, 64
    %v6166 = vpop.permute.xlu0 %6165
    %6167 = vrot.lane.b32.xlu0 %v4651, 64
    %v6168 = vpop.permute.xlu0 %6167
    %6169 = vrot.lane.b32.xlu0 %v4653, 64
    %v6170 = vpop.permute.xlu0 %6169
    %6171 = vrot.lane.b32.xlu0 %v4656, 64
    %v6172 = vpop.permute.xlu0 %6171
    %6173 = vrot.lane.b32.xlu0 %v4658, 64
    %v6174 = vpop.permute.xlu0 %6173
    %6175 = vrot.lane.b32.xlu0 %v4682, 64
    %v6176 = vpop.permute.xlu0 %6175
    %6177 = vrot.lane.b32.xlu0 %v4684, 64
    %v6178 = vpop.permute.xlu0 %6177
    %6179 = vrot.lane.b32.xlu0 %v4708, 64
    %v6180 = vpop.permute.xlu0 %6179
    %6181 = vrot.lane.b32.xlu0 %v4710, 64
    %v6182 = vpop.permute.xlu0 %6181
    %v6247 = vsel %vm2518, %v4135, %v4712
    %v6248 = vsel %vm2518, %v4136, %v4714
    %v6249 = vsel %vm2518, %v4138, %v4716
    %v6250 = vsel %vm2518, %v4139, %v4718
    %v6251 = vsel %vm2518, %v4141, %v4720
    %v6252 = vsel %vm2518, %v4142, %v4722
    %v6253 = vsel %vm2518, %v4144, %v4724
    %v6254 = vsel %vm2518, %v4145, %v4726
    %v6255 = vsel %vm2518, %v4147, %v4728
    %v6256 = vsel %vm2518, %v4148, %v4730
    %v6257 = vsel %vm2518, %v4150, %v4732
    %v6258 = vsel %vm2518, %v4151, %v4734
    %v6259 = vsel %vm2518, %v4153, %v4736
    %v6260 = vsel %vm2518, %v4154, %v4738
    %v6261 = vsel %vm2518, %v4156, %v4740
    %v6262 = vsel %vm2518, %v4157, %v4742
    %v6263 = vsel %vm2518, %v4159, %v4744
    %v6264 = vsel %vm2518, %v4160, %v4746
    %v6265 = vsel %vm2518, %v4162, %v4748
    %v6266 = vsel %vm2518, %v4163, %v4750
    %v6267 = vsel %vm2518, %v4165, %v4752
    %v6268 = vsel %vm2518, %v4166, %v4754
    %v6269 = vsel %vm2518, %v4168, %v4756
    %v6270 = vsel %vm2518, %v4169, %v4758
    %v6271 = vsel %vm2518, %v4171, %v4760
    %v6272 = vsel %vm2518, %v4172, %v4762
    %v6273 = vsel %vm2518, %v4174, %v4764
    %v6274 = vsel %vm2518, %v4175, %v4766
    %v6275 = vsel %vm2518, %v4177, %v4768
    %v6276 = vsel %vm2518, %v4178, %v4770
    %v6277 = vsel %vm2518, %v4180, %v4772
    %v6278 = vsel %vm2518, %v4181, %v4774
    %v6279 = vsel %vm2518, %v4189, %v4776
    %v6280 = vsel %vm2518, %v4190, %v4778
    %v6281 = vsel %vm2518, %v4192, %v4780
    %v6282 = vsel %vm2518, %v4193, %v4782
    %v6283 = vsel %vm2518, %v4195, %v4784
    %v6284 = vsel %vm2518, %v4196, %v4786
    %v6285 = vsel %vm2518, %v4198, %v4788
    %v6286 = vsel %vm2518, %v4199, %v4790
    %v6287 = vsel %vm2518, %v4201, %v4792
    %v6288 = vsel %vm2518, %v4202, %v4794
    %v6289 = vsel %vm2518, %v4204, %v4796
    %v6290 = vsel %vm2518, %v4205, %v4798
    %v6291 = vsel %vm2518, %v4207, %v4800
    %v6292 = vsel %vm2518, %v4208, %v4802
    %v6293 = vsel %vm2518, %v4210, %v4804
    %v6294 = vsel %vm2518, %v4211, %v4806
    %v6295 = vsel %vm2518, %v4213, %v4808
    %v6296 = vsel %vm2518, %v4214, %v4810
    %v6297 = vsel %vm2518, %v4216, %v4812
    %v6298 = vsel %vm2518, %v4217, %v4814
    %v6299 = vsel %vm2518, %v4219, %v4816
    %v6300 = vsel %vm2518, %v4220, %v4818
    %v6301 = vsel %vm2518, %v4222, %v4820
    %v6302 = vsel %vm2518, %v4223, %v4822
    %v6303 = vsel %vm2518, %v4225, %v4824
    %v6304 = vsel %vm2518, %v4226, %v4826
    %v6305 = vsel %vm2518, %v4228, %v4828
    %v6306 = vsel %vm2518, %v4229, %v4830
    %v6307 = vsel %vm2518, %v4231, %v4832
    %v6308 = vsel %vm2518, %v4232, %v4834
    %v6309 = vsel %vm2518, %v4234, %v4836
    %v6310 = vsel %vm2518, %v4235, %v4838
    %v6311 = vsel %vm2648, %v6247, %v4904
    %v6312 = vsel %vm2648, %v6248, %v4906
    %v6313 = vsel %vm2648, %v6249, %v4908
    %v6314 = vsel %vm2648, %v6250, %v4910
    %v6315 = vsel %vm2648, %v6251, %v4912
    %v6316 = vsel %vm2648, %v6252, %v4914
    %v6317 = vsel %vm2648, %v6253, %v4916
    %v6318 = vsel %vm2648, %v6254, %v4918
    %v6319 = vsel %vm2648, %v6255, %v4920
    %v6320 = vsel %vm2648, %v6256, %v4922
    %v6321 = vsel %vm2648, %v6257, %v4924
    %v6322 = vsel %vm2648, %v6258, %v4926
    %v6323 = vsel %vm2648, %v6259, %v4928
    %v6324 = vsel %vm2648, %v6260, %v4930
    %v6325 = vsel %vm2648, %v6261, %v4932
    %v6326 = vsel %vm2648, %v6262, %v4934
    %v6327 = vsel %vm2648, %v6263, %v4936
    %v6328 = vsel %vm2648, %v6264, %v4938
    %v6329 = vsel %vm2648, %v6265, %v4940
    %v6330 = vsel %vm2648, %v6266, %v4942
    %v6331 = vsel %vm2648, %v6267, %v4944
    %v6332 = vsel %vm2648, %v6268, %v4946
    %v6333 = vsel %vm2648, %v6269, %v4948
    %v6334 = vsel %vm2648, %v6270, %v4950
    %v6335 = vsel %vm2648, %v6271, %v4952
    %v6336 = vsel %vm2648, %v6272, %v4954
    %v6337 = vsel %vm2648, %v6273, %v4956
    %v6338 = vsel %vm2648, %v6274, %v4958
    %v6339 = vsel %vm2648, %v6275, %v4960
    %v6340 = vsel %vm2648, %v6276, %v4962
    %v6341 = vsel %vm2648, %v6277, %v4964
    %v6342 = vsel %vm2648, %v6278, %v4966
    %v6343 = vsel %vm2648, %v6279, %v4968
    %v6344 = vsel %vm2648, %v6280, %v4970
    %v6345 = vsel %vm2648, %v6281, %v4972
    %v6346 = vsel %vm2648, %v6282, %v4974
    %v6347 = vsel %vm2648, %v6283, %v4976
    %v6348 = vsel %vm2648, %v6284, %v4978
    %v6349 = vsel %vm2648, %v6285, %v4980
    %v6350 = vsel %vm2648, %v6286, %v4982
    %v6351 = vsel %vm2648, %v6287, %v4984
    %v6352 = vsel %vm2648, %v6288, %v4986
    %v6353 = vsel %vm2648, %v6289, %v4988
    %v6354 = vsel %vm2648, %v6290, %v4990
    %v6355 = vsel %vm2648, %v6291, %v4992
    %v6356 = vsel %vm2648, %v6292, %v4994
    %v6357 = vsel %vm2648, %v6293, %v4996
    %v6358 = vsel %vm2648, %v6294, %v4998
    %v6359 = vsel %vm2648, %v6295, %v5000
    %v6360 = vsel %vm2648, %v6296, %v5002
    %v6361 = vsel %vm2648, %v6297, %v5004
    %v6362 = vsel %vm2648, %v6298, %v5006
    %v6363 = vsel %vm2648, %v6299, %v5008
    %v6364 = vsel %vm2648, %v6300, %v5010
    %v6365 = vsel %vm2648, %v6301, %v5012
    %v6366 = vsel %vm2648, %v6302, %v5014
    %v6367 = vsel %vm2648, %v6303, %v5016
    %v6368 = vsel %vm2648, %v6304, %v5018
    %v6369 = vsel %vm2648, %v6305, %v5020
    %v6370 = vsel %vm2648, %v6306, %v5022
    %v6371 = vsel %vm2648, %v6307, %v5024
    %v6372 = vsel %vm2648, %v6308, %v5026
    %v6373 = vsel %vm2648, %v6309, %v5028
    %v6374 = vsel %vm2648, %v6310, %v5030
    %v6375 = vsel %vm2778, %v6311, %v5096
    %v6376 = vsel %vm2778, %v6312, %v5098
    %v6377 = vsel %vm2778, %v6313, %v5100
    %v6378 = vsel %vm2778, %v6314, %v5102
    %v6379 = vsel %vm2778, %v6315, %v5104
    %v6380 = vsel %vm2778, %v6316, %v5106
    %v6381 = vsel %vm2778, %v6317, %v5108
    %v6382 = vsel %vm2778, %v6318, %v5110
    %v6383 = vsel %vm2778, %v6319, %v5112
    %v6384 = vsel %vm2778, %v6320, %v5114
    %v6385 = vsel %vm2778, %v6321, %v5116
    %v6386 = vsel %vm2778, %v6322, %v5118
    %v6387 = vsel %vm2778, %v6323, %v5120
    %v6388 = vsel %vm2778, %v6324, %v5122
    %v6389 = vsel %vm2778, %v6325, %v5124
    %v6390 = vsel %vm2778, %v6326, %v5126
    %v6391 = vsel %vm2778, %v6327, %v5128
    %v6392 = vsel %vm2778, %v6328, %v5130
    %v6393 = vsel %vm2778, %v6329, %v5132
    %v6394 = vsel %vm2778, %v6330, %v5134
    %v6395 = vsel %vm2778, %v6331, %v5136
    %v6396 = vsel %vm2778, %v6332, %v5138
    %v6397 = vsel %vm2778, %v6333, %v5140
    %v6398 = vsel %vm2778, %v6334, %v5142
    %v6399 = vsel %vm2778, %v6335, %v5144
    %v6400 = vsel %vm2778, %v6336, %v5146
    %v6401 = vsel %vm2778, %v6337, %v5148
    %v6402 = vsel %vm2778, %v6338, %v5150
    %v6403 = vsel %vm2778, %v6339, %v5152
    %v6404 = vsel %vm2778, %v6340, %v5154
    %v6405 = vsel %vm2778, %v6341, %v5156
    %v6406 = vsel %vm2778, %v6342, %v5158
    %v6407 = vsel %vm2778, %v6343, %v5160
    %v6408 = vsel %vm2778, %v6344, %v5162
    %v6409 = vsel %vm2778, %v6345, %v5164
    %v6410 = vsel %vm2778, %v6346, %v5166
    %v6411 = vsel %vm2778, %v6347, %v5168
    %v6412 = vsel %vm2778, %v6348, %v5170
    %v6413 = vsel %vm2778, %v6349, %v5172
    %v6414 = vsel %vm2778, %v6350, %v5174
    %v6415 = vsel %vm2778, %v6351, %v5176
    %v6416 = vsel %vm2778, %v6352, %v5178
    %v6417 = vsel %vm2778, %v6353, %v5180
    %v6418 = vsel %vm2778, %v6354, %v5182
    %v6419 = vsel %vm2778, %v6355, %v5184
    %v6420 = vsel %vm2778, %v6356, %v5186
    %v6421 = vsel %vm2778, %v6357, %v5188
    %v6422 = vsel %vm2778, %v6358, %v5190
    %v6423 = vsel %vm2778, %v6359, %v5192
    %v6424 = vsel %vm2778, %v6360, %v5194
    %v6425 = vsel %vm2778, %v6361, %v5196
    %v6426 = vsel %vm2778, %v6362, %v5198
    %v6427 = vsel %vm2778, %v6363, %v5200
    %v6428 = vsel %vm2778, %v6364, %v5202
    %v6429 = vsel %vm2778, %v6365, %v5204
    %v6430 = vsel %vm2778, %v6366, %v5206
    %v6431 = vsel %vm2778, %v6367, %v5208
    %v6432 = vsel %vm2778, %v6368, %v5210
    %v6433 = vsel %vm2778, %v6369, %v5212
    %v6434 = vsel %vm2778, %v6370, %v5214
    %v6435 = vsel %vm2778, %v6371, %v5216
    %v6436 = vsel %vm2778, %v6372, %v5218
    %v6437 = vsel %vm2778, %v6373, %v5220
    %v6438 = vsel %vm2778, %v6374, %v5222
    %v6439 = vsel %vm2908, %v6375, %v5288
    %v6440 = vsel %vm2908, %v6376, %v5290
    %v6441 = vsel %vm2908, %v6377, %v5292
    %v6442 = vsel %vm2908, %v6378, %v5294
    %v6443 = vsel %vm2908, %v6379, %v5296
    %v6444 = vsel %vm2908, %v6380, %v5298
    %v6445 = vsel %vm2908, %v6381, %v5300
    %v6446 = vsel %vm2908, %v6382, %v5302
    %v6447 = vsel %vm2908, %v6383, %v5304
    %v6448 = vsel %vm2908, %v6384, %v5306
    %v6449 = vsel %vm2908, %v6385, %v5308
    %v6450 = vsel %vm2908, %v6386, %v5310
    %v6451 = vsel %vm2908, %v6387, %v5312
    %v6452 = vsel %vm2908, %v6388, %v5314
    %v6453 = vsel %vm2908, %v6389, %v5316
    %v6454 = vsel %vm2908, %v6390, %v5318
    %v6455 = vsel %vm2908, %v6391, %v5320
    %v6456 = vsel %vm2908, %v6392, %v5322
    %v6457 = vsel %vm2908, %v6393, %v5324
    %v6458 = vsel %vm2908, %v6394, %v5326
    %v6459 = vsel %vm2908, %v6395, %v5328
    %v6460 = vsel %vm2908, %v6396, %v5330
    %v6461 = vsel %vm2908, %v6397, %v5332
    %v6462 = vsel %vm2908, %v6398, %v5334
    %v6463 = vsel %vm2908, %v6399, %v5336
    %v6464 = vsel %vm2908, %v6400, %v5338
    %v6465 = vsel %vm2908, %v6401, %v5340
    %v6466 = vsel %vm2908, %v6402, %v5342
    %v6467 = vsel %vm2908, %v6403, %v5344
    %v6468 = vsel %vm2908, %v6404, %v5346
    %v6469 = vsel %vm2908, %v6405, %v5348
    %v6470 = vsel %vm2908, %v6406, %v5350
    %v6471 = vsel %vm2908, %v6407, %v5352
    %v6472 = vsel %vm2908, %v6408, %v5354
    %v6473 = vsel %vm2908, %v6409, %v5356
    %v6474 = vsel %vm2908, %v6410, %v5358
    %v6475 = vsel %vm2908, %v6411, %v5360
    %v6476 = vsel %vm2908, %v6412, %v5362
    %v6477 = vsel %vm2908, %v6413, %v5364
    %v6478 = vsel %vm2908, %v6414, %v5366
    %v6479 = vsel %vm2908, %v6415, %v5368
    %v6480 = vsel %vm2908, %v6416, %v5370
    %v6481 = vsel %vm2908, %v6417, %v5372
    %v6482 = vsel %vm2908, %v6418, %v5374
    %v6483 = vsel %vm2908, %v6419, %v5376
    %v6484 = vsel %vm2908, %v6420, %v5378
    %v6485 = vsel %vm2908, %v6421, %v5380
    %v6486 = vsel %vm2908, %v6422, %v5382
    %v6487 = vsel %vm2908, %v6423, %v5384
    %v6488 = vsel %vm2908, %v6424, %v5386
    %v6489 = vsel %vm2908, %v6425, %v5388
    %v6490 = vsel %vm2908, %v6426, %v5390
    %v6491 = vsel %vm2908, %v6427, %v5392
    %v6492 = vsel %vm2908, %v6428, %v5394
    %v6493 = vsel %vm2908, %v6429, %v5396
    %v6494 = vsel %vm2908, %v6430, %v5398
    %v6495 = vsel %vm2908, %v6431, %v5400
    %v6496 = vsel %vm2908, %v6432, %v5402
    %v6497 = vsel %vm2908, %v6433, %v5404
    %v6498 = vsel %vm2908, %v6434, %v5406
    %v6499 = vsel %vm2908, %v6435, %v5408
    %v6500 = vsel %vm2908, %v6436, %v5410
    %v6501 = vsel %vm2908, %v6437, %v5412
    %v6502 = vsel %vm2908, %v6438, %v5414
    %vm6503 = vcmask 326656
    %v6504 = vsel %vm6503, %v6439, %v5480
    %v6505 = vsel %vm6503, %v6440, %v5482
    %v6506 = vsel %vm6503, %v6441, %v5484
    %v6507 = vsel %vm6503, %v6442, %v5486
    %v6508 = vsel %vm6503, %v6443, %v5488
    %v6509 = vsel %vm6503, %v6444, %v5490
    %v6510 = vsel %vm6503, %v6445, %v5492
    %v6511 = vsel %vm6503, %v6446, %v5494
    %v6512 = vsel %vm6503, %v6447, %v5496
    %v6513 = vsel %vm6503, %v6448, %v5498
    %v6514 = vsel %vm6503, %v6449, %v5500
    %v6515 = vsel %vm6503, %v6450, %v5502
    %v6516 = vsel %vm6503, %v6451, %v5504
    %v6517 = vsel %vm6503, %v6452, %v5506
    %v6518 = vsel %vm6503, %v6453, %v5508
    %v6519 = vsel %vm6503, %v6454, %v5510
    %v6520 = vsel %vm6503, %v6455, %v5512
    %v6521 = vsel %vm6503, %v6456, %v5514
    %v6522 = vsel %vm6503, %v6457, %v5516
    %v6523 = vsel %vm6503, %v6458, %v5518
    %v6524 = vsel %vm6503, %v6459, %v5520
    %v6525 = vsel %vm6503, %v6460, %v5522
    %v6526 = vsel %vm6503, %v6461, %v5524
    %v6527 = vsel %vm6503, %v6462, %v5526
    %v6528 = vsel %vm6503, %v6463, %v5528
    %v6529 = vsel %vm6503, %v6464, %v5530
    %v6530 = vsel %vm6503, %v6465, %v5532
    %v6531 = vsel %vm6503, %v6466, %v5534
    %v6532 = vsel %vm6503, %v6467, %v5536
    %v6533 = vsel %vm6503, %v6468, %v5538
    %v6534 = vsel %vm6503, %v6469, %v5540
    %v6535 = vsel %vm6503, %v6470, %v5542
    %v6536 = vsel %vm6503, %v6471, %v5544
    %v6537 = vsel %vm6503, %v6472, %v5546
    %v6538 = vsel %vm6503, %v6473, %v5548
    %v6539 = vsel %vm6503, %v6474, %v5550
    %v6540 = vsel %vm6503, %v6475, %v5552
    %v6541 = vsel %vm6503, %v6476, %v5554
    %v6542 = vsel %vm6503, %v6477, %v5556
    %v6543 = vsel %vm6503, %v6478, %v5558
    %v6544 = vsel %vm6503, %v6479, %v5560
    %v6545 = vsel %vm6503, %v6480, %v5562
    %v6546 = vsel %vm6503, %v6481, %v5564
    %v6547 = vsel %vm6503, %v6482, %v5566
    %v6548 = vsel %vm6503, %v6483, %v5568
    %v6549 = vsel %vm6503, %v6484, %v5570
    %v6550 = vsel %vm6503, %v6485, %v5572
    %v6551 = vsel %vm6503, %v6486, %v5574
    %v6552 = vsel %vm6503, %v6487, %v5576
    %v6553 = vsel %vm6503, %v6488, %v5578
    %v6554 = vsel %vm6503, %v6489, %v5580
    %v6555 = vsel %vm6503, %v6490, %v5582
    %v6556 = vsel %vm6503, %v6491, %v5584
    %v6557 = vsel %vm6503, %v6492, %v5586
    %v6558 = vsel %vm6503, %v6493, %v5588
    %v6559 = vsel %vm6503, %v6494, %v5590
    %v6560 = vsel %vm6503, %v6495, %v5592
    %v6561 = vsel %vm6503, %v6496, %v5594
    %v6562 = vsel %vm6503, %v6497, %v5596
    %v6563 = vsel %vm6503, %v6498, %v5598
    %v6564 = vsel %vm6503, %v6499, %v5600
    %v6565 = vsel %vm6503, %v6500, %v5602
    %v6566 = vsel %vm6503, %v6501, %v5604
    %v6567 = vsel %vm6503, %v6502, %v5606
    %vm6568 = vcmask 392192
    %v6569 = vsel %vm6568, %v6504, %v5672
    %v6570 = vsel %vm6568, %v6505, %v5674
    %v6571 = vsel %vm6568, %v6506, %v5676
    %v6572 = vsel %vm6568, %v6507, %v5678
    %v6573 = vsel %vm6568, %v6508, %v5680
    %v6574 = vsel %vm6568, %v6509, %v5682
    %v6575 = vsel %vm6568, %v6510, %v5684
    %v6576 = vsel %vm6568, %v6511, %v5686
    %v6577 = vsel %vm6568, %v6512, %v5688
    %v6578 = vsel %vm6568, %v6513, %v5690
    %v6579 = vsel %vm6568, %v6514, %v5692
    %v6580 = vsel %vm6568, %v6515, %v5694
    %v6581 = vsel %vm6568, %v6516, %v5696
    %v6582 = vsel %vm6568, %v6517, %v5698
    %v6583 = vsel %vm6568, %v6518, %v5700
    %v6584 = vsel %vm6568, %v6519, %v5702
    %v6585 = vsel %vm6568, %v6520, %v5704
    %v6586 = vsel %vm6568, %v6521, %v5706
    %v6587 = vsel %vm6568, %v6522, %v5708
    %v6588 = vsel %vm6568, %v6523, %v5710
    %v6589 = vsel %vm6568, %v6524, %v5712
    %v6590 = vsel %vm6568, %v6525, %v5714
    %v6591 = vsel %vm6568, %v6526, %v5716
    %v6592 = vsel %vm6568, %v6527, %v5718
    %v6593 = vsel %vm6568, %v6528, %v5720
    %v6594 = vsel %vm6568, %v6529, %v5722
    %v6595 = vsel %vm6568, %v6530, %v5724
    %v6596 = vsel %vm6568, %v6531, %v5726
    %v6597 = vsel %vm6568, %v6532, %v5728
    %v6598 = vsel %vm6568, %v6533, %v5730
    %v6599 = vsel %vm6568, %v6534, %v5732
    %v6600 = vsel %vm6568, %v6535, %v5734
    %v6601 = vsel %vm6568, %v6536, %v5736
    %v6602 = vsel %vm6568, %v6537, %v5738
    %v6603 = vsel %vm6568, %v6538, %v5740
    %v6604 = vsel %vm6568, %v6539, %v5742
    %v6605 = vsel %vm6568, %v6540, %v5744
    %v6606 = vsel %vm6568, %v6541, %v5746
    %v6607 = vsel %vm6568, %v6542, %v5748
    %v6608 = vsel %vm6568, %v6543, %v5750
    %v6609 = vsel %vm6568, %v6544, %v5752
    %v6610 = vsel %vm6568, %v6545, %v5754
    %v6611 = vsel %vm6568, %v6546, %v5756
    %v6612 = vsel %vm6568, %v6547, %v5758
    %v6613 = vsel %vm6568, %v6548, %v5760
    %v6614 = vsel %vm6568, %v6549, %v5762
    %v6615 = vsel %vm6568, %v6550, %v5764
    %v6616 = vsel %vm6568, %v6551, %v5766
    %v6617 = vsel %vm6568, %v6552, %v5768
    %v6618 = vsel %vm6568, %v6553, %v5770
    %v6619 = vsel %vm6568, %v6554, %v5772
    %v6620 = vsel %vm6568, %v6555, %v5774
    %v6621 = vsel %vm6568, %v6556, %v5776
    %v6622 = vsel %vm6568, %v6557, %v5778
    %v6623 = vsel %vm6568, %v6558, %v5780
    %v6624 = vsel %vm6568, %v6559, %v5782
    %v6625 = vsel %vm6568, %v6560, %v5784
    %v6626 = vsel %vm6568, %v6561, %v5786
    %v6627 = vsel %vm6568, %v6562, %v5788
    %v6628 = vsel %vm6568, %v6563, %v5790
    %v6629 = vsel %vm6568, %v6564, %v5792
    %v6630 = vsel %vm6568, %v6565, %v5794
    %v6631 = vsel %vm6568, %v6566, %v5796
    %v6632 = vsel %vm6568, %v6567, %v5798
    %vm6633 = vcmask 457728
    %v6634 = vsel %vm6633, %v6569, %v5864
    %v6635 = vsel %vm6633, %v6570, %v5866
    %v6636 = vsel %vm6633, %v6571, %v5868
    %v6637 = vsel %vm6633, %v6572, %v5870
    %v6638 = vsel %vm6633, %v6573, %v5872
    %v6639 = vsel %vm6633, %v6574, %v5874
    %v6640 = vsel %vm6633, %v6575, %v5876
    %v6641 = vsel %vm6633, %v6576, %v5878
    %v6642 = vsel %vm6633, %v6577, %v5880
    %v6643 = vsel %vm6633, %v6578, %v5882
    %v6644 = vsel %vm6633, %v6579, %v5884
    %v6645 = vsel %vm6633, %v6580, %v5886
    %v6646 = vsel %vm6633, %v6581, %v5888
    %v6647 = vsel %vm6633, %v6582, %v5890
    %v6648 = vsel %vm6633, %v6583, %v5892
    %v6649 = vsel %vm6633, %v6584, %v5894
    %v6650 = vsel %vm6633, %v6585, %v5896
    %v6651 = vsel %vm6633, %v6586, %v5898
    %v6652 = vsel %vm6633, %v6587, %v5900
    %v6653 = vsel %vm6633, %v6588, %v5902
    %v6654 = vsel %vm6633, %v6589, %v5904
    %v6655 = vsel %vm6633, %v6590, %v5906
    %v6656 = vsel %vm6633, %v6591, %v5908
    %v6657 = vsel %vm6633, %v6592, %v5910
    %v6658 = vsel %vm6633, %v6593, %v5912
    %v6659 = vsel %vm6633, %v6594, %v5914
    %v6660 = vsel %vm6633, %v6595, %v5916
    %v6661 = vsel %vm6633, %v6596, %v5918
    %v6662 = vsel %vm6633, %v6597, %v5920
    %v6663 = vsel %vm6633, %v6598, %v5922
    %v6664 = vsel %vm6633, %v6599, %v5924
    %v6665 = vsel %vm6633, %v6600, %v5926
    %v6666 = vsel %vm6633, %v6601, %v5928
    %v6667 = vsel %vm6633, %v6602, %v5930
    %v6668 = vsel %vm6633, %v6603, %v5932
    %v6669 = vsel %vm6633, %v6604, %v5934
    %v6670 = vsel %vm6633, %v6605, %v5936
    %v6671 = vsel %vm6633, %v6606, %v5938
    %v6672 = vsel %vm6633, %v6607, %v5940
    %v6673 = vsel %vm6633, %v6608, %v5942
    %v6674 = vsel %vm6633, %v6609, %v5944
    %v6675 = vsel %vm6633, %v6610, %v5946
    %v6676 = vsel %vm6633, %v6611, %v5948
    %v6677 = vsel %vm6633, %v6612, %v5950
    %v6678 = vsel %vm6633, %v6613, %v5952
    %v6679 = vsel %vm6633, %v6614, %v5954
    %v6680 = vsel %vm6633, %v6615, %v5956
    %v6681 = vsel %vm6633, %v6616, %v5958
    %v6682 = vsel %vm6633, %v6617, %v5960
    %v6683 = vsel %vm6633, %v6618, %v5962
    %v6684 = vsel %vm6633, %v6619, %v5964
    %v6685 = vsel %vm6633, %v6620, %v5966
    %v6686 = vsel %vm6633, %v6621, %v5968
    %v6687 = vsel %vm6633, %v6622, %v5970
    %v6688 = vsel %vm6633, %v6623, %v5972
    %v6689 = vsel %vm6633, %v6624, %v5974
    %v6690 = vsel %vm6633, %v6625, %v5976
    %v6691 = vsel %vm6633, %v6626, %v5978
    %v6692 = vsel %vm6633, %v6627, %v5980
    %v6693 = vsel %vm6633, %v6628, %v5982
    %v6694 = vsel %vm6633, %v6629, %v5984
    %v6695 = vsel %vm6633, %v6630, %v5986
    %v6696 = vsel %vm6633, %v6631, %v5988
    %v6697 = vsel %vm6633, %v6632, %v5990
    %vm6698 = vcmask 523264
    %v6699 = vsel %vm6698, %v6634, %v6056
    %v6700 = vsel %vm6698, %v6635, %v6058
    %v6701 = vsel %vm6698, %v6636, %v6060
    %v6702 = vsel %vm6698, %v6637, %v6062
    %v6703 = vsel %vm6698, %v6638, %v6064
    %v6704 = vsel %vm6698, %v6639, %v6066
    %v6705 = vsel %vm6698, %v6640, %v6068
    %v6706 = vsel %vm6698, %v6641, %v6070
    %v6707 = vsel %vm6698, %v6642, %v6072
    %v6708 = vsel %vm6698, %v6643, %v6074
    %v6709 = vsel %vm6698, %v6644, %v6076
    %v6710 = vsel %vm6698, %v6645, %v6078
    %v6711 = vsel %vm6698, %v6646, %v6080
    %v6712 = vsel %vm6698, %v6647, %v6082
    %v6713 = vsel %vm6698, %v6648, %v6084
    %v6714 = vsel %vm6698, %v6649, %v6086
    %v6715 = vsel %vm6698, %v6650, %v6088
    %v6716 = vsel %vm6698, %v6651, %v6090
    %v6717 = vsel %vm6698, %v6652, %v6092
    %v6718 = vsel %vm6698, %v6653, %v6094
    %v6719 = vsel %vm6698, %v6654, %v6096
    %v6720 = vsel %vm6698, %v6655, %v6098
    %v6721 = vsel %vm6698, %v6656, %v6100
    %v6722 = vsel %vm6698, %v6657, %v6102
    %v6723 = vsel %vm6698, %v6658, %v6104
    %v6724 = vsel %vm6698, %v6659, %v6106
    %v6725 = vsel %vm6698, %v6660, %v6108
    %v6726 = vsel %vm6698, %v6661, %v6110
    %v6727 = vsel %vm6698, %v6662, %v6112
    %v6728 = vsel %vm6698, %v6663, %v6114
    %v6729 = vsel %vm6698, %v6664, %v6116
    %v6730 = vsel %vm6698, %v6665, %v6118
    %v6731 = vsel %vm6698, %v6666, %v6120
    %v6732 = vsel %vm6698, %v6667, %v6122
    %v6733 = vsel %vm6698, %v6668, %v6124
    %v6734 = vsel %vm6698, %v6669, %v6126
    %v6735 = vsel %vm6698, %v6670, %v6128
    %v6736 = vsel %vm6698, %v6671, %v6130
    %v6737 = vsel %vm6698, %v6672, %v6132
    %v6738 = vsel %vm6698, %v6673, %v6134
    %v6739 = vsel %vm6698, %v6674, %v6136
    %v6740 = vsel %vm6698, %v6675, %v6138
    %v6741 = vsel %vm6698, %v6676, %v6140
    %v6742 = vsel %vm6698, %v6677, %v6142
    %v6743 = vsel %vm6698, %v6678, %v6144
    %v6744 = vsel %vm6698, %v6679, %v6146
    %v6745 = vsel %vm6698, %v6680, %v6148
    %v6746 = vsel %vm6698, %v6681, %v6150
    %v6747 = vsel %vm6698, %v6682, %v6152
    %v6748 = vsel %vm6698, %v6683, %v6154
    %v6749 = vsel %vm6698, %v6684, %v6156
    %v6750 = vsel %vm6698, %v6685, %v6158
    %v6751 = vsel %vm6698, %v6686, %v6160
    %v6752 = vsel %vm6698, %v6687, %v6162
    %v6753 = vsel %vm6698, %v6688, %v6164
    %v6754 = vsel %vm6698, %v6689, %v6166
    %v6755 = vsel %vm6698, %v6690, %v6168
    %v6756 = vsel %vm6698, %v6691, %v6170
    %v6757 = vsel %vm6698, %v6692, %v6172
    %v6758 = vsel %vm6698, %v6693, %v6174
    %v6759 = vsel %vm6698, %v6694, %v6176
    %v6760 = vsel %vm6698, %v6695, %v6178
    %v6761 = vsel %vm6698, %v6696, %v6180
    %v6762 = vsel %vm6698, %v6697, %v6182
    %v6763 = vpack.c.bf16 %v6700, %v6699
    %v6764 = vpack.c.bf16 %v6702, %v6701
    %v6765 = vpack.c.bf16 %v6704, %v6703
    %v6766 = vpack.c.bf16 %v6706, %v6705
    %v6767 = vpack.c.bf16 %v6708, %v6707
    %v6768 = vpack.c.bf16 %v6710, %v6709
    %v6769 = vpack.c.bf16 %v6712, %v6711
    %v6770 = vpack.c.bf16 %v6714, %v6713
    %v6771 = vpack.c.bf16 %v6716, %v6715
    %v6772 = vpack.c.bf16 %v6718, %v6717
    %v6773 = vpack.c.bf16 %v6720, %v6719
    %v6774 = vpack.c.bf16 %v6722, %v6721
    %v6775 = vpack.c.bf16 %v6724, %v6723
    %v6776 = vpack.c.bf16 %v6726, %v6725
    %v6777 = vpack.c.bf16 %v6728, %v6727
    %v6778 = vpack.c.bf16 %v6730, %v6729
    %v6779 = vpack.c.bf16 %v6732, %v6731
    %v6780 = vpack.c.bf16 %v6734, %v6733
    %v6781 = vpack.c.bf16 %v6736, %v6735
    %v6782 = vpack.c.bf16 %v6738, %v6737
    %v6783 = vpack.c.bf16 %v6740, %v6739
    %v6784 = vpack.c.bf16 %v6742, %v6741
    %v6785 = vpack.c.bf16 %v6744, %v6743
    %v6786 = vpack.c.bf16 %v6746, %v6745
    %v6787 = vpack.c.bf16 %v6748, %v6747
    %v6788 = vpack.c.bf16 %v6750, %v6749
    %v6789 = vpack.c.bf16 %v6752, %v6751
    %v6790 = vpack.c.bf16 %v6754, %v6753
    %v6791 = vpack.c.bf16 %v6756, %v6755
    %v6792 = vpack.c.bf16 %v6758, %v6757
    %v6793 = vpack.c.bf16 %v6760, %v6759
    %v6794 = vpack.c.bf16 %v6762, %v6761
    %v6795 = vld [vmem:[%s4] sm:$0xf]
    %v6796 = vld [vmem:[%s4 + $0x4] sm:$0xf]
    %v6797 = vld [vmem:[%s4 + $0x8] sm:$0xf]
    %v6798 = vld [vmem:[%s4 + $0xc] sm:$0xf]
    %v6799 = vld [vmem:[%s4 + $0x10] sm:$0xf]
    %v6800 = vld [vmem:[%s4 + $0x14] sm:$0xf]
    %v6801 = vld [vmem:[%s4 + $0x18] sm:$0xf]
    %v6802 = vld [vmem:[%s4 + $0x1c] sm:$0xf]
    %v6803 = vld [vmem:[%s4 + $0x20] sm:$0xf]
    %v6813 = vunpack.c.l.b16 %v6795
    %v6814 = vunpack.c.l.b16 %v6796
    %v6815 = vunpack.c.l.b16 %v6797
    %v6816 = vunpack.c.l.b16 %v6798
    %v6817 = vunpack.c.l.b16 %v6799
    %v6818 = vunpack.c.l.b16 %v6800
    %v6819 = vunpack.c.l.b16 %v6801
    %v6820 = vunpack.c.l.b16 %v6802
    %v6821 = vunpack.c.l.b16 %v6803
    %v6822 = vpack.c.b16 %v6814, %v6813
    %v6823 = vpack.c.b16 %v6816, %v6815
    %v6824 = vpack.c.b16 %v6818, %v6817
    %v6825 = vpack.c.b16 %v6820, %v6819
    %v6826 = vpack.c.b16 %v6821, %v6821
    %vm6831 = vcmask 588800
    %v6833 = vsel %vm6831, %v6763, 0
    %v6836 = vsel %vm6831, %v6764, 0
    %v6839 = vsel %vm6831, %v6765, 0
    %v6842 = vsel %vm6831, %v6766, 0
    %v6845 = vsel %vm6831, %v6767, 0
    %v6848 = vsel %vm6831, %v6768, 0
    %v6851 = vsel %vm6831, %v6769, 0
    %v6854 = vsel %vm6831, %v6770, 0
    %v6857 = vsel %vm6831, %v6771, 0
    %v6860 = vsel %vm6831, %v6772, 0
    %v6863 = vsel %vm6831, %v6773, 0
    %v6866 = vsel %vm6831, %v6774, 0
    %v6869 = vsel %vm6831, %v6775, 0
    %v6872 = vsel %vm6831, %v6776, 0
    %v6875 = vsel %vm6831, %v6777, 0
    %v6878 = vsel %vm6831, %v6778, 0
    %v6881 = vsel %vm6831, %v6779, 0
    %v6884 = vsel %vm6831, %v6780, 0
    %v6887 = vsel %vm6831, %v6781, 0
    %v6890 = vsel %vm6831, %v6782, 0
    %v6893 = vsel %vm6831, %v6783, 0
    %v6896 = vsel %vm6831, %v6784, 0
    %v6899 = vsel %vm6831, %v6785, 0
    %v6902 = vsel %vm6831, %v6786, 0
    %v6905 = vsel %vm6831, %v6787, 0
    %v6908 = vsel %vm6831, %v6788, 0
    %v6911 = vsel %vm6831, %v6789, 0
    %v6914 = vsel %vm6831, %v6790, 0
    %v6917 = vsel %vm6831, %v6791, 0
    %v6920 = vsel %vm6831, %v6792, 0
    %v6923 = vsel %vm6831, %v6793, 0
    %v6926 = vsel %vm6831, %v6794, 0
    %vm6928 = vcmask 1043456
    %v6930 = vsel %vm6928, %v6826, 0
    %6932 = vmatprep.subr.bf16.mxu0 0
    %6933 = vmatpush1.bf16.msra.mxu0 %v6822
    %6934 = vmatprep.subr.bf16.mxu0 0
    %6935 = vmatpush1.bf16.msra.mxu0 %v6823
    %6936 = vmatprep.subr.bf16.mxu0 0
    %6937 = vmatpush1.bf16.msra.mxu0 %v6824
    %6938 = vmatprep.subr.bf16.mxu0 0
    %6939 = vmatpush1.bf16.msra.mxu0 %v6825
    %6940 = vmatprep.subr.bf16.mxu0 0
    %6941 = vmatpush1.bf16.msra.mxu0 %v6930
    %6942 = vmatprep.subr.bf16.mxu0 0
    %6943 = vmatpush1.bf16.msra.mxu0 0
    %6944 = vmatprep.subr.bf16.mxu0 0
    %6945 = vmatpush1.bf16.msra.mxu0 0
    %6946 = vmatprep.subr.bf16.mxu0 0
    %6947 = vmatpush1.bf16.msra.mxu0 0
    %6948 = vmatprep.subr.bf16.mxu0 0
    %6949 = vmatpush1.bf16.msra.mxu0 0
    %6950 = vmatprep.subr.bf16.mxu0 0
    %6951 = vmatpush1.bf16.msra.mxu0 0
    %6952 = vmatprep.subr.bf16.mxu0 0
    %6953 = vmatpush1.bf16.msra.mxu0 0
    %6954 = vmatprep.subr.bf16.mxu0 0
    %6955 = vmatpush1.bf16.msra.mxu0 0
    %6956 = vmatprep.subr.bf16.mxu0 0
    %6957 = vmatpush1.bf16.msra.mxu0 0
    %6958 = vmatprep.subr.bf16.mxu0 0
    %6959 = vmatpush1.bf16.msra.mxu0 0
    %6960 = vmatprep.subr.bf16.mxu0 0
    %6961 = vmatpush1.bf16.msra.mxu0 0
    %6962 = vmatprep.subr.bf16.mxu0 0
    %6963 = vmatpush1.bf16.msra.mxu0 0
    %6964 = vmatprep.mubr.bf16.mxu0 0
    %6965 = vmatmul.mubr.bf16.gmra.mrb[0].mxu0 %v6833
    %v6966 = vpop.f32.mrb[0].mxu0
    %v6967 = vadd.f32 0.0, %v6966
    %v6968 = vpop.f32.mrb[0].mxu0
    %v6969 = vpop.f32.mrb[0].mxu0
    %v6970 = vadd.f32 0.0, %v6969
    %v6971 = vpop.f32.mrb[0].mxu0
    %6972 = vmatprep.mubr.bf16.mxu0 0
    %6973 = vmatmul.mubr.bf16.gmra.mrb[0].mxu0 %v6836
    %v6974 = vpop.f32.mrb[0].mxu0
    %v6975 = vadd.f32 0.0, %v6974
    %v6976 = vpop.f32.mrb[0].mxu0
    %v6977 = vpop.f32.mrb[0].mxu0
    %v6978 = vadd.f32 0.0, %v6977
    %v6979 = vpop.f32.mrb[0].mxu0
    %6980 = vmatprep.mubr.bf16.mxu0 0
    %6981 = vmatmul.mubr.bf16.gmra.mrb[0].mxu0 %v6839
    %v6982 = vpop.f32.mrb[0].mxu0
    %v6983 = vadd.f32 0.0, %v6982
    %v6984 = vpop.f32.mrb[0].mxu0
    %v6985 = vpop.f32.mrb[0].mxu0
    %v6986 = vadd.f32 0.0, %v6985
    %v6987 = vpop.f32.mrb[0].mxu0
    %6988 = vmatprep.mubr.bf16.mxu0 0
    %6989 = vmatmul.mubr.bf16.gmra.mrb[0].mxu0 %v6842
    %v6990 = vpop.f32.mrb[0].mxu0
    %v6991 = vadd.f32 0.0, %v6990
    %v6992 = vpop.f32.mrb[0].mxu0
    %v6993 = vpop.f32.mrb[0].mxu0
    %v6994 = vadd.f32 0.0, %v6993
    %v6995 = vpop.f32.mrb[0].mxu0
    %6996 = vmatprep.mubr.bf16.mxu0 0
    %6997 = vmatmul.mubr.bf16.gmra.mrb[0].mxu0 %v6845
    %v6998 = vpop.f32.mrb[0].mxu0
    %v6999 = vadd.f32 0.0, %v6998
    %v7000 = vpop.f32.mrb[0].mxu0
    %v7001 = vpop.f32.mrb[0].mxu0
    %v7002 = vadd.f32 0.0, %v7001
    %v7003 = vpop.f32.mrb[0].mxu0
    %7004 = vmatprep.mubr.bf16.mxu0 0
    %7005 = vmatmul.mubr.bf16.gmra.mrb[0].mxu0 %v6848
    %v7006 = vpop.f32.mrb[0].mxu0
    %v7007 = vadd.f32 0.0, %v7006
    %v7008 = vpop.f32.mrb[0].mxu0
    %v7009 = vpop.f32.mrb[0].mxu0
    %v7010 = vadd.f32 0.0, %v7009
    %v7011 = vpop.f32.mrb[0].mxu0
    %7012 = vmatprep.mubr.bf16.mxu0 0
    %7013 = vmatmul.mubr.bf16.gmra.mrb[0].mxu0 %v6851
    %v7014 = vpop.f32.mrb[0].mxu0
    %v7015 = vadd.f32 0.0, %v7014
    %v7016 = vpop.f32.mrb[0].mxu0
    %v7017 = vpop.f32.mrb[0].mxu0
    %v7018 = vadd.f32 0.0, %v7017
    %v7019 = vpop.f32.mrb[0].mxu0
    %7020 = vmatprep.mubr.bf16.mxu0 0
    %7021 = vmatmul.mubr.bf16.gmra.mrb[0].mxu0 %v6854
    %v7022 = vpop.f32.mrb[0].mxu0
    %v7023 = vadd.f32 0.0, %v7022
    %v7024 = vpop.f32.mrb[0].mxu0
    %v7025 = vpop.f32.mrb[0].mxu0
    %v7026 = vadd.f32 0.0, %v7025
    %v7027 = vpop.f32.mrb[0].mxu0
    %7028 = vmatprep.mubr.bf16.mxu0 0
    %7029 = vmatmul.mubr.bf16.gmra.mrb[0].mxu0 %v6857
    %v7030 = vpop.f32.mrb[0].mxu0
    %v7031 = vadd.f32 0.0, %v7030
    %v7032 = vpop.f32.mrb[0].mxu0
    %v7033 = vpop.f32.mrb[0].mxu0
    %v7034 = vadd.f32 0.0, %v7033
    %v7035 = vpop.f32.mrb[0].mxu0
    %7036 = vmatprep.mubr.bf16.mxu0 0
    %7037 = vmatmul.mubr.bf16.gmra.mrb[0].mxu0 %v6860
    %v7038 = vpop.f32.mrb[0].mxu0
    %v7039 = vadd.f32 0.0, %v7038
    %v7040 = vpop.f32.mrb[0].mxu0
    %v7041 = vpop.f32.mrb[0].mxu0
    %v7042 = vadd.f32 0.0, %v7041
    %v7043 = vpop.f32.mrb[0].mxu0
    %7044 = vmatprep.mubr.bf16.mxu0 0
    %7045 = vmatmul.mubr.bf16.gmra.mrb[0].mxu0 %v6863
    %v7046 = vpop.f32.mrb[0].mxu0
    %v7047 = vadd.f32 0.0, %v7046
    %v7048 = vpop.f32.mrb[0].mxu0
    %v7049 = vpop.f32.mrb[0].mxu0
    %v7050 = vadd.f32 0.0, %v7049
    %v7051 = vpop.f32.mrb[0].mxu0
    %7052 = vmatprep.mubr.bf16.mxu0 0
    %7053 = vmatmul.mubr.bf16.gmra.mrb[0].mxu0 %v6866
    %v7054 = vpop.f32.mrb[0].mxu0
    %v7055 = vadd.f32 0.0, %v7054
    %v7056 = vpop.f32.mrb[0].mxu0
    %v7057 = vpop.f32.mrb[0].mxu0
    %v7058 = vadd.f32 0.0, %v7057
    %v7059 = vpop.f32.mrb[0].mxu0
    %7060 = vmatprep.mubr.bf16.mxu0 0
    %7061 = vmatmul.mubr.bf16.gmra.mrb[0].mxu0 %v6869
    %v7062 = vpop.f32.mrb[0].mxu0
    %v7063 = vadd.f32 0.0, %v7062
    %v7064 = vpop.f32.mrb[0].mxu0
    %v7065 = vpop.f32.mrb[0].mxu0
    %v7066 = vadd.f32 0.0, %v7065
    %v7067 = vpop.f32.mrb[0].mxu0
    %7068 = vmatprep.mubr.bf16.mxu0 0
    %7069 = vmatmul.mubr.bf16.gmra.mrb[0].mxu0 %v6872
    %v7070 = vpop.f32.mrb[0].mxu0
    %v7071 = vadd.f32 0.0, %v7070
    %v7072 = vpop.f32.mrb[0].mxu0
    %v7073 = vpop.f32.mrb[0].mxu0
    %v7074 = vadd.f32 0.0, %v7073
    %v7075 = vpop.f32.mrb[0].mxu0
    %7076 = vmatprep.mubr.bf16.mxu0 0
    %7077 = vmatmul.mubr.bf16.gmra.mrb[0].mxu0 %v6875
    %v7078 = vpop.f32.mrb[0].mxu0
    %v7079 = vadd.f32 0.0, %v7078
    %v7080 = vpop.f32.mrb[0].mxu0
    %v7081 = vpop.f32.mrb[0].mxu0
    %v7082 = vadd.f32 0.0, %v7081
    %v7083 = vpop.f32.mrb[0].mxu0
    %7084 = vmatprep.mubr.bf16.mxu0 0
    %7085 = vmatmul.mubr.bf16.gmra.mrb[0].mxu0 %v6878
    %v7086 = vpop.f32.mrb[0].mxu0
    %v7087 = vadd.f32 0.0, %v7086
    %v7088 = vpop.f32.mrb[0].mxu0
    %v7089 = vpop.f32.mrb[0].mxu0
    %v7090 = vadd.f32 0.0, %v7089
    %v7091 = vpop.f32.mrb[0].mxu0
    %7092 = vmatprep.mubr.bf16.mxu0 0
    %7093 = vmatmul.mubr.bf16.gmra.mrb[0].mxu0 %v6881
    %v7094 = vpop.f32.mrb[0].mxu0
    %v7095 = vadd.f32 0.0, %v7094
    %v7096 = vpop.f32.mrb[0].mxu0
    %v7097 = vpop.f32.mrb[0].mxu0
    %v7098 = vadd.f32 0.0, %v7097
    %v7099 = vpop.f32.mrb[0].mxu0
    %7100 = vmatprep.mubr.bf16.mxu0 0
    %7101 = vmatmul.mubr.bf16.gmra.mrb[0].mxu0 %v6884
    %v7102 = vpop.f32.mrb[0].mxu0
    %v7103 = vadd.f32 0.0, %v7102
    %v7104 = vpop.f32.mrb[0].mxu0
    %v7105 = vpop.f32.mrb[0].mxu0
    %v7106 = vadd.f32 0.0, %v7105
    %v7107 = vpop.f32.mrb[0].mxu0
    %7108 = vmatprep.mubr.bf16.mxu0 0
    %7109 = vmatmul.mubr.bf16.gmra.mrb[0].mxu0 %v6887
    %v7110 = vpop.f32.mrb[0].mxu0
    %v7111 = vadd.f32 0.0, %v7110
    %v7112 = vpop.f32.mrb[0].mxu0
    %v7113 = vpop.f32.mrb[0].mxu0
    %v7114 = vadd.f32 0.0, %v7113
    %v7115 = vpop.f32.mrb[0].mxu0
    %7116 = vmatprep.mubr.bf16.mxu0 0
    %7117 = vmatmul.mubr.bf16.gmra.mrb[0].mxu0 %v6890
    %v7118 = vpop.f32.mrb[0].mxu0
    %v7119 = vadd.f32 0.0, %v7118
    %v7120 = vpop.f32.mrb[0].mxu0
    %v7121 = vpop.f32.mrb[0].mxu0
    %v7122 = vadd.f32 0.0, %v7121
    %v7123 = vpop.f32.mrb[0].mxu0
    %7124 = vmatprep.mubr.bf16.mxu0 0
    %7125 = vmatmul.mubr.bf16.gmra.mrb[0].mxu0 %v6893
    %v7126 = vpop.f32.mrb[0].mxu0
    %v7127 = vadd.f32 0.0, %v7126
    %v7128 = vpop.f32.mrb[0].mxu0
    %v7129 = vpop.f32.mrb[0].mxu0
    %v7130 = vadd.f32 0.0, %v7129
    %v7131 = vpop.f32.mrb[0].mxu0
    %7132 = vmatprep.mubr.bf16.mxu0 0
    %7133 = vmatmul.mubr.bf16.gmra.mrb[0].mxu0 %v6896
    %v7134 = vpop.f32.mrb[0].mxu0
    %v7135 = vadd.f32 0.0, %v7134
    %v7136 = vpop.f32.mrb[0].mxu0
    %v7137 = vpop.f32.mrb[0].mxu0
    %v7138 = vadd.f32 0.0, %v7137
    %v7139 = vpop.f32.mrb[0].mxu0
    %7140 = vmatprep.mubr.bf16.mxu0 0
    %7141 = vmatmul.mubr.bf16.gmra.mrb[0].mxu0 %v6899
    %v7142 = vpop.f32.mrb[0].mxu0
    %v7143 = vadd.f32 0.0, %v7142
    %v7144 = vpop.f32.mrb[0].mxu0
    %v7145 = vpop.f32.mrb[0].mxu0
    %v7146 = vadd.f32 0.0, %v7145
    %v7147 = vpop.f32.mrb[0].mxu0
    %7148 = vmatprep.mubr.bf16.mxu0 0
    %7149 = vmatmul.mubr.bf16.gmra.mrb[0].mxu0 %v6902
    %v7150 = vpop.f32.mrb[0].mxu0
    %v7151 = vadd.f32 0.0, %v7150
    %v7152 = vpop.f32.mrb[0].mxu0
    %v7153 = vpop.f32.mrb[0].mxu0
    %v7154 = vadd.f32 0.0, %v7153
    %v7155 = vpop.f32.mrb[0].mxu0
    %7156 = vmatprep.mubr.bf16.mxu0 0
    %7157 = vmatmul.mubr.bf16.gmra.mrb[0].mxu0 %v6905
    %v7158 = vpop.f32.mrb[0].mxu0
    %v7159 = vadd.f32 0.0, %v7158
    %v7160 = vpop.f32.mrb[0].mxu0
    %v7161 = vpop.f32.mrb[0].mxu0
    %v7162 = vadd.f32 0.0, %v7161
    %v7163 = vpop.f32.mrb[0].mxu0
    %7164 = vmatprep.mubr.bf16.mxu0 0
    %7165 = vmatmul.mubr.bf16.gmra.mrb[0].mxu0 %v6908
    %v7166 = vpop.f32.mrb[0].mxu0
    %v7167 = vadd.f32 0.0, %v7166
    %v7168 = vpop.f32.mrb[0].mxu0
    %v7169 = vpop.f32.mrb[0].mxu0
    %v7170 = vadd.f32 0.0, %v7169
    %v7171 = vpop.f32.mrb[0].mxu0
    %7172 = vmatprep.mubr.bf16.mxu0 0
    %7173 = vmatmul.mubr.bf16.gmra.mrb[0].mxu0 %v6911
    %v7174 = vpop.f32.mrb[0].mxu0
    %v7175 = vadd.f32 0.0, %v7174
    %v7176 = vpop.f32.mrb[0].mxu0
    %v7177 = vpop.f32.mrb[0].mxu0
    %v7178 = vadd.f32 0.0, %v7177
    %v7179 = vpop.f32.mrb[0].mxu0
    %7180 = vmatprep.mubr.bf16.mxu0 0
    %7181 = vmatmul.mubr.bf16.gmra.mrb[0].mxu0 %v6914
    %v7182 = vpop.f32.mrb[0].mxu0
    %v7183 = vadd.f32 0.0, %v7182
    %v7184 = vpop.f32.mrb[0].mxu0
    %v7185 = vpop.f32.mrb[0].mxu0
    %v7186 = vadd.f32 0.0, %v7185
    %v7187 = vpop.f32.mrb[0].mxu0
    %7188 = vmatprep.mubr.bf16.mxu0 0
    %7189 = vmatmul.mubr.bf16.gmra.mrb[0].mxu0 %v6917
    %v7190 = vpop.f32.mrb[0].mxu0
    %v7191 = vadd.f32 0.0, %v7190
    %v7192 = vpop.f32.mrb[0].mxu0
    %v7193 = vpop.f32.mrb[0].mxu0
    %v7194 = vadd.f32 0.0, %v7193
    %v7195 = vpop.f32.mrb[0].mxu0
    %7196 = vmatprep.mubr.bf16.mxu0 0
    %7197 = vmatmul.mubr.bf16.gmra.mrb[0].mxu0 %v6920
    %v7198 = vpop.f32.mrb[0].mxu0
    %v7199 = vadd.f32 0.0, %v7198
    %v7200 = vpop.f32.mrb[0].mxu0
    %v7201 = vpop.f32.mrb[0].mxu0
    %v7202 = vadd.f32 0.0, %v7201
    %v7203 = vpop.f32.mrb[0].mxu0
    %7204 = vmatprep.mubr.bf16.mxu0 0
    %7205 = vmatmul.mubr.bf16.gmra.mrb[0].mxu0 %v6923
    %v7206 = vpop.f32.mrb[0].mxu0
    %v7207 = vadd.f32 0.0, %v7206
    %v7208 = vpop.f32.mrb[0].mxu0
    %v7209 = vpop.f32.mrb[0].mxu0
    %v7210 = vadd.f32 0.0, %v7209
    %v7211 = vpop.f32.mrb[0].mxu0
    %7212 = vmatprep.mubr.bf16.mxu0 0
    %7213 = vmatmul.mubr.bf16.gmra.mrb[0].mxu0 %v6926
    %v7214 = vpop.f32.mrb[0].mxu0
    %v7215 = vadd.f32 0.0, %v7214
    %v7216 = vpop.f32.mrb[0].mxu0
    %v7217 = vpop.f32.mrb[0].mxu0
    %v7218 = vadd.f32 0.0, %v7217
    %v7219 = vpop.f32.mrb[0].mxu0
    %7220 = vdwg.mxu0
    %v7221 = vsel %vm2518, %v6967, 0.0
    %v7222 = vsel %vm2518, %v6970, 0.0
    %v7223 = vadd.f32 %v7221, %v7222
    %v7224 = vsel %vm2518, %v6975, 0.0
    %v7225 = vadd.f32 %v7223, %v7224
    %v7226 = vsel %vm2518, %v6978, 0.0
    %v7227 = vadd.f32 %v7225, %v7226
    %v7228 = vsel %vm2518, %v6983, 0.0
    %v7229 = vadd.f32 %v7227, %v7228
    %v7230 = vsel %vm2518, %v6986, 0.0
    %v7231 = vadd.f32 %v7229, %v7230
    %v7232 = vsel %vm2518, %v6991, 0.0
    %v7233 = vadd.f32 %v7231, %v7232
    %v7234 = vsel %vm2518, %v6994, 0.0
    %v7235 = vadd.f32 %v7233, %v7234
    %v7236 = vsel %vm2518, %v6999, 0.0
    %v7237 = vadd.f32 %v7235, %v7236
    %v7238 = vsel %vm2518, %v7002, 0.0
    %v7239 = vadd.f32 %v7237, %v7238
    %v7240 = vsel %vm2518, %v7007, 0.0
    %v7241 = vadd.f32 %v7239, %v7240
    %v7242 = vsel %vm2518, %v7010, 0.0
    %v7243 = vadd.f32 %v7241, %v7242
    %v7244 = vsel %vm2518, %v7015, 0.0
    %v7245 = vadd.f32 %v7243, %v7244
    %v7246 = vsel %vm2518, %v7018, 0.0
    %v7247 = vadd.f32 %v7245, %v7246
    %v7248 = vsel %vm2518, %v7023, 0.0
    %v7249 = vadd.f32 %v7247, %v7248
    %v7250 = vsel %vm2518, %v7026, 0.0
    %v7251 = vadd.f32 %v7249, %v7250
    %v7252 = vsel %vm2518, %v7031, 0.0
    %v7253 = vadd.f32 %v7251, %v7252
    %v7254 = vsel %vm2518, %v7034, 0.0
    %v7255 = vadd.f32 %v7253, %v7254
    %v7256 = vsel %vm2518, %v7039, 0.0
    %v7257 = vadd.f32 %v7255, %v7256
    %v7258 = vsel %vm2518, %v7042, 0.0
    %v7259 = vadd.f32 %v7257, %v7258
    %v7260 = vsel %vm2518, %v7047, 0.0
    %v7261 = vadd.f32 %v7259, %v7260
    %v7262 = vsel %vm2518, %v7050, 0.0
    %v7263 = vadd.f32 %v7261, %v7262
    %v7264 = vsel %vm2518, %v7055, 0.0
    %v7265 = vadd.f32 %v7263, %v7264
    %v7266 = vsel %vm2518, %v7058, 0.0
    %v7267 = vadd.f32 %v7265, %v7266
    %v7268 = vsel %vm2518, %v7063, 0.0
    %v7269 = vadd.f32 %v7267, %v7268
    %v7270 = vsel %vm2518, %v7066, 0.0
    %v7271 = vadd.f32 %v7269, %v7270
    %v7272 = vsel %vm2518, %v7071, 0.0
    %v7273 = vadd.f32 %v7271, %v7272
    %v7274 = vsel %vm2518, %v7074, 0.0
    %v7275 = vadd.f32 %v7273, %v7274
    %v7276 = vsel %vm2518, %v7079, 0.0
    %v7277 = vadd.f32 %v7275, %v7276
    %v7278 = vsel %vm2518, %v7082, 0.0
    %v7279 = vadd.f32 %v7277, %v7278
    %v7280 = vsel %vm2518, %v7087, 0.0
    %v7281 = vadd.f32 %v7279, %v7280
    %v7282 = vsel %vm2518, %v7090, 0.0
    %v7283 = vadd.f32 %v7281, %v7282
    %v7284 = vsel %vm2518, %v7095, 0.0
    %v7285 = vadd.f32 %v7283, %v7284
    %v7286 = vsel %vm2518, %v7098, 0.0
    %v7287 = vadd.f32 %v7285, %v7286
    %v7288 = vsel %vm2518, %v7103, 0.0
    %v7289 = vadd.f32 %v7287, %v7288
    %v7290 = vsel %vm2518, %v7106, 0.0
    %v7291 = vadd.f32 %v7289, %v7290
    %v7292 = vsel %vm2518, %v7111, 0.0
    %v7293 = vadd.f32 %v7291, %v7292
    %v7294 = vsel %vm2518, %v7114, 0.0
    %v7295 = vadd.f32 %v7293, %v7294
    %v7296 = vsel %vm2518, %v7119, 0.0
    %v7297 = vadd.f32 %v7295, %v7296
    %v7298 = vsel %vm2518, %v7122, 0.0
    %v7299 = vadd.f32 %v7297, %v7298
    %v7300 = vsel %vm2518, %v7127, 0.0
    %v7301 = vadd.f32 %v7299, %v7300
    %v7302 = vsel %vm2518, %v7130, 0.0
    %v7303 = vadd.f32 %v7301, %v7302
    %v7304 = vsel %vm2518, %v7135, 0.0
    %v7305 = vadd.f32 %v7303, %v7304
    %v7306 = vsel %vm2518, %v7138, 0.0
    %v7307 = vadd.f32 %v7305, %v7306
    %v7308 = vsel %vm2518, %v7143, 0.0
    %v7309 = vadd.f32 %v7307, %v7308
    %v7310 = vsel %vm2518, %v7146, 0.0
    %v7311 = vadd.f32 %v7309, %v7310
    %v7312 = vsel %vm2518, %v7151, 0.0
    %v7313 = vadd.f32 %v7311, %v7312
    %v7314 = vsel %vm2518, %v7154, 0.0
    %v7315 = vadd.f32 %v7313, %v7314
    %v7316 = vsel %vm2518, %v7159, 0.0
    %v7317 = vadd.f32 %v7315, %v7316
    %v7318 = vsel %vm2518, %v7162, 0.0
    %v7319 = vadd.f32 %v7317, %v7318
    %v7320 = vsel %vm2518, %v7167, 0.0
    %v7321 = vadd.f32 %v7319, %v7320
    %v7322 = vsel %vm2518, %v7170, 0.0
    %v7323 = vadd.f32 %v7321, %v7322
    %v7324 = vsel %vm2518, %v7175, 0.0
    %v7325 = vadd.f32 %v7323, %v7324
    %v7326 = vsel %vm2518, %v7178, 0.0
    %v7327 = vadd.f32 %v7325, %v7326
    %v7328 = vsel %vm2518, %v7183, 0.0
    %v7329 = vadd.f32 %v7327, %v7328
    %v7330 = vsel %vm2518, %v7186, 0.0
    %v7331 = vadd.f32 %v7329, %v7330
    %v7332 = vsel %vm2518, %v7191, 0.0
    %v7333 = vadd.f32 %v7331, %v7332
    %v7334 = vsel %vm2518, %v7194, 0.0
    %v7335 = vadd.f32 %v7333, %v7334
    %v7336 = vsel %vm2518, %v7199, 0.0
    %v7337 = vadd.f32 %v7335, %v7336
    %v7338 = vsel %vm2518, %v7202, 0.0
    %v7339 = vadd.f32 %v7337, %v7338
    %v7340 = vsel %vm2518, %v7207, 0.0
    %v7341 = vadd.f32 %v7339, %v7340
    %v7342 = vsel %vm2518, %v7210, 0.0
    %v7343 = vadd.f32 %v7341, %v7342
    %v7344 = vsel %vm2518, %v7215, 0.0
    %v7345 = vadd.f32 %v7343, %v7344
    %v7346 = vsel %vm2518, %v7218, 0.0
    %v7347 = vadd.f32 %v7345, %v7346
    %v7348 = vrot.slane %v7347, 4
    %v7349 = vadd.f32 %v7347, %v7348
    %v7350 = vrot.slane %v7349, 2
    %v7351 = vadd.f32 %v7349, %v7350
    %v7352 = vrot.slane %v7351, 1
    %v7353 = vadd.f32 %v7351, %v7352
    %v7354 = vmul.f32 %v7353, 0.001953125
    %v7355 = vmul.f32 %v6967, %v6967
    %v7356 = vmul.f32 %v6970, %v6970
    %v7357 = vmul.f32 %v6975, %v6975
    %v7358 = vmul.f32 %v6978, %v6978
    %v7359 = vmul.f32 %v6983, %v6983
    %v7360 = vmul.f32 %v6986, %v6986
    %v7361 = vmul.f32 %v6991, %v6991
    %v7362 = vmul.f32 %v6994, %v6994
    %v7363 = vmul.f32 %v6999, %v6999
    %v7364 = vmul.f32 %v7002, %v7002
    %v7365 = vmul.f32 %v7007, %v7007
    %v7366 = vmul.f32 %v7010, %v7010
    %v7367 = vmul.f32 %v7015, %v7015
    %v7368 = vmul.f32 %v7018, %v7018
    %v7369 = vmul.f32 %v7023, %v7023
    %v7370 = vmul.f32 %v7026, %v7026
    %v7371 = vmul.f32 %v7031, %v7031
    %v7372 = vmul.f32 %v7034, %v7034
    %v7373 = vmul.f32 %v7039, %v7039
    %v7374 = vmul.f32 %v7042, %v7042
    %v7375 = vmul.f32 %v7047, %v7047
    %v7376 = vmul.f32 %v7050, %v7050
    %v7377 = vmul.f32 %v7055, %v7055
    %v7378 = vmul.f32 %v7058, %v7058
    %v7379 = vmul.f32 %v7063, %v7063
    %v7380 = vmul.f32 %v7066, %v7066
    %v7381 = vmul.f32 %v7071, %v7071
    %v7382 = vmul.f32 %v7074, %v7074
    %v7383 = vmul.f32 %v7079, %v7079
    %v7384 = vmul.f32 %v7082, %v7082
    %v7385 = vmul.f32 %v7087, %v7087
    %v7386 = vmul.f32 %v7090, %v7090
    %v7387 = vmul.f32 %v7095, %v7095
    %v7388 = vmul.f32 %v7098, %v7098
    %v7389 = vmul.f32 %v7103, %v7103
    %v7390 = vmul.f32 %v7106, %v7106
    %v7391 = vmul.f32 %v7111, %v7111
    %v7392 = vmul.f32 %v7114, %v7114
    %v7393 = vmul.f32 %v7119, %v7119
    %v7394 = vmul.f32 %v7122, %v7122
    %v7395 = vmul.f32 %v7127, %v7127
    %v7396 = vmul.f32 %v7130, %v7130
    %v7397 = vmul.f32 %v7135, %v7135
    %v7398 = vmul.f32 %v7138, %v7138
    %v7399 = vmul.f32 %v7143, %v7143
    %v7400 = vmul.f32 %v7146, %v7146
    %v7401 = vmul.f32 %v7151, %v7151
    %v7402 = vmul.f32 %v7154, %v7154
    %v7403 = vmul.f32 %v7159, %v7159
    %v7404 = vmul.f32 %v7162, %v7162
    %v7405 = vmul.f32 %v7167, %v7167
    %v7406 = vmul.f32 %v7170, %v7170
    %v7407 = vmul.f32 %v7175, %v7175
    %v7408 = vmul.f32 %v7178, %v7178
    %v7409 = vmul.f32 %v7183, %v7183
    %v7410 = vmul.f32 %v7186, %v7186
    %v7411 = vmul.f32 %v7191, %v7191
    %v7412 = vmul.f32 %v7194, %v7194
    %v7413 = vmul.f32 %v7199, %v7199
    %v7414 = vmul.f32 %v7202, %v7202
    %v7415 = vmul.f32 %v7207, %v7207
    %v7416 = vmul.f32 %v7210, %v7210
    %v7417 = vmul.f32 %v7215, %v7215
    %v7418 = vmul.f32 %v7218, %v7218
    %v7419 = vsel %vm2518, %v7355, 0.0
    %v7420 = vsel %vm2518, %v7356, 0.0
    %v7421 = vadd.f32 %v7419, %v7420
    %v7422 = vsel %vm2518, %v7357, 0.0
    %v7423 = vadd.f32 %v7421, %v7422
    %v7424 = vsel %vm2518, %v7358, 0.0
    %v7425 = vadd.f32 %v7423, %v7424
    %v7426 = vsel %vm2518, %v7359, 0.0
    %v7427 = vadd.f32 %v7425, %v7426
    %v7428 = vsel %vm2518, %v7360, 0.0
    %v7429 = vadd.f32 %v7427, %v7428
    %v7430 = vsel %vm2518, %v7361, 0.0
    %v7431 = vadd.f32 %v7429, %v7430
    %v7432 = vsel %vm2518, %v7362, 0.0
    %v7433 = vadd.f32 %v7431, %v7432
    %v7434 = vsel %vm2518, %v7363, 0.0
    %v7435 = vadd.f32 %v7433, %v7434
    %v7436 = vsel %vm2518, %v7364, 0.0
    %v7437 = vadd.f32 %v7435, %v7436
    %v7438 = vsel %vm2518, %v7365, 0.0
    %v7439 = vadd.f32 %v7437, %v7438
    %v7440 = vsel %vm2518, %v7366, 0.0
    %v7441 = vadd.f32 %v7439, %v7440
    %v7442 = vsel %vm2518, %v7367, 0.0
    %v7443 = vadd.f32 %v7441, %v7442
    %v7444 = vsel %vm2518, %v7368, 0.0
    %v7445 = vadd.f32 %v7443, %v7444
    %v7446 = vsel %vm2518, %v7369, 0.0
    %v7447 = vadd.f32 %v7445, %v7446
    %v7448 = vsel %vm2518, %v7370, 0.0
    %v7449 = vadd.f32 %v7447, %v7448
    %v7450 = vsel %vm2518, %v7371, 0.0
    %v7451 = vadd.f32 %v7449, %v7450
    %v7452 = vsel %vm2518, %v7372, 0.0
    %v7453 = vadd.f32 %v7451, %v7452
    %v7454 = vsel %vm2518, %v7373, 0.0
    %v7455 = vadd.f32 %v7453, %v7454
    %v7456 = vsel %vm2518, %v7374, 0.0
    %v7457 = vadd.f32 %v7455, %v7456
    %v7458 = vsel %vm2518, %v7375, 0.0
    %v7459 = vadd.f32 %v7457, %v7458
    %v7460 = vsel %vm2518, %v7376, 0.0
    %v7461 = vadd.f32 %v7459, %v7460
    %v7462 = vsel %vm2518, %v7377, 0.0
    %v7463 = vadd.f32 %v7461, %v7462
    %v7464 = vsel %vm2518, %v7378, 0.0
    %v7465 = vadd.f32 %v7463, %v7464
    %v7466 = vsel %vm2518, %v7379, 0.0
    %v7467 = vadd.f32 %v7465, %v7466
    %v7468 = vsel %vm2518, %v7380, 0.0
    %v7469 = vadd.f32 %v7467, %v7468
    %v7470 = vsel %vm2518, %v7381, 0.0
    %v7471 = vadd.f32 %v7469, %v7470
    %v7472 = vsel %vm2518, %v7382, 0.0
    %v7473 = vadd.f32 %v7471, %v7472
    %v7474 = vsel %vm2518, %v7383, 0.0
    %v7475 = vadd.f32 %v7473, %v7474
    %v7476 = vsel %vm2518, %v7384, 0.0
    %v7477 = vadd.f32 %v7475, %v7476
    %v7478 = vsel %vm2518, %v7385, 0.0
    %v7479 = vadd.f32 %v7477, %v7478
    %v7480 = vsel %vm2518, %v7386, 0.0
    %v7481 = vadd.f32 %v7479, %v7480
    %v7482 = vsel %vm2518, %v7387, 0.0
    %v7483 = vadd.f32 %v7481, %v7482
    %v7484 = vsel %vm2518, %v7388, 0.0
    %v7485 = vadd.f32 %v7483, %v7484
    %v7486 = vsel %vm2518, %v7389, 0.0
    %v7487 = vadd.f32 %v7485, %v7486
    %v7488 = vsel %vm2518, %v7390, 0.0
    %v7489 = vadd.f32 %v7487, %v7488
    %v7490 = vsel %vm2518, %v7391, 0.0
    %v7491 = vadd.f32 %v7489, %v7490
    %v7492 = vsel %vm2518, %v7392, 0.0
    %v7493 = vadd.f32 %v7491, %v7492
    %v7494 = vsel %vm2518, %v7393, 0.0
    %v7495 = vadd.f32 %v7493, %v7494
    %v7496 = vsel %vm2518, %v7394, 0.0
    %v7497 = vadd.f32 %v7495, %v7496
    %v7498 = vsel %vm2518, %v7395, 0.0
    %v7499 = vadd.f32 %v7497, %v7498
    %v7500 = vsel %vm2518, %v7396, 0.0
    %v7501 = vadd.f32 %v7499, %v7500
    %v7502 = vsel %vm2518, %v7397, 0.0
    %v7503 = vadd.f32 %v7501, %v7502
    %v7504 = vsel %vm2518, %v7398, 0.0
    %v7505 = vadd.f32 %v7503, %v7504
    %v7506 = vsel %vm2518, %v7399, 0.0
    %v7507 = vadd.f32 %v7505, %v7506
    %v7508 = vsel %vm2518, %v7400, 0.0
    %v7509 = vadd.f32 %v7507, %v7508
    %v7510 = vsel %vm2518, %v7401, 0.0
    %v7511 = vadd.f32 %v7509, %v7510
    %v7512 = vsel %vm2518, %v7402, 0.0
    %v7513 = vadd.f32 %v7511, %v7512
    %v7514 = vsel %vm2518, %v7403, 0.0
    %v7515 = vadd.f32 %v7513, %v7514
    %v7516 = vsel %vm2518, %v7404, 0.0
    %v7517 = vadd.f32 %v7515, %v7516
    %v7518 = vsel %vm2518, %v7405, 0.0
    %v7519 = vadd.f32 %v7517, %v7518
    %v7520 = vsel %vm2518, %v7406, 0.0
    %v7521 = vadd.f32 %v7519, %v7520
    %v7522 = vsel %vm2518, %v7407, 0.0
    %v7523 = vadd.f32 %v7521, %v7522
    %v7524 = vsel %vm2518, %v7408, 0.0
    %v7525 = vadd.f32 %v7523, %v7524
    %v7526 = vsel %vm2518, %v7409, 0.0
    %v7527 = vadd.f32 %v7525, %v7526
    %v7528 = vsel %vm2518, %v7410, 0.0
    %v7529 = vadd.f32 %v7527, %v7528
    %v7530 = vsel %vm2518, %v7411, 0.0
    %v7531 = vadd.f32 %v7529, %v7530
    %v7532 = vsel %vm2518, %v7412, 0.0
    %v7533 = vadd.f32 %v7531, %v7532
    %v7534 = vsel %vm2518, %v7413, 0.0
    %v7535 = vadd.f32 %v7533, %v7534
    %v7536 = vsel %vm2518, %v7414, 0.0
    %v7537 = vadd.f32 %v7535, %v7536
    %v7538 = vsel %vm2518, %v7415, 0.0
    %v7539 = vadd.f32 %v7537, %v7538
    %v7540 = vsel %vm2518, %v7416, 0.0
    %v7541 = vadd.f32 %v7539, %v7540
    %v7542 = vsel %vm2518, %v7417, 0.0
    %v7543 = vadd.f32 %v7541, %v7542
    %v7544 = vsel %vm2518, %v7418, 0.0
    %v7545 = vadd.f32 %v7543, %v7544
    %v7546 = vrot.slane %v7545, 4
    %v7547 = vadd.f32 %v7545, %v7546
    %v7548 = vrot.slane %v7547, 2
    %v7549 = vadd.f32 %v7547, %v7548
    %v7550 = vrot.slane %v7549, 1
    %v7551 = vadd.f32 %v7549, %v7550
    %v7552 = vmul.f32 %v7551, 0.001953125
    %v7553 = vmul.f32 %v7354, %v7354
    %v7554 = vsub.f32 %v7552, %v7553
    %v7555 = vmax.f32 %v7554, 0.0
    %v7556 = vld [vmem:[%s5] sm:$0x1]
    %v7557 = vadd.f32 %v7555, 1e-05
    %v7558 = vrsqrt.pop %v7557
    %v7559 = vmul.f32 %v7556, %v7558
    %v7560 = vld [vmem:[%s6] sm:$0x1]
    %v7561 = vmul.f32 %v7354, %v7559
    %v7562 = vsub.f32 %v7560, %v7561
    %v7564 = vlaneseq
    %v7565 = vshrl.u32 %v7564, 7
    %v7566 = vsub.s32 0, %v7565
    %v7567 = vrot.slane %v7559, %v7566
    %v7569 = vmul.f32 %v6967, %v7567
    %v7570 = vmul.f32 %v6970, %v7567
    %v7571 = vmul.f32 %v6975, %v7567
    %v7572 = vmul.f32 %v6978, %v7567
    %v7573 = vmul.f32 %v6983, %v7567
    %v7574 = vmul.f32 %v6986, %v7567
    %v7575 = vmul.f32 %v6991, %v7567
    %v7576 = vmul.f32 %v6994, %v7567
    %v7577 = vmul.f32 %v6999, %v7567
    %v7578 = vmul.f32 %v7002, %v7567
    %v7579 = vmul.f32 %v7007, %v7567
    %v7580 = vmul.f32 %v7010, %v7567
    %v7581 = vmul.f32 %v7015, %v7567
    %v7582 = vmul.f32 %v7018, %v7567
    %v7583 = vmul.f32 %v7023, %v7567
    %v7584 = vmul.f32 %v7026, %v7567
    %v7585 = vmul.f32 %v7031, %v7567
    %v7586 = vmul.f32 %v7034, %v7567
    %v7587 = vmul.f32 %v7039, %v7567
    %v7588 = vmul.f32 %v7042, %v7567
    %v7589 = vmul.f32 %v7047, %v7567
    %v7590 = vmul.f32 %v7050, %v7567
    %v7591 = vmul.f32 %v7055, %v7567
    %v7592 = vmul.f32 %v7058, %v7567
    %v7593 = vmul.f32 %v7063, %v7567
    %v7594 = vmul.f32 %v7066, %v7567
    %v7595 = vmul.f32 %v7071, %v7567
    %v7596 = vmul.f32 %v7074, %v7567
    %v7597 = vmul.f32 %v7079, %v7567
    %v7598 = vmul.f32 %v7082, %v7567
    %v7599 = vmul.f32 %v7087, %v7567
    %v7600 = vmul.f32 %v7090, %v7567
    %v7601 = vmul.f32 %v7095, %v7567
    %v7602 = vmul.f32 %v7098, %v7567
    %v7603 = vmul.f32 %v7103, %v7567
    %v7604 = vmul.f32 %v7106, %v7567
    %v7605 = vmul.f32 %v7111, %v7567
    %v7606 = vmul.f32 %v7114, %v7567
    %v7607 = vmul.f32 %v7119, %v7567
    %v7608 = vmul.f32 %v7122, %v7567
    %v7609 = vmul.f32 %v7127, %v7567
    %v7610 = vmul.f32 %v7130, %v7567
    %v7611 = vmul.f32 %v7135, %v7567
    %v7612 = vmul.f32 %v7138, %v7567
    %v7613 = vmul.f32 %v7143, %v7567
    %v7614 = vmul.f32 %v7146, %v7567
    %v7615 = vmul.f32 %v7151, %v7567
    %v7616 = vmul.f32 %v7154, %v7567
    %v7617 = vmul.f32 %v7159, %v7567
    %v7618 = vmul.f32 %v7162, %v7567
    %v7619 = vmul.f32 %v7167, %v7567
    %v7620 = vmul.f32 %v7170, %v7567
    %v7621 = vmul.f32 %v7175, %v7567
    %v7622 = vmul.f32 %v7178, %v7567
    %v7623 = vmul.f32 %v7183, %v7567
    %v7624 = vmul.f32 %v7186, %v7567
    %v7625 = vmul.f32 %v7191, %v7567
    %v7626 = vmul.f32 %v7194, %v7567
    %v7627 = vmul.f32 %v7199, %v7567
    %v7628 = vmul.f32 %v7202, %v7567
    %v7629 = vmul.f32 %v7207, %v7567
    %v7630 = vmul.f32 %v7210, %v7567
    %v7631 = vmul.f32 %v7215, %v7567
    %v7632 = vmul.f32 %v7218, %v7567
    %v7634 = vlaneseq
    %v7635 = vshrl.u32 %v7634, 7
    %v7636 = vsub.s32 0, %v7635
    %v7637 = vrot.slane %v7562, %v7636
    %v7639 = vadd.f32 %v7569, %v7637
    %v7640 = vadd.f32 %v7570, %v7637
    %v7641 = vadd.f32 %v7571, %v7637
    %v7642 = vadd.f32 %v7572, %v7637
    %v7643 = vadd.f32 %v7573, %v7637
    %v7644 = vadd.f32 %v7574, %v7637
    %v7645 = vadd.f32 %v7575, %v7637
    %v7646 = vadd.f32 %v7576, %v7637
    %v7647 = vadd.f32 %v7577, %v7637
    %v7648 = vadd.f32 %v7578, %v7637
    %v7649 = vadd.f32 %v7579, %v7637
    %v7650 = vadd.f32 %v7580, %v7637
    %v7651 = vadd.f32 %v7581, %v7637
    %v7652 = vadd.f32 %v7582, %v7637
    %v7653 = vadd.f32 %v7583, %v7637
    %v7654 = vadd.f32 %v7584, %v7637
    %v7655 = vadd.f32 %v7585, %v7637
    %v7656 = vadd.f32 %v7586, %v7637
    %v7657 = vadd.f32 %v7587, %v7637
    %v7658 = vadd.f32 %v7588, %v7637
    %v7659 = vadd.f32 %v7589, %v7637
    %v7660 = vadd.f32 %v7590, %v7637
    %v7661 = vadd.f32 %v7591, %v7637
    %v7662 = vadd.f32 %v7592, %v7637
    %v7663 = vadd.f32 %v7593, %v7637
    %v7664 = vadd.f32 %v7594, %v7637
    %v7665 = vadd.f32 %v7595, %v7637
    %v7666 = vadd.f32 %v7596, %v7637
    %v7667 = vadd.f32 %v7597, %v7637
    %v7668 = vadd.f32 %v7598, %v7637
    %v7669 = vadd.f32 %v7599, %v7637
    %v7670 = vadd.f32 %v7600, %v7637
    %v7671 = vadd.f32 %v7601, %v7637
    %v7672 = vadd.f32 %v7602, %v7637
    %v7673 = vadd.f32 %v7603, %v7637
    %v7674 = vadd.f32 %v7604, %v7637
    %v7675 = vadd.f32 %v7605, %v7637
    %v7676 = vadd.f32 %v7606, %v7637
    %v7677 = vadd.f32 %v7607, %v7637
    %v7678 = vadd.f32 %v7608, %v7637
    %v7679 = vadd.f32 %v7609, %v7637
    %v7680 = vadd.f32 %v7610, %v7637
    %v7681 = vadd.f32 %v7611, %v7637
    %v7682 = vadd.f32 %v7612, %v7637
    %v7683 = vadd.f32 %v7613, %v7637
    %v7684 = vadd.f32 %v7614, %v7637
    %v7685 = vadd.f32 %v7615, %v7637
    %v7686 = vadd.f32 %v7616, %v7637
    %v7687 = vadd.f32 %v7617, %v7637
    %v7688 = vadd.f32 %v7618, %v7637
    %v7689 = vadd.f32 %v7619, %v7637
    %v7690 = vadd.f32 %v7620, %v7637
    %v7691 = vadd.f32 %v7621, %v7637
    %v7692 = vadd.f32 %v7622, %v7637
    %v7693 = vadd.f32 %v7623, %v7637
    %v7694 = vadd.f32 %v7624, %v7637
    %v7695 = vadd.f32 %v7625, %v7637
    %v7696 = vadd.f32 %v7626, %v7637
    %v7697 = vadd.f32 %v7627, %v7637
    %v7698 = vadd.f32 %v7628, %v7637
    %v7699 = vadd.f32 %v7629, %v7637
    %v7700 = vadd.f32 %v7630, %v7637
    %v7701 = vadd.f32 %v7631, %v7637
    %v7702 = vadd.f32 %v7632, %v7637
    %v7703 = vmax.f32 %v7639, 0.0
    %v7704 = vmax.f32 %v7640, 0.0
    %v7705 = vmax.f32 %v7641, 0.0
    %v7706 = vmax.f32 %v7642, 0.0
    %v7707 = vmax.f32 %v7643, 0.0
    %v7708 = vmax.f32 %v7644, 0.0
    %v7709 = vmax.f32 %v7645, 0.0
    %v7710 = vmax.f32 %v7646, 0.0
    %v7711 = vmax.f32 %v7647, 0.0
    %v7712 = vmax.f32 %v7648, 0.0
    %v7713 = vmax.f32 %v7649, 0.0
    %v7714 = vmax.f32 %v7650, 0.0
    %v7715 = vmax.f32 %v7651, 0.0
    %v7716 = vmax.f32 %v7652, 0.0
    %v7717 = vmax.f32 %v7653, 0.0
    %v7718 = vmax.f32 %v7654, 0.0
    %v7719 = vmax.f32 %v7655, 0.0
    %v7720 = vmax.f32 %v7656, 0.0
    %v7721 = vmax.f32 %v7657, 0.0
    %v7722 = vmax.f32 %v7658, 0.0
    %v7723 = vmax.f32 %v7659, 0.0
    %v7724 = vmax.f32 %v7660, 0.0
    %v7725 = vmax.f32 %v7661, 0.0
    %v7726 = vmax.f32 %v7662, 0.0
    %v7727 = vmax.f32 %v7663, 0.0
    %v7728 = vmax.f32 %v7664, 0.0
    %v7729 = vmax.f32 %v7665, 0.0
    %v7730 = vmax.f32 %v7666, 0.0
    %v7731 = vmax.f32 %v7667, 0.0
    %v7732 = vmax.f32 %v7668, 0.0
    %v7733 = vmax.f32 %v7669, 0.0
    %v7734 = vmax.f32 %v7670, 0.0
    %v7735 = vmax.f32 %v7671, 0.0
    %v7736 = vmax.f32 %v7672, 0.0
    %v7737 = vmax.f32 %v7673, 0.0
    %v7738 = vmax.f32 %v7674, 0.0
    %v7739 = vmax.f32 %v7675, 0.0
    %v7740 = vmax.f32 %v7676, 0.0
    %v7741 = vmax.f32 %v7677, 0.0
    %v7742 = vmax.f32 %v7678, 0.0
    %v7743 = vmax.f32 %v7679, 0.0
    %v7744 = vmax.f32 %v7680, 0.0
    %v7745 = vmax.f32 %v7681, 0.0
    %v7746 = vmax.f32 %v7682, 0.0
    %v7747 = vmax.f32 %v7683, 0.0
    %v7748 = vmax.f32 %v7684, 0.0
    %v7749 = vmax.f32 %v7685, 0.0
    %v7750 = vmax.f32 %v7686, 0.0
    %v7751 = vmax.f32 %v7687, 0.0
    %v7752 = vmax.f32 %v7688, 0.0
    %v7753 = vmax.f32 %v7689, 0.0
    %v7754 = vmax.f32 %v7690, 0.0
    %v7755 = vmax.f32 %v7691, 0.0
    %v7756 = vmax.f32 %v7692, 0.0
    %v7757 = vmax.f32 %v7693, 0.0
    %v7758 = vmax.f32 %v7694, 0.0
    %v7759 = vmax.f32 %v7695, 0.0
    %v7760 = vmax.f32 %v7696, 0.0
    %v7761 = vmax.f32 %v7697, 0.0
    %v7762 = vmax.f32 %v7698, 0.0
    %v7763 = vmax.f32 %v7699, 0.0
    %v7764 = vmax.f32 %v7700, 0.0
    %v7765 = vmax.f32 %v7701, 0.0
    %v7766 = vmax.f32 %v7702, 0.0
    %7767 = vxpose.xlu0.b32.start [1/16] %v7703, 128
    %7768 = vxpose.xlu0.b32.cont [2/16] %v7704, 128
    %7769 = vxpose.xlu0.b32.cont [3/16] %v7705, 128
    %7770 = vxpose.xlu0.b32.cont [4/16] %v7706, 128
    %7771 = vxpose.xlu0.b32.cont [5/16] %v7707, 128
    %7772 = vxpose.xlu0.b32.cont [6/16] %v7708, 128
    %7773 = vxpose.xlu0.b32.cont [7/16] %v7709, 128
    %7774 = vxpose.xlu0.b32.cont [8/16] %v7710, 128
    %7775 = vxpose.xlu0.b32.cont [9/16] %v7711, 128
    %7776 = vxpose.xlu0.b32.cont [10/16] %v7712, 128
    %7777 = vxpose.xlu0.b32.cont [11/16] %v7713, 128
    %7778 = vxpose.xlu0.b32.cont [12/16] %v7714, 128
    %7779 = vxpose.xlu0.b32.cont [13/16] %v7715, 128
    %7780 = vxpose.xlu0.b32.cont [14/16] %v7716, 128
    %7781 = vxpose.xlu0.b32.cont [15/16] %v7717, 128
    %7782 = vxpose.xlu0.b32.end [16/16] %v7718, 128
    %v7783 = vpop.trf.xlu0
    %v7784 = vpop.trf.xlu0
    %v7785 = vpop.trf.xlu0
    %v7786 = vpop.trf.xlu0
    %v7787 = vpop.trf.xlu0
    %v7788 = vpop.trf.xlu0
    %v7789 = vpop.trf.xlu0
    %v7790 = vpop.trf.xlu0
    %v7791 = vpop.trf.xlu0
    %v7792 = vpop.trf.xlu0
    %v7793 = vpop.trf.xlu0
    %v7794 = vpop.trf.xlu0
    %v7795 = vpop.trf.xlu0
    %v7796 = vpop.trf.xlu0
    %v7797 = vpop.trf.xlu0
    %v7798 = vpop.trf.xlu0
    %7799 = vxpose.xlu0.b32.start [1/16] %v7719, 128
    %7800 = vxpose.xlu0.b32.cont [2/16] %v7720, 128
    %7801 = vxpose.xlu0.b32.cont [3/16] %v7721, 128
    %7802 = vxpose.xlu0.b32.cont [4/16] %v7722, 128
    %7803 = vxpose.xlu0.b32.cont [5/16] %v7723, 128
    %7804 = vxpose.xlu0.b32.cont [6/16] %v7724, 128
    %7805 = vxpose.xlu0.b32.cont [7/16] %v7725, 128
    %7806 = vxpose.xlu0.b32.cont [8/16] %v7726, 128
    %7807 = vxpose.xlu0.b32.cont [9/16] %v7727, 128
    %7808 = vxpose.xlu0.b32.cont [10/16] %v7728, 128
    %7809 = vxpose.xlu0.b32.cont [11/16] %v7729, 128
    %7810 = vxpose.xlu0.b32.cont [12/16] %v7730, 128
    %7811 = vxpose.xlu0.b32.cont [13/16] %v7731, 128
    %7812 = vxpose.xlu0.b32.cont [14/16] %v7732, 128
    %7813 = vxpose.xlu0.b32.cont [15/16] %v7733, 128
    %7814 = vxpose.xlu0.b32.end [16/16] %v7734, 128
    %v7815 = vpop.trf.xlu0
    %v7816 = vpop.trf.xlu0
    %v7817 = vpop.trf.xlu0
    %v7818 = vpop.trf.xlu0
    %v7819 = vpop.trf.xlu0
    %v7820 = vpop.trf.xlu0
    %v7821 = vpop.trf.xlu0
    %v7822 = vpop.trf.xlu0
    %v7823 = vpop.trf.xlu0
    %v7824 = vpop.trf.xlu0
    %v7825 = vpop.trf.xlu0
    %v7826 = vpop.trf.xlu0
    %v7827 = vpop.trf.xlu0
    %v7828 = vpop.trf.xlu0
    %v7829 = vpop.trf.xlu0
    %v7830 = vpop.trf.xlu0
    %7831 = vst [vmem:[#allocation4] sm:$0xff] %v7783
    %7832 = vst [vmem:[#allocation4 + $0x8] sm:$0xff] %v7815
    %7833 = vxpose.xlu0.b32.start [1/16] %v7735, 128
    %7834 = vxpose.xlu0.b32.cont [2/16] %v7736, 128
    %7835 = vxpose.xlu0.b32.cont [3/16] %v7737, 128
    %7836 = vxpose.xlu0.b32.cont [4/16] %v7738, 128
    %7837 = vxpose.xlu0.b32.cont [5/16] %v7739, 128
    %7838 = vxpose.xlu0.b32.cont [6/16] %v7740, 128
    %7839 = vxpose.xlu0.b32.cont [7/16] %v7741, 128
    %7840 = vxpose.xlu0.b32.cont [8/16] %v7742, 128
    %7841 = vxpose.xlu0.b32.cont [9/16] %v7743, 128
    %7842 = vxpose.xlu0.b32.cont [10/16] %v7744, 128
    %7843 = vxpose.xlu0.b32.cont [11/16] %v7745, 128
    %7844 = vxpose.xlu0.b32.cont [12/16] %v7746, 128
    %7845 = vxpose.xlu0.b32.cont [13/16] %v7747, 128
    %7846 = vxpose.xlu0.b32.cont [14/16] %v7748, 128
    %7847 = vxpose.xlu0.b32.cont [15/16] %v7749, 128
    %7848 = vxpose.xlu0.b32.end [16/16] %v7750, 128
    %v7849 = vpop.trf.xlu0
    %v7850 = vpop.trf.xlu0
    %v7851 = vpop.trf.xlu0
    %v7852 = vpop.trf.xlu0
    %v7853 = vpop.trf.xlu0
    %v7854 = vpop.trf.xlu0
    %v7855 = vpop.trf.xlu0
    %v7856 = vpop.trf.xlu0
    %v7857 = vpop.trf.xlu0
    %v7858 = vpop.trf.xlu0
    %v7859 = vpop.trf.xlu0
    %v7860 = vpop.trf.xlu0
    %v7861 = vpop.trf.xlu0
    %v7862 = vpop.trf.xlu0
    %v7863 = vpop.trf.xlu0
    %v7864 = vpop.trf.xlu0
    %7865 = vxpose.xlu0.b32.start [1/16] %v7751, 128
    %7866 = vxpose.xlu0.b32.cont [2/16] %v7752, 128
    %7867 = vxpose.xlu0.b32.cont [3/16] %v7753, 128
    %7868 = vxpose.xlu0.b32.cont [4/16] %v7754, 128
    %7869 = vxpose.xlu0.b32.cont [5/16] %v7755, 128
    %7870 = vxpose.xlu0.b32.cont [6/16] %v7756, 128
    %7871 = vxpose.xlu0.b32.cont [7/16] %v7757, 128
    %7872 = vxpose.xlu0.b32.cont [8/16] %v7758, 128
    %7873 = vxpose.xlu0.b32.cont [9/16] %v7759, 128
    %7874 = vxpose.xlu0.b32.cont [10/16] %v7760, 128
    %7875 = vxpose.xlu0.b32.cont [11/16] %v7761, 128
    %7876 = vxpose.xlu0.b32.cont [12/16] %v7762, 128
    %7877 = vxpose.xlu0.b32.cont [13/16] %v7763, 128
    %7878 = vxpose.xlu0.b32.cont [14/16] %v7764, 128
    %7879 = vxpose.xlu0.b32.cont [15/16] %v7765, 128
    %7880 = vxpose.xlu0.b32.end [16/16] %v7766, 128
    %v7881 = vpop.trf.xlu0
    %v7882 = vpop.trf.xlu0
    %v7883 = vpop.trf.xlu0
    %v7884 = vpop.trf.xlu0
    %v7885 = vpop.trf.xlu0
    %v7886 = vpop.trf.xlu0
    %v7887 = vpop.trf.xlu0
    %v7888 = vpop.trf.xlu0
    %v7889 = vpop.trf.xlu0
    %v7890 = vpop.trf.xlu0
    %v7891 = vpop.trf.xlu0
    %v7892 = vpop.trf.xlu0
    %v7893 = vpop.trf.xlu0
    %v7894 = vpop.trf.xlu0
    %v7895 = vpop.trf.xlu0
    %v7896 = vpop.trf.xlu0
    %7897 = vst [vmem:[#allocation4 + $0x10] sm:$0xff] %v7849
    %7898 = vst [vmem:[#allocation4 + $0x18] sm:$0xff] %v7881
    // Predicated region
    $region30: #{tpu_custom_call.1} parent=1 // pred_check
      _
    $region31: #{tpu_custom_call.1} parent=1 // pred_check_branch
      %7900 = sbr.rel (0) target = $region33
    $region32: #{tpu_custom_call.1} parent=1 // pred_region
      %s7902 = ssub.s32 512, 512
      %7903 = vsyncadd [#allocation5], %s7902
      %s7904 = sshll.u32 [#allocation4], 4
      %s7905 = int_to_ptr.vmem [resolvable:$true] %s7904
      %7910 = dma.vmem_to_hbm [thread:$0]  %s7905, 512, %s7, [#allocation5], 256, 256, 16
    $region33: #{tpu_custom_call.1} parent=1 // pred_fallthru
      _
    // Predicated region
    $region34: #{tpu_custom_call.1} parent=1 // pred_check
      _
    $region35: #{tpu_custom_call.1} parent=1 // pred_check_branch
      %7912 = sbr.rel (0) target = $region37
    $region36: #{tpu_custom_call.1} parent=1 // pred_region
      %7913 = dma.done [#allocation5], 512
    $region37: #{tpu_custom_call.1} parent=1 // pred_fallthru
      _
    %7914 = vsyncpa [#allocation5], 1

</llo_original>
